<compile_context>
chip_gen: v6e
topology: v6e:2x2x1
jax: 0.10.0
libtpu: 0.0.40
codegen_flags: <defaults>
</compile_context>

<pallas_src>
import jax
import jax.numpy as jnp
from jax.experimental import pallas as pl
from jax.experimental.pallas import tpu as pltpu

BN_EPS = 1e-5
ROW_TILE = 512                        # rows (B*H*W) per grid step; multiple of 8
VMEM_LIMIT = 48 * 1024 * 1024         # explicit scoped-VMEM limit, < v7x's 64 MiB physical


def _round_up(n, m):
    return ((n + m - 1) // m) * m


# ----------------------------- Pallas kernels ------------------------------

def _matmul_stats_kernel(p_ref, w_ref, s_ref, ss_ref):
    """Pass A: y = p @ w (bf16 in, f32 accum); accumulate per-channel sum / sumsq.

    p_ref:  (T, K) bf16 row tile of im2col patches
    w_ref:  (K, C) bf16 conv weight (same block every step)
    s_ref, ss_ref: (1, C) f32 resident accumulators (same block every step)
    """
    @pl.when(pl.program_id(0) == 0)
    def _():
        s_ref[...] = jnp.zeros_like(s_ref)
        ss_ref[...] = jnp.zeros_like(ss_ref)

    y = jnp.dot(p_ref[...], w_ref[...], preferred_element_type=jnp.float32)
    s_ref[...] += jnp.sum(y, axis=0, keepdims=True)
    ss_ref[...] += jnp.sum(y * y, axis=0, keepdims=True)


def _matmul_bn_relu_kernel(p_ref, w_ref, scale_ref, shift_ref, o_ref):
    """Pass B: y = p @ w; single fused folded-BN (y*scale + shift) + ReLU."""
    y = jnp.dot(p_ref[...], w_ref[...], preferred_element_type=jnp.float32)
    o_ref[...] = jnp.maximum(y * scale_ref[...] + shift_ref[...], 0.0)


def _fc_logsoftmax_kernel(x_ref, w_ref, b_ref, o_ref):
    """Linear + log_softmax over the last dim (F.log_softmax default dim=1 on 2-D)."""
    z = jnp.dot(x_ref[...], w_ref[...], preferred_element_type=jnp.float32) + b_ref[...]
    m = jnp.max(z, axis=-1, keepdims=True)
    lse = m + jnp.log(jnp.sum(jnp.exp(z - m), axis=-1, keepdims=True))
    o_ref[...] = z - lse


# ------------------------------ Pallas wrappers ----------------------------

def conv_bn_relu(patches, w2d, bias, gamma, beta):
    """im2col conv + train-mode BatchNorm(batch stats, biased var) + ReLU.

    patches: (n, K) float, K = 25*Cin, rows in (B, H, W) row-major order
    w2d:     (K, C) conv weight flattened in (ky, kx, cin) order
    bias, gamma, beta: (1, C)
    returns: (n, C) float32
    """
    n, K = patches.shape
    C = w2d.shape[1]

    tile = min(ROW_TILE, _round_up(n, 8))
    n_pad = _round_up(n, tile)
    grid = (n_pad // tile,)

    p = patches.astype(jnp.bfloat16)              # bf16: MXU-native, half the HBM bytes
    if n_pad != n:
        p = jnp.pad(p, ((0, n_pad - n), (0, 0)))  # zero rows: exact no-op for the stats
    w = w2d.astype(jnp.bfloat16)

    matmul_flops = 2 * n_pad * K * C
    io_bytes = n_pad * K * 2 + K * C * 2

    # ---- pass A: row-tiled matmul + per-channel sum / sumsq (sequential reduction)
    s, ss = pl.pallas_call(
        _matmul_stats_kernel,
        grid=grid,
        in_specs=[pl.BlockSpec((tile, K), lambda i: (i, 0)),
                  pl.BlockSpec((K, C), lambda i: (0, 0))],
        out_specs=[pl.BlockSpec((1, C), lambda i: (0, 0)),
                   pl.BlockSpec((1, C), lambda i: (0, 0))],
        out_shape=[jax.ShapeDtypeStruct((1, C), jnp.float32),
                   jax.ShapeDtypeStruct((1, C), jnp.float32)],
        compiler_params=pltpu.CompilerParams(
            dimension_semantics=("arbitrary",),
            vmem_limit_bytes=VMEM_LIMIT),
        cost_estimate=pl.CostEstimate(
            flops=matmul_flops + 3 * n_pad * C,
            transcendentals=0,
            bytes_accessed=io_bytes + 2 * C * 4),
    )(p, w)

    # ---- tiny (1, C) glue: fold BN into one scale/shift pair (one pass over y later).
    # Batch-stat BN of (p@w + bias) == ((p@w) - mean(p@w)) * gamma/std(p@w) + beta:
    # the conv bias shifts the batch mean by itself and cancels exactly, so `bias`
    # does not appear in the folded affine below.
    mean = s / n
    var = jnp.maximum(ss / n - mean * mean, 0.0)   # biased variance, as PyTorch BN uses
    scale = gamma * jax.lax.rsqrt(var + BN_EPS)
    shift = beta - mean * scale

    # ---- pass B: recompute the matmul per tile + fused scale/shift + ReLU.
    # "parallel" axis -> grid shards across both TensorCores on v7x; recomputation
    # avoids writing/reading the pre-BN (n, C) activation through HBM.
    out = pl.pallas_call(
        _matmul_bn_relu_kernel,
        grid=grid,
        in_specs=[pl.BlockSpec((tile, K), lambda i: (i, 0)),
                  pl.BlockSpec((K, C), lambda i: (0, 0)),
                  pl.BlockSpec((1, C), lambda i: (0, 0)),
                  pl.BlockSpec((1, C), lambda i: (0, 0))],
        out_specs=pl.BlockSpec((tile, C), lambda i: (i, 0)),
        out_shape=jax.ShapeDtypeStruct((n_pad, C), jnp.float32),
        compiler_params=pltpu.CompilerParams(
            dimension_semantics=("parallel",),
            vmem_limit_bytes=VMEM_LIMIT),
        cost_estimate=pl.CostEstimate(
            flops=matmul_flops + 3 * n_pad * C,
            transcendentals=0,
            bytes_accessed=io_bytes + 2 * C * 4 + n_pad * C * 4),
    )(p, w, scale, shift)

    return out[:n]


def fc_logsoftmax(x, w, b):
    """Linear(F -> O) + log_softmax, row-tiled over the batch."""
    B, F = x.shape
    O = w.shape[1]
    tile = min(256, _round_up(B, 8))
    b_pad = _round_up(B, tile)

    xp = x.astype(jnp.bfloat16)
    if b_pad != B:
        xp = jnp.pad(xp, ((0, b_pad - B), (0, 0)))   # padded rows sliced off below

    out = pl.pallas_call(
        _fc_logsoftmax_kernel,
        grid=(b_pad // tile,),
        in_specs=[pl.BlockSpec((tile, F), lambda i: (i, 0)),
                  pl.BlockSpec((F, O), lambda i: (0, 0)),
                  pl.BlockSpec((1, O), lambda i: (0, 0))],
        out_specs=pl.BlockSpec((tile, O), lambda i: (i, 0)),
        out_shape=jax.ShapeDtypeStruct((b_pad, O), jnp.float32),
        compiler_params=pltpu.CompilerParams(
            dimension_semantics=("parallel",),
            vmem_limit_bytes=VMEM_LIMIT),
        cost_estimate=pl.CostEstimate(
            flops=2 * b_pad * F * O + 6 * b_pad * O,
            transcendentals=b_pad * O,
            bytes_accessed=b_pad * F * 2 + F * O * 2 + O * 4 + b_pad * O * 4),
    )(xp, w.astype(jnp.bfloat16), b)
    return out[:B]


# --------------------------------- glue ------------------------------------

def _im2col_same5x5(x_nhwc):
    """x: (B,H,W,Cin) -> patches (B*H*W, 25*Cin), padding=2 ('same')."""
    B, H, W, Cin = x_nhwc.shape
    xp = jnp.pad(x_nhwc, ((0, 0), (2, 2), (2, 2), (0, 0)))
    taps = [xp[:, dy:dy + H, dx:dx + W, :] for dy in range(5) for dx in range(5)]
    p = jnp.stack(taps, axis=-2)                      # (B,H,W,25,Cin)
    return p.reshape(B * H * W, 25 * Cin)


def _maxpool2(x_nhwc):
    B, H, W, C = x_nhwc.shape
    return x_nhwc.reshape(B, H // 2, 2, W // 2, 2, C).max(axis=(2, 4))


def net_forward(x_nchw, params):
    B = x_nchw.shape[0]
    x = jnp.transpose(x_nchw, (0, 2, 3, 1)).astype(jnp.float32)    # NHWC (B,28,28,1)

    # ----- layer1: Conv2d(1,28,5,pad=2) + BN(28) + ReLU + MaxPool(2)
    p1 = _im2col_same5x5(x)                                        # (B*784, 25)
    h1 = conv_bn_relu(p1, params["w1"], params["b1"], params["g1"], params["be1"])
    h1 = _maxpool2(h1.reshape(B, 28, 28, 28))                      # (B,14,14,28)

    # ----- layer2: Conv2d(28,28,5,pad=2) + BN(28) + ReLU + MaxPool(2)
    p2 = _im2col_same5x5(h1)                                       # (B*196, 700)
    h2 = conv_bn_relu(p2, params["w2"], params["b2"], params["g2"], params["be2"])
    h2 = _maxpool2(h2.reshape(B, 14, 14, 28))                      # (B,7,7,28)

    # ----- flatten in PyTorch NCHW order: out.view(B, -1) on (B,28,7,7)
    flat = jnp.transpose(h2, (0, 3, 1, 2)).reshape(B, 7 * 7 * 28)  # (B,1372)

    # ----- fc + log_softmax
    return fc_logsoftmax(flat, params["wfc"], params["bfc"])       # (B,64)


# ------------------------------ params / main ------------------------------

def init_params(key):
    ks = jax.random.split(key, 6)
    C = 28
    # NOTE: conv weights are stored flattened as (KH*KW*Cin, Cout) matching the
    # im2col tap order; real PyTorch weights (Cout,Cin,5,5) must be permuted to
    # (KH,KW,Cin,Cout) before reshaping.
    params = {
        "w1": (jax.random.normal(ks[0], (5, 5, 1, C), jnp.float32) * 0.1
               ).reshape(25 * 1, C),
        "b1": jax.random.normal(ks[1], (1, C), jnp.float32) * 0.1,
        "g1": jnp.ones((1, C), jnp.float32),     # BatchNorm2d default affine init
        "be1": jnp.zeros((1, C), jnp.float32),
        "w2": (jax.random.normal(ks[2], (5, 5, C, C), jnp.float32) * 0.05
               ).reshape(25 * C, C),
        "b2": jax.random.normal(ks[3], (1, C), jnp.float32) * 0.1,
        "g2": jnp.ones((1, C), jnp.float32),
        "be2": jnp.zeros((1, C), jnp.float32),
        "wfc": jax.random.normal(ks[4], (7 * 7 * C, 64), jnp.float32) * 0.02,
        "bfc": jax.random.normal(ks[5], (1, 64), jnp.float32) * 0.02,
    }
    return params


if __name__ == "__main__":
    key = jax.random.PRNGKey(0)
    pkey, xkey = jax.random.split(key)
    params = init_params(pkey)

    # input spatial size fixed by the architecture (fc expects 7*7*28): 28x28, 1 channel
    x = jax.random.normal(xkey, (2, 1, 28, 28), jnp.float32)

    out = jax.jit(net_forward)(x, params)
    out = jax.block_until_ready(out)

    assert out.shape == (2, 64), out.shape
    assert bool(jnp.all(jnp.isfinite(out)))
    # log_softmax rows must exponentiate-sum to 1
    row_sums = jnp.sum(jnp.exp(out), axis=-1)
    assert bool(jnp.allclose(row_sums, 1.0, atol=1e-3)), row_sums

    print("KERNEL_OK")
</pallas_src>

<mosaic_0001>
module attributes {stable_mosaic.version = 11 : i64} {
  func.func @_matmul_stats_kernel(%arg0: i32, %arg1: memref<512x25xbf16, #tpu.memory_space<vmem>>, %arg2: memref<25x28xbf16, #tpu.memory_space<vmem>>, %arg3: memref<1x28xf32, #tpu.memory_space<vmem>>, %arg4: memref<1x28xf32, #tpu.memory_space<vmem>>) attributes {dimension_semantics = [#tpu.dimension_semantics<arbitrary>], iteration_bounds = array<i64: 4>, scalar_prefetch = 0 : i64, scratch_operands = 0 : i64, tpu.core_type = #tpu.core_type<tc>, window_params = [{transform_indices = @transform_0, window_bounds = array<i64: 512, 25>}, {pipeline_mode = #tpu.pipeline_mode<synchronous>, transform_indices = @transform_1, window_bounds = array<i64: 25, 28>}, {pipeline_mode = #tpu.pipeline_mode<synchronous>, transform_indices = @transform_2, window_bounds = array<i64: 1, 28>}, {pipeline_mode = #tpu.pipeline_mode<synchronous>, transform_indices = @transform_3, window_bounds = array<i64: 1, 28>}]} {
    %c0_i32 = arith.constant 0 : i32
    %0 = arith.cmpi eq, %arg0, %c0_i32 : i32
    %1 = arith.extui %0 : i1 to i32
    %c0_i32_0 = arith.constant 0 : i32
    %2 = arith.cmpi ne, %1, %c0_i32_0 : i32
    scf.if %2 {
      %cst_14 = arith.constant 0.000000e+00 : f32
      %17 = vector.broadcast %cst_14 : f32 to vector<1x28xf32>
      %c0_15 = arith.constant 0 : index
      %c0_16 = arith.constant 0 : index
      %18 = vector.load %arg3[%c0_15, %c0_16] : memref<1x28xf32, #tpu.memory_space<vmem>>, vector<1x28xf32>
      tpu.vector_store %arg3[%c0_15, %c0_16], %17 {strides = array<i32>} : memref<1x28xf32, #tpu.memory_space<vmem>>, vector<1x28xf32>,
      %cst_17 = arith.constant 0.000000e+00 : f32
      %19 = vector.broadcast %cst_17 : f32 to vector<1x28xf32>
      %c0_18 = arith.constant 0 : index
      %c0_19 = arith.constant 0 : index
      %20 = vector.load %arg4[%c0_18, %c0_19] : memref<1x28xf32, #tpu.memory_space<vmem>>, vector<1x28xf32>
      tpu.vector_store %arg4[%c0_18, %c0_19], %19 {strides = array<i32>} : memref<1x28xf32, #tpu.memory_space<vmem>>, vector<1x28xf32>,
    } else {
    }
    %c0 = arith.constant 0 : index
    %c0_1 = arith.constant 0 : index
    %3 = vector.load %arg1[%c0, %c0_1] : memref<512x25xbf16, #tpu.memory_space<vmem>>, vector<512x25xbf16>
    %c0_2 = arith.constant 0 : index
    %c0_3 = arith.constant 0 : index
    %4 = vector.load %arg2[%c0_2, %c0_3] : memref<25x28xbf16, #tpu.memory_space<vmem>>, vector<25x28xbf16>
    %cst = arith.constant dense<0.000000e+00> : vector<512x28xf32>
    %5 = tpu.matmul %3, %4, %cst {dimension_numbers = #tpu.dot_dimension_numbers<[1], [0], [0], [1], [0, 0, 1, 1], [], []>} : vector<512x25xbf16>, vector<25x28xbf16>, vector<512x28xf32> -> vector<512x28xf32>
    %c0_4 = arith.constant 0 : index
    %c0_5 = arith.constant 0 : index
    %6 = vector.load %arg3[%c0_4, %c0_5] : memref<1x28xf32, #tpu.memory_space<vmem>>, vector<1x28xf32>
    %cst_6 = arith.constant dense<0.000000e+00> : vector<28xf32>
    %7 = vector.multi_reduction <add>, %5, %cst_6 [0] : vector<512x28xf32> to vector<28xf32>
    %8 = vector.shape_cast %7 : vector<28xf32> to vector<1x28xf32>
    %9 = arith.addf %6, %8 : vector<1x28xf32>
    %c0_7 = arith.constant 0 : index
    %c0_8 = arith.constant 0 : index
    %10 = vector.load %arg3[%c0_7, %c0_8] : memref<1x28xf32, #tpu.memory_space<vmem>>, vector<1x28xf32>
    tpu.vector_store %arg3[%c0_7, %c0_8], %9 {strides = array<i32>} : memref<1x28xf32, #tpu.memory_space<vmem>>, vector<1x28xf32>,
    %c0_9 = arith.constant 0 : index
    %c0_10 = arith.constant 0 : index
    %11 = vector.load %arg4[%c0_9, %c0_10] : memref<1x28xf32, #tpu.memory_space<vmem>>, vector<1x28xf32>
    %12 = arith.mulf %5, %5 : vector<512x28xf32>
    %cst_11 = arith.constant dense<0.000000e+00> : vector<28xf32>
    %13 = vector.multi_reduction <add>, %12, %cst_11 [0] : vector<512x28xf32> to vector<28xf32>
    %14 = vector.shape_cast %13 : vector<28xf32> to vector<1x28xf32>
    %15 = arith.addf %11, %14 : vector<1x28xf32>
    %c0_12 = arith.constant 0 : index
    %c0_13 = arith.constant 0 : index
    %16 = vector.load %arg4[%c0_12, %c0_13] : memref<1x28xf32, #tpu.memory_space<vmem>>, vector<1x28xf32>
    tpu.vector_store %arg4[%c0_12, %c0_13], %15 {strides = array<i32>} : memref<1x28xf32, #tpu.memory_space<vmem>>, vector<1x28xf32>,
    return
  }
  func.func @transform_0(%arg0: i32) -> (i32, i32) {
    %c0_i32 = arith.constant 0 : i32
    %c0_i32_0 = arith.constant 0 : i32
    return %arg0, %c0_i32 : i32, i32
  }
  func.func @transform_1(%arg0: i32) -> (i32, i32) {
    %c0_i32 = arith.constant 0 : i32
    %c0_i32_0 = arith.constant 0 : i32
    %c0_i32_1 = arith.constant 0 : i32
    return %c0_i32, %c0_i32_0 : i32, i32
  }
  func.func @transform_2(%arg0: i32) -> (i32, i32) {
    %c0_i32 = arith.constant 0 : i32
    %c0_i32_0 = arith.constant 0 : i32
    %c0_i32_1 = arith.constant 0 : i32
    return %c0_i32, %c0_i32_0 : i32, i32
  }
  func.func @transform_3(%arg0: i32) -> (i32, i32) {
    %c0_i32 = arith.constant 0 : i32
    %c0_i32_0 = arith.constant 0 : i32
    %c0_i32_1 = arith.constant 0 : i32
    return %c0_i32, %c0_i32_0 : i32, i32
  }
}

module attributes {stable_mosaic.version = 11 : i64} {
  func.func @_matmul_bn_relu_kernel(%arg0: i32, %arg1: memref<512x25xbf16, #tpu.memory_space<vmem>>, %arg2: memref<25x28xbf16, #tpu.memory_space<vmem>>, %arg3: memref<1x28xf32, #tpu.memory_space<vmem>>, %arg4: memref<1x28xf32, #tpu.memory_space<vmem>>, %arg5: memref<512x28xf32, #tpu.memory_space<vmem>>) attributes {dimension_semantics = [#tpu.dimension_semantics<parallel>], iteration_bounds = array<i64: 4>, scalar_prefetch = 0 : i64, scratch_operands = 0 : i64, tpu.core_type = #tpu.core_type<tc>, window_params = [{transform_indices = @transform_0, window_bounds = array<i64: 512, 25>}, {pipeline_mode = #tpu.pipeline_mode<synchronous>, transform_indices = @transform_1, window_bounds = array<i64: 25, 28>}, {pipeline_mode = #tpu.pipeline_mode<synchronous>, transform_indices = @transform_2, window_bounds = array<i64: 1, 28>}, {pipeline_mode = #tpu.pipeline_mode<synchronous>, transform_indices = @transform_3, window_bounds = array<i64: 1, 28>}, {transform_indices = @transform_4, window_bounds = array<i64: 512, 28>}]} {
    %c0 = arith.constant 0 : index
    %c0_0 = arith.constant 0 : index
    %0 = vector.load %arg1[%c0, %c0_0] : memref<512x25xbf16, #tpu.memory_space<vmem>>, vector<512x25xbf16>
    %c0_1 = arith.constant 0 : index
    %c0_2 = arith.constant 0 : index
    %1 = vector.load %arg2[%c0_1, %c0_2] : memref<25x28xbf16, #tpu.memory_space<vmem>>, vector<25x28xbf16>
    %cst = arith.constant dense<0.000000e+00> : vector<512x28xf32>
    %2 = tpu.matmul %0, %1, %cst {dimension_numbers = #tpu.dot_dimension_numbers<[1], [0], [0], [1], [0, 0, 1, 1], [], []>} : vector<512x25xbf16>, vector<25x28xbf16>, vector<512x28xf32> -> vector<512x28xf32>
    %c0_3 = arith.constant 0 : index
    %c0_4 = arith.constant 0 : index
    %3 = vector.load %arg3[%c0_3, %c0_4] : memref<1x28xf32, #tpu.memory_space<vmem>>, vector<1x28xf32>
    %4 = vector.broadcast %3 : vector<1x28xf32> to vector<512x28xf32>
    %5 = arith.mulf %2, %4 : vector<512x28xf32>
    %c0_5 = arith.constant 0 : index
    %c0_6 = arith.constant 0 : index
    %6 = vector.load %arg4[%c0_5, %c0_6] : memref<1x28xf32, #tpu.memory_space<vmem>>, vector<1x28xf32>
    %7 = vector.broadcast %6 : vector<1x28xf32> to vector<512x28xf32>
    %8 = arith.addf %5, %7 : vector<512x28xf32>
    %cst_7 = arith.constant 0.000000e+00 : f32
    %9 = vector.broadcast %cst_7 : f32 to vector<512x28xf32>
    %10 = arith.maximumf %8, %9 : vector<512x28xf32>
    %c0_8 = arith.constant 0 : index
    %c0_9 = arith.constant 0 : index
    %11 = vector.load %arg5[%c0_8, %c0_9] : memref<512x28xf32, #tpu.memory_space<vmem>>, vector<512x28xf32>
    tpu.vector_store %arg5[%c0_8, %c0_9], %10 {strides = array<i32>} : memref<512x28xf32, #tpu.memory_space<vmem>>, vector<512x28xf32>,
    return
  }
  func.func @transform_0(%arg0: i32) -> (i32, i32) {
    %c0_i32 = arith.constant 0 : i32
    %c0_i32_0 = arith.constant 0 : i32
    return %arg0, %c0_i32 : i32, i32
  }
  func.func @transform_1(%arg0: i32) -> (i32, i32) {
    %c0_i32 = arith.constant 0 : i32
    %c0_i32_0 = arith.constant 0 : i32
    %c0_i32_1 = arith.constant 0 : i32
    return %c0_i32, %c0_i32_0 : i32, i32
  }
  func.func @transform_2(%arg0: i32) -> (i32, i32) {
    %c0_i32 = arith.constant 0 : i32
    %c0_i32_0 = arith.constant 0 : i32
    %c0_i32_1 = arith.constant 0 : i32
    return %c0_i32, %c0_i32_0 : i32, i32
  }
  func.func @transform_3(%arg0: i32) -> (i32, i32) {
    %c0_i32 = arith.constant 0 : i32
    %c0_i32_0 = arith.constant 0 : i32
    %c0_i32_1 = arith.constant 0 : i32
    return %c0_i32, %c0_i32_0 : i32, i32
  }
  func.func @transform_4(%arg0: i32) -> (i32, i32) {
    %c0_i32 = arith.constant 0 : i32
    %c0_i32_0 = arith.constant 0 : i32
    return %arg0, %c0_i32 : i32, i32
  }
}

module attributes {stable_mosaic.version = 11 : i64} {
  func.func @_matmul_stats_kernel(%arg0: i32, %arg1: memref<392x700xbf16, #tpu.memory_space<vmem>>, %arg2: memref<700x28xbf16, #tpu.memory_space<vmem>>, %arg3: memref<1x28xf32, #tpu.memory_space<vmem>>, %arg4: memref<1x28xf32, #tpu.memory_space<vmem>>) attributes {dimension_semantics = [#tpu.dimension_semantics<arbitrary>], iteration_bounds = array<i64: 1>, scalar_prefetch = 0 : i64, scratch_operands = 0 : i64, tpu.core_type = #tpu.core_type<tc>, window_params = [{transform_indices = @transform_0, window_bounds = array<i64: 392, 700>}, {pipeline_mode = #tpu.pipeline_mode<synchronous>, transform_indices = @transform_1, window_bounds = array<i64: 700, 28>}, {pipeline_mode = #tpu.pipeline_mode<synchronous>, transform_indices = @transform_2, window_bounds = array<i64: 1, 28>}, {pipeline_mode = #tpu.pipeline_mode<synchronous>, transform_indices = @transform_3, window_bounds = array<i64: 1, 28>}]} {
    %c0_i32 = arith.constant 0 : i32
    %0 = arith.cmpi eq, %arg0, %c0_i32 : i32
    %1 = arith.extui %0 : i1 to i32
    %c0_i32_0 = arith.constant 0 : i32
    %2 = arith.cmpi ne, %1, %c0_i32_0 : i32
    scf.if %2 {
      %cst_14 = arith.constant 0.000000e+00 : f32
      %17 = vector.broadcast %cst_14 : f32 to vector<1x28xf32>
      %c0_15 = arith.constant 0 : index
      %c0_16 = arith.constant 0 : index
      %18 = vector.load %arg3[%c0_15, %c0_16] : memref<1x28xf32, #tpu.memory_space<vmem>>, vector<1x28xf32>
      tpu.vector_store %arg3[%c0_15, %c0_16], %17 {strides = array<i32>} : memref<1x28xf32, #tpu.memory_space<vmem>>, vector<1x28xf32>,
      %cst_17 = arith.constant 0.000000e+00 : f32
      %19 = vector.broadcast %cst_17 : f32 to vector<1x28xf32>
      %c0_18 = arith.constant 0 : index
      %c0_19 = arith.constant 0 : index
      %20 = vector.load %arg4[%c0_18, %c0_19] : memref<1x28xf32, #tpu.memory_space<vmem>>, vector<1x28xf32>
      tpu.vector_store %arg4[%c0_18, %c0_19], %19 {strides = array<i32>} : memref<1x28xf32, #tpu.memory_space<vmem>>, vector<1x28xf32>,
    } else {
    }
    %c0 = arith.constant 0 : index
    %c0_1 = arith.constant 0 : index
    %3 = vector.load %arg1[%c0, %c0_1] : memref<392x700xbf16, #tpu.memory_space<vmem>>, vector<392x700xbf16>
    %c0_2 = arith.constant 0 : index
    %c0_3 = arith.constant 0 : index
    %4 = vector.load %arg2[%c0_2, %c0_3] : memref<700x28xbf16, #tpu.memory_space<vmem>>, vector<700x28xbf16>
    %cst = arith.constant dense<0.000000e+00> : vector<392x28xf32>
    %5 = tpu.matmul %3, %4, %cst {dimension_numbers = #tpu.dot_dimension_numbers<[1], [0], [0], [1], [0, 0, 1, 1], [], []>} : vector<392x700xbf16>, vector<700x28xbf16>, vector<392x28xf32> -> vector<392x28xf32>
    %c0_4 = arith.constant 0 : index
    %c0_5 = arith.constant 0 : index
    %6 = vector.load %arg3[%c0_4, %c0_5] : memref<1x28xf32, #tpu.memory_space<vmem>>, vector<1x28xf32>
    %cst_6 = arith.constant dense<0.000000e+00> : vector<28xf32>
    %7 = vector.multi_reduction <add>, %5, %cst_6 [0] : vector<392x28xf32> to vector<28xf32>
    %8 = vector.shape_cast %7 : vector<28xf32> to vector<1x28xf32>
    %9 = arith.addf %6, %8 : vector<1x28xf32>
    %c0_7 = arith.constant 0 : index
    %c0_8 = arith.constant 0 : index
    %10 = vector.load %arg3[%c0_7, %c0_8] : memref<1x28xf32, #tpu.memory_space<vmem>>, vector<1x28xf32>
    tpu.vector_store %arg3[%c0_7, %c0_8], %9 {strides = array<i32>} : memref<1x28xf32, #tpu.memory_space<vmem>>, vector<1x28xf32>,
    %c0_9 = arith.constant 0 : index
    %c0_10 = arith.constant 0 : index
    %11 = vector.load %arg4[%c0_9, %c0_10] : memref<1x28xf32, #tpu.memory_space<vmem>>, vector<1x28xf32>
    %12 = arith.mulf %5, %5 : vector<392x28xf32>
    %cst_11 = arith.constant dense<0.000000e+00> : vector<28xf32>
    %13 = vector.multi_reduction <add>, %12, %cst_11 [0] : vector<392x28xf32> to vector<28xf32>
    %14 = vector.shape_cast %13 : vector<28xf32> to vector<1x28xf32>
    %15 = arith.addf %11, %14 : vector<1x28xf32>
    %c0_12 = arith.constant 0 : index
    %c0_13 = arith.constant 0 : index
    %16 = vector.load %arg4[%c0_12, %c0_13] : memref<1x28xf32, #tpu.memory_space<vmem>>, vector<1x28xf32>
    tpu.vector_store %arg4[%c0_12, %c0_13], %15 {strides = array<i32>} : memref<1x28xf32, #tpu.memory_space<vmem>>, vector<1x28xf32>,
    return
  }
  func.func @transform_0(%arg0: i32) -> (i32, i32) {
    %c0_i32 = arith.constant 0 : i32
    %c0_i32_0 = arith.constant 0 : i32
    return %arg0, %c0_i32 : i32, i32
  }
  func.func @transform_1(%arg0: i32) -> (i32, i32) {
    %c0_i32 = arith.constant 0 : i32
    %c0_i32_0 = arith.constant 0 : i32
    %c0_i32_1 = arith.constant 0 : i32
    return %c0_i32, %c0_i32_0 : i32, i32
  }
  func.func @transform_2(%arg0: i32) -> (i32, i32) {
    %c0_i32 = arith.constant 0 : i32
    %c0_i32_0 = arith.constant 0 : i32
    %c0_i32_1 = arith.constant 0 : i32
    return %c0_i32, %c0_i32_0 : i32, i32
  }
  func.func @transform_3(%arg0: i32) -> (i32, i32) {
    %c0_i32 = arith.constant 0 : i32
    %c0_i32_0 = arith.constant 0 : i32
    %c0_i32_1 = arith.constant 0 : i32
    return %c0_i32, %c0_i32_0 : i32, i32
  }
}

module attributes {stable_mosaic.version = 11 : i64} {
  func.func @_matmul_bn_relu_kernel(%arg0: i32, %arg1: memref<392x700xbf16, #tpu.memory_space<vmem>>, %arg2: memref<700x28xbf16, #tpu.memory_space<vmem>>, %arg3: memref<1x28xf32, #tpu.memory_space<vmem>>, %arg4: memref<1x28xf32, #tpu.memory_space<vmem>>, %arg5: memref<392x28xf32, #tpu.memory_space<vmem>>) attributes {dimension_semantics = [#tpu.dimension_semantics<parallel>], iteration_bounds = array<i64: 1>, scalar_prefetch = 0 : i64, scratch_operands = 0 : i64, tpu.core_type = #tpu.core_type<tc>, window_params = [{transform_indices = @transform_0, window_bounds = array<i64: 392, 700>}, {pipeline_mode = #tpu.pipeline_mode<synchronous>, transform_indices = @transform_1, window_bounds = array<i64: 700, 28>}, {pipeline_mode = #tpu.pipeline_mode<synchronous>, transform_indices = @transform_2, window_bounds = array<i64: 1, 28>}, {pipeline_mode = #tpu.pipeline_mode<synchronous>, transform_indices = @transform_3, window_bounds = array<i64: 1, 28>}, {transform_indices = @transform_4, window_bounds = array<i64: 392, 28>}]} {
    %c0 = arith.constant 0 : index
    %c0_0 = arith.constant 0 : index
    %0 = vector.load %arg1[%c0, %c0_0] : memref<392x700xbf16, #tpu.memory_space<vmem>>, vector<392x700xbf16>
    %c0_1 = arith.constant 0 : index
    %c0_2 = arith.constant 0 : index
    %1 = vector.load %arg2[%c0_1, %c0_2] : memref<700x28xbf16, #tpu.memory_space<vmem>>, vector<700x28xbf16>
    %cst = arith.constant dense<0.000000e+00> : vector<392x28xf32>
    %2 = tpu.matmul %0, %1, %cst {dimension_numbers = #tpu.dot_dimension_numbers<[1], [0], [0], [1], [0, 0, 1, 1], [], []>} : vector<392x700xbf16>, vector<700x28xbf16>, vector<392x28xf32> -> vector<392x28xf32>
    %c0_3 = arith.constant 0 : index
    %c0_4 = arith.constant 0 : index
    %3 = vector.load %arg3[%c0_3, %c0_4] : memref<1x28xf32, #tpu.memory_space<vmem>>, vector<1x28xf32>
    %4 = vector.broadcast %3 : vector<1x28xf32> to vector<392x28xf32>
    %5 = arith.mulf %2, %4 : vector<392x28xf32>
    %c0_5 = arith.constant 0 : index
    %c0_6 = arith.constant 0 : index
    %6 = vector.load %arg4[%c0_5, %c0_6] : memref<1x28xf32, #tpu.memory_space<vmem>>, vector<1x28xf32>
    %7 = vector.broadcast %6 : vector<1x28xf32> to vector<392x28xf32>
    %8 = arith.addf %5, %7 : vector<392x28xf32>
    %cst_7 = arith.constant 0.000000e+00 : f32
    %9 = vector.broadcast %cst_7 : f32 to vector<392x28xf32>
    %10 = arith.maximumf %8, %9 : vector<392x28xf32>
    %c0_8 = arith.constant 0 : index
    %c0_9 = arith.constant 0 : index
    %11 = vector.load %arg5[%c0_8, %c0_9] : memref<392x28xf32, #tpu.memory_space<vmem>>, vector<392x28xf32>
    tpu.vector_store %arg5[%c0_8, %c0_9], %10 {strides = array<i32>} : memref<392x28xf32, #tpu.memory_space<vmem>>, vector<392x28xf32>,
    return
  }
  func.func @transform_0(%arg0: i32) -> (i32, i32) {
    %c0_i32 = arith.constant 0 : i32
    %c0_i32_0 = arith.constant 0 : i32
    return %arg0, %c0_i32 : i32, i32
  }
  func.func @transform_1(%arg0: i32) -> (i32, i32) {
    %c0_i32 = arith.constant 0 : i32
    %c0_i32_0 = arith.constant 0 : i32
    %c0_i32_1 = arith.constant 0 : i32
    return %c0_i32, %c0_i32_0 : i32, i32
  }
  func.func @transform_2(%arg0: i32) -> (i32, i32) {
    %c0_i32 = arith.constant 0 : i32
    %c0_i32_0 = arith.constant 0 : i32
    %c0_i32_1 = arith.constant 0 : i32
    return %c0_i32, %c0_i32_0 : i32, i32
  }
  func.func @transform_3(%arg0: i32) -> (i32, i32) {
    %c0_i32 = arith.constant 0 : i32
    %c0_i32_0 = arith.constant 0 : i32
    %c0_i32_1 = arith.constant 0 : i32
    return %c0_i32, %c0_i32_0 : i32, i32
  }
  func.func @transform_4(%arg0: i32) -> (i32, i32) {
    %c0_i32 = arith.constant 0 : i32
    %c0_i32_0 = arith.constant 0 : i32
    return %arg0, %c0_i32 : i32, i32
  }
}

module attributes {stable_mosaic.version = 11 : i64} {
  func.func @_fc_logsoftmax_kernel(%arg0: i32, %arg1: memref<8x1372xbf16, #tpu.memory_space<vmem>>, %arg2: memref<1372x64xbf16, #tpu.memory_space<vmem>>, %arg3: memref<1x64xf32, #tpu.memory_space<vmem>>, %arg4: memref<8x64xf32, #tpu.memory_space<vmem>>) attributes {dimension_semantics = [#tpu.dimension_semantics<parallel>], iteration_bounds = array<i64: 1>, scalar_prefetch = 0 : i64, scratch_operands = 0 : i64, tpu.core_type = #tpu.core_type<tc>, window_params = [{transform_indices = @transform_0, window_bounds = array<i64: 8, 1372>}, {pipeline_mode = #tpu.pipeline_mode<synchronous>, transform_indices = @transform_1, window_bounds = array<i64: 1372, 64>}, {pipeline_mode = #tpu.pipeline_mode<synchronous>, transform_indices = @transform_2, window_bounds = array<i64: 1, 64>}, {transform_indices = @transform_3, window_bounds = array<i64: 8, 64>}]} {
    %c0 = arith.constant 0 : index
    %c0_0 = arith.constant 0 : index
    %0 = vector.load %arg1[%c0, %c0_0] : memref<8x1372xbf16, #tpu.memory_space<vmem>>, vector<8x1372xbf16>
    %c0_1 = arith.constant 0 : index
    %c0_2 = arith.constant 0 : index
    %1 = vector.load %arg2[%c0_1, %c0_2] : memref<1372x64xbf16, #tpu.memory_space<vmem>>, vector<1372x64xbf16>
    %cst = arith.constant dense<0.000000e+00> : vector<8x64xf32>
    %2 = tpu.matmul %0, %1, %cst {dimension_numbers = #tpu.dot_dimension_numbers<[1], [0], [0], [1], [0, 0, 1, 1], [], []>} : vector<8x1372xbf16>, vector<1372x64xbf16>, vector<8x64xf32> -> vector<8x64xf32>
    %c0_3 = arith.constant 0 : index
    %c0_4 = arith.constant 0 : index
    %3 = vector.load %arg3[%c0_3, %c0_4] : memref<1x64xf32, #tpu.memory_space<vmem>>, vector<1x64xf32>
    %4 = vector.broadcast %3 : vector<1x64xf32> to vector<8x64xf32>
    %5 = arith.addf %2, %4 : vector<8x64xf32>
    %cst_5 = arith.constant dense<0xFF800000> : vector<8xf32>
    %6 = vector.multi_reduction <maximumf>, %5, %cst_5 [1] : vector<8x64xf32> to vector<8xf32>
    %7 = vector.shape_cast %6 : vector<8xf32> to vector<8x1xf32>
    %8 = vector.broadcast %7 : vector<8x1xf32> to vector<8x64xf32>
    %9 = arith.subf %5, %8 : vector<8x64xf32>
    %10 = math.exp %9 : vector<8x64xf32>
    %cst_6 = arith.constant dense<0.000000e+00> : vector<8xf32>
    %11 = vector.multi_reduction <add>, %10, %cst_6 [1] : vector<8x64xf32> to vector<8xf32>
    %12 = vector.shape_cast %11 : vector<8xf32> to vector<8x1xf32>
    %13 = math.log %12 : vector<8x1xf32>
    %14 = arith.addf %7, %13 : vector<8x1xf32>
    %15 = vector.broadcast %14 : vector<8x1xf32> to vector<8x64xf32>
    %16 = arith.subf %5, %15 : vector<8x64xf32>
    %c0_7 = arith.constant 0 : index
    %c0_8 = arith.constant 0 : index
    %17 = vector.load %arg4[%c0_7, %c0_8] : memref<8x64xf32, #tpu.memory_space<vmem>>, vector<8x64xf32>
    tpu.vector_store %arg4[%c0_7, %c0_8], %16 {strides = array<i32>} : memref<8x64xf32, #tpu.memory_space<vmem>>, vector<8x64xf32>,
    return
  }
  func.func @transform_0(%arg0: i32) -> (i32, i32) {
    %c0_i32 = arith.constant 0 : i32
    %c0_i32_0 = arith.constant 0 : i32
    return %arg0, %c0_i32 : i32, i32
  }
  func.func @transform_1(%arg0: i32) -> (i32, i32) {
    %c0_i32 = arith.constant 0 : i32
    %c0_i32_0 = arith.constant 0 : i32
    %c0_i32_1 = arith.constant 0 : i32
    return %c0_i32, %c0_i32_0 : i32, i32
  }
  func.func @transform_2(%arg0: i32) -> (i32, i32) {
    %c0_i32 = arith.constant 0 : i32
    %c0_i32_0 = arith.constant 0 : i32
    %c0_i32_1 = arith.constant 0 : i32
    return %c0_i32, %c0_i32_0 : i32, i32
  }
  func.func @transform_3(%arg0: i32) -> (i32, i32) {
    %c0_i32 = arith.constant 0 : i32
    %c0_i32_0 = arith.constant 0 : i32
    return %arg0, %c0_i32 : i32, i32
  }
}

</mosaic_0001>

<llo_original>
// kernel: net_forward.6
$region0: #{net_forward.6}
  #allocation0 [shape = 'u32[]', space=smem, size = 0x4, offset = 0x4, fixed_abs, tag = 'smem constant byte address 0x4 - core index']
  #allocation1 [shape = 'u32[144,128]{1,0:T(1,128)}', space=vmem, size = 0x12000, scoped, tag = 'internal scratch']
  %s0 = inlined_call_operand.vmem [shape: bf16[2048,25], index: 0, kind: input, shape index: {}]
  %s1 = inlined_call_operand.vmem [shape: bf16[25,28], index: 1, kind: input, shape index: {}]
  %s2 = inlined_call_operand.vmem [shape: f32[1,28], index: 2, kind: input, shape index: {}]
  %s3 = inlined_call_operand.vmem [shape: f32[1,28], index: 3, kind: input, shape index: {}]
  %s4 = inlined_call_operand.vmem [shape: f32[2048,28], index: 4, kind: output, shape index: {}]
  %s5 = sld [smem:[#allocation0]]
  $region49: #{net_forward.6} parent=0
    _
  %s7 = ssub.s32 1, %s5
  %s8 = scalar_select 0, %s7, %s5
  loop: start=0, step=1, limit=6
  $region2: #{net_forward.6} parent=0 // loop_pre_header
    _
  $region3: #{net_forward.6} parent=0 // loop_header
    %s10 = sphi 0, %s14
    %p11 = scmp.ge.s32.totalorder %s10, 6
    %s20 = sphi 0, %s22
    %s23 = sphi 0, %s20
    %s24 = sphi 0, %s23
    %s40 = sphi 0, %s24
    %s44 = sphi 0, %s44
    %s46 = sphi 0, %s44
    %s47 = sphi 0, %s46
    %s61 = sphi 0, %s47
    %s65 = sphi 0, %s65
    %s67 = sphi 0, %s65
    %s68 = sphi 0, %s67
    %s82 = sphi 0, %s68
    %s86 = sphi 0, %s86
    %s88 = sphi 0, %s86
    %s89 = sphi 0, %s88
    %s103 = sphi 0, %s89
    %s109 = sphi 0, %s111
    %s112 = sphi 0, %s109
    %s113 = sphi 0, %s112
    %s129 = sphi 0, %s113
  $region4: #{net_forward.6} parent=0 // loop_header_branch
    %13 = sbr.rel (%p11) target = $region8
  $region5: #{net_forward.6} parent=0 // loop_body
    %s15 = ssub.s32 %s10, 1
    %s16 = ssub.s32 %s10, 2
    %s17 = sadd.s32 %s10, 1
    %s18 = ssub.s32 %s10, %s17
    %p19 = scmp.eq.s32.totalorder %s18, 0
    %s21 = sadd.s32 %s20, 1
    %s22 = scalar_select %p19, %s20, %s21
    %p25 = pneg %p19
    %p26 = scmp.eq.s32.totalorder %s10, 3
    %p27 = por %p25, %p26
    %p28 = scmp.ne.s32.totalorder %s20, %s23
    %p29 = scmp.eq.s32.totalorder %s10, 0
    %p30 = por %p28, %p29
    %p31 = scmp.ne.s32.totalorder %s20, %s23
    %p32 = scmp.eq.s32.totalorder %s15, 3
    %p33 = por %p31, %p32
    %p34 = scmp.ne.s32.totalorder %s23, %s24
    %p35 = scmp.eq.s32.totalorder %s15, 0
    %p36 = por %p34, %p35
    %p37 = scmp.ne.s32.totalorder %s23, %s24
    %p38 = scmp.eq.s32.totalorder %s16, 3
    %p39 = por %p37, %p38
    %p41 = scmp.ne.s32.totalorder %s24, %s40
    %p42 = scmp.eq.s32.totalorder %s16, 0
    %p43 = por %p41, %p42
    %s45 = sadd.s32 %s44, 1
    %p48 = scmp.eq.s32.totalorder %s10, 3
    %p49 = scmp.ne.s32.totalorder %s44, %s46
    %p50 = scmp.eq.s32.totalorder %s10, 0
    %p51 = por %p49, %p50
    %p52 = scmp.ne.s32.totalorder %s44, %s46
    %p53 = scmp.eq.s32.totalorder %s15, 3
    %p54 = por %p52, %p53
    %p55 = scmp.ne.s32.totalorder %s46, %s47
    %p56 = scmp.eq.s32.totalorder %s15, 0
    %p57 = por %p55, %p56
    %p58 = scmp.ne.s32.totalorder %s46, %s47
    %p59 = scmp.eq.s32.totalorder %s16, 3
    %p60 = por %p58, %p59
    %p62 = scmp.ne.s32.totalorder %s47, %s61
    %p63 = scmp.eq.s32.totalorder %s16, 0
    %p64 = por %p62, %p63
    %s66 = sadd.s32 %s65, 1
    %p69 = scmp.eq.s32.totalorder %s10, 3
    %p70 = scmp.ne.s32.totalorder %s65, %s67
    %p71 = scmp.eq.s32.totalorder %s10, 0
    %p72 = por %p70, %p71
    %p73 = scmp.ne.s32.totalorder %s65, %s67
    %p74 = scmp.eq.s32.totalorder %s15, 3
    %p75 = por %p73, %p74
    %p76 = scmp.ne.s32.totalorder %s67, %s68
    %p77 = scmp.eq.s32.totalorder %s15, 0
    %p78 = por %p76, %p77
    %p79 = scmp.ne.s32.totalorder %s67, %s68
    %p80 = scmp.eq.s32.totalorder %s16, 3
    %p81 = por %p79, %p80
    %p83 = scmp.ne.s32.totalorder %s68, %s82
    %p84 = scmp.eq.s32.totalorder %s16, 0
    %p85 = por %p83, %p84
    %s87 = sadd.s32 %s86, 1
    %p90 = scmp.eq.s32.totalorder %s10, 3
    %p91 = scmp.ne.s32.totalorder %s86, %s88
    %p92 = scmp.eq.s32.totalorder %s10, 0
    %p93 = por %p91, %p92
    %p94 = scmp.ne.s32.totalorder %s86, %s88
    %p95 = scmp.eq.s32.totalorder %s15, 3
    %p96 = por %p94, %p95
    %p97 = scmp.ne.s32.totalorder %s88, %s89
    %p98 = scmp.eq.s32.totalorder %s15, 0
    %p99 = por %p97, %p98
    %p100 = scmp.ne.s32.totalorder %s88, %s89
    %p101 = scmp.eq.s32.totalorder %s16, 3
    %p102 = por %p100, %p101
    %p104 = scmp.ne.s32.totalorder %s89, %s103
    %p105 = scmp.eq.s32.totalorder %s16, 0
    %p106 = por %p104, %p105
    %s107 = ssub.s32 %s10, %s17
    %p108 = scmp.eq.s32.totalorder %s107, 0
    %s110 = sadd.s32 %s109, 1
    %s111 = scalar_select %p108, %s109, %s110
    %p114 = pneg %p108
    %p115 = scmp.eq.s32.totalorder %s10, 3
    %p116 = por %p114, %p115
    %p117 = scmp.ne.s32.totalorder %s109, %s112
    %p118 = scmp.eq.s32.totalorder %s10, 0
    %p119 = por %p117, %p118
    %p120 = scmp.ne.s32.totalorder %s109, %s112
    %p121 = scmp.eq.s32.totalorder %s15, 3
    %p122 = por %p120, %p121
    %p123 = scmp.ne.s32.totalorder %s112, %s113
    %p124 = scmp.eq.s32.totalorder %s15, 0
    %p125 = por %p123, %p124
    %p126 = scmp.ne.s32.totalorder %s112, %s113
    %p127 = scmp.eq.s32.totalorder %s16, 3
    %p128 = por %p126, %p127
    %p130 = scmp.ne.s32.totalorder %s113, %s129
    %p131 = scmp.eq.s32.totalorder %s16, 0
    %p132 = por %p130, %p131
    %p133 = scmp.le.s32.totalorder 1, %s10
    %p134 = scmp.lt.s32.totalorder %s10, 5
    %p135 = pnand %p133, %p134
    %p136 = pneg %p135
    // Predicated region
    $region9: #{net_forward.6} parent=5 // pred_check
      _
    $region10: #{net_forward.6} parent=5 // pred_check_branch
      %138 = sbr.rel (%p135) target = $region12
    $region11: #{net_forward.6} parent=5 // pred_region
      %s139 = ssub.s32 %s10, 1
      // Predicated region
      $region13: #{net_forward.6} parent=11 // pred_check
        %p140 = pneg %p57
      $region14: #{net_forward.6} parent=11 // pred_check_branch
        %142 = sbr.rel (%p140) target = $region16
      $region15: #{net_forward.6} parent=11 // pred_region
        _
      $region16: #{net_forward.6} parent=11 // pred_fallthru
        _
      // Predicated region
      $region17: #{net_forward.6} parent=11 // pred_check
        %p143 = pneg %p78
      $region18: #{net_forward.6} parent=11 // pred_check_branch
        %145 = sbr.rel (%p143) target = $region20
      $region19: #{net_forward.6} parent=11 // pred_region
        _
      $region20: #{net_forward.6} parent=11 // pred_fallthru
        _
      // Predicated region
      $region21: #{net_forward.6} parent=11 // pred_check
        %p146 = pneg %p99
      $region22: #{net_forward.6} parent=11 // pred_check_branch
        %148 = sbr.rel (%p146) target = $region24
      $region23: #{net_forward.6} parent=11 // pred_region
        _
      $region24: #{net_forward.6} parent=11 // pred_fallthru
        _
    $region12: #{net_forward.6} parent=5 // pred_fallthru
      _
    %p149 = scmp.lt.s32.totalorder %s10, 4
    // Predicated region
    $region25: #{net_forward.6} parent=5 // pred_check
      %p150 = pneg %p149
    $region26: #{net_forward.6} parent=5 // pred_check_branch
      %152 = sbr.rel (%p150) target = $region28
    $region27: #{net_forward.6} parent=5 // pred_region
      // Predicated region
      $region29: #{net_forward.6} parent=27 // pred_check
        %p153 = pneg %p30
      $region30: #{net_forward.6} parent=27 // pred_check_branch
        %155 = sbr.rel (%p153) target = $region32
      $region31: #{net_forward.6} parent=27 // pred_region
        %s156 = smul.u32 64, %s10
        %p157 = scmp.lt.s32.totalorder %s156, 255
        %s158 = scalar_select %p157, %s156, 255
        %s159 = smul.addr %s158, 4
        %s160 = scalar_lea.vmem %s0, %s159
        %s161 = smul.u32 64, %s10
      $region32: #{net_forward.6} parent=27 // pred_fallthru
        _
    $region28: #{net_forward.6} parent=5 // pred_fallthru
      _
    %p162 = scmp.le.s32.totalorder 1, %s10
    %p163 = scmp.lt.s32.totalorder %s10, 5
    %p164 = pnand %p162, %p163
    %p165 = pneg %p164
    // Predicated region
    $region33: #{net_forward.6} parent=5 // pred_check
      _
    $region34: #{net_forward.6} parent=5 // pred_check_branch
      %167 = sbr.rel (%p164) target = $region36
    $region35: #{net_forward.6} parent=5 // pred_region
      %s168 = ssub.s32 %s10, 1
      %s169 = smul.u32 64, %s15
      %p170 = scmp.lt.s32.totalorder %s169, 255
      %s171 = scalar_select %p170, %s169, 255
      %s172 = smul.addr %s171, 4
      %s173 = scalar_lea.vmem %s0, %s172
      %p174 = pneg %p36
      %p175 = pneg %p33
      %p176 = pneg %p57
      %p177 = pneg %p54
      %p178 = pneg %p78
      %p179 = pneg %p75
      %p180 = pneg %p99
      %p181 = pneg %p96
      %p182 = pneg %p125
      %p183 = pneg %p122
      %s184 = smul.u32 64, %s15
      %p185 = scmp.lt.s32.totalorder %s184, 255
      %s186 = scalar_select %p185, %s184, 255
      %s187 = smul.addr %s186, 8
      %s188 = scalar_lea.vmem %s4, %s187
      %s189 = smul.u32 64, %s15
      %p190 = scmp.lt.s32.totalorder %s189, 255
      %s191 = scalar_select %p190, %s189, 255
      %s192 = smul.addr %s191, 4
      %s193 = scalar_lea.vmem %s0, %s192
      %s194 = smul.u32 64, %s15
      %s195 = smul.u32 64, %s15
      %p196 = scmp.lt.s32.totalorder %s195, 255
      %s197 = scalar_select %p196, %s195, 255
      %s198 = smul.addr %s197, 8
      %s199 = scalar_lea.vmem %s4, %s198
      %s200 = smul.u32 64, %s15
      %v202 = vld [vmem:[%s193] sm:$0xf]
      %v203 = vld [vmem:[%s193 + $0x4] sm:$0xf]
      %v204 = vld [vmem:[%s193 + $0x8] sm:$0xf]
      %v205 = vld [vmem:[%s193 + $0xc] sm:$0xf]
      %v206 = vld [vmem:[%s193 + $0x10] sm:$0xf]
      %v207 = vld [vmem:[%s193 + $0x14] sm:$0xf]
      %v208 = vld [vmem:[%s193 + $0x18] sm:$0xf]
      %v209 = vld [vmem:[%s193 + $0x1c] sm:$0xf]
      %v210 = vld [vmem:[%s193 + $0x20] sm:$0xf]
      %v211 = vld [vmem:[%s193 + $0x24] sm:$0xf]
      %v212 = vld [vmem:[%s193 + $0x28] sm:$0xf]
      %v213 = vld [vmem:[%s193 + $0x2c] sm:$0xf]
      %v214 = vld [vmem:[%s193 + $0x30] sm:$0xf]
      %v215 = vld [vmem:[%s193 + $0x34] sm:$0xf]
      %v216 = vld [vmem:[%s193 + $0x38] sm:$0xf]
      %v217 = vld [vmem:[%s193 + $0x3c] sm:$0xf]
      %v218 = vld [vmem:[%s193 + $0x40] sm:$0xf]
      %v219 = vld [vmem:[%s193 + $0x44] sm:$0xf]
      %v220 = vld [vmem:[%s193 + $0x48] sm:$0xf]
      %v221 = vld [vmem:[%s193 + $0x4c] sm:$0xf]
      %v222 = vld [vmem:[%s193 + $0x50] sm:$0xf]
      %v223 = vld [vmem:[%s193 + $0x54] sm:$0xf]
      %v224 = vld [vmem:[%s193 + $0x58] sm:$0xf]
      %v225 = vld [vmem:[%s193 + $0x5c] sm:$0xf]
      %v226 = vld [vmem:[%s193 + $0x60] sm:$0xf]
      %v227 = vld [vmem:[%s193 + $0x64] sm:$0xf]
      %v228 = vld [vmem:[%s193 + $0x68] sm:$0xf]
      %v229 = vld [vmem:[%s193 + $0x6c] sm:$0xf]
      %v230 = vld [vmem:[%s193 + $0x70] sm:$0xf]
      %v231 = vld [vmem:[%s193 + $0x74] sm:$0xf]
      %v232 = vld [vmem:[%s193 + $0x78] sm:$0xf]
      %v233 = vld [vmem:[%s193 + $0x7c] sm:$0xf]
      %v234 = vld [vmem:[%s193 + $0x80] sm:$0xf]
      %v235 = vld [vmem:[%s193 + $0x84] sm:$0xf]
      %v236 = vld [vmem:[%s193 + $0x88] sm:$0xf]
      %v237 = vld [vmem:[%s193 + $0x8c] sm:$0xf]
      %v238 = vld [vmem:[%s193 + $0x90] sm:$0xf]
      %v239 = vld [vmem:[%s193 + $0x94] sm:$0xf]
      %v240 = vld [vmem:[%s193 + $0x98] sm:$0xf]
      %v241 = vld [vmem:[%s193 + $0x9c] sm:$0xf]
      %v242 = vld [vmem:[%s193 + $0xa0] sm:$0xf]
      %v243 = vld [vmem:[%s193 + $0xa4] sm:$0xf]
      %v244 = vld [vmem:[%s193 + $0xa8] sm:$0xf]
      %v245 = vld [vmem:[%s193 + $0xac] sm:$0xf]
      %v246 = vld [vmem:[%s193 + $0xb0] sm:$0xf]
      %v247 = vld [vmem:[%s193 + $0xb4] sm:$0xf]
      %v248 = vld [vmem:[%s193 + $0xb8] sm:$0xf]
      %v249 = vld [vmem:[%s193 + $0xbc] sm:$0xf]
      %v250 = vld [vmem:[%s193 + $0xc0] sm:$0xf]
      %v251 = vld [vmem:[%s193 + $0xc4] sm:$0xf]
      %v252 = vld [vmem:[%s193 + $0xc8] sm:$0xf]
      %v253 = vld [vmem:[%s193 + $0xcc] sm:$0xf]
      %v254 = vld [vmem:[%s193 + $0xd0] sm:$0xf]
      %v255 = vld [vmem:[%s193 + $0xd4] sm:$0xf]
      %v256 = vld [vmem:[%s193 + $0xd8] sm:$0xf]
      %v257 = vld [vmem:[%s193 + $0xdc] sm:$0xf]
      %v258 = vld [vmem:[%s193 + $0xe0] sm:$0xf]
      %v259 = vld [vmem:[%s193 + $0xe4] sm:$0xf]
      %v260 = vld [vmem:[%s193 + $0xe8] sm:$0xf]
      %v261 = vld [vmem:[%s193 + $0xec] sm:$0xf]
      %v262 = vld [vmem:[%s193 + $0xf0] sm:$0xf]
      %v263 = vld [vmem:[%s193 + $0xf4] sm:$0xf]
      %v264 = vld [vmem:[%s193 + $0xf8] sm:$0xf]
      %v265 = vld [vmem:[%s193 + $0xfc] sm:$0xf]
      %v266 = vld [vmem:[%s1] sm:$0xf]
      %v267 = vld [vmem:[%s1 + $0x4] sm:$0xf]
      %v268 = vld [vmem:[%s1 + $0x8] sm:$0xf]
      %v269 = vld [vmem:[%s1 + $0xc] sm:$0x1]
      %v334 = vunpack.c.l.b16 %v202
      %v335 = vunpack.c.l.b16 %v203
      %v336 = vunpack.c.l.b16 %v204
      %v337 = vunpack.c.l.b16 %v205
      %v338 = vunpack.c.l.b16 %v206
      %v339 = vunpack.c.l.b16 %v207
      %v340 = vunpack.c.l.b16 %v208
      %v341 = vunpack.c.l.b16 %v209
      %v342 = vunpack.c.l.b16 %v210
      %v343 = vunpack.c.l.b16 %v211
      %v344 = vunpack.c.l.b16 %v212
      %v345 = vunpack.c.l.b16 %v213
      %v346 = vunpack.c.l.b16 %v214
      %v347 = vunpack.c.l.b16 %v215
      %v348 = vunpack.c.l.b16 %v216
      %v349 = vunpack.c.l.b16 %v217
      %v350 = vunpack.c.l.b16 %v218
      %v351 = vunpack.c.l.b16 %v219
      %v352 = vunpack.c.l.b16 %v220
      %v353 = vunpack.c.l.b16 %v221
      %v354 = vunpack.c.l.b16 %v222
      %v355 = vunpack.c.l.b16 %v223
      %v356 = vunpack.c.l.b16 %v224
      %v357 = vunpack.c.l.b16 %v225
      %v358 = vunpack.c.l.b16 %v226
      %v359 = vunpack.c.l.b16 %v227
      %v360 = vunpack.c.l.b16 %v228
      %v361 = vunpack.c.l.b16 %v229
      %v362 = vunpack.c.l.b16 %v230
      %v363 = vunpack.c.l.b16 %v231
      %v364 = vunpack.c.l.b16 %v232
      %v365 = vunpack.c.l.b16 %v233
      %v366 = vunpack.c.l.b16 %v234
      %v367 = vunpack.c.l.b16 %v235
      %v368 = vunpack.c.l.b16 %v236
      %v369 = vunpack.c.l.b16 %v237
      %v370 = vunpack.c.l.b16 %v238
      %v371 = vunpack.c.l.b16 %v239
      %v372 = vunpack.c.l.b16 %v240
      %v373 = vunpack.c.l.b16 %v241
      %v374 = vunpack.c.l.b16 %v242
      %v375 = vunpack.c.l.b16 %v243
      %v376 = vunpack.c.l.b16 %v244
      %v377 = vunpack.c.l.b16 %v245
      %v378 = vunpack.c.l.b16 %v246
      %v379 = vunpack.c.l.b16 %v247
      %v380 = vunpack.c.l.b16 %v248
      %v381 = vunpack.c.l.b16 %v249
      %v382 = vunpack.c.l.b16 %v250
      %v383 = vunpack.c.l.b16 %v251
      %v384 = vunpack.c.l.b16 %v252
      %v385 = vunpack.c.l.b16 %v253
      %v386 = vunpack.c.l.b16 %v254
      %v387 = vunpack.c.l.b16 %v255
      %v388 = vunpack.c.l.b16 %v256
      %v389 = vunpack.c.l.b16 %v257
      %v390 = vunpack.c.l.b16 %v258
      %v391 = vunpack.c.l.b16 %v259
      %v392 = vunpack.c.l.b16 %v260
      %v393 = vunpack.c.l.b16 %v261
      %v394 = vunpack.c.l.b16 %v262
      %v395 = vunpack.c.l.b16 %v263
      %v396 = vunpack.c.l.b16 %v264
      %v397 = vunpack.c.l.b16 %v265
      %v398 = vpack.c.b16 %v335, %v334
      %v399 = vpack.c.b16 %v337, %v336
      %v400 = vpack.c.b16 %v339, %v338
      %v401 = vpack.c.b16 %v341, %v340
      %v402 = vpack.c.b16 %v343, %v342
      %v403 = vpack.c.b16 %v345, %v344
      %v404 = vpack.c.b16 %v347, %v346
      %v405 = vpack.c.b16 %v349, %v348
      %v406 = vpack.c.b16 %v351, %v350
      %v407 = vpack.c.b16 %v353, %v352
      %v408 = vpack.c.b16 %v355, %v354
      %v409 = vpack.c.b16 %v357, %v356
      %v410 = vpack.c.b16 %v359, %v358
      %v411 = vpack.c.b16 %v361, %v360
      %v412 = vpack.c.b16 %v363, %v362
      %v413 = vpack.c.b16 %v365, %v364
      %v414 = vpack.c.b16 %v367, %v366
      %v415 = vpack.c.b16 %v369, %v368
      %v416 = vpack.c.b16 %v371, %v370
      %v417 = vpack.c.b16 %v373, %v372
      %v418 = vpack.c.b16 %v375, %v374
      %v419 = vpack.c.b16 %v377, %v376
      %v420 = vpack.c.b16 %v379, %v378
      %v421 = vpack.c.b16 %v381, %v380
      %v422 = vpack.c.b16 %v383, %v382
      %v423 = vpack.c.b16 %v385, %v384
      %v424 = vpack.c.b16 %v387, %v386
      %v425 = vpack.c.b16 %v389, %v388
      %v426 = vpack.c.b16 %v391, %v390
      %v427 = vpack.c.b16 %v393, %v392
      %v428 = vpack.c.b16 %v395, %v394
      %v429 = vpack.c.b16 %v397, %v396
      %v434 = vunpack.c.l.b16 %v266
      %v435 = vunpack.c.l.b16 %v267
      %v436 = vunpack.c.l.b16 %v268
      %v437 = vunpack.c.l.b16 %v269
      %v438 = vpack.c.b16 %v435, %v434
      %v439 = vpack.c.b16 %v437, %v436
      %vm441 = vcmask 203776
      %v443 = vsel %vm441, %v398, 0
      %v446 = vsel %vm441, %v399, 0
      %v449 = vsel %vm441, %v400, 0
      %v452 = vsel %vm441, %v401, 0
      %v455 = vsel %vm441, %v402, 0
      %v458 = vsel %vm441, %v403, 0
      %v461 = vsel %vm441, %v404, 0
      %v464 = vsel %vm441, %v405, 0
      %v467 = vsel %vm441, %v406, 0
      %v470 = vsel %vm441, %v407, 0
      %v473 = vsel %vm441, %v408, 0
      %v476 = vsel %vm441, %v409, 0
      %v479 = vsel %vm441, %v410, 0
      %v482 = vsel %vm441, %v411, 0
      %v485 = vsel %vm441, %v412, 0
      %v488 = vsel %vm441, %v413, 0
      %v491 = vsel %vm441, %v414, 0
      %v494 = vsel %vm441, %v415, 0
      %v497 = vsel %vm441, %v416, 0
      %v500 = vsel %vm441, %v417, 0
      %v503 = vsel %vm441, %v418, 0
      %v506 = vsel %vm441, %v419, 0
      %v509 = vsel %vm441, %v420, 0
      %v512 = vsel %vm441, %v421, 0
      %v515 = vsel %vm441, %v422, 0
      %v518 = vsel %vm441, %v423, 0
      %v521 = vsel %vm441, %v424, 0
      %v524 = vsel %vm441, %v425, 0
      %v527 = vsel %vm441, %v426, 0
      %v530 = vsel %vm441, %v427, 0
      %v533 = vsel %vm441, %v428, 0
      %v536 = vsel %vm441, %v429, 0
      %vm538 = vcmask 1043456
      %vm539 = vcmask 1044480
      %v540 = vsel %vm538, 4294967295, 65535
      %v541 = vsel %vm539, %v540, 0
      %v543 = vand.u32 %v439, %v541
      %545 = vmatprep.subr.bf16.mxu0 0
      %546 = vmatpush1.bf16.msra.mxu0 0
      %547 = vmatprep.subr.bf16.mxu0 0
      %548 = vmatpush1.bf16.msra.mxu0 0
      %549 = vmatprep.subr.bf16.mxu0 0
      %550 = vmatpush1.bf16.msra.mxu0 0
      %551 = vmatprep.subr.bf16.mxu0 0
      %552 = vmatpush1.bf16.msra.mxu0 0
      %553 = vmatprep.subr.bf16.mxu0 0
      %554 = vmatpush1.bf16.msra.mxu0 0
      %555 = vmatprep.subr.bf16.mxu0 0
      %556 = vmatpush1.bf16.msra.mxu0 0
      %557 = vmatprep.subr.bf16.mxu0 0
      %558 = vmatpush1.bf16.msra.mxu0 %v543
      %559 = vmatprep.subr.bf16.mxu0 0
      %560 = vmatpush1.bf16.msra.mxu0 %v438
      %561 = vmatprep.subr.bf16.mxu0 0
      %562 = vmatpush2.bf16.msra.mxu0 0
      %563 = vmatprep.subr.bf16.mxu0 0
      %564 = vmatpush2.bf16.msra.mxu0 0
      %565 = vmatprep.subr.bf16.mxu0 0
      %566 = vmatpush2.bf16.msra.mxu0 0
      %567 = vmatprep.subr.bf16.mxu0 0
      %568 = vmatpush2.bf16.msra.mxu0 0
      %569 = vmatprep.subr.bf16.mxu0 0
      %570 = vmatpush2.bf16.msra.mxu0 0
      %571 = vmatprep.subr.bf16.mxu0 0
      %572 = vmatpush2.bf16.msra.mxu0 0
      %573 = vmatprep.subr.bf16.mxu0 0
      %574 = vmatpush2.bf16.msra.mxu0 0
      %575 = vmatprep.subr.bf16.mxu0 0
      %576 = vmatpush2.bf16.msra.mxu0 0
      %577 = vmatprep.mubr.bf16.mxu0 0
      %578 = vmatmul.mubr.bf16.gmra.mxu0 %v443
      %v579 = vpop.f32.mrf.mxu0
      %v580 = vadd.f32 0.0, %v579
      %v581 = vpop.f32.mrf.mxu0
      %v582 = vpop.f32.mrf.mxu0
      %v583 = vadd.f32 0.0, %v582
      %v584 = vpop.f32.mrf.mxu0
      %585 = vmatprep.mubr.bf16.mxu0 0
      %586 = vmatmul.mubr.bf16.gmra.mxu0 %v446
      %v587 = vpop.f32.mrf.mxu0
      %v588 = vadd.f32 0.0, %v587
      %v589 = vpop.f32.mrf.mxu0
      %v590 = vpop.f32.mrf.mxu0
      %v591 = vadd.f32 0.0, %v590
      %v592 = vpop.f32.mrf.mxu0
      %593 = vmatprep.mubr.bf16.mxu0 0
      %594 = vmatmul.mubr.bf16.gmra.mxu0 %v449
      %v595 = vpop.f32.mrf.mxu0
      %v596 = vadd.f32 0.0, %v595
      %v597 = vpop.f32.mrf.mxu0
      %v598 = vpop.f32.mrf.mxu0
      %v599 = vadd.f32 0.0, %v598
      %v600 = vpop.f32.mrf.mxu0
      %601 = vmatprep.mubr.bf16.mxu0 0
      %602 = vmatmul.mubr.bf16.gmra.mxu0 %v452
      %v603 = vpop.f32.mrf.mxu0
      %v604 = vadd.f32 0.0, %v603
      %v605 = vpop.f32.mrf.mxu0
      %v606 = vpop.f32.mrf.mxu0
      %v607 = vadd.f32 0.0, %v606
      %v608 = vpop.f32.mrf.mxu0
      %609 = vmatprep.mubr.bf16.mxu0 0
      %610 = vmatmul.mubr.bf16.gmra.mxu0 %v455
      %v611 = vpop.f32.mrf.mxu0
      %v612 = vadd.f32 0.0, %v611
      %v613 = vpop.f32.mrf.mxu0
      %v614 = vpop.f32.mrf.mxu0
      %v615 = vadd.f32 0.0, %v614
      %v616 = vpop.f32.mrf.mxu0
      %617 = vmatprep.mubr.bf16.mxu0 0
      %618 = vmatmul.mubr.bf16.gmra.mxu0 %v458
      %v619 = vpop.f32.mrf.mxu0
      %v620 = vadd.f32 0.0, %v619
      %v621 = vpop.f32.mrf.mxu0
      %v622 = vpop.f32.mrf.mxu0
      %v623 = vadd.f32 0.0, %v622
      %v624 = vpop.f32.mrf.mxu0
      %625 = vmatprep.mubr.bf16.mxu0 0
      %626 = vmatmul.mubr.bf16.gmra.mxu0 %v461
      %v627 = vpop.f32.mrf.mxu0
      %v628 = vadd.f32 0.0, %v627
      %v629 = vpop.f32.mrf.mxu0
      %v630 = vpop.f32.mrf.mxu0
      %v631 = vadd.f32 0.0, %v630
      %v632 = vpop.f32.mrf.mxu0
      %633 = vmatprep.mubr.bf16.mxu0 0
      %634 = vmatmul.mubr.bf16.gmra.mxu0 %v464
      %v635 = vpop.f32.mrf.mxu0
      %v636 = vadd.f32 0.0, %v635
      %v637 = vpop.f32.mrf.mxu0
      %v638 = vpop.f32.mrf.mxu0
      %v639 = vadd.f32 0.0, %v638
      %v640 = vpop.f32.mrf.mxu0
      %641 = vmatprep.mubr.bf16.mxu0 0
      %642 = vmatmul.mubr.bf16.gmra.mxu0 %v467
      %v643 = vpop.f32.mrf.mxu0
      %v644 = vadd.f32 0.0, %v643
      %v645 = vpop.f32.mrf.mxu0
      %v646 = vpop.f32.mrf.mxu0
      %v647 = vadd.f32 0.0, %v646
      %v648 = vpop.f32.mrf.mxu0
      %649 = vmatprep.mubr.bf16.mxu0 0
      %650 = vmatmul.mubr.bf16.gmra.mxu0 %v470
      %v651 = vpop.f32.mrf.mxu0
      %v652 = vadd.f32 0.0, %v651
      %v653 = vpop.f32.mrf.mxu0
      %v654 = vpop.f32.mrf.mxu0
      %v655 = vadd.f32 0.0, %v654
      %v656 = vpop.f32.mrf.mxu0
      %657 = vmatprep.mubr.bf16.mxu0 0
      %658 = vmatmul.mubr.bf16.gmra.mxu0 %v473
      %v659 = vpop.f32.mrf.mxu0
      %v660 = vadd.f32 0.0, %v659
      %v661 = vpop.f32.mrf.mxu0
      %v662 = vpop.f32.mrf.mxu0
      %v663 = vadd.f32 0.0, %v662
      %v664 = vpop.f32.mrf.mxu0
      %665 = vmatprep.mubr.bf16.mxu0 0
      %666 = vmatmul.mubr.bf16.gmra.mxu0 %v476
      %v667 = vpop.f32.mrf.mxu0
      %v668 = vadd.f32 0.0, %v667
      %v669 = vpop.f32.mrf.mxu0
      %v670 = vpop.f32.mrf.mxu0
      %v671 = vadd.f32 0.0, %v670
      %v672 = vpop.f32.mrf.mxu0
      %673 = vmatprep.mubr.bf16.mxu0 0
      %674 = vmatmul.mubr.bf16.gmra.mxu0 %v479
      %v675 = vpop.f32.mrf.mxu0
      %v676 = vadd.f32 0.0, %v675
      %v677 = vpop.f32.mrf.mxu0
      %v678 = vpop.f32.mrf.mxu0
      %v679 = vadd.f32 0.0, %v678
      %v680 = vpop.f32.mrf.mxu0
      %681 = vmatprep.mubr.bf16.mxu0 0
      %682 = vmatmul.mubr.bf16.gmra.mxu0 %v482
      %v683 = vpop.f32.mrf.mxu0
      %v684 = vadd.f32 0.0, %v683
      %v685 = vpop.f32.mrf.mxu0
      %v686 = vpop.f32.mrf.mxu0
      %v687 = vadd.f32 0.0, %v686
      %v688 = vpop.f32.mrf.mxu0
      %689 = vmatprep.mubr.bf16.mxu0 0
      %690 = vmatmul.mubr.bf16.gmra.mxu0 %v485
      %v691 = vpop.f32.mrf.mxu0
      %v692 = vadd.f32 0.0, %v691
      %v693 = vpop.f32.mrf.mxu0
      %v694 = vpop.f32.mrf.mxu0
      %v695 = vadd.f32 0.0, %v694
      %v696 = vpop.f32.mrf.mxu0
      %697 = vmatprep.mubr.bf16.mxu0 0
      %698 = vmatmul.mubr.bf16.gmra.mxu0 %v488
      %v699 = vpop.f32.mrf.mxu0
      %v700 = vadd.f32 0.0, %v699
      %v701 = vpop.f32.mrf.mxu0
      %v702 = vpop.f32.mrf.mxu0
      %v703 = vadd.f32 0.0, %v702
      %v704 = vpop.f32.mrf.mxu0
      %705 = vmatprep.mubr.bf16.mxu0 0
      %706 = vmatmul.mubr.bf16.gmra.mxu0 %v491
      %v707 = vpop.f32.mrf.mxu0
      %v708 = vadd.f32 0.0, %v707
      %v709 = vpop.f32.mrf.mxu0
      %v710 = vpop.f32.mrf.mxu0
      %v711 = vadd.f32 0.0, %v710
      %v712 = vpop.f32.mrf.mxu0
      %713 = vmatprep.mubr.bf16.mxu0 0
      %714 = vmatmul.mubr.bf16.gmra.mxu0 %v494
      %v715 = vpop.f32.mrf.mxu0
      %v716 = vadd.f32 0.0, %v715
      %v717 = vpop.f32.mrf.mxu0
      %v718 = vpop.f32.mrf.mxu0
      %v719 = vadd.f32 0.0, %v718
      %v720 = vpop.f32.mrf.mxu0
      %721 = vmatprep.mubr.bf16.mxu0 0
      %722 = vmatmul.mubr.bf16.gmra.mxu0 %v497
      %v723 = vpop.f32.mrf.mxu0
      %v724 = vadd.f32 0.0, %v723
      %v725 = vpop.f32.mrf.mxu0
      %v726 = vpop.f32.mrf.mxu0
      %v727 = vadd.f32 0.0, %v726
      %v728 = vpop.f32.mrf.mxu0
      %729 = vmatprep.mubr.bf16.mxu0 0
      %730 = vmatmul.mubr.bf16.gmra.mxu0 %v500
      %v731 = vpop.f32.mrf.mxu0
      %v732 = vadd.f32 0.0, %v731
      %v733 = vpop.f32.mrf.mxu0
      %v734 = vpop.f32.mrf.mxu0
      %v735 = vadd.f32 0.0, %v734
      %v736 = vpop.f32.mrf.mxu0
      %737 = vmatprep.mubr.bf16.mxu0 0
      %738 = vmatmul.mubr.bf16.gmra.mxu0 %v503
      %v739 = vpop.f32.mrf.mxu0
      %v740 = vadd.f32 0.0, %v739
      %v741 = vpop.f32.mrf.mxu0
      %v742 = vpop.f32.mrf.mxu0
      %v743 = vadd.f32 0.0, %v742
      %v744 = vpop.f32.mrf.mxu0
      %745 = vmatprep.mubr.bf16.mxu0 0
      %746 = vmatmul.mubr.bf16.gmra.mxu0 %v506
      %v747 = vpop.f32.mrf.mxu0
      %v748 = vadd.f32 0.0, %v747
      %v749 = vpop.f32.mrf.mxu0
      %v750 = vpop.f32.mrf.mxu0
      %v751 = vadd.f32 0.0, %v750
      %v752 = vpop.f32.mrf.mxu0
      %753 = vmatprep.mubr.bf16.mxu0 0
      %754 = vmatmul.mubr.bf16.gmra.mxu0 %v509
      %v755 = vpop.f32.mrf.mxu0
      %v756 = vadd.f32 0.0, %v755
      %v757 = vpop.f32.mrf.mxu0
      %v758 = vpop.f32.mrf.mxu0
      %v759 = vadd.f32 0.0, %v758
      %v760 = vpop.f32.mrf.mxu0
      %761 = vmatprep.mubr.bf16.mxu0 0
      %762 = vmatmul.mubr.bf16.gmra.mxu0 %v512
      %v763 = vpop.f32.mrf.mxu0
      %v764 = vadd.f32 0.0, %v763
      %v765 = vpop.f32.mrf.mxu0
      %v766 = vpop.f32.mrf.mxu0
      %v767 = vadd.f32 0.0, %v766
      %v768 = vpop.f32.mrf.mxu0
      %769 = vmatprep.mubr.bf16.mxu0 0
      %770 = vmatmul.mubr.bf16.gmra.mxu0 %v515
      %v771 = vpop.f32.mrf.mxu0
      %v772 = vadd.f32 0.0, %v771
      %v773 = vpop.f32.mrf.mxu0
      %v774 = vpop.f32.mrf.mxu0
      %v775 = vadd.f32 0.0, %v774
      %v776 = vpop.f32.mrf.mxu0
      %777 = vmatprep.mubr.bf16.mxu0 0
      %778 = vmatmul.mubr.bf16.gmra.mxu0 %v518
      %v779 = vpop.f32.mrf.mxu0
      %v780 = vadd.f32 0.0, %v779
      %v781 = vpop.f32.mrf.mxu0
      %v782 = vpop.f32.mrf.mxu0
      %v783 = vadd.f32 0.0, %v782
      %v784 = vpop.f32.mrf.mxu0
      %785 = vmatprep.mubr.bf16.mxu0 0
      %786 = vmatmul.mubr.bf16.gmra.mxu0 %v521
      %v787 = vpop.f32.mrf.mxu0
      %v788 = vadd.f32 0.0, %v787
      %v789 = vpop.f32.mrf.mxu0
      %v790 = vpop.f32.mrf.mxu0
      %v791 = vadd.f32 0.0, %v790
      %v792 = vpop.f32.mrf.mxu0
      %793 = vmatprep.mubr.bf16.mxu0 0
      %794 = vmatmul.mubr.bf16.gmra.mxu0 %v524
      %v795 = vpop.f32.mrf.mxu0
      %v796 = vadd.f32 0.0, %v795
      %v797 = vpop.f32.mrf.mxu0
      %v798 = vpop.f32.mrf.mxu0
      %v799 = vadd.f32 0.0, %v798
      %v800 = vpop.f32.mrf.mxu0
      %801 = vmatprep.mubr.bf16.mxu0 0
      %802 = vmatmul.mubr.bf16.gmra.mxu0 %v527
      %v803 = vpop.f32.mrf.mxu0
      %v804 = vadd.f32 0.0, %v803
      %v805 = vpop.f32.mrf.mxu0
      %v806 = vpop.f32.mrf.mxu0
      %v807 = vadd.f32 0.0, %v806
      %v808 = vpop.f32.mrf.mxu0
      %809 = vmatprep.mubr.bf16.mxu0 0
      %810 = vmatmul.mubr.bf16.gmra.mxu0 %v530
      %v811 = vpop.f32.mrf.mxu0
      %v812 = vadd.f32 0.0, %v811
      %v813 = vpop.f32.mrf.mxu0
      %v814 = vpop.f32.mrf.mxu0
      %v815 = vadd.f32 0.0, %v814
      %v816 = vpop.f32.mrf.mxu0
      %817 = vmatprep.mubr.bf16.mxu0 0
      %818 = vmatmul.mubr.bf16.gmra.mxu0 %v533
      %v819 = vpop.f32.mrf.mxu0
      %v820 = vadd.f32 0.0, %v819
      %v821 = vpop.f32.mrf.mxu0
      %v822 = vpop.f32.mrf.mxu0
      %v823 = vadd.f32 0.0, %v822
      %v824 = vpop.f32.mrf.mxu0
      %825 = vmatprep.mubr.bf16.mxu0 0
      %826 = vmatmul.mubr.bf16.gmra.mxu0 %v536
      %v827 = vpop.f32.mrf.mxu0
      %v828 = vadd.f32 0.0, %v827
      %v829 = vpop.f32.mrf.mxu0
      %v830 = vpop.f32.mrf.mxu0
      %v831 = vadd.f32 0.0, %v830
      %v832 = vpop.f32.mrf.mxu0
      %833 = vdwg.mxu0
      %v834 = vld [vmem:[%s2] sm:$0x1]
      %v836 = vlaneseq
      %v837 = vshrl.u32 %v836, 7
      %v838 = vsub.s32 0, %v837
      %v839 = vrot.slane %v834, %v838
      %v841 = vmul.f32 %v580, %v839
      %v842 = vmul.f32 %v583, %v839
      %v843 = vmul.f32 %v588, %v839
      %v844 = vmul.f32 %v591, %v839
      %v845 = vmul.f32 %v596, %v839
      %v846 = vmul.f32 %v599, %v839
      %v847 = vmul.f32 %v604, %v839
      %v848 = vmul.f32 %v607, %v839
      %v849 = vmul.f32 %v612, %v839
      %v850 = vmul.f32 %v615, %v839
      %v851 = vmul.f32 %v620, %v839
      %v852 = vmul.f32 %v623, %v839
      %v853 = vmul.f32 %v628, %v839
      %v854 = vmul.f32 %v631, %v839
      %v855 = vmul.f32 %v636, %v839
      %v856 = vmul.f32 %v639, %v839
      %v857 = vmul.f32 %v644, %v839
      %v858 = vmul.f32 %v647, %v839
      %v859 = vmul.f32 %v652, %v839
      %v860 = vmul.f32 %v655, %v839
      %v861 = vmul.f32 %v660, %v839
      %v862 = vmul.f32 %v663, %v839
      %v863 = vmul.f32 %v668, %v839
      %v864 = vmul.f32 %v671, %v839
      %v865 = vmul.f32 %v676, %v839
      %v866 = vmul.f32 %v679, %v839
      %v867 = vmul.f32 %v684, %v839
      %v868 = vmul.f32 %v687, %v839
      %v869 = vmul.f32 %v692, %v839
      %v870 = vmul.f32 %v695, %v839
      %v871 = vmul.f32 %v700, %v839
      %v872 = vmul.f32 %v703, %v839
      %v873 = vmul.f32 %v708, %v839
      %v874 = vmul.f32 %v711, %v839
      %v875 = vmul.f32 %v716, %v839
      %v876 = vmul.f32 %v719, %v839
      %v877 = vmul.f32 %v724, %v839
      %v878 = vmul.f32 %v727, %v839
      %v879 = vmul.f32 %v732, %v839
      %v880 = vmul.f32 %v735, %v839
      %v881 = vmul.f32 %v740, %v839
      %v882 = vmul.f32 %v743, %v839
      %v883 = vmul.f32 %v748, %v839
      %v884 = vmul.f32 %v751, %v839
      %v885 = vmul.f32 %v756, %v839
      %v886 = vmul.f32 %v759, %v839
      %v887 = vmul.f32 %v764, %v839
      %v888 = vmul.f32 %v767, %v839
      %v889 = vmul.f32 %v772, %v839
      %v890 = vmul.f32 %v775, %v839
      %v891 = vmul.f32 %v780, %v839
      %v892 = vmul.f32 %v783, %v839
      %v893 = vmul.f32 %v788, %v839
      %v894 = vmul.f32 %v791, %v839
      %v895 = vmul.f32 %v796, %v839
      %v896 = vmul.f32 %v799, %v839
      %v897 = vmul.f32 %v804, %v839
      %v898 = vmul.f32 %v807, %v839
      %v899 = vmul.f32 %v812, %v839
      %v900 = vmul.f32 %v815, %v839
      %v901 = vmul.f32 %v820, %v839
      %v902 = vmul.f32 %v823, %v839
      %v903 = vmul.f32 %v828, %v839
      %v904 = vmul.f32 %v831, %v839
      %v905 = vld [vmem:[%s3] sm:$0x1]
      %v907 = vlaneseq
      %v908 = vshrl.u32 %v907, 7
      %v909 = vsub.s32 0, %v908
      %v910 = vrot.slane %v905, %v909
      %v912 = vadd.f32 %v841, %v910
      %v913 = vadd.f32 %v842, %v910
      %v914 = vadd.f32 %v843, %v910
      %v915 = vadd.f32 %v844, %v910
      %v916 = vadd.f32 %v845, %v910
      %v917 = vadd.f32 %v846, %v910
      %v918 = vadd.f32 %v847, %v910
      %v919 = vadd.f32 %v848, %v910
      %v920 = vadd.f32 %v849, %v910
      %v921 = vadd.f32 %v850, %v910
      %v922 = vadd.f32 %v851, %v910
      %v923 = vadd.f32 %v852, %v910
      %v924 = vadd.f32 %v853, %v910
      %v925 = vadd.f32 %v854, %v910
      %v926 = vadd.f32 %v855, %v910
      %v927 = vadd.f32 %v856, %v910
      %v928 = vadd.f32 %v857, %v910
      %v929 = vadd.f32 %v858, %v910
      %v930 = vadd.f32 %v859, %v910
      %v931 = vadd.f32 %v860, %v910
      %v932 = vadd.f32 %v861, %v910
      %v933 = vadd.f32 %v862, %v910
      %v934 = vadd.f32 %v863, %v910
      %v935 = vadd.f32 %v864, %v910
      %v936 = vadd.f32 %v865, %v910
      %v937 = vadd.f32 %v866, %v910
      %v938 = vadd.f32 %v867, %v910
      %v939 = vadd.f32 %v868, %v910
      %v940 = vadd.f32 %v869, %v910
      %v941 = vadd.f32 %v870, %v910
      %v942 = vadd.f32 %v871, %v910
      %v943 = vadd.f32 %v872, %v910
      %v944 = vadd.f32 %v873, %v910
      %v945 = vadd.f32 %v874, %v910
      %v946 = vadd.f32 %v875, %v910
      %v947 = vadd.f32 %v876, %v910
      %v948 = vadd.f32 %v877, %v910
      %v949 = vadd.f32 %v878, %v910
      %v950 = vadd.f32 %v879, %v910
      %v951 = vadd.f32 %v880, %v910
      %v952 = vadd.f32 %v881, %v910
      %v953 = vadd.f32 %v882, %v910
      %v954 = vadd.f32 %v883, %v910
      %v955 = vadd.f32 %v884, %v910
      %v956 = vadd.f32 %v885, %v910
      %v957 = vadd.f32 %v886, %v910
      %v958 = vadd.f32 %v887, %v910
      %v959 = vadd.f32 %v888, %v910
      %v960 = vadd.f32 %v889, %v910
      %v961 = vadd.f32 %v890, %v910
      %v962 = vadd.f32 %v891, %v910
      %v963 = vadd.f32 %v892, %v910
      %v964 = vadd.f32 %v893, %v910
      %v965 = vadd.f32 %v894, %v910
      %v966 = vadd.f32 %v895, %v910
      %v967 = vadd.f32 %v896, %v910
      %v968 = vadd.f32 %v897, %v910
      %v969 = vadd.f32 %v898, %v910
      %v970 = vadd.f32 %v899, %v910
      %v971 = vadd.f32 %v900, %v910
      %v972 = vadd.f32 %v901, %v910
      %v973 = vadd.f32 %v902, %v910
      %v974 = vadd.f32 %v903, %v910
      %v975 = vadd.f32 %v904, %v910
      %v976 = vmax.f32 %v912, 0.0
      %v977 = vmax.f32 %v913, 0.0
      %v978 = vmax.f32 %v914, 0.0
      %v979 = vmax.f32 %v915, 0.0
      %v980 = vmax.f32 %v916, 0.0
      %v981 = vmax.f32 %v917, 0.0
      %v982 = vmax.f32 %v918, 0.0
      %v983 = vmax.f32 %v919, 0.0
      %v984 = vmax.f32 %v920, 0.0
      %v985 = vmax.f32 %v921, 0.0
      %v986 = vmax.f32 %v922, 0.0
      %v987 = vmax.f32 %v923, 0.0
      %v988 = vmax.f32 %v924, 0.0
      %v989 = vmax.f32 %v925, 0.0
      %v990 = vmax.f32 %v926, 0.0
      %v991 = vmax.f32 %v927, 0.0
      %v992 = vmax.f32 %v928, 0.0
      %v993 = vmax.f32 %v929, 0.0
      %v994 = vmax.f32 %v930, 0.0
      %v995 = vmax.f32 %v931, 0.0
      %v996 = vmax.f32 %v932, 0.0
      %v997 = vmax.f32 %v933, 0.0
      %v998 = vmax.f32 %v934, 0.0
      %v999 = vmax.f32 %v935, 0.0
      %v1000 = vmax.f32 %v936, 0.0
      %v1001 = vmax.f32 %v937, 0.0
      %v1002 = vmax.f32 %v938, 0.0
      %v1003 = vmax.f32 %v939, 0.0
      %v1004 = vmax.f32 %v940, 0.0
      %v1005 = vmax.f32 %v941, 0.0
      %v1006 = vmax.f32 %v942, 0.0
      %v1007 = vmax.f32 %v943, 0.0
      %v1008 = vmax.f32 %v944, 0.0
      %v1009 = vmax.f32 %v945, 0.0
      %v1010 = vmax.f32 %v946, 0.0
      %v1011 = vmax.f32 %v947, 0.0
      %v1012 = vmax.f32 %v948, 0.0
      %v1013 = vmax.f32 %v949, 0.0
      %v1014 = vmax.f32 %v950, 0.0
      %v1015 = vmax.f32 %v951, 0.0
      %v1016 = vmax.f32 %v952, 0.0
      %v1017 = vmax.f32 %v953, 0.0
      %v1018 = vmax.f32 %v954, 0.0
      %v1019 = vmax.f32 %v955, 0.0
      %v1020 = vmax.f32 %v956, 0.0
      %v1021 = vmax.f32 %v957, 0.0
      %v1022 = vmax.f32 %v958, 0.0
      %v1023 = vmax.f32 %v959, 0.0
      %v1024 = vmax.f32 %v960, 0.0
      %v1025 = vmax.f32 %v961, 0.0
      %v1026 = vmax.f32 %v962, 0.0
      %v1027 = vmax.f32 %v963, 0.0
      %v1028 = vmax.f32 %v964, 0.0
      %v1029 = vmax.f32 %v965, 0.0
      %v1030 = vmax.f32 %v966, 0.0
      %v1031 = vmax.f32 %v967, 0.0
      %v1032 = vmax.f32 %v968, 0.0
      %v1033 = vmax.f32 %v969, 0.0
      %v1034 = vmax.f32 %v970, 0.0
      %v1035 = vmax.f32 %v971, 0.0
      %v1036 = vmax.f32 %v972, 0.0
      %v1037 = vmax.f32 %v973, 0.0
      %v1038 = vmax.f32 %v974, 0.0
      %v1039 = vmax.f32 %v975, 0.0
      %vm1040 = vcmask 228352
      %1041 = vst.msk [vmem:[%s199] sm:$0xff] %vm1040, %v976
      %1042 = vst.msk [vmem:[%s199 + $0x8] sm:$0xff] %vm1040, %v977
      %1043 = vst.msk [vmem:[%s199 + $0x10] sm:$0xff] %vm1040, %v978
      %1044 = vst.msk [vmem:[%s199 + $0x18] sm:$0xff] %vm1040, %v979
      %1045 = vst.msk [vmem:[%s199 + $0x20] sm:$0xff] %vm1040, %v980
      %1046 = vst.msk [vmem:[%s199 + $0x28] sm:$0xff] %vm1040, %v981
      %1047 = vst.msk [vmem:[%s199 + $0x30] sm:$0xff] %vm1040, %v982
      %1048 = vst.msk [vmem:[%s199 + $0x38] sm:$0xff] %vm1040, %v983
      %1049 = vst.msk [vmem:[%s199 + $0x40] sm:$0xff] %vm1040, %v984
      %1050 = vst.msk [vmem:[%s199 + $0x48] sm:$0xff] %vm1040, %v985
      %1051 = vst.msk [vmem:[%s199 + $0x50] sm:$0xff] %vm1040, %v986
      %1052 = vst.msk [vmem:[%s199 + $0x58] sm:$0xff] %vm1040, %v987
      %1053 = vst.msk [vmem:[%s199 + $0x60] sm:$0xff] %vm1040, %v988
      %1054 = vst.msk [vmem:[%s199 + $0x68] sm:$0xff] %vm1040, %v989
      %1055 = vst.msk [vmem:[%s199 + $0x70] sm:$0xff] %vm1040, %v990
      %1056 = vst.msk [vmem:[%s199 + $0x78] sm:$0xff] %vm1040, %v991
      %1057 = vst.msk [vmem:[%s199 + $0x80] sm:$0xff] %vm1040, %v992
      %1058 = vst.msk [vmem:[%s199 + $0x88] sm:$0xff] %vm1040, %v993
      %1059 = vst.msk [vmem:[%s199 + $0x90] sm:$0xff] %vm1040, %v994
      %1060 = vst.msk [vmem:[%s199 + $0x98] sm:$0xff] %vm1040, %v995
      %1061 = vst.msk [vmem:[%s199 + $0xa0] sm:$0xff] %vm1040, %v996
      %1062 = vst.msk [vmem:[%s199 + $0xa8] sm:$0xff] %vm1040, %v997
      %1063 = vst.msk [vmem:[%s199 + $0xb0] sm:$0xff] %vm1040, %v998
      %1064 = vst.msk [vmem:[%s199 + $0xb8] sm:$0xff] %vm1040, %v999
      %1065 = vst.msk [vmem:[%s199 + $0xc0] sm:$0xff] %vm1040, %v1000
      %1066 = vst.msk [vmem:[%s199 + $0xc8] sm:$0xff] %vm1040, %v1001
      %1067 = vst.msk [vmem:[%s199 + $0xd0] sm:$0xff] %vm1040, %v1002
      %1068 = vst.msk [vmem:[%s199 + $0xd8] sm:$0xff] %vm1040, %v1003
      %1069 = vst.msk [vmem:[%s199 + $0xe0] sm:$0xff] %vm1040, %v1004
      %1070 = vst.msk [vmem:[%s199 + $0xe8] sm:$0xff] %vm1040, %v1005
      %1071 = vst.msk [vmem:[%s199 + $0xf0] sm:$0xff] %vm1040, %v1006
      %1072 = vst.msk [vmem:[%s199 + $0xf8] sm:$0xff] %vm1040, %v1007
      %1073 = vst.msk [vmem:[%s199 + $0x100] sm:$0xff] %vm1040, %v1008
      %1074 = vst.msk [vmem:[%s199 + $0x108] sm:$0xff] %vm1040, %v1009
      %1075 = vst.msk [vmem:[%s199 + $0x110] sm:$0xff] %vm1040, %v1010
      %1076 = vst.msk [vmem:[%s199 + $0x118] sm:$0xff] %vm1040, %v1011
      %1077 = vst.msk [vmem:[%s199 + $0x120] sm:$0xff] %vm1040, %v1012
      %1078 = vst.msk [vmem:[%s199 + $0x128] sm:$0xff] %vm1040, %v1013
      %1079 = vst.msk [vmem:[%s199 + $0x130] sm:$0xff] %vm1040, %v1014
      %1080 = vst.msk [vmem:[%s199 + $0x138] sm:$0xff] %vm1040, %v1015
      %1081 = vst.msk [vmem:[%s199 + $0x140] sm:$0xff] %vm1040, %v1016
      %1082 = vst.msk [vmem:[%s199 + $0x148] sm:$0xff] %vm1040, %v1017
      %1083 = vst.msk [vmem:[%s199 + $0x150] sm:$0xff] %vm1040, %v1018
      %1084 = vst.msk [vmem:[%s199 + $0x158] sm:$0xff] %vm1040, %v1019
      %1085 = vst.msk [vmem:[%s199 + $0x160] sm:$0xff] %vm1040, %v1020
      %1086 = vst.msk [vmem:[%s199 + $0x168] sm:$0xff] %vm1040, %v1021
      %1087 = vst.msk [vmem:[%s199 + $0x170] sm:$0xff] %vm1040, %v1022
      %1088 = vst.msk [vmem:[%s199 + $0x178] sm:$0xff] %vm1040, %v1023
      %1089 = vst.msk [vmem:[%s199 + $0x180] sm:$0xff] %vm1040, %v1024
      %1090 = vst.msk [vmem:[%s199 + $0x188] sm:$0xff] %vm1040, %v1025
      %1091 = vst.msk [vmem:[%s199 + $0x190] sm:$0xff] %vm1040, %v1026
      %1092 = vst.msk [vmem:[%s199 + $0x198] sm:$0xff] %vm1040, %v1027
      %1093 = vst.msk [vmem:[%s199 + $0x1a0] sm:$0xff] %vm1040, %v1028
      %1094 = vst.msk [vmem:[%s199 + $0x1a8] sm:$0xff] %vm1040, %v1029
      %1095 = vst.msk [vmem:[%s199 + $0x1b0] sm:$0xff] %vm1040, %v1030
      %1096 = vst.msk [vmem:[%s199 + $0x1b8] sm:$0xff] %vm1040, %v1031
      %1097 = vst.msk [vmem:[%s199 + $0x1c0] sm:$0xff] %vm1040, %v1032
      %1098 = vst.msk [vmem:[%s199 + $0x1c8] sm:$0xff] %vm1040, %v1033
      %1099 = vst.msk [vmem:[%s199 + $0x1d0] sm:$0xff] %vm1040, %v1034
      %1100 = vst.msk [vmem:[%s199 + $0x1d8] sm:$0xff] %vm1040, %v1035
      %1101 = vst.msk [vmem:[%s199 + $0x1e0] sm:$0xff] %vm1040, %v1036
      %1102 = vst.msk [vmem:[%s199 + $0x1e8] sm:$0xff] %vm1040, %v1037
      %1103 = vst.msk [vmem:[%s199 + $0x1f0] sm:$0xff] %vm1040, %v1038
      %1104 = vst.msk [vmem:[%s199 + $0x1f8] sm:$0xff] %vm1040, %v1039
      %s1105 = smul.u32 64, %s15
      %p1106 = scmp.lt.s32.totalorder %s1105, 255
      %s1107 = scalar_select %p1106, %s1105, 255
      %s1108 = smul.addr %s1107, 8
      %s1109 = scalar_lea.vmem %s4, %s1108
      // Predicated region
      $region37: #{net_forward.6} parent=35 // pred_check
        %p1110 = pneg %p122
      $region38: #{net_forward.6} parent=35 // pred_check_branch
        %1112 = sbr.rel (%p1110) target = $region40
      $region39: #{net_forward.6} parent=35 // pred_region
        %s1113 = smul.u32 64, %s15
      $region40: #{net_forward.6} parent=35 // pred_fallthru
        _
    $region36: #{net_forward.6} parent=5 // pred_fallthru
      _
    %p1114 = scmp.le.s32.totalorder 2, %s10
    // Predicated region
    $region41: #{net_forward.6} parent=5 // pred_check
      %p1115 = pneg %p1114
    $region42: #{net_forward.6} parent=5 // pred_check_branch
      %1117 = sbr.rel (%p1115) target = $region44
    $region43: #{net_forward.6} parent=5 // pred_region
      %s1118 = ssub.s32 %s10, 2
      // Predicated region
      $region45: #{net_forward.6} parent=43 // pred_check
        %p1119 = pneg %p128
      $region46: #{net_forward.6} parent=43 // pred_check_branch
        %1121 = sbr.rel (%p1119) target = $region48
      $region47: #{net_forward.6} parent=43 // pred_region
        %s1122 = smul.u32 64, %s16
        %p1123 = scmp.lt.s32.totalorder %s1122, 255
        %s1124 = scalar_select %p1123, %s1122, 255
        %s1125 = smul.addr %s1124, 8
        %s1126 = scalar_lea.vmem %s4, %s1125
      $region48: #{net_forward.6} parent=43 // pred_fallthru
        _
    $region44: #{net_forward.6} parent=5 // pred_fallthru
      _
  $region6: #{net_forward.6} parent=0 // loop_footer
    %s14 = sadd.s32 1, %s10
  $region7: #{net_forward.6} parent=0 // loop_footer_branch
    %9 = sbr.rel target = $region3
  $region8: #{net_forward.6} parent=0 // loop_exit
    _

// kernel: net_forward.5
$region0: #{net_forward.5}
  #allocation0 [shape = 'u32[]', space=smem, size = 0x4, offset = 0x4, fixed_abs, tag = 'smem constant byte address 0x4 - core index']
  #allocation1 [shape = 'u32[144,128]{1,0:T(1,128)}', space=vmem, size = 0x12000, scoped, tag = 'internal scratch']
  %s0 = inlined_call_operand.vmem [shape: bf16[2048,25], index: 0, kind: input, shape index: {}]
  %s1 = inlined_call_operand.vmem [shape: bf16[25,28], index: 1, kind: input, shape index: {}]
  %s2 = inlined_call_operand.vmem [shape: f32[1,28], index: 2, kind: output, shape index: {0}]
  %s3 = inlined_call_operand.vmem [shape: f32[1,28], index: 3, kind: output, shape index: {1}]
  %4 = xla_tuple %s2, %s3
  %s5 = sld [smem:[#allocation0]]
  $region53: #{net_forward.5} parent=0
    _
  %s7 = ssub.s32 1, %s5
  %s8 = scalar_select 0, %s7, %s5
  loop: start=0, step=1, limit=6
  $region2: #{net_forward.5} parent=0 // loop_pre_header
    _
  $region3: #{net_forward.5} parent=0 // loop_header
    %s10 = sphi 0, %s14
    %p11 = scmp.ge.s32.totalorder %s10, 6
    %s20 = sphi 0, %s22
    %s23 = sphi 0, %s20
    %s24 = sphi 0, %s23
    %s40 = sphi 0, %s24
    %s44 = sphi 0, %s44
    %s46 = sphi 0, %s44
    %s47 = sphi 0, %s46
    %s61 = sphi 0, %s47
    %s65 = sphi 0, %s65
    %s67 = sphi 0, %s65
    %s68 = sphi 0, %s67
    %s82 = sphi 0, %s68
    %s86 = sphi 0, %s86
    %s88 = sphi 0, %s86
    %s89 = sphi 0, %s88
    %s103 = sphi 0, %s89
  $region4: #{net_forward.5} parent=0 // loop_header_branch
    %13 = sbr.rel (%p11) target = $region8
  $region5: #{net_forward.5} parent=0 // loop_body
    %s15 = ssub.s32 %s10, 1
    %s16 = ssub.s32 %s10, 2
    %s17 = sadd.s32 %s10, 1
    %s18 = ssub.s32 %s10, %s17
    %p19 = scmp.eq.s32.totalorder %s18, 0
    %s21 = sadd.s32 %s20, 1
    %s22 = scalar_select %p19, %s20, %s21
    %p25 = pneg %p19
    %p26 = scmp.eq.s32.totalorder %s10, 3
    %p27 = por %p25, %p26
    %p28 = scmp.ne.s32.totalorder %s20, %s23
    %p29 = scmp.eq.s32.totalorder %s10, 0
    %p30 = por %p28, %p29
    %p31 = scmp.ne.s32.totalorder %s20, %s23
    %p32 = scmp.eq.s32.totalorder %s15, 3
    %p33 = por %p31, %p32
    %p34 = scmp.ne.s32.totalorder %s23, %s24
    %p35 = scmp.eq.s32.totalorder %s15, 0
    %p36 = por %p34, %p35
    %p37 = scmp.ne.s32.totalorder %s23, %s24
    %p38 = scmp.eq.s32.totalorder %s16, 3
    %p39 = por %p37, %p38
    %p41 = scmp.ne.s32.totalorder %s24, %s40
    %p42 = scmp.eq.s32.totalorder %s16, 0
    %p43 = por %p41, %p42
    %s45 = sadd.s32 %s44, 1
    %p48 = scmp.eq.s32.totalorder %s10, 3
    %p49 = scmp.ne.s32.totalorder %s44, %s46
    %p50 = scmp.eq.s32.totalorder %s10, 0
    %p51 = por %p49, %p50
    %p52 = scmp.ne.s32.totalorder %s44, %s46
    %p53 = scmp.eq.s32.totalorder %s15, 3
    %p54 = por %p52, %p53
    %p55 = scmp.ne.s32.totalorder %s46, %s47
    %p56 = scmp.eq.s32.totalorder %s15, 0
    %p57 = por %p55, %p56
    %p58 = scmp.ne.s32.totalorder %s46, %s47
    %p59 = scmp.eq.s32.totalorder %s16, 3
    %p60 = por %p58, %p59
    %p62 = scmp.ne.s32.totalorder %s47, %s61
    %p63 = scmp.eq.s32.totalorder %s16, 0
    %p64 = por %p62, %p63
    %s66 = sadd.s32 %s65, 1
    %p69 = scmp.eq.s32.totalorder %s10, 3
    %p70 = scmp.ne.s32.totalorder %s65, %s67
    %p71 = scmp.eq.s32.totalorder %s10, 0
    %p72 = por %p70, %p71
    %p73 = scmp.ne.s32.totalorder %s65, %s67
    %p74 = scmp.eq.s32.totalorder %s15, 3
    %p75 = por %p73, %p74
    %p76 = scmp.ne.s32.totalorder %s67, %s68
    %p77 = scmp.eq.s32.totalorder %s15, 0
    %p78 = por %p76, %p77
    %p79 = scmp.ne.s32.totalorder %s67, %s68
    %p80 = scmp.eq.s32.totalorder %s16, 3
    %p81 = por %p79, %p80
    %p83 = scmp.ne.s32.totalorder %s68, %s82
    %p84 = scmp.eq.s32.totalorder %s16, 0
    %p85 = por %p83, %p84
    %s87 = sadd.s32 %s86, 1
    %p90 = scmp.eq.s32.totalorder %s10, 3
    %p91 = scmp.ne.s32.totalorder %s86, %s88
    %p92 = scmp.eq.s32.totalorder %s10, 0
    %p93 = por %p91, %p92
    %p94 = scmp.ne.s32.totalorder %s86, %s88
    %p95 = scmp.eq.s32.totalorder %s15, 3
    %p96 = por %p94, %p95
    %p97 = scmp.ne.s32.totalorder %s88, %s89
    %p98 = scmp.eq.s32.totalorder %s15, 0
    %p99 = por %p97, %p98
    %p100 = scmp.ne.s32.totalorder %s88, %s89
    %p101 = scmp.eq.s32.totalorder %s16, 3
    %p102 = por %p100, %p101
    %p104 = scmp.ne.s32.totalorder %s89, %s103
    %p105 = scmp.eq.s32.totalorder %s16, 0
    %p106 = por %p104, %p105
    %p107 = scmp.le.s32.totalorder 1, %s10
    %p108 = scmp.lt.s32.totalorder %s10, 5
    %p109 = pnand %p107, %p108
    %p110 = pneg %p109
    // Predicated region
    $region9: #{net_forward.5} parent=5 // pred_check
      _
    $region10: #{net_forward.5} parent=5 // pred_check_branch
      %112 = sbr.rel (%p109) target = $region12
    $region11: #{net_forward.5} parent=5 // pred_region
      %s113 = ssub.s32 %s10, 1
      // Predicated region
      $region13: #{net_forward.5} parent=11 // pred_check
        %p114 = pneg %p57
      $region14: #{net_forward.5} parent=11 // pred_check_branch
        %116 = sbr.rel (%p114) target = $region16
      $region15: #{net_forward.5} parent=11 // pred_region
        _
      $region16: #{net_forward.5} parent=11 // pred_fallthru
        _
    $region12: #{net_forward.5} parent=5 // pred_fallthru
      _
    %p117 = scmp.lt.s32.totalorder %s10, 4
    // Predicated region
    $region17: #{net_forward.5} parent=5 // pred_check
      %p118 = pneg %p117
    $region18: #{net_forward.5} parent=5 // pred_check_branch
      %120 = sbr.rel (%p118) target = $region20
    $region19: #{net_forward.5} parent=5 // pred_region
      // Predicated region
      $region21: #{net_forward.5} parent=19 // pred_check
        %p121 = pneg %p30
      $region22: #{net_forward.5} parent=19 // pred_check_branch
        %123 = sbr.rel (%p121) target = $region24
      $region23: #{net_forward.5} parent=19 // pred_region
        %s124 = smul.u32 64, %s10
        %p125 = scmp.lt.s32.totalorder %s124, 255
        %s126 = scalar_select %p125, %s124, 255
        %s127 = smul.addr %s126, 4
        %s128 = scalar_lea.vmem %s0, %s127
        %s129 = smul.u32 64, %s10
      $region24: #{net_forward.5} parent=19 // pred_fallthru
        _
    $region20: #{net_forward.5} parent=5 // pred_fallthru
      _
    %p130 = scmp.le.s32.totalorder 1, %s10
    %p131 = scmp.lt.s32.totalorder %s10, 5
    %p132 = pnand %p130, %p131
    %p133 = pneg %p132
    // Predicated region
    $region25: #{net_forward.5} parent=5 // pred_check
      _
    $region26: #{net_forward.5} parent=5 // pred_check_branch
      %135 = sbr.rel (%p132) target = $region28
    $region27: #{net_forward.5} parent=5 // pred_region
      %s136 = ssub.s32 %s10, 1
      %s137 = smul.u32 64, %s15
      %p138 = scmp.lt.s32.totalorder %s137, 255
      %s139 = scalar_select %p138, %s137, 255
      %s140 = smul.addr %s139, 4
      %s141 = scalar_lea.vmem %s0, %s140
      %p142 = pneg %p36
      %p143 = pneg %p33
      %p144 = pneg %p57
      %p145 = pneg %p54
      %p146 = pneg %p78
      %p147 = pneg %p75
      %p148 = pneg %p99
      %p149 = pneg %p96
      %s150 = smul.u32 64, %s15
      %p151 = scmp.lt.s32.totalorder %s150, 255
      %s152 = scalar_select %p151, %s150, 255
      %s153 = smul.addr %s152, 4
      %s154 = scalar_lea.vmem %s0, %s153
      %s155 = smul.u32 64, %s15
      %p157 = scmp.eq.s32.totalorder %s15, 0
      // Predicated region
      $region29: #{net_forward.5} parent=27 // pred_check
        %p158 = pneg %p157
      $region30: #{net_forward.5} parent=27 // pred_check_branch
        %160 = sbr.rel (%p158) target = $region32
      $region31: #{net_forward.5} parent=27 // pred_region
        %vm161 = vcmask 221184
        %162 = vst.msk [vmem:[%s2] sm:$0x1] %vm161, 0.0
        %163 = vst.msk [vmem:[%s3] sm:$0x1] %vm161, 0.0
      $region32: #{net_forward.5} parent=27 // pred_fallthru
        _
      %v164 = vld [vmem:[%s154] sm:$0xf]
      %v165 = vld [vmem:[%s154 + $0x4] sm:$0xf]
      %v166 = vld [vmem:[%s154 + $0x8] sm:$0xf]
      %v167 = vld [vmem:[%s154 + $0xc] sm:$0xf]
      %v168 = vld [vmem:[%s154 + $0x10] sm:$0xf]
      %v169 = vld [vmem:[%s154 + $0x14] sm:$0xf]
      %v170 = vld [vmem:[%s154 + $0x18] sm:$0xf]
      %v171 = vld [vmem:[%s154 + $0x1c] sm:$0xf]
      %v172 = vld [vmem:[%s154 + $0x20] sm:$0xf]
      %v173 = vld [vmem:[%s154 + $0x24] sm:$0xf]
      %v174 = vld [vmem:[%s154 + $0x28] sm:$0xf]
      %v175 = vld [vmem:[%s154 + $0x2c] sm:$0xf]
      %v176 = vld [vmem:[%s154 + $0x30] sm:$0xf]
      %v177 = vld [vmem:[%s154 + $0x34] sm:$0xf]
      %v178 = vld [vmem:[%s154 + $0x38] sm:$0xf]
      %v179 = vld [vmem:[%s154 + $0x3c] sm:$0xf]
      %v180 = vld [vmem:[%s154 + $0x40] sm:$0xf]
      %v181 = vld [vmem:[%s154 + $0x44] sm:$0xf]
      %v182 = vld [vmem:[%s154 + $0x48] sm:$0xf]
      %v183 = vld [vmem:[%s154 + $0x4c] sm:$0xf]
      %v184 = vld [vmem:[%s154 + $0x50] sm:$0xf]
      %v185 = vld [vmem:[%s154 + $0x54] sm:$0xf]
      %v186 = vld [vmem:[%s154 + $0x58] sm:$0xf]
      %v187 = vld [vmem:[%s154 + $0x5c] sm:$0xf]
      %v188 = vld [vmem:[%s154 + $0x60] sm:$0xf]
      %v189 = vld [vmem:[%s154 + $0x64] sm:$0xf]
      %v190 = vld [vmem:[%s154 + $0x68] sm:$0xf]
      %v191 = vld [vmem:[%s154 + $0x6c] sm:$0xf]
      %v192 = vld [vmem:[%s154 + $0x70] sm:$0xf]
      %v193 = vld [vmem:[%s154 + $0x74] sm:$0xf]
      %v194 = vld [vmem:[%s154 + $0x78] sm:$0xf]
      %v195 = vld [vmem:[%s154 + $0x7c] sm:$0xf]
      %v196 = vld [vmem:[%s154 + $0x80] sm:$0xf]
      %v197 = vld [vmem:[%s154 + $0x84] sm:$0xf]
      %v198 = vld [vmem:[%s154 + $0x88] sm:$0xf]
      %v199 = vld [vmem:[%s154 + $0x8c] sm:$0xf]
      %v200 = vld [vmem:[%s154 + $0x90] sm:$0xf]
      %v201 = vld [vmem:[%s154 + $0x94] sm:$0xf]
      %v202 = vld [vmem:[%s154 + $0x98] sm:$0xf]
      %v203 = vld [vmem:[%s154 + $0x9c] sm:$0xf]
      %v204 = vld [vmem:[%s154 + $0xa0] sm:$0xf]
      %v205 = vld [vmem:[%s154 + $0xa4] sm:$0xf]
      %v206 = vld [vmem:[%s154 + $0xa8] sm:$0xf]
      %v207 = vld [vmem:[%s154 + $0xac] sm:$0xf]
      %v208 = vld [vmem:[%s154 + $0xb0] sm:$0xf]
      %v209 = vld [vmem:[%s154 + $0xb4] sm:$0xf]
      %v210 = vld [vmem:[%s154 + $0xb8] sm:$0xf]
      %v211 = vld [vmem:[%s154 + $0xbc] sm:$0xf]
      %v212 = vld [vmem:[%s154 + $0xc0] sm:$0xf]
      %v213 = vld [vmem:[%s154 + $0xc4] sm:$0xf]
      %v214 = vld [vmem:[%s154 + $0xc8] sm:$0xf]
      %v215 = vld [vmem:[%s154 + $0xcc] sm:$0xf]
      %v216 = vld [vmem:[%s154 + $0xd0] sm:$0xf]
      %v217 = vld [vmem:[%s154 + $0xd4] sm:$0xf]
      %v218 = vld [vmem:[%s154 + $0xd8] sm:$0xf]
      %v219 = vld [vmem:[%s154 + $0xdc] sm:$0xf]
      %v220 = vld [vmem:[%s154 + $0xe0] sm:$0xf]
      %v221 = vld [vmem:[%s154 + $0xe4] sm:$0xf]
      %v222 = vld [vmem:[%s154 + $0xe8] sm:$0xf]
      %v223 = vld [vmem:[%s154 + $0xec] sm:$0xf]
      %v224 = vld [vmem:[%s154 + $0xf0] sm:$0xf]
      %v225 = vld [vmem:[%s154 + $0xf4] sm:$0xf]
      %v226 = vld [vmem:[%s154 + $0xf8] sm:$0xf]
      %v227 = vld [vmem:[%s154 + $0xfc] sm:$0xf]
      %v228 = vld [vmem:[%s1] sm:$0xf]
      %v229 = vld [vmem:[%s1 + $0x4] sm:$0xf]
      %v230 = vld [vmem:[%s1 + $0x8] sm:$0xf]
      %v231 = vld [vmem:[%s1 + $0xc] sm:$0x1]
      %v296 = vunpack.c.l.b16 %v164
      %v297 = vunpack.c.l.b16 %v165
      %v298 = vunpack.c.l.b16 %v166
      %v299 = vunpack.c.l.b16 %v167
      %v300 = vunpack.c.l.b16 %v168
      %v301 = vunpack.c.l.b16 %v169
      %v302 = vunpack.c.l.b16 %v170
      %v303 = vunpack.c.l.b16 %v171
      %v304 = vunpack.c.l.b16 %v172
      %v305 = vunpack.c.l.b16 %v173
      %v306 = vunpack.c.l.b16 %v174
      %v307 = vunpack.c.l.b16 %v175
      %v308 = vunpack.c.l.b16 %v176
      %v309 = vunpack.c.l.b16 %v177
      %v310 = vunpack.c.l.b16 %v178
      %v311 = vunpack.c.l.b16 %v179
      %v312 = vunpack.c.l.b16 %v180
      %v313 = vunpack.c.l.b16 %v181
      %v314 = vunpack.c.l.b16 %v182
      %v315 = vunpack.c.l.b16 %v183
      %v316 = vunpack.c.l.b16 %v184
      %v317 = vunpack.c.l.b16 %v185
      %v318 = vunpack.c.l.b16 %v186
      %v319 = vunpack.c.l.b16 %v187
      %v320 = vunpack.c.l.b16 %v188
      %v321 = vunpack.c.l.b16 %v189
      %v322 = vunpack.c.l.b16 %v190
      %v323 = vunpack.c.l.b16 %v191
      %v324 = vunpack.c.l.b16 %v192
      %v325 = vunpack.c.l.b16 %v193
      %v326 = vunpack.c.l.b16 %v194
      %v327 = vunpack.c.l.b16 %v195
      %v328 = vunpack.c.l.b16 %v196
      %v329 = vunpack.c.l.b16 %v197
      %v330 = vunpack.c.l.b16 %v198
      %v331 = vunpack.c.l.b16 %v199
      %v332 = vunpack.c.l.b16 %v200
      %v333 = vunpack.c.l.b16 %v201
      %v334 = vunpack.c.l.b16 %v202
      %v335 = vunpack.c.l.b16 %v203
      %v336 = vunpack.c.l.b16 %v204
      %v337 = vunpack.c.l.b16 %v205
      %v338 = vunpack.c.l.b16 %v206
      %v339 = vunpack.c.l.b16 %v207
      %v340 = vunpack.c.l.b16 %v208
      %v341 = vunpack.c.l.b16 %v209
      %v342 = vunpack.c.l.b16 %v210
      %v343 = vunpack.c.l.b16 %v211
      %v344 = vunpack.c.l.b16 %v212
      %v345 = vunpack.c.l.b16 %v213
      %v346 = vunpack.c.l.b16 %v214
      %v347 = vunpack.c.l.b16 %v215
      %v348 = vunpack.c.l.b16 %v216
      %v349 = vunpack.c.l.b16 %v217
      %v350 = vunpack.c.l.b16 %v218
      %v351 = vunpack.c.l.b16 %v219
      %v352 = vunpack.c.l.b16 %v220
      %v353 = vunpack.c.l.b16 %v221
      %v354 = vunpack.c.l.b16 %v222
      %v355 = vunpack.c.l.b16 %v223
      %v356 = vunpack.c.l.b16 %v224
      %v357 = vunpack.c.l.b16 %v225
      %v358 = vunpack.c.l.b16 %v226
      %v359 = vunpack.c.l.b16 %v227
      %v360 = vpack.c.b16 %v297, %v296
      %v361 = vpack.c.b16 %v299, %v298
      %v362 = vpack.c.b16 %v301, %v300
      %v363 = vpack.c.b16 %v303, %v302
      %v364 = vpack.c.b16 %v305, %v304
      %v365 = vpack.c.b16 %v307, %v306
      %v366 = vpack.c.b16 %v309, %v308
      %v367 = vpack.c.b16 %v311, %v310
      %v368 = vpack.c.b16 %v313, %v312
      %v369 = vpack.c.b16 %v315, %v314
      %v370 = vpack.c.b16 %v317, %v316
      %v371 = vpack.c.b16 %v319, %v318
      %v372 = vpack.c.b16 %v321, %v320
      %v373 = vpack.c.b16 %v323, %v322
      %v374 = vpack.c.b16 %v325, %v324
      %v375 = vpack.c.b16 %v327, %v326
      %v376 = vpack.c.b16 %v329, %v328
      %v377 = vpack.c.b16 %v331, %v330
      %v378 = vpack.c.b16 %v333, %v332
      %v379 = vpack.c.b16 %v335, %v334
      %v380 = vpack.c.b16 %v337, %v336
      %v381 = vpack.c.b16 %v339, %v338
      %v382 = vpack.c.b16 %v341, %v340
      %v383 = vpack.c.b16 %v343, %v342
      %v384 = vpack.c.b16 %v345, %v344
      %v385 = vpack.c.b16 %v347, %v346
      %v386 = vpack.c.b16 %v349, %v348
      %v387 = vpack.c.b16 %v351, %v350
      %v388 = vpack.c.b16 %v353, %v352
      %v389 = vpack.c.b16 %v355, %v354
      %v390 = vpack.c.b16 %v357, %v356
      %v391 = vpack.c.b16 %v359, %v358
      %v396 = vunpack.c.l.b16 %v228
      %v397 = vunpack.c.l.b16 %v229
      %v398 = vunpack.c.l.b16 %v230
      %v399 = vunpack.c.l.b16 %v231
      %v400 = vpack.c.b16 %v397, %v396
      %v401 = vpack.c.b16 %v399, %v398
      %vm403 = vcmask 203776
      %v405 = vsel %vm403, %v360, 0
      %v408 = vsel %vm403, %v361, 0
      %v411 = vsel %vm403, %v362, 0
      %v414 = vsel %vm403, %v363, 0
      %v417 = vsel %vm403, %v364, 0
      %v420 = vsel %vm403, %v365, 0
      %v423 = vsel %vm403, %v366, 0
      %v426 = vsel %vm403, %v367, 0
      %v429 = vsel %vm403, %v368, 0
      %v432 = vsel %vm403, %v369, 0
      %v435 = vsel %vm403, %v370, 0
      %v438 = vsel %vm403, %v371, 0
      %v441 = vsel %vm403, %v372, 0
      %v444 = vsel %vm403, %v373, 0
      %v447 = vsel %vm403, %v374, 0
      %v450 = vsel %vm403, %v375, 0
      %v453 = vsel %vm403, %v376, 0
      %v456 = vsel %vm403, %v377, 0
      %v459 = vsel %vm403, %v378, 0
      %v462 = vsel %vm403, %v379, 0
      %v465 = vsel %vm403, %v380, 0
      %v468 = vsel %vm403, %v381, 0
      %v471 = vsel %vm403, %v382, 0
      %v474 = vsel %vm403, %v383, 0
      %v477 = vsel %vm403, %v384, 0
      %v480 = vsel %vm403, %v385, 0
      %v483 = vsel %vm403, %v386, 0
      %v486 = vsel %vm403, %v387, 0
      %v489 = vsel %vm403, %v388, 0
      %v492 = vsel %vm403, %v389, 0
      %v495 = vsel %vm403, %v390, 0
      %v498 = vsel %vm403, %v391, 0
      %vm500 = vcmask 1043456
      %vm501 = vcmask 1044480
      %v502 = vsel %vm500, 4294967295, 65535
      %v503 = vsel %vm501, %v502, 0
      %v505 = vand.u32 %v401, %v503
      %507 = vmatprep.subr.bf16.mxu0 0
      %508 = vmatpush1.bf16.msra.mxu0 0
      %509 = vmatprep.subr.bf16.mxu0 0
      %510 = vmatpush1.bf16.msra.mxu0 0
      %511 = vmatprep.subr.bf16.mxu0 0
      %512 = vmatpush1.bf16.msra.mxu0 0
      %513 = vmatprep.subr.bf16.mxu0 0
      %514 = vmatpush1.bf16.msra.mxu0 0
      %515 = vmatprep.subr.bf16.mxu0 0
      %516 = vmatpush1.bf16.msra.mxu0 0
      %517 = vmatprep.subr.bf16.mxu0 0
      %518 = vmatpush1.bf16.msra.mxu0 0
      %519 = vmatprep.subr.bf16.mxu0 0
      %520 = vmatpush1.bf16.msra.mxu0 %v505
      %521 = vmatprep.subr.bf16.mxu0 0
      %522 = vmatpush1.bf16.msra.mxu0 %v400
      %523 = vmatprep.subr.bf16.mxu0 0
      %524 = vmatpush2.bf16.msra.mxu0 0
      %525 = vmatprep.subr.bf16.mxu0 0
      %526 = vmatpush2.bf16.msra.mxu0 0
      %527 = vmatprep.subr.bf16.mxu0 0
      %528 = vmatpush2.bf16.msra.mxu0 0
      %529 = vmatprep.subr.bf16.mxu0 0
      %530 = vmatpush2.bf16.msra.mxu0 0
      %531 = vmatprep.subr.bf16.mxu0 0
      %532 = vmatpush2.bf16.msra.mxu0 0
      %533 = vmatprep.subr.bf16.mxu0 0
      %534 = vmatpush2.bf16.msra.mxu0 0
      %535 = vmatprep.subr.bf16.mxu0 0
      %536 = vmatpush2.bf16.msra.mxu0 0
      %537 = vmatprep.subr.bf16.mxu0 0
      %538 = vmatpush2.bf16.msra.mxu0 0
      %539 = vmatprep.mubr.bf16.mxu0 0
      %540 = vmatmul.mubr.bf16.gmra.mxu0 %v405
      %v541 = vpop.f32.mrf.mxu0
      %v542 = vadd.f32 0.0, %v541
      %v543 = vpop.f32.mrf.mxu0
      %v544 = vpop.f32.mrf.mxu0
      %v545 = vadd.f32 0.0, %v544
      %v546 = vpop.f32.mrf.mxu0
      %547 = vmatprep.mubr.bf16.mxu0 0
      %548 = vmatmul.mubr.bf16.gmra.mxu0 %v408
      %v549 = vpop.f32.mrf.mxu0
      %v550 = vadd.f32 0.0, %v549
      %v551 = vpop.f32.mrf.mxu0
      %v552 = vpop.f32.mrf.mxu0
      %v553 = vadd.f32 0.0, %v552
      %v554 = vpop.f32.mrf.mxu0
      %555 = vmatprep.mubr.bf16.mxu0 0
      %556 = vmatmul.mubr.bf16.gmra.mxu0 %v411
      %v557 = vpop.f32.mrf.mxu0
      %v558 = vadd.f32 0.0, %v557
      %v559 = vpop.f32.mrf.mxu0
      %v560 = vpop.f32.mrf.mxu0
      %v561 = vadd.f32 0.0, %v560
      %v562 = vpop.f32.mrf.mxu0
      %563 = vmatprep.mubr.bf16.mxu0 0
      %564 = vmatmul.mubr.bf16.gmra.mxu0 %v414
      %v565 = vpop.f32.mrf.mxu0
      %v566 = vadd.f32 0.0, %v565
      %v567 = vpop.f32.mrf.mxu0
      %v568 = vpop.f32.mrf.mxu0
      %v569 = vadd.f32 0.0, %v568
      %v570 = vpop.f32.mrf.mxu0
      %571 = vmatprep.mubr.bf16.mxu0 0
      %572 = vmatmul.mubr.bf16.gmra.mxu0 %v417
      %v573 = vpop.f32.mrf.mxu0
      %v574 = vadd.f32 0.0, %v573
      %v575 = vpop.f32.mrf.mxu0
      %v576 = vpop.f32.mrf.mxu0
      %v577 = vadd.f32 0.0, %v576
      %v578 = vpop.f32.mrf.mxu0
      %579 = vmatprep.mubr.bf16.mxu0 0
      %580 = vmatmul.mubr.bf16.gmra.mxu0 %v420
      %v581 = vpop.f32.mrf.mxu0
      %v582 = vadd.f32 0.0, %v581
      %v583 = vpop.f32.mrf.mxu0
      %v584 = vpop.f32.mrf.mxu0
      %v585 = vadd.f32 0.0, %v584
      %v586 = vpop.f32.mrf.mxu0
      %587 = vmatprep.mubr.bf16.mxu0 0
      %588 = vmatmul.mubr.bf16.gmra.mxu0 %v423
      %v589 = vpop.f32.mrf.mxu0
      %v590 = vadd.f32 0.0, %v589
      %v591 = vpop.f32.mrf.mxu0
      %v592 = vpop.f32.mrf.mxu0
      %v593 = vadd.f32 0.0, %v592
      %v594 = vpop.f32.mrf.mxu0
      %595 = vmatprep.mubr.bf16.mxu0 0
      %596 = vmatmul.mubr.bf16.gmra.mxu0 %v426
      %v597 = vpop.f32.mrf.mxu0
      %v598 = vadd.f32 0.0, %v597
      %v599 = vpop.f32.mrf.mxu0
      %v600 = vpop.f32.mrf.mxu0
      %v601 = vadd.f32 0.0, %v600
      %v602 = vpop.f32.mrf.mxu0
      %603 = vmatprep.mubr.bf16.mxu0 0
      %604 = vmatmul.mubr.bf16.gmra.mxu0 %v429
      %v605 = vpop.f32.mrf.mxu0
      %v606 = vadd.f32 0.0, %v605
      %v607 = vpop.f32.mrf.mxu0
      %v608 = vpop.f32.mrf.mxu0
      %v609 = vadd.f32 0.0, %v608
      %v610 = vpop.f32.mrf.mxu0
      %611 = vmatprep.mubr.bf16.mxu0 0
      %612 = vmatmul.mubr.bf16.gmra.mxu0 %v432
      %v613 = vpop.f32.mrf.mxu0
      %v614 = vadd.f32 0.0, %v613
      %v615 = vpop.f32.mrf.mxu0
      %v616 = vpop.f32.mrf.mxu0
      %v617 = vadd.f32 0.0, %v616
      %v618 = vpop.f32.mrf.mxu0
      %619 = vmatprep.mubr.bf16.mxu0 0
      %620 = vmatmul.mubr.bf16.gmra.mxu0 %v435
      %v621 = vpop.f32.mrf.mxu0
      %v622 = vadd.f32 0.0, %v621
      %v623 = vpop.f32.mrf.mxu0
      %v624 = vpop.f32.mrf.mxu0
      %v625 = vadd.f32 0.0, %v624
      %v626 = vpop.f32.mrf.mxu0
      %627 = vmatprep.mubr.bf16.mxu0 0
      %628 = vmatmul.mubr.bf16.gmra.mxu0 %v438
      %v629 = vpop.f32.mrf.mxu0
      %v630 = vadd.f32 0.0, %v629
      %v631 = vpop.f32.mrf.mxu0
      %v632 = vpop.f32.mrf.mxu0
      %v633 = vadd.f32 0.0, %v632
      %v634 = vpop.f32.mrf.mxu0
      %635 = vmatprep.mubr.bf16.mxu0 0
      %636 = vmatmul.mubr.bf16.gmra.mxu0 %v441
      %v637 = vpop.f32.mrf.mxu0
      %v638 = vadd.f32 0.0, %v637
      %v639 = vpop.f32.mrf.mxu0
      %v640 = vpop.f32.mrf.mxu0
      %v641 = vadd.f32 0.0, %v640
      %v642 = vpop.f32.mrf.mxu0
      %643 = vmatprep.mubr.bf16.mxu0 0
      %644 = vmatmul.mubr.bf16.gmra.mxu0 %v444
      %v645 = vpop.f32.mrf.mxu0
      %v646 = vadd.f32 0.0, %v645
      %v647 = vpop.f32.mrf.mxu0
      %v648 = vpop.f32.mrf.mxu0
      %v649 = vadd.f32 0.0, %v648
      %v650 = vpop.f32.mrf.mxu0
      %651 = vmatprep.mubr.bf16.mxu0 0
      %652 = vmatmul.mubr.bf16.gmra.mxu0 %v447
      %v653 = vpop.f32.mrf.mxu0
      %v654 = vadd.f32 0.0, %v653
      %v655 = vpop.f32.mrf.mxu0
      %v656 = vpop.f32.mrf.mxu0
      %v657 = vadd.f32 0.0, %v656
      %v658 = vpop.f32.mrf.mxu0
      %659 = vmatprep.mubr.bf16.mxu0 0
      %660 = vmatmul.mubr.bf16.gmra.mxu0 %v450
      %v661 = vpop.f32.mrf.mxu0
      %v662 = vadd.f32 0.0, %v661
      %v663 = vpop.f32.mrf.mxu0
      %v664 = vpop.f32.mrf.mxu0
      %v665 = vadd.f32 0.0, %v664
      %v666 = vpop.f32.mrf.mxu0
      %667 = vmatprep.mubr.bf16.mxu0 0
      %668 = vmatmul.mubr.bf16.gmra.mxu0 %v453
      %v669 = vpop.f32.mrf.mxu0
      %v670 = vadd.f32 0.0, %v669
      %v671 = vpop.f32.mrf.mxu0
      %v672 = vpop.f32.mrf.mxu0
      %v673 = vadd.f32 0.0, %v672
      %v674 = vpop.f32.mrf.mxu0
      %675 = vmatprep.mubr.bf16.mxu0 0
      %676 = vmatmul.mubr.bf16.gmra.mxu0 %v456
      %v677 = vpop.f32.mrf.mxu0
      %v678 = vadd.f32 0.0, %v677
      %v679 = vpop.f32.mrf.mxu0
      %v680 = vpop.f32.mrf.mxu0
      %v681 = vadd.f32 0.0, %v680
      %v682 = vpop.f32.mrf.mxu0
      %683 = vmatprep.mubr.bf16.mxu0 0
      %684 = vmatmul.mubr.bf16.gmra.mxu0 %v459
      %v685 = vpop.f32.mrf.mxu0
      %v686 = vadd.f32 0.0, %v685
      %v687 = vpop.f32.mrf.mxu0
      %v688 = vpop.f32.mrf.mxu0
      %v689 = vadd.f32 0.0, %v688
      %v690 = vpop.f32.mrf.mxu0
      %691 = vmatprep.mubr.bf16.mxu0 0
      %692 = vmatmul.mubr.bf16.gmra.mxu0 %v462
      %v693 = vpop.f32.mrf.mxu0
      %v694 = vadd.f32 0.0, %v693
      %v695 = vpop.f32.mrf.mxu0
      %v696 = vpop.f32.mrf.mxu0
      %v697 = vadd.f32 0.0, %v696
      %v698 = vpop.f32.mrf.mxu0
      %699 = vmatprep.mubr.bf16.mxu0 0
      %700 = vmatmul.mubr.bf16.gmra.mxu0 %v465
      %v701 = vpop.f32.mrf.mxu0
      %v702 = vadd.f32 0.0, %v701
      %v703 = vpop.f32.mrf.mxu0
      %v704 = vpop.f32.mrf.mxu0
      %v705 = vadd.f32 0.0, %v704
      %v706 = vpop.f32.mrf.mxu0
      %707 = vmatprep.mubr.bf16.mxu0 0
      %708 = vmatmul.mubr.bf16.gmra.mxu0 %v468
      %v709 = vpop.f32.mrf.mxu0
      %v710 = vadd.f32 0.0, %v709
      %v711 = vpop.f32.mrf.mxu0
      %v712 = vpop.f32.mrf.mxu0
      %v713 = vadd.f32 0.0, %v712
      %v714 = vpop.f32.mrf.mxu0
      %715 = vmatprep.mubr.bf16.mxu0 0
      %716 = vmatmul.mubr.bf16.gmra.mxu0 %v471
      %v717 = vpop.f32.mrf.mxu0
      %v718 = vadd.f32 0.0, %v717
      %v719 = vpop.f32.mrf.mxu0
      %v720 = vpop.f32.mrf.mxu0
      %v721 = vadd.f32 0.0, %v720
      %v722 = vpop.f32.mrf.mxu0
      %723 = vmatprep.mubr.bf16.mxu0 0
      %724 = vmatmul.mubr.bf16.gmra.mxu0 %v474
      %v725 = vpop.f32.mrf.mxu0
      %v726 = vadd.f32 0.0, %v725
      %v727 = vpop.f32.mrf.mxu0
      %v728 = vpop.f32.mrf.mxu0
      %v729 = vadd.f32 0.0, %v728
      %v730 = vpop.f32.mrf.mxu0
      %731 = vmatprep.mubr.bf16.mxu0 0
      %732 = vmatmul.mubr.bf16.gmra.mxu0 %v477
      %v733 = vpop.f32.mrf.mxu0
      %v734 = vadd.f32 0.0, %v733
      %v735 = vpop.f32.mrf.mxu0
      %v736 = vpop.f32.mrf.mxu0
      %v737 = vadd.f32 0.0, %v736
      %v738 = vpop.f32.mrf.mxu0
      %739 = vmatprep.mubr.bf16.mxu0 0
      %740 = vmatmul.mubr.bf16.gmra.mxu0 %v480
      %v741 = vpop.f32.mrf.mxu0
      %v742 = vadd.f32 0.0, %v741
      %v743 = vpop.f32.mrf.mxu0
      %v744 = vpop.f32.mrf.mxu0
      %v745 = vadd.f32 0.0, %v744
      %v746 = vpop.f32.mrf.mxu0
      %747 = vmatprep.mubr.bf16.mxu0 0
      %748 = vmatmul.mubr.bf16.gmra.mxu0 %v483
      %v749 = vpop.f32.mrf.mxu0
      %v750 = vadd.f32 0.0, %v749
      %v751 = vpop.f32.mrf.mxu0
      %v752 = vpop.f32.mrf.mxu0
      %v753 = vadd.f32 0.0, %v752
      %v754 = vpop.f32.mrf.mxu0
      %755 = vmatprep.mubr.bf16.mxu0 0
      %756 = vmatmul.mubr.bf16.gmra.mxu0 %v486
      %v757 = vpop.f32.mrf.mxu0
      %v758 = vadd.f32 0.0, %v757
      %v759 = vpop.f32.mrf.mxu0
      %v760 = vpop.f32.mrf.mxu0
      %v761 = vadd.f32 0.0, %v760
      %v762 = vpop.f32.mrf.mxu0
      %763 = vmatprep.mubr.bf16.mxu0 0
      %764 = vmatmul.mubr.bf16.gmra.mxu0 %v489
      %v765 = vpop.f32.mrf.mxu0
      %v766 = vadd.f32 0.0, %v765
      %v767 = vpop.f32.mrf.mxu0
      %v768 = vpop.f32.mrf.mxu0
      %v769 = vadd.f32 0.0, %v768
      %v770 = vpop.f32.mrf.mxu0
      %771 = vmatprep.mubr.bf16.mxu0 0
      %772 = vmatmul.mubr.bf16.gmra.mxu0 %v492
      %v773 = vpop.f32.mrf.mxu0
      %v774 = vadd.f32 0.0, %v773
      %v775 = vpop.f32.mrf.mxu0
      %v776 = vpop.f32.mrf.mxu0
      %v777 = vadd.f32 0.0, %v776
      %v778 = vpop.f32.mrf.mxu0
      %779 = vmatprep.mubr.bf16.mxu0 0
      %780 = vmatmul.mubr.bf16.gmra.mxu0 %v495
      %v781 = vpop.f32.mrf.mxu0
      %v782 = vadd.f32 0.0, %v781
      %v783 = vpop.f32.mrf.mxu0
      %v784 = vpop.f32.mrf.mxu0
      %v785 = vadd.f32 0.0, %v784
      %v786 = vpop.f32.mrf.mxu0
      %787 = vmatprep.mubr.bf16.mxu0 0
      %788 = vmatmul.mubr.bf16.gmra.mxu0 %v498
      %v789 = vpop.f32.mrf.mxu0
      %v790 = vadd.f32 0.0, %v789
      %v791 = vpop.f32.mrf.mxu0
      %v792 = vpop.f32.mrf.mxu0
      %v793 = vadd.f32 0.0, %v792
      %v794 = vpop.f32.mrf.mxu0
      %795 = vdwg.mxu0
      %v796 = vld [vmem:[%s2] sm:$0x1]
      %vm797 = vcmask 228352
      %v798 = vsel %vm797, %v542, 0.0
      %v799 = vsel %vm797, %v545, 0.0
      %v800 = vadd.f32 %v798, %v799
      %v801 = vsel %vm797, %v550, 0.0
      %v802 = vadd.f32 %v800, %v801
      %v803 = vsel %vm797, %v553, 0.0
      %v804 = vadd.f32 %v802, %v803
      %v805 = vsel %vm797, %v558, 0.0
      %v806 = vadd.f32 %v804, %v805
      %v807 = vsel %vm797, %v561, 0.0
      %v808 = vadd.f32 %v806, %v807
      %v809 = vsel %vm797, %v566, 0.0
      %v810 = vadd.f32 %v808, %v809
      %v811 = vsel %vm797, %v569, 0.0
      %v812 = vadd.f32 %v810, %v811
      %v813 = vsel %vm797, %v574, 0.0
      %v814 = vadd.f32 %v812, %v813
      %v815 = vsel %vm797, %v577, 0.0
      %v816 = vadd.f32 %v814, %v815
      %v817 = vsel %vm797, %v582, 0.0
      %v818 = vadd.f32 %v816, %v817
      %v819 = vsel %vm797, %v585, 0.0
      %v820 = vadd.f32 %v818, %v819
      %v821 = vsel %vm797, %v590, 0.0
      %v822 = vadd.f32 %v820, %v821
      %v823 = vsel %vm797, %v593, 0.0
      %v824 = vadd.f32 %v822, %v823
      %v825 = vsel %vm797, %v598, 0.0
      %v826 = vadd.f32 %v824, %v825
      %v827 = vsel %vm797, %v601, 0.0
      %v828 = vadd.f32 %v826, %v827
      %v829 = vsel %vm797, %v606, 0.0
      %v830 = vadd.f32 %v828, %v829
      %v831 = vsel %vm797, %v609, 0.0
      %v832 = vadd.f32 %v830, %v831
      %v833 = vsel %vm797, %v614, 0.0
      %v834 = vadd.f32 %v832, %v833
      %v835 = vsel %vm797, %v617, 0.0
      %v836 = vadd.f32 %v834, %v835
      %v837 = vsel %vm797, %v622, 0.0
      %v838 = vadd.f32 %v836, %v837
      %v839 = vsel %vm797, %v625, 0.0
      %v840 = vadd.f32 %v838, %v839
      %v841 = vsel %vm797, %v630, 0.0
      %v842 = vadd.f32 %v840, %v841
      %v843 = vsel %vm797, %v633, 0.0
      %v844 = vadd.f32 %v842, %v843
      %v845 = vsel %vm797, %v638, 0.0
      %v846 = vadd.f32 %v844, %v845
      %v847 = vsel %vm797, %v641, 0.0
      %v848 = vadd.f32 %v846, %v847
      %v849 = vsel %vm797, %v646, 0.0
      %v850 = vadd.f32 %v848, %v849
      %v851 = vsel %vm797, %v649, 0.0
      %v852 = vadd.f32 %v850, %v851
      %v853 = vsel %vm797, %v654, 0.0
      %v854 = vadd.f32 %v852, %v853
      %v855 = vsel %vm797, %v657, 0.0
      %v856 = vadd.f32 %v854, %v855
      %v857 = vsel %vm797, %v662, 0.0
      %v858 = vadd.f32 %v856, %v857
      %v859 = vsel %vm797, %v665, 0.0
      %v860 = vadd.f32 %v858, %v859
      %v861 = vsel %vm797, %v670, 0.0
      %v862 = vadd.f32 %v860, %v861
      %v863 = vsel %vm797, %v673, 0.0
      %v864 = vadd.f32 %v862, %v863
      %v865 = vsel %vm797, %v678, 0.0
      %v866 = vadd.f32 %v864, %v865
      %v867 = vsel %vm797, %v681, 0.0
      %v868 = vadd.f32 %v866, %v867
      %v869 = vsel %vm797, %v686, 0.0
      %v870 = vadd.f32 %v868, %v869
      %v871 = vsel %vm797, %v689, 0.0
      %v872 = vadd.f32 %v870, %v871
      %v873 = vsel %vm797, %v694, 0.0
      %v874 = vadd.f32 %v872, %v873
      %v875 = vsel %vm797, %v697, 0.0
      %v876 = vadd.f32 %v874, %v875
      %v877 = vsel %vm797, %v702, 0.0
      %v878 = vadd.f32 %v876, %v877
      %v879 = vsel %vm797, %v705, 0.0
      %v880 = vadd.f32 %v878, %v879
      %v881 = vsel %vm797, %v710, 0.0
      %v882 = vadd.f32 %v880, %v881
      %v883 = vsel %vm797, %v713, 0.0
      %v884 = vadd.f32 %v882, %v883
      %v885 = vsel %vm797, %v718, 0.0
      %v886 = vadd.f32 %v884, %v885
      %v887 = vsel %vm797, %v721, 0.0
      %v888 = vadd.f32 %v886, %v887
      %v889 = vsel %vm797, %v726, 0.0
      %v890 = vadd.f32 %v888, %v889
      %v891 = vsel %vm797, %v729, 0.0
      %v892 = vadd.f32 %v890, %v891
      %v893 = vsel %vm797, %v734, 0.0
      %v894 = vadd.f32 %v892, %v893
      %v895 = vsel %vm797, %v737, 0.0
      %v896 = vadd.f32 %v894, %v895
      %v897 = vsel %vm797, %v742, 0.0
      %v898 = vadd.f32 %v896, %v897
      %v899 = vsel %vm797, %v745, 0.0
      %v900 = vadd.f32 %v898, %v899
      %v901 = vsel %vm797, %v750, 0.0
      %v902 = vadd.f32 %v900, %v901
      %v903 = vsel %vm797, %v753, 0.0
      %v904 = vadd.f32 %v902, %v903
      %v905 = vsel %vm797, %v758, 0.0
      %v906 = vadd.f32 %v904, %v905
      %v907 = vsel %vm797, %v761, 0.0
      %v908 = vadd.f32 %v906, %v907
      %v909 = vsel %vm797, %v766, 0.0
      %v910 = vadd.f32 %v908, %v909
      %v911 = vsel %vm797, %v769, 0.0
      %v912 = vadd.f32 %v910, %v911
      %v913 = vsel %vm797, %v774, 0.0
      %v914 = vadd.f32 %v912, %v913
      %v915 = vsel %vm797, %v777, 0.0
      %v916 = vadd.f32 %v914, %v915
      %v917 = vsel %vm797, %v782, 0.0
      %v918 = vadd.f32 %v916, %v917
      %v919 = vsel %vm797, %v785, 0.0
      %v920 = vadd.f32 %v918, %v919
      %v921 = vsel %vm797, %v790, 0.0
      %v922 = vadd.f32 %v920, %v921
      %v923 = vsel %vm797, %v793, 0.0
      %v924 = vadd.f32 %v922, %v923
      %v925 = vrot.slane %v924, 4
      %v926 = vadd.f32 %v924, %v925
      %v927 = vrot.slane %v926, 2
      %v928 = vadd.f32 %v926, %v927
      %v929 = vrot.slane %v928, 1
      %v930 = vadd.f32 %v928, %v929
      %v931 = vadd.f32 %v796, %v930
      %vm932 = vcmask 221184
      %933 = vst.msk [vmem:[%s2] sm:$0x1] %vm932, %v931
      %v934 = vld [vmem:[%s3] sm:$0x1]
      %v935 = vmul.f32 %v542, %v542
      %v936 = vmul.f32 %v545, %v545
      %v937 = vmul.f32 %v550, %v550
      %v938 = vmul.f32 %v553, %v553
      %v939 = vmul.f32 %v558, %v558
      %v940 = vmul.f32 %v561, %v561
      %v941 = vmul.f32 %v566, %v566
      %v942 = vmul.f32 %v569, %v569
      %v943 = vmul.f32 %v574, %v574
      %v944 = vmul.f32 %v577, %v577
      %v945 = vmul.f32 %v582, %v582
      %v946 = vmul.f32 %v585, %v585
      %v947 = vmul.f32 %v590, %v590
      %v948 = vmul.f32 %v593, %v593
      %v949 = vmul.f32 %v598, %v598
      %v950 = vmul.f32 %v601, %v601
      %v951 = vmul.f32 %v606, %v606
      %v952 = vmul.f32 %v609, %v609
      %v953 = vmul.f32 %v614, %v614
      %v954 = vmul.f32 %v617, %v617
      %v955 = vmul.f32 %v622, %v622
      %v956 = vmul.f32 %v625, %v625
      %v957 = vmul.f32 %v630, %v630
      %v958 = vmul.f32 %v633, %v633
      %v959 = vmul.f32 %v638, %v638
      %v960 = vmul.f32 %v641, %v641
      %v961 = vmul.f32 %v646, %v646
      %v962 = vmul.f32 %v649, %v649
      %v963 = vmul.f32 %v654, %v654
      %v964 = vmul.f32 %v657, %v657
      %v965 = vmul.f32 %v662, %v662
      %v966 = vmul.f32 %v665, %v665
      %v967 = vmul.f32 %v670, %v670
      %v968 = vmul.f32 %v673, %v673
      %v969 = vmul.f32 %v678, %v678
      %v970 = vmul.f32 %v681, %v681
      %v971 = vmul.f32 %v686, %v686
      %v972 = vmul.f32 %v689, %v689
      %v973 = vmul.f32 %v694, %v694
      %v974 = vmul.f32 %v697, %v697
      %v975 = vmul.f32 %v702, %v702
      %v976 = vmul.f32 %v705, %v705
      %v977 = vmul.f32 %v710, %v710
      %v978 = vmul.f32 %v713, %v713
      %v979 = vmul.f32 %v718, %v718
      %v980 = vmul.f32 %v721, %v721
      %v981 = vmul.f32 %v726, %v726
      %v982 = vmul.f32 %v729, %v729
      %v983 = vmul.f32 %v734, %v734
      %v984 = vmul.f32 %v737, %v737
      %v985 = vmul.f32 %v742, %v742
      %v986 = vmul.f32 %v745, %v745
      %v987 = vmul.f32 %v750, %v750
      %v988 = vmul.f32 %v753, %v753
      %v989 = vmul.f32 %v758, %v758
      %v990 = vmul.f32 %v761, %v761
      %v991 = vmul.f32 %v766, %v766
      %v992 = vmul.f32 %v769, %v769
      %v993 = vmul.f32 %v774, %v774
      %v994 = vmul.f32 %v777, %v777
      %v995 = vmul.f32 %v782, %v782
      %v996 = vmul.f32 %v785, %v785
      %v997 = vmul.f32 %v790, %v790
      %v998 = vmul.f32 %v793, %v793
      %v999 = vsel %vm797, %v935, 0.0
      %v1000 = vsel %vm797, %v936, 0.0
      %v1001 = vadd.f32 %v999, %v1000
      %v1002 = vsel %vm797, %v937, 0.0
      %v1003 = vadd.f32 %v1001, %v1002
      %v1004 = vsel %vm797, %v938, 0.0
      %v1005 = vadd.f32 %v1003, %v1004
      %v1006 = vsel %vm797, %v939, 0.0
      %v1007 = vadd.f32 %v1005, %v1006
      %v1008 = vsel %vm797, %v940, 0.0
      %v1009 = vadd.f32 %v1007, %v1008
      %v1010 = vsel %vm797, %v941, 0.0
      %v1011 = vadd.f32 %v1009, %v1010
      %v1012 = vsel %vm797, %v942, 0.0
      %v1013 = vadd.f32 %v1011, %v1012
      %v1014 = vsel %vm797, %v943, 0.0
      %v1015 = vadd.f32 %v1013, %v1014
      %v1016 = vsel %vm797, %v944, 0.0
      %v1017 = vadd.f32 %v1015, %v1016
      %v1018 = vsel %vm797, %v945, 0.0
      %v1019 = vadd.f32 %v1017, %v1018
      %v1020 = vsel %vm797, %v946, 0.0
      %v1021 = vadd.f32 %v1019, %v1020
      %v1022 = vsel %vm797, %v947, 0.0
      %v1023 = vadd.f32 %v1021, %v1022
      %v1024 = vsel %vm797, %v948, 0.0
      %v1025 = vadd.f32 %v1023, %v1024
      %v1026 = vsel %vm797, %v949, 0.0
      %v1027 = vadd.f32 %v1025, %v1026
      %v1028 = vsel %vm797, %v950, 0.0
      %v1029 = vadd.f32 %v1027, %v1028
      %v1030 = vsel %vm797, %v951, 0.0
      %v1031 = vadd.f32 %v1029, %v1030
      %v1032 = vsel %vm797, %v952, 0.0
      %v1033 = vadd.f32 %v1031, %v1032
      %v1034 = vsel %vm797, %v953, 0.0
      %v1035 = vadd.f32 %v1033, %v1034
      %v1036 = vsel %vm797, %v954, 0.0
      %v1037 = vadd.f32 %v1035, %v1036
      %v1038 = vsel %vm797, %v955, 0.0
      %v1039 = vadd.f32 %v1037, %v1038
      %v1040 = vsel %vm797, %v956, 0.0
      %v1041 = vadd.f32 %v1039, %v1040
      %v1042 = vsel %vm797, %v957, 0.0
      %v1043 = vadd.f32 %v1041, %v1042
      %v1044 = vsel %vm797, %v958, 0.0
      %v1045 = vadd.f32 %v1043, %v1044
      %v1046 = vsel %vm797, %v959, 0.0
      %v1047 = vadd.f32 %v1045, %v1046
      %v1048 = vsel %vm797, %v960, 0.0
      %v1049 = vadd.f32 %v1047, %v1048
      %v1050 = vsel %vm797, %v961, 0.0
      %v1051 = vadd.f32 %v1049, %v1050
      %v1052 = vsel %vm797, %v962, 0.0
      %v1053 = vadd.f32 %v1051, %v1052
      %v1054 = vsel %vm797, %v963, 0.0
      %v1055 = vadd.f32 %v1053, %v1054
      %v1056 = vsel %vm797, %v964, 0.0
      %v1057 = vadd.f32 %v1055, %v1056
      %v1058 = vsel %vm797, %v965, 0.0
      %v1059 = vadd.f32 %v1057, %v1058
      %v1060 = vsel %vm797, %v966, 0.0
      %v1061 = vadd.f32 %v1059, %v1060
      %v1062 = vsel %vm797, %v967, 0.0
      %v1063 = vadd.f32 %v1061, %v1062
      %v1064 = vsel %vm797, %v968, 0.0
      %v1065 = vadd.f32 %v1063, %v1064
      %v1066 = vsel %vm797, %v969, 0.0
      %v1067 = vadd.f32 %v1065, %v1066
      %v1068 = vsel %vm797, %v970, 0.0
      %v1069 = vadd.f32 %v1067, %v1068
      %v1070 = vsel %vm797, %v971, 0.0
      %v1071 = vadd.f32 %v1069, %v1070
      %v1072 = vsel %vm797, %v972, 0.0
      %v1073 = vadd.f32 %v1071, %v1072
      %v1074 = vsel %vm797, %v973, 0.0
      %v1075 = vadd.f32 %v1073, %v1074
      %v1076 = vsel %vm797, %v974, 0.0
      %v1077 = vadd.f32 %v1075, %v1076
      %v1078 = vsel %vm797, %v975, 0.0
      %v1079 = vadd.f32 %v1077, %v1078
      %v1080 = vsel %vm797, %v976, 0.0
      %v1081 = vadd.f32 %v1079, %v1080
      %v1082 = vsel %vm797, %v977, 0.0
      %v1083 = vadd.f32 %v1081, %v1082
      %v1084 = vsel %vm797, %v978, 0.0
      %v1085 = vadd.f32 %v1083, %v1084
      %v1086 = vsel %vm797, %v979, 0.0
      %v1087 = vadd.f32 %v1085, %v1086
      %v1088 = vsel %vm797, %v980, 0.0
      %v1089 = vadd.f32 %v1087, %v1088
      %v1090 = vsel %vm797, %v981, 0.0
      %v1091 = vadd.f32 %v1089, %v1090
      %v1092 = vsel %vm797, %v982, 0.0
      %v1093 = vadd.f32 %v1091, %v1092
      %v1094 = vsel %vm797, %v983, 0.0
      %v1095 = vadd.f32 %v1093, %v1094
      %v1096 = vsel %vm797, %v984, 0.0
      %v1097 = vadd.f32 %v1095, %v1096
      %v1098 = vsel %vm797, %v985, 0.0
      %v1099 = vadd.f32 %v1097, %v1098
      %v1100 = vsel %vm797, %v986, 0.0
      %v1101 = vadd.f32 %v1099, %v1100
      %v1102 = vsel %vm797, %v987, 0.0
      %v1103 = vadd.f32 %v1101, %v1102
      %v1104 = vsel %vm797, %v988, 0.0
      %v1105 = vadd.f32 %v1103, %v1104
      %v1106 = vsel %vm797, %v989, 0.0
      %v1107 = vadd.f32 %v1105, %v1106
      %v1108 = vsel %vm797, %v990, 0.0
      %v1109 = vadd.f32 %v1107, %v1108
      %v1110 = vsel %vm797, %v991, 0.0
      %v1111 = vadd.f32 %v1109, %v1110
      %v1112 = vsel %vm797, %v992, 0.0
      %v1113 = vadd.f32 %v1111, %v1112
      %v1114 = vsel %vm797, %v993, 0.0
      %v1115 = vadd.f32 %v1113, %v1114
      %v1116 = vsel %vm797, %v994, 0.0
      %v1117 = vadd.f32 %v1115, %v1116
      %v1118 = vsel %vm797, %v995, 0.0
      %v1119 = vadd.f32 %v1117, %v1118
      %v1120 = vsel %vm797, %v996, 0.0
      %v1121 = vadd.f32 %v1119, %v1120
      %v1122 = vsel %vm797, %v997, 0.0
      %v1123 = vadd.f32 %v1121, %v1122
      %v1124 = vsel %vm797, %v998, 0.0
      %v1125 = vadd.f32 %v1123, %v1124
      %v1126 = vrot.slane %v1125, 4
      %v1127 = vadd.f32 %v1125, %v1126
      %v1128 = vrot.slane %v1127, 2
      %v1129 = vadd.f32 %v1127, %v1128
      %v1130 = vrot.slane %v1129, 1
      %v1131 = vadd.f32 %v1129, %v1130
      %v1132 = vadd.f32 %v934, %v1131
      %1133 = vst.msk [vmem:[%s3] sm:$0x1] %vm932, %v1132
      // Predicated region
      $region33: #{net_forward.5} parent=27 // pred_check
        %p1134 = pneg %p75
      $region34: #{net_forward.5} parent=27 // pred_check_branch
        %1136 = sbr.rel (%p1134) target = $region36
      $region35: #{net_forward.5} parent=27 // pred_region
        _
      $region36: #{net_forward.5} parent=27 // pred_fallthru
        _
      // Predicated region
      $region37: #{net_forward.5} parent=27 // pred_check
        %p1137 = pneg %p96
      $region38: #{net_forward.5} parent=27 // pred_check_branch
        %1139 = sbr.rel (%p1137) target = $region40
      $region39: #{net_forward.5} parent=27 // pred_region
        _
      $region40: #{net_forward.5} parent=27 // pred_fallthru
        _
      // Predicated region
      $region41: #{net_forward.5} parent=27 // pred_check
        %p1140 = pneg %p75
      $region42: #{net_forward.5} parent=27 // pred_check_branch
        %1142 = sbr.rel (%p1140) target = $region44
      $region43: #{net_forward.5} parent=27 // pred_region
        _
      $region44: #{net_forward.5} parent=27 // pred_fallthru
        _
      // Predicated region
      $region45: #{net_forward.5} parent=27 // pred_check
        %p1143 = pneg %p96
      $region46: #{net_forward.5} parent=27 // pred_check_branch
        %1145 = sbr.rel (%p1143) target = $region48
      $region47: #{net_forward.5} parent=27 // pred_region
        _
      $region48: #{net_forward.5} parent=27 // pred_fallthru
        _
    $region28: #{net_forward.5} parent=5 // pred_fallthru
      _
    %p1146 = scmp.le.s32.totalorder 2, %s10
    // Predicated region
    $region49: #{net_forward.5} parent=5 // pred_check
      %p1147 = pneg %p1146
    $region50: #{net_forward.5} parent=5 // pred_check_branch
      %1149 = sbr.rel (%p1147) target = $region52
    $region51: #{net_forward.5} parent=5 // pred_region
      %s1150 = ssub.s32 %s10, 2
    $region52: #{net_forward.5} parent=5 // pred_fallthru
      _
  $region6: #{net_forward.5} parent=0 // loop_footer
    %s14 = sadd.s32 1, %s10
  $region7: #{net_forward.5} parent=0 // loop_footer_branch
    %9 = sbr.rel target = $region3
  $region8: #{net_forward.5} parent=0 // loop_exit
    _

// kernel: net_forward.7
$region0: #{net_forward.7}
  #allocation0 [shape = 'u32[]', space=smem, size = 0x4, offset = 0x4, fixed_abs, tag = 'smem constant byte address 0x4 - core index']
  #allocation1 [shape = 'u32[144,128]{1,0:T(1,128)}', space=vmem, size = 0x12000, scoped, tag = 'internal scratch']
  %s0 = inlined_call_operand.vmem [shape: bf16[392,700], index: 0, kind: input, shape index: {}]
  %s1 = inlined_call_operand.vmem [shape: bf16[700,28], index: 1, kind: input, shape index: {}]
  %s2 = inlined_call_operand.vmem [shape: f32[1,28], index: 2, kind: output, shape index: {0}]
  %s3 = inlined_call_operand.vmem [shape: f32[1,28], index: 3, kind: output, shape index: {1}]
  %4 = xla_tuple %s2, %s3
  %s5 = sld [smem:[#allocation0]]
  $region30: #{net_forward.7} parent=0
    _
  %s7 = ssub.s32 1, %s5
  %s8 = scalar_select 0, %s7, %s5
  // Predicated region
  $region2: #{net_forward.7} parent=0 // pred_check
    _
  $region3: #{net_forward.7} parent=0 // pred_check_branch
    %10 = sbr.rel (0) target = $region5
  $region4: #{net_forward.7} parent=0 // pred_region
    _
  $region5: #{net_forward.7} parent=0 // pred_fallthru
    _
  // Predicated region
  $region6: #{net_forward.7} parent=0 // pred_check
    _
  $region7: #{net_forward.7} parent=0 // pred_check_branch
    %12 = sbr.rel (0) target = $region9
  $region8: #{net_forward.7} parent=0 // pred_region
    _
  $region9: #{net_forward.7} parent=0 // pred_fallthru
    _
  %p14 = scmp.eq.s32.totalorder 0, 0
  // Predicated region
  $region10: #{net_forward.7} parent=0 // pred_check
    %p15 = pneg %p14
  $region11: #{net_forward.7} parent=0 // pred_check_branch
    %17 = sbr.rel (%p15) target = $region13
  $region12: #{net_forward.7} parent=0 // pred_region
    %vm18 = vcmask 221184
    %19 = vst.msk [vmem:[%s2] sm:$0x1] %vm18, 0.0
    %20 = vst.msk [vmem:[%s3] sm:$0x1] %vm18, 0.0
  $region13: #{net_forward.7} parent=0 // pred_fallthru
    _
  %v21 = vld [vmem:[%s0] sm:$0xff]
  %v22 = vld [vmem:[%s0 + $0x8] sm:$0xff]
  %v23 = vld [vmem:[%s0 + $0x10] sm:$0xff]
  %v24 = vld [vmem:[%s0 + $0x18] sm:$0xff]
  %v25 = vld [vmem:[%s0 + $0x20] sm:$0xff]
  %v26 = vld [vmem:[%s0 + $0x28] sm:$0xff]
  %v27 = vld [vmem:[%s0 + $0x30] sm:$0xff]
  %v28 = vld [vmem:[%s0 + $0x38] sm:$0xff]
  %v29 = vld [vmem:[%s0 + $0x40] sm:$0xff]
  %v30 = vld [vmem:[%s0 + $0x48] sm:$0xff]
  %v31 = vld [vmem:[%s0 + $0x50] sm:$0xff]
  %v32 = vld [vmem:[%s0 + $0x58] sm:$0xff]
  %v33 = vld [vmem:[%s0 + $0x60] sm:$0xff]
  %v34 = vld [vmem:[%s0 + $0x68] sm:$0xff]
  %v35 = vld [vmem:[%s0 + $0x70] sm:$0xff]
  %v36 = vld [vmem:[%s0 + $0x78] sm:$0xff]
  %v37 = vld [vmem:[%s0 + $0x80] sm:$0xff]
  %v38 = vld [vmem:[%s0 + $0x88] sm:$0xff]
  %v39 = vld [vmem:[%s0 + $0x90] sm:$0xff]
  %v40 = vld [vmem:[%s0 + $0x98] sm:$0xff]
  %v41 = vld [vmem:[%s0 + $0xa0] sm:$0xff]
  %v42 = vld [vmem:[%s0 + $0xa8] sm:$0xff]
  %v43 = vld [vmem:[%s0 + $0xb0] sm:$0xff]
  %v44 = vld [vmem:[%s0 + $0xb8] sm:$0xff]
  %v45 = vld [vmem:[%s0 + $0xc0] sm:$0xff]
  %v46 = vld [vmem:[%s0 + $0xc8] sm:$0xff]
  %v47 = vld [vmem:[%s0 + $0xd0] sm:$0xff]
  %v48 = vld [vmem:[%s0 + $0xd8] sm:$0xff]
  %v49 = vld [vmem:[%s0 + $0xe0] sm:$0xff]
  %v50 = vld [vmem:[%s0 + $0xe8] sm:$0xff]
  %v51 = vld [vmem:[%s0 + $0xf0] sm:$0xff]
  %v52 = vld [vmem:[%s0 + $0xf8] sm:$0xff]
  %v53 = vld [vmem:[%s0 + $0x100] sm:$0xff]
  %v54 = vld [vmem:[%s0 + $0x108] sm:$0xff]
  %v55 = vld [vmem:[%s0 + $0x110] sm:$0xff]
  %v56 = vld [vmem:[%s0 + $0x118] sm:$0xff]
  %v57 = vld [vmem:[%s0 + $0x120] sm:$0xff]
  %v58 = vld [vmem:[%s0 + $0x128] sm:$0xff]
  %v59 = vld [vmem:[%s0 + $0x130] sm:$0xff]
  %v60 = vld [vmem:[%s0 + $0x138] sm:$0xff]
  %v61 = vld [vmem:[%s0 + $0x140] sm:$0xff]
  %v62 = vld [vmem:[%s0 + $0x148] sm:$0xff]
  %v63 = vld [vmem:[%s0 + $0x150] sm:$0xff]
  %v64 = vld [vmem:[%s0 + $0x158] sm:$0xff]
  %v65 = vld [vmem:[%s0 + $0x160] sm:$0xff]
  %v66 = vld [vmem:[%s0 + $0x168] sm:$0xff]
  %v67 = vld [vmem:[%s0 + $0x170] sm:$0xff]
  %v68 = vld [vmem:[%s0 + $0x178] sm:$0xff]
  %v69 = vld [vmem:[%s0 + $0x180] sm:$0xff]
  %v70 = vld [vmem:[%s0 + $0x188] sm:$0xff]
  %v71 = vld [vmem:[%s0 + $0x190] sm:$0xff]
  %v72 = vld [vmem:[%s0 + $0x198] sm:$0xff]
  %v73 = vld [vmem:[%s0 + $0x1a0] sm:$0xff]
  %v74 = vld [vmem:[%s0 + $0x1a8] sm:$0xff]
  %v75 = vld [vmem:[%s0 + $0x1b0] sm:$0xff]
  %v76 = vld [vmem:[%s0 + $0x1b8] sm:$0xff]
  %v77 = vld [vmem:[%s0 + $0x1c0] sm:$0xff]
  %v78 = vld [vmem:[%s0 + $0x1c8] sm:$0xff]
  %v79 = vld [vmem:[%s0 + $0x1d0] sm:$0xff]
  %v80 = vld [vmem:[%s0 + $0x1d8] sm:$0xff]
  %v81 = vld [vmem:[%s0 + $0x1e0] sm:$0xff]
  %v82 = vld [vmem:[%s0 + $0x1e8] sm:$0xff]
  %v83 = vld [vmem:[%s0 + $0x1f0] sm:$0xff]
  %v84 = vld [vmem:[%s0 + $0x1f8] sm:$0xff]
  %v85 = vld [vmem:[%s0 + $0x200] sm:$0xff]
  %v86 = vld [vmem:[%s0 + $0x208] sm:$0xff]
  %v87 = vld [vmem:[%s0 + $0x210] sm:$0xff]
  %v88 = vld [vmem:[%s0 + $0x218] sm:$0xff]
  %v89 = vld [vmem:[%s0 + $0x220] sm:$0xff]
  %v90 = vld [vmem:[%s0 + $0x228] sm:$0xff]
  %v91 = vld [vmem:[%s0 + $0x230] sm:$0xff]
  %v92 = vld [vmem:[%s0 + $0x238] sm:$0xff]
  %v93 = vld [vmem:[%s0 + $0x240] sm:$0xff]
  %v94 = vld [vmem:[%s0 + $0x248] sm:$0xff]
  %v95 = vld [vmem:[%s0 + $0x250] sm:$0xff]
  %v96 = vld [vmem:[%s0 + $0x258] sm:$0xff]
  %v97 = vld [vmem:[%s0 + $0x260] sm:$0xff]
  %v98 = vld [vmem:[%s0 + $0x268] sm:$0xff]
  %v99 = vld [vmem:[%s0 + $0x270] sm:$0xff]
  %v100 = vld [vmem:[%s0 + $0x278] sm:$0xff]
  %v101 = vld [vmem:[%s0 + $0x280] sm:$0xff]
  %v102 = vld [vmem:[%s0 + $0x288] sm:$0xff]
  %v103 = vld [vmem:[%s0 + $0x290] sm:$0xff]
  %v104 = vld [vmem:[%s0 + $0x298] sm:$0xff]
  %v105 = vld [vmem:[%s0 + $0x2a0] sm:$0xff]
  %v106 = vld [vmem:[%s0 + $0x2a8] sm:$0xff]
  %v107 = vld [vmem:[%s0 + $0x2b0] sm:$0xff]
  %v108 = vld [vmem:[%s0 + $0x2b8] sm:$0xff]
  %v109 = vld [vmem:[%s0 + $0x2c0] sm:$0xff]
  %v110 = vld [vmem:[%s0 + $0x2c8] sm:$0xff]
  %v111 = vld [vmem:[%s0 + $0x2d0] sm:$0xff]
  %v112 = vld [vmem:[%s0 + $0x2d8] sm:$0xff]
  %v113 = vld [vmem:[%s0 + $0x2e0] sm:$0xff]
  %v114 = vld [vmem:[%s0 + $0x2e8] sm:$0xff]
  %v115 = vld [vmem:[%s0 + $0x2f0] sm:$0xff]
  %v116 = vld [vmem:[%s0 + $0x2f8] sm:$0xff]
  %v117 = vld [vmem:[%s0 + $0x300] sm:$0xff]
  %v118 = vld [vmem:[%s0 + $0x308] sm:$0xff]
  %v119 = vld [vmem:[%s0 + $0x310] sm:$0xff]
  %v120 = vld [vmem:[%s0 + $0x318] sm:$0xff]
  %v121 = vld [vmem:[%s0 + $0x320] sm:$0xff]
  %v122 = vld [vmem:[%s0 + $0x328] sm:$0xff]
  %v123 = vld [vmem:[%s0 + $0x330] sm:$0xff]
  %v124 = vld [vmem:[%s0 + $0x338] sm:$0xff]
  %v125 = vld [vmem:[%s0 + $0x340] sm:$0xff]
  %v126 = vld [vmem:[%s0 + $0x348] sm:$0xff]
  %v127 = vld [vmem:[%s0 + $0x350] sm:$0xff]
  %v128 = vld [vmem:[%s0 + $0x358] sm:$0xff]
  %v129 = vld [vmem:[%s0 + $0x360] sm:$0xff]
  %v130 = vld [vmem:[%s0 + $0x368] sm:$0xff]
  %v131 = vld [vmem:[%s0 + $0x370] sm:$0xff]
  %v132 = vld [vmem:[%s0 + $0x378] sm:$0xff]
  %v133 = vld [vmem:[%s0 + $0x380] sm:$0xff]
  %v134 = vld [vmem:[%s0 + $0x388] sm:$0xff]
  %v135 = vld [vmem:[%s0 + $0x390] sm:$0xff]
  %v136 = vld [vmem:[%s0 + $0x398] sm:$0xff]
  %v137 = vld [vmem:[%s0 + $0x3a0] sm:$0xff]
  %v138 = vld [vmem:[%s0 + $0x3a8] sm:$0xff]
  %v139 = vld [vmem:[%s0 + $0x3b0] sm:$0xff]
  %v140 = vld [vmem:[%s0 + $0x3b8] sm:$0xff]
  %v141 = vld [vmem:[%s0 + $0x3c0] sm:$0xff]
  %v142 = vld [vmem:[%s0 + $0x3c8] sm:$0xff]
  %v143 = vld [vmem:[%s0 + $0x3d0] sm:$0xff]
  %v144 = vld [vmem:[%s0 + $0x3d8] sm:$0xff]
  %v145 = vld [vmem:[%s0 + $0x3e0] sm:$0xff]
  %v146 = vld [vmem:[%s0 + $0x3e8] sm:$0xff]
  %v147 = vld [vmem:[%s0 + $0x3f0] sm:$0xff]
  %v148 = vld [vmem:[%s0 + $0x3f8] sm:$0xff]
  %v149 = vld [vmem:[%s0 + $0x400] sm:$0xff]
  %v150 = vld [vmem:[%s0 + $0x408] sm:$0xff]
  %v151 = vld [vmem:[%s0 + $0x410] sm:$0xff]
  %v152 = vld [vmem:[%s0 + $0x418] sm:$0xff]
  %v153 = vld [vmem:[%s0 + $0x420] sm:$0xff]
  %v154 = vld [vmem:[%s0 + $0x428] sm:$0xff]
  %v155 = vld [vmem:[%s0 + $0x430] sm:$0xff]
  %v156 = vld [vmem:[%s0 + $0x438] sm:$0xff]
  %v157 = vld [vmem:[%s0 + $0x440] sm:$0xff]
  %v158 = vld [vmem:[%s0 + $0x448] sm:$0xff]
  %v159 = vld [vmem:[%s0 + $0x450] sm:$0xff]
  %v160 = vld [vmem:[%s0 + $0x458] sm:$0xff]
  %v161 = vld [vmem:[%s0 + $0x460] sm:$0xff]
  %v162 = vld [vmem:[%s0 + $0x468] sm:$0xff]
  %v163 = vld [vmem:[%s0 + $0x470] sm:$0xff]
  %v164 = vld [vmem:[%s0 + $0x478] sm:$0xff]
  %v165 = vld [vmem:[%s0 + $0x480] sm:$0xff]
  %v166 = vld [vmem:[%s0 + $0x488] sm:$0xff]
  %v167 = vld [vmem:[%s0 + $0x490] sm:$0xff]
  %v168 = vld [vmem:[%s1] sm:$0xf]
  %v169 = vld [vmem:[%s1 + $0x4] sm:$0xf]
  %v170 = vld [vmem:[%s1 + $0x8] sm:$0xf]
  %v171 = vld [vmem:[%s1 + $0xc] sm:$0xf]
  %v172 = vld [vmem:[%s1 + $0x10] sm:$0xf]
  %v173 = vld [vmem:[%s1 + $0x14] sm:$0xf]
  %v174 = vld [vmem:[%s1 + $0x18] sm:$0xf]
  %v175 = vld [vmem:[%s1 + $0x1c] sm:$0xf]
  %v176 = vld [vmem:[%s1 + $0x20] sm:$0xf]
  %v177 = vld [vmem:[%s1 + $0x24] sm:$0xf]
  %v178 = vld [vmem:[%s1 + $0x28] sm:$0xf]
  %v179 = vld [vmem:[%s1 + $0x2c] sm:$0xf]
  %v180 = vld [vmem:[%s1 + $0x30] sm:$0xf]
  %v181 = vld [vmem:[%s1 + $0x34] sm:$0xf]
  %v182 = vld [vmem:[%s1 + $0x38] sm:$0xf]
  %v183 = vld [vmem:[%s1 + $0x3c] sm:$0xf]
  %v184 = vld [vmem:[%s1 + $0x40] sm:$0xf]
  %v185 = vld [vmem:[%s1 + $0x44] sm:$0xf]
  %v186 = vld [vmem:[%s1 + $0x48] sm:$0xf]
  %v187 = vld [vmem:[%s1 + $0x4c] sm:$0xf]
  %v188 = vld [vmem:[%s1 + $0x50] sm:$0xf]
  %v189 = vld [vmem:[%s1 + $0x54] sm:$0xf]
  %v190 = vld [vmem:[%s1 + $0x58] sm:$0xf]
  %v191 = vld [vmem:[%s1 + $0x5c] sm:$0xf]
  %v192 = vld [vmem:[%s1 + $0x60] sm:$0xf]
  %v193 = vld [vmem:[%s1 + $0x64] sm:$0xf]
  %v194 = vld [vmem:[%s1 + $0x68] sm:$0xf]
  %v195 = vld [vmem:[%s1 + $0x6c] sm:$0xf]
  %v196 = vld [vmem:[%s1 + $0x70] sm:$0xf]
  %v197 = vld [vmem:[%s1 + $0x74] sm:$0xf]
  %v198 = vld [vmem:[%s1 + $0x78] sm:$0xf]
  %v199 = vld [vmem:[%s1 + $0x7c] sm:$0xf]
  %v200 = vld [vmem:[%s1 + $0x80] sm:$0xf]
  %v201 = vld [vmem:[%s1 + $0x84] sm:$0xf]
  %v202 = vld [vmem:[%s1 + $0x88] sm:$0xf]
  %v203 = vld [vmem:[%s1 + $0x8c] sm:$0xf]
  %v204 = vld [vmem:[%s1 + $0x90] sm:$0xf]
  %v205 = vld [vmem:[%s1 + $0x94] sm:$0xf]
  %v206 = vld [vmem:[%s1 + $0x98] sm:$0xf]
  %v207 = vld [vmem:[%s1 + $0x9c] sm:$0xf]
  %v208 = vld [vmem:[%s1 + $0xa0] sm:$0xf]
  %v209 = vld [vmem:[%s1 + $0xa4] sm:$0xf]
  %v210 = vld [vmem:[%s1 + $0xa8] sm:$0xf]
  %v211 = vld [vmem:[%s1 + $0xac] sm:$0xf]
  %v212 = vld [vmem:[%s1 + $0xb0] sm:$0xf]
  %v213 = vld [vmem:[%s1 + $0xb4] sm:$0xf]
  %v214 = vld [vmem:[%s1 + $0xb8] sm:$0xf]
  %v215 = vld [vmem:[%s1 + $0xbc] sm:$0xf]
  %v216 = vld [vmem:[%s1 + $0xc0] sm:$0xf]
  %v217 = vld [vmem:[%s1 + $0xc4] sm:$0xf]
  %v218 = vld [vmem:[%s1 + $0xc8] sm:$0xf]
  %v219 = vld [vmem:[%s1 + $0xcc] sm:$0xf]
  %v220 = vld [vmem:[%s1 + $0xd0] sm:$0xf]
  %v221 = vld [vmem:[%s1 + $0xd4] sm:$0xf]
  %v222 = vld [vmem:[%s1 + $0xd8] sm:$0xf]
  %v223 = vld [vmem:[%s1 + $0xdc] sm:$0xf]
  %v224 = vld [vmem:[%s1 + $0xe0] sm:$0xf]
  %v225 = vld [vmem:[%s1 + $0xe4] sm:$0xf]
  %v226 = vld [vmem:[%s1 + $0xe8] sm:$0xf]
  %v227 = vld [vmem:[%s1 + $0xec] sm:$0xf]
  %v228 = vld [vmem:[%s1 + $0xf0] sm:$0xf]
  %v229 = vld [vmem:[%s1 + $0xf4] sm:$0xf]
  %v230 = vld [vmem:[%s1 + $0xf8] sm:$0xf]
  %v231 = vld [vmem:[%s1 + $0xfc] sm:$0xf]
  %v232 = vld [vmem:[%s1 + $0x100] sm:$0xf]
  %v233 = vld [vmem:[%s1 + $0x104] sm:$0xf]
  %v234 = vld [vmem:[%s1 + $0x108] sm:$0xf]
  %v235 = vld [vmem:[%s1 + $0x10c] sm:$0xf]
  %v236 = vld [vmem:[%s1 + $0x110] sm:$0xf]
  %v237 = vld [vmem:[%s1 + $0x114] sm:$0xf]
  %v238 = vld [vmem:[%s1 + $0x118] sm:$0xf]
  %v239 = vld [vmem:[%s1 + $0x11c] sm:$0xf]
  %v240 = vld [vmem:[%s1 + $0x120] sm:$0xf]
  %v241 = vld [vmem:[%s1 + $0x124] sm:$0xf]
  %v242 = vld [vmem:[%s1 + $0x128] sm:$0xf]
  %v243 = vld [vmem:[%s1 + $0x12c] sm:$0xf]
  %v244 = vld [vmem:[%s1 + $0x130] sm:$0xf]
  %v245 = vld [vmem:[%s1 + $0x134] sm:$0xf]
  %v246 = vld [vmem:[%s1 + $0x138] sm:$0xf]
  %v247 = vld [vmem:[%s1 + $0x13c] sm:$0xf]
  %v248 = vld [vmem:[%s1 + $0x140] sm:$0xf]
  %v249 = vld [vmem:[%s1 + $0x144] sm:$0xf]
  %v250 = vld [vmem:[%s1 + $0x148] sm:$0xf]
  %v251 = vld [vmem:[%s1 + $0x14c] sm:$0xf]
  %v252 = vld [vmem:[%s1 + $0x150] sm:$0xf]
  %v253 = vld [vmem:[%s1 + $0x154] sm:$0xf]
  %v254 = vld [vmem:[%s1 + $0x158] sm:$0xf]
  %v255 = vld [vmem:[%s1 + $0x15c] sm:$0x3]
  %v403 = vunpack.c.l.b16 %v21
  %v404 = vunpack.c.h.b16 %v21
  %v405 = vunpack.c.l.b16 %v22
  %v406 = vunpack.c.h.b16 %v22
  %v407 = vunpack.c.l.b16 %v23
  %v408 = vunpack.c.h.b16 %v23
  %v409 = vunpack.c.l.b16 %v24
  %v410 = vunpack.c.h.b16 %v24
  %v411 = vunpack.c.l.b16 %v25
  %v412 = vunpack.c.h.b16 %v25
  %v413 = vunpack.c.l.b16 %v26
  %v414 = vunpack.c.h.b16 %v26
  %v415 = vunpack.c.l.b16 %v27
  %v416 = vunpack.c.h.b16 %v27
  %v417 = vunpack.c.l.b16 %v28
  %v418 = vunpack.c.h.b16 %v28
  %v419 = vunpack.c.l.b16 %v29
  %v420 = vunpack.c.h.b16 %v29
  %v421 = vunpack.c.l.b16 %v30
  %v422 = vunpack.c.h.b16 %v30
  %v423 = vunpack.c.l.b16 %v31
  %v424 = vunpack.c.h.b16 %v31
  %v425 = vunpack.c.l.b16 %v32
  %v426 = vunpack.c.h.b16 %v32
  %v427 = vunpack.c.l.b16 %v33
  %v428 = vunpack.c.h.b16 %v33
  %v429 = vunpack.c.l.b16 %v34
  %v430 = vunpack.c.h.b16 %v34
  %v431 = vunpack.c.l.b16 %v35
  %v432 = vunpack.c.h.b16 %v35
  %v433 = vunpack.c.l.b16 %v36
  %v434 = vunpack.c.h.b16 %v36
  %v435 = vunpack.c.l.b16 %v37
  %v436 = vunpack.c.h.b16 %v37
  %v437 = vunpack.c.l.b16 %v38
  %v438 = vunpack.c.h.b16 %v38
  %v439 = vunpack.c.l.b16 %v39
  %v440 = vunpack.c.h.b16 %v39
  %v441 = vunpack.c.l.b16 %v40
  %v442 = vunpack.c.h.b16 %v40
  %v443 = vunpack.c.l.b16 %v41
  %v444 = vunpack.c.h.b16 %v41
  %v445 = vunpack.c.l.b16 %v42
  %v446 = vunpack.c.h.b16 %v42
  %v447 = vunpack.c.l.b16 %v43
  %v448 = vunpack.c.h.b16 %v43
  %v449 = vunpack.c.l.b16 %v44
  %v450 = vunpack.c.h.b16 %v44
  %v451 = vunpack.c.l.b16 %v45
  %v452 = vunpack.c.h.b16 %v45
  %v453 = vunpack.c.l.b16 %v46
  %v454 = vunpack.c.h.b16 %v46
  %v455 = vunpack.c.l.b16 %v47
  %v456 = vunpack.c.h.b16 %v47
  %v457 = vunpack.c.l.b16 %v48
  %v458 = vunpack.c.h.b16 %v48
  %v459 = vunpack.c.l.b16 %v49
  %v460 = vunpack.c.h.b16 %v49
  %v461 = vunpack.c.l.b16 %v50
  %v462 = vunpack.c.h.b16 %v50
  %v463 = vunpack.c.l.b16 %v51
  %v464 = vunpack.c.h.b16 %v51
  %v465 = vunpack.c.l.b16 %v52
  %v466 = vunpack.c.h.b16 %v52
  %v467 = vunpack.c.l.b16 %v53
  %v468 = vunpack.c.h.b16 %v53
  %v469 = vunpack.c.l.b16 %v54
  %v470 = vunpack.c.h.b16 %v54
  %v471 = vunpack.c.l.b16 %v55
  %v472 = vunpack.c.h.b16 %v55
  %v473 = vunpack.c.l.b16 %v56
  %v474 = vunpack.c.h.b16 %v56
  %v475 = vunpack.c.l.b16 %v57
  %v476 = vunpack.c.h.b16 %v57
  %v477 = vunpack.c.l.b16 %v58
  %v478 = vunpack.c.h.b16 %v58
  %v479 = vunpack.c.l.b16 %v59
  %v480 = vunpack.c.h.b16 %v59
  %v481 = vunpack.c.l.b16 %v60
  %v482 = vunpack.c.h.b16 %v60
  %v483 = vunpack.c.l.b16 %v61
  %v484 = vunpack.c.h.b16 %v61
  %v485 = vunpack.c.l.b16 %v62
  %v486 = vunpack.c.h.b16 %v62
  %v487 = vunpack.c.l.b16 %v63
  %v488 = vunpack.c.h.b16 %v63
  %v489 = vunpack.c.l.b16 %v64
  %v490 = vunpack.c.h.b16 %v64
  %v491 = vunpack.c.l.b16 %v65
  %v492 = vunpack.c.h.b16 %v65
  %v493 = vunpack.c.l.b16 %v66
  %v494 = vunpack.c.h.b16 %v66
  %v495 = vunpack.c.l.b16 %v67
  %v496 = vunpack.c.h.b16 %v67
  %v497 = vunpack.c.l.b16 %v68
  %v498 = vunpack.c.h.b16 %v68
  %v499 = vunpack.c.l.b16 %v69
  %v500 = vunpack.c.h.b16 %v69
  %v501 = vunpack.c.l.b16 %v70
  %v502 = vunpack.c.h.b16 %v70
  %v503 = vunpack.c.l.b16 %v71
  %v504 = vunpack.c.h.b16 %v71
  %v505 = vunpack.c.l.b16 %v72
  %v506 = vunpack.c.h.b16 %v72
  %v507 = vunpack.c.l.b16 %v73
  %v508 = vunpack.c.h.b16 %v73
  %v509 = vunpack.c.l.b16 %v74
  %v510 = vunpack.c.h.b16 %v74
  %v511 = vunpack.c.l.b16 %v75
  %v512 = vunpack.c.h.b16 %v75
  %v513 = vunpack.c.l.b16 %v76
  %v514 = vunpack.c.h.b16 %v76
  %v515 = vunpack.c.l.b16 %v77
  %v516 = vunpack.c.h.b16 %v77
  %v517 = vunpack.c.l.b16 %v78
  %v518 = vunpack.c.h.b16 %v78
  %v519 = vunpack.c.l.b16 %v79
  %v520 = vunpack.c.h.b16 %v79
  %v521 = vunpack.c.l.b16 %v80
  %v522 = vunpack.c.h.b16 %v80
  %v523 = vunpack.c.l.b16 %v81
  %v524 = vunpack.c.h.b16 %v81
  %v525 = vunpack.c.l.b16 %v82
  %v526 = vunpack.c.h.b16 %v82
  %v527 = vunpack.c.l.b16 %v83
  %v528 = vunpack.c.h.b16 %v83
  %v529 = vunpack.c.l.b16 %v84
  %v530 = vunpack.c.h.b16 %v84
  %v531 = vunpack.c.l.b16 %v85
  %v532 = vunpack.c.h.b16 %v85
  %v533 = vunpack.c.l.b16 %v86
  %v534 = vunpack.c.h.b16 %v86
  %v535 = vunpack.c.l.b16 %v87
  %v536 = vunpack.c.h.b16 %v87
  %v537 = vunpack.c.l.b16 %v88
  %v538 = vunpack.c.h.b16 %v88
  %v539 = vunpack.c.l.b16 %v89
  %v540 = vunpack.c.h.b16 %v89
  %v541 = vunpack.c.l.b16 %v90
  %v542 = vunpack.c.h.b16 %v90
  %v543 = vunpack.c.l.b16 %v91
  %v544 = vunpack.c.h.b16 %v91
  %v545 = vunpack.c.l.b16 %v92
  %v546 = vunpack.c.h.b16 %v92
  %v547 = vunpack.c.l.b16 %v93
  %v548 = vunpack.c.h.b16 %v93
  %v549 = vunpack.c.l.b16 %v94
  %v550 = vunpack.c.h.b16 %v94
  %v551 = vunpack.c.l.b16 %v95
  %v552 = vunpack.c.h.b16 %v95
  %v553 = vunpack.c.l.b16 %v96
  %v554 = vunpack.c.h.b16 %v96
  %v555 = vunpack.c.l.b16 %v97
  %v556 = vunpack.c.h.b16 %v97
  %v557 = vunpack.c.l.b16 %v98
  %v558 = vunpack.c.h.b16 %v98
  %v559 = vunpack.c.l.b16 %v99
  %v560 = vunpack.c.h.b16 %v99
  %v561 = vunpack.c.l.b16 %v100
  %v562 = vunpack.c.h.b16 %v100
  %v563 = vunpack.c.l.b16 %v101
  %v564 = vunpack.c.h.b16 %v101
  %v565 = vunpack.c.l.b16 %v102
  %v566 = vunpack.c.h.b16 %v102
  %v567 = vunpack.c.l.b16 %v103
  %v568 = vunpack.c.h.b16 %v103
  %v569 = vunpack.c.l.b16 %v104
  %v570 = vunpack.c.h.b16 %v104
  %v571 = vunpack.c.l.b16 %v105
  %v572 = vunpack.c.h.b16 %v105
  %v573 = vunpack.c.l.b16 %v106
  %v574 = vunpack.c.h.b16 %v106
  %v575 = vunpack.c.l.b16 %v107
  %v576 = vunpack.c.h.b16 %v107
  %v577 = vunpack.c.l.b16 %v108
  %v578 = vunpack.c.h.b16 %v108
  %v579 = vunpack.c.l.b16 %v109
  %v580 = vunpack.c.h.b16 %v109
  %v581 = vunpack.c.l.b16 %v110
  %v582 = vunpack.c.h.b16 %v110
  %v583 = vunpack.c.l.b16 %v111
  %v584 = vunpack.c.h.b16 %v111
  %v585 = vunpack.c.l.b16 %v112
  %v586 = vunpack.c.h.b16 %v112
  %v587 = vunpack.c.l.b16 %v113
  %v588 = vunpack.c.h.b16 %v113
  %v589 = vunpack.c.l.b16 %v114
  %v590 = vunpack.c.h.b16 %v114
  %v591 = vunpack.c.l.b16 %v115
  %v592 = vunpack.c.h.b16 %v115
  %v593 = vunpack.c.l.b16 %v116
  %v594 = vunpack.c.h.b16 %v116
  %v595 = vunpack.c.l.b16 %v117
  %v596 = vunpack.c.h.b16 %v117
  %v597 = vunpack.c.l.b16 %v118
  %v598 = vunpack.c.h.b16 %v118
  %v599 = vunpack.c.l.b16 %v119
  %v600 = vunpack.c.h.b16 %v119
  %v601 = vunpack.c.l.b16 %v120
  %v602 = vunpack.c.h.b16 %v120
  %v603 = vunpack.c.l.b16 %v121
  %v604 = vunpack.c.h.b16 %v121
  %v605 = vunpack.c.l.b16 %v122
  %v606 = vunpack.c.h.b16 %v122
  %v607 = vunpack.c.l.b16 %v123
  %v608 = vunpack.c.h.b16 %v123
  %v609 = vunpack.c.l.b16 %v124
  %v610 = vunpack.c.h.b16 %v124
  %v611 = vunpack.c.l.b16 %v125
  %v612 = vunpack.c.h.b16 %v125
  %v613 = vunpack.c.l.b16 %v126
  %v614 = vunpack.c.h.b16 %v126
  %v615 = vunpack.c.l.b16 %v127
  %v616 = vunpack.c.h.b16 %v127
  %v617 = vunpack.c.l.b16 %v128
  %v618 = vunpack.c.h.b16 %v128
  %v619 = vunpack.c.l.b16 %v129
  %v620 = vunpack.c.h.b16 %v129
  %v621 = vunpack.c.l.b16 %v130
  %v622 = vunpack.c.h.b16 %v130
  %v623 = vunpack.c.l.b16 %v131
  %v624 = vunpack.c.h.b16 %v131
  %v625 = vunpack.c.l.b16 %v132
  %v626 = vunpack.c.h.b16 %v132
  %v627 = vunpack.c.l.b16 %v133
  %v628 = vunpack.c.h.b16 %v133
  %v629 = vunpack.c.l.b16 %v134
  %v630 = vunpack.c.h.b16 %v134
  %v631 = vunpack.c.l.b16 %v135
  %v632 = vunpack.c.h.b16 %v135
  %v633 = vunpack.c.l.b16 %v136
  %v634 = vunpack.c.h.b16 %v136
  %v635 = vunpack.c.l.b16 %v137
  %v636 = vunpack.c.h.b16 %v137
  %v637 = vunpack.c.l.b16 %v138
  %v638 = vunpack.c.h.b16 %v138
  %v639 = vunpack.c.l.b16 %v139
  %v640 = vunpack.c.h.b16 %v139
  %v641 = vunpack.c.l.b16 %v140
  %v642 = vunpack.c.h.b16 %v140
  %v643 = vunpack.c.l.b16 %v141
  %v644 = vunpack.c.h.b16 %v141
  %v645 = vunpack.c.l.b16 %v142
  %v646 = vunpack.c.h.b16 %v142
  %v647 = vunpack.c.l.b16 %v143
  %v648 = vunpack.c.h.b16 %v143
  %v649 = vunpack.c.l.b16 %v144
  %v650 = vunpack.c.h.b16 %v144
  %v651 = vunpack.c.l.b16 %v145
  %v652 = vunpack.c.h.b16 %v145
  %v653 = vunpack.c.l.b16 %v146
  %v654 = vunpack.c.h.b16 %v146
  %v655 = vunpack.c.l.b16 %v147
  %v656 = vunpack.c.h.b16 %v147
  %v657 = vunpack.c.l.b16 %v148
  %v658 = vunpack.c.h.b16 %v148
  %v659 = vunpack.c.l.b16 %v149
  %v660 = vunpack.c.h.b16 %v149
  %v661 = vunpack.c.l.b16 %v150
  %v662 = vunpack.c.h.b16 %v150
  %v663 = vunpack.c.l.b16 %v151
  %v664 = vunpack.c.h.b16 %v151
  %v665 = vunpack.c.l.b16 %v152
  %v666 = vunpack.c.h.b16 %v152
  %v667 = vunpack.c.l.b16 %v153
  %v668 = vunpack.c.h.b16 %v153
  %v669 = vunpack.c.l.b16 %v154
  %v670 = vunpack.c.h.b16 %v154
  %v671 = vunpack.c.l.b16 %v155
  %v672 = vunpack.c.h.b16 %v155
  %v673 = vunpack.c.l.b16 %v156
  %v674 = vunpack.c.h.b16 %v156
  %v675 = vunpack.c.l.b16 %v157
  %v676 = vunpack.c.h.b16 %v157
  %v677 = vunpack.c.l.b16 %v158
  %v678 = vunpack.c.h.b16 %v158
  %v679 = vunpack.c.l.b16 %v159
  %v680 = vunpack.c.h.b16 %v159
  %v681 = vunpack.c.l.b16 %v160
  %v682 = vunpack.c.h.b16 %v160
  %v683 = vunpack.c.l.b16 %v161
  %v684 = vunpack.c.h.b16 %v161
  %v685 = vunpack.c.l.b16 %v162
  %v686 = vunpack.c.h.b16 %v162
  %v687 = vunpack.c.l.b16 %v163
  %v688 = vunpack.c.h.b16 %v163
  %v689 = vunpack.c.l.b16 %v164
  %v690 = vunpack.c.h.b16 %v164
  %v691 = vunpack.c.l.b16 %v165
  %v692 = vunpack.c.h.b16 %v165
  %v693 = vunpack.c.l.b16 %v166
  %v694 = vunpack.c.h.b16 %v166
  %v695 = vunpack.c.l.b16 %v167
  %v696 = vunpack.c.h.b16 %v167
  %v697 = vpack.c.b16 %v409, %v403
  %v698 = vpack.c.b16 %v410, %v404
  %v699 = vpack.c.b16 %v411, %v405
  %v700 = vpack.c.b16 %v412, %v406
  %v701 = vpack.c.b16 %v413, %v407
  %v702 = vpack.c.b16 %v414, %v408
  %v703 = vpack.c.b16 %v421, %v415
  %v704 = vpack.c.b16 %v422, %v416
  %v705 = vpack.c.b16 %v423, %v417
  %v706 = vpack.c.b16 %v424, %v418
  %v707 = vpack.c.b16 %v425, %v419
  %v708 = vpack.c.b16 %v426, %v420
  %v709 = vpack.c.b16 %v433, %v427
  %v710 = vpack.c.b16 %v434, %v428
  %v711 = vpack.c.b16 %v435, %v429
  %v712 = vpack.c.b16 %v436, %v430
  %v713 = vpack.c.b16 %v437, %v431
  %v714 = vpack.c.b16 %v438, %v432
  %v715 = vpack.c.b16 %v445, %v439
  %v716 = vpack.c.b16 %v446, %v440
  %v717 = vpack.c.b16 %v447, %v441
  %v718 = vpack.c.b16 %v448, %v442
  %v719 = vpack.c.b16 %v449, %v443
  %v720 = vpack.c.b16 %v450, %v444
  %v721 = vpack.c.b16 %v457, %v451
  %v722 = vpack.c.b16 %v458, %v452
  %v723 = vpack.c.b16 %v459, %v453
  %v724 = vpack.c.b16 %v460, %v454
  %v725 = vpack.c.b16 %v461, %v455
  %v726 = vpack.c.b16 %v462, %v456
  %v727 = vpack.c.b16 %v469, %v463
  %v728 = vpack.c.b16 %v470, %v464
  %v729 = vpack.c.b16 %v471, %v465
  %v730 = vpack.c.b16 %v472, %v466
  %v731 = vpack.c.b16 %v473, %v467
  %v732 = vpack.c.b16 %v474, %v468
  %v733 = vpack.c.b16 %v481, %v475
  %v734 = vpack.c.b16 %v482, %v476
  %v735 = vpack.c.b16 %v483, %v477
  %v736 = vpack.c.b16 %v484, %v478
  %v737 = vpack.c.b16 %v485, %v479
  %v738 = vpack.c.b16 %v486, %v480
  %v739 = vpack.c.b16 %v493, %v487
  %v740 = vpack.c.b16 %v494, %v488
  %v741 = vpack.c.b16 %v495, %v489
  %v742 = vpack.c.b16 %v496, %v490
  %v743 = vpack.c.b16 %v497, %v491
  %v744 = vpack.c.b16 %v498, %v492
  %v745 = vpack.c.b16 %v505, %v499
  %v746 = vpack.c.b16 %v506, %v500
  %v747 = vpack.c.b16 %v507, %v501
  %v748 = vpack.c.b16 %v508, %v502
  %v749 = vpack.c.b16 %v509, %v503
  %v750 = vpack.c.b16 %v510, %v504
  %v751 = vpack.c.b16 %v517, %v511
  %v752 = vpack.c.b16 %v518, %v512
  %v753 = vpack.c.b16 %v519, %v513
  %v754 = vpack.c.b16 %v520, %v514
  %v755 = vpack.c.b16 %v521, %v515
  %v756 = vpack.c.b16 %v522, %v516
  %v757 = vpack.c.b16 %v529, %v523
  %v758 = vpack.c.b16 %v530, %v524
  %v759 = vpack.c.b16 %v531, %v525
  %v760 = vpack.c.b16 %v532, %v526
  %v761 = vpack.c.b16 %v533, %v527
  %v762 = vpack.c.b16 %v534, %v528
  %v763 = vpack.c.b16 %v541, %v535
  %v764 = vpack.c.b16 %v542, %v536
  %v765 = vpack.c.b16 %v543, %v537
  %v766 = vpack.c.b16 %v544, %v538
  %v767 = vpack.c.b16 %v545, %v539
  %v768 = vpack.c.b16 %v546, %v540
  %v769 = vpack.c.b16 %v553, %v547
  %v770 = vpack.c.b16 %v554, %v548
  %v771 = vpack.c.b16 %v555, %v549
  %v772 = vpack.c.b16 %v556, %v550
  %v773 = vpack.c.b16 %v557, %v551
  %v774 = vpack.c.b16 %v558, %v552
  %v775 = vpack.c.b16 %v565, %v559
  %v776 = vpack.c.b16 %v566, %v560
  %v777 = vpack.c.b16 %v567, %v561
  %v778 = vpack.c.b16 %v568, %v562
  %v779 = vpack.c.b16 %v569, %v563
  %v780 = vpack.c.b16 %v570, %v564
  %v781 = vpack.c.b16 %v577, %v571
  %v782 = vpack.c.b16 %v578, %v572
  %v783 = vpack.c.b16 %v579, %v573
  %v784 = vpack.c.b16 %v580, %v574
  %v785 = vpack.c.b16 %v581, %v575
  %v786 = vpack.c.b16 %v582, %v576
  %v787 = vpack.c.b16 %v589, %v583
  %v788 = vpack.c.b16 %v590, %v584
  %v789 = vpack.c.b16 %v591, %v585
  %v790 = vpack.c.b16 %v592, %v586
  %v791 = vpack.c.b16 %v593, %v587
  %v792 = vpack.c.b16 %v594, %v588
  %v793 = vpack.c.b16 %v601, %v595
  %v794 = vpack.c.b16 %v602, %v596
  %v795 = vpack.c.b16 %v603, %v597
  %v796 = vpack.c.b16 %v604, %v598
  %v797 = vpack.c.b16 %v605, %v599
  %v798 = vpack.c.b16 %v606, %v600
  %v799 = vpack.c.b16 %v613, %v607
  %v800 = vpack.c.b16 %v614, %v608
  %v801 = vpack.c.b16 %v615, %v609
  %v802 = vpack.c.b16 %v616, %v610
  %v803 = vpack.c.b16 %v617, %v611
  %v804 = vpack.c.b16 %v618, %v612
  %v805 = vpack.c.b16 %v625, %v619
  %v806 = vpack.c.b16 %v626, %v620
  %v807 = vpack.c.b16 %v627, %v621
  %v808 = vpack.c.b16 %v628, %v622
  %v809 = vpack.c.b16 %v629, %v623
  %v810 = vpack.c.b16 %v630, %v624
  %v811 = vpack.c.b16 %v637, %v631
  %v812 = vpack.c.b16 %v638, %v632
  %v813 = vpack.c.b16 %v639, %v633
  %v814 = vpack.c.b16 %v640, %v634
  %v815 = vpack.c.b16 %v641, %v635
  %v816 = vpack.c.b16 %v642, %v636
  %v817 = vpack.c.b16 %v649, %v643
  %v818 = vpack.c.b16 %v650, %v644
  %v819 = vpack.c.b16 %v651, %v645
  %v820 = vpack.c.b16 %v652, %v646
  %v821 = vpack.c.b16 %v653, %v647
  %v822 = vpack.c.b16 %v654, %v648
  %v823 = vpack.c.b16 %v661, %v655
  %v824 = vpack.c.b16 %v662, %v656
  %v825 = vpack.c.b16 %v663, %v657
  %v826 = vpack.c.b16 %v664, %v658
  %v827 = vpack.c.b16 %v665, %v659
  %v828 = vpack.c.b16 %v666, %v660
  %v829 = vpack.c.b16 %v673, %v667
  %v830 = vpack.c.b16 %v674, %v668
  %v831 = vpack.c.b16 %v675, %v669
  %v832 = vpack.c.b16 %v676, %v670
  %v833 = vpack.c.b16 %v677, %v671
  %v834 = vpack.c.b16 %v678, %v672
  %v835 = vpack.c.b16 %v685, %v679
  %v836 = vpack.c.b16 %v686, %v680
  %v837 = vpack.c.b16 %v687, %v681
  %v838 = vpack.c.b16 %v688, %v682
  %v839 = vpack.c.b16 %v689, %v683
  %v840 = vpack.c.b16 %v690, %v684
  %v841 = vpack.c.b16 %v691, %v691
  %v842 = vpack.c.b16 %v692, %v692
  %v843 = vpack.c.b16 %v693, %v693
  %v844 = vpack.c.b16 %v694, %v694
  %v845 = vpack.c.b16 %v695, %v695
  %v846 = vpack.c.b16 %v696, %v696
  %v1060 = vunpack.c.l.b16 %v168
  %v1061 = vunpack.c.l.b16 %v169
  %v1062 = vunpack.c.l.b16 %v170
  %v1063 = vunpack.c.l.b16 %v171
  %v1064 = vunpack.c.l.b16 %v172
  %v1065 = vunpack.c.l.b16 %v173
  %v1066 = vunpack.c.l.b16 %v174
  %v1067 = vunpack.c.l.b16 %v175
  %v1068 = vunpack.c.l.b16 %v176
  %v1069 = vunpack.c.l.b16 %v177
  %v1070 = vunpack.c.l.b16 %v178
  %v1071 = vunpack.c.l.b16 %v179
  %v1072 = vunpack.c.l.b16 %v180
  %v1073 = vunpack.c.l.b16 %v181
  %v1074 = vunpack.c.l.b16 %v182
  %v1075 = vunpack.c.l.b16 %v183
  %v1076 = vunpack.c.l.b16 %v184
  %v1077 = vunpack.c.l.b16 %v185
  %v1078 = vunpack.c.l.b16 %v186
  %v1079 = vunpack.c.l.b16 %v187
  %v1080 = vunpack.c.l.b16 %v188
  %v1081 = vunpack.c.l.b16 %v189
  %v1082 = vunpack.c.l.b16 %v190
  %v1083 = vunpack.c.l.b16 %v191
  %v1084 = vunpack.c.l.b16 %v192
  %v1085 = vunpack.c.l.b16 %v193
  %v1086 = vunpack.c.l.b16 %v194
  %v1087 = vunpack.c.l.b16 %v195
  %v1088 = vunpack.c.l.b16 %v196
  %v1089 = vunpack.c.l.b16 %v197
  %v1090 = vunpack.c.l.b16 %v198
  %v1091 = vunpack.c.l.b16 %v199
  %v1092 = vunpack.c.l.b16 %v200
  %v1093 = vunpack.c.l.b16 %v201
  %v1094 = vunpack.c.l.b16 %v202
  %v1095 = vunpack.c.l.b16 %v203
  %v1096 = vunpack.c.l.b16 %v204
  %v1097 = vunpack.c.l.b16 %v205
  %v1098 = vunpack.c.l.b16 %v206
  %v1099 = vunpack.c.l.b16 %v207
  %v1100 = vunpack.c.l.b16 %v208
  %v1101 = vunpack.c.l.b16 %v209
  %v1102 = vunpack.c.l.b16 %v210
  %v1103 = vunpack.c.l.b16 %v211
  %v1104 = vunpack.c.l.b16 %v212
  %v1105 = vunpack.c.l.b16 %v213
  %v1106 = vunpack.c.l.b16 %v214
  %v1107 = vunpack.c.l.b16 %v215
  %v1108 = vunpack.c.l.b16 %v216
  %v1109 = vunpack.c.l.b16 %v217
  %v1110 = vunpack.c.l.b16 %v218
  %v1111 = vunpack.c.l.b16 %v219
  %v1112 = vunpack.c.l.b16 %v220
  %v1113 = vunpack.c.l.b16 %v221
  %v1114 = vunpack.c.l.b16 %v222
  %v1115 = vunpack.c.l.b16 %v223
  %v1116 = vunpack.c.l.b16 %v224
  %v1117 = vunpack.c.l.b16 %v225
  %v1118 = vunpack.c.l.b16 %v226
  %v1119 = vunpack.c.l.b16 %v227
  %v1120 = vunpack.c.l.b16 %v228
  %v1121 = vunpack.c.l.b16 %v229
  %v1122 = vunpack.c.l.b16 %v230
  %v1123 = vunpack.c.l.b16 %v231
  %v1124 = vunpack.c.l.b16 %v232
  %v1125 = vunpack.c.l.b16 %v233
  %v1126 = vunpack.c.l.b16 %v234
  %v1127 = vunpack.c.l.b16 %v235
  %v1128 = vunpack.c.l.b16 %v236
  %v1129 = vunpack.c.l.b16 %v237
  %v1130 = vunpack.c.l.b16 %v238
  %v1131 = vunpack.c.l.b16 %v239
  %v1132 = vunpack.c.l.b16 %v240
  %v1133 = vunpack.c.l.b16 %v241
  %v1134 = vunpack.c.l.b16 %v242
  %v1135 = vunpack.c.l.b16 %v243
  %v1136 = vunpack.c.l.b16 %v244
  %v1137 = vunpack.c.l.b16 %v245
  %v1138 = vunpack.c.l.b16 %v246
  %v1139 = vunpack.c.l.b16 %v247
  %v1140 = vunpack.c.l.b16 %v248
  %v1141 = vunpack.c.l.b16 %v249
  %v1142 = vunpack.c.l.b16 %v250
  %v1143 = vunpack.c.l.b16 %v251
  %v1144 = vunpack.c.l.b16 %v252
  %v1145 = vunpack.c.l.b16 %v253
  %v1146 = vunpack.c.l.b16 %v254
  %v1147 = vunpack.c.l.b16 %v255
  %v1148 = vpack.c.b16 %v1061, %v1060
  %v1149 = vpack.c.b16 %v1063, %v1062
  %v1150 = vpack.c.b16 %v1065, %v1064
  %v1151 = vpack.c.b16 %v1067, %v1066
  %v1152 = vpack.c.b16 %v1069, %v1068
  %v1153 = vpack.c.b16 %v1071, %v1070
  %v1154 = vpack.c.b16 %v1073, %v1072
  %v1155 = vpack.c.b16 %v1075, %v1074
  %v1156 = vpack.c.b16 %v1077, %v1076
  %v1157 = vpack.c.b16 %v1079, %v1078
  %v1158 = vpack.c.b16 %v1081, %v1080
  %v1159 = vpack.c.b16 %v1083, %v1082
  %v1160 = vpack.c.b16 %v1085, %v1084
  %v1161 = vpack.c.b16 %v1087, %v1086
  %v1162 = vpack.c.b16 %v1089, %v1088
  %v1163 = vpack.c.b16 %v1091, %v1090
  %v1164 = vpack.c.b16 %v1093, %v1092
  %v1165 = vpack.c.b16 %v1095, %v1094
  %v1166 = vpack.c.b16 %v1097, %v1096
  %v1167 = vpack.c.b16 %v1099, %v1098
  %v1168 = vpack.c.b16 %v1101, %v1100
  %v1169 = vpack.c.b16 %v1103, %v1102
  %v1170 = vpack.c.b16 %v1105, %v1104
  %v1171 = vpack.c.b16 %v1107, %v1106
  %v1172 = vpack.c.b16 %v1109, %v1108
  %v1173 = vpack.c.b16 %v1111, %v1110
  %v1174 = vpack.c.b16 %v1113, %v1112
  %v1175 = vpack.c.b16 %v1115, %v1114
  %v1176 = vpack.c.b16 %v1117, %v1116
  %v1177 = vpack.c.b16 %v1119, %v1118
  %v1178 = vpack.c.b16 %v1121, %v1120
  %v1179 = vpack.c.b16 %v1123, %v1122
  %v1180 = vpack.c.b16 %v1125, %v1124
  %v1181 = vpack.c.b16 %v1127, %v1126
  %v1182 = vpack.c.b16 %v1129, %v1128
  %v1183 = vpack.c.b16 %v1131, %v1130
  %v1184 = vpack.c.b16 %v1133, %v1132
  %v1185 = vpack.c.b16 %v1135, %v1134
  %v1186 = vpack.c.b16 %v1137, %v1136
  %v1187 = vpack.c.b16 %v1139, %v1138
  %v1188 = vpack.c.b16 %v1141, %v1140
  %v1189 = vpack.c.b16 %v1143, %v1142
  %v1190 = vpack.c.b16 %v1145, %v1144
  %v1191 = vpack.c.b16 %v1147, %v1146
  %vm1235 = vcmask 490496
  %v1237 = vsel %vm1235, %v702, 0
  %v1240 = vsel %vm1235, %v708, 0
  %v1243 = vsel %vm1235, %v714, 0
  %v1246 = vsel %vm1235, %v720, 0
  %v1249 = vsel %vm1235, %v726, 0
  %v1252 = vsel %vm1235, %v732, 0
  %v1255 = vsel %vm1235, %v738, 0
  %v1258 = vsel %vm1235, %v744, 0
  %v1261 = vsel %vm1235, %v750, 0
  %v1264 = vsel %vm1235, %v756, 0
  %v1267 = vsel %vm1235, %v762, 0
  %v1270 = vsel %vm1235, %v768, 0
  %v1273 = vsel %vm1235, %v774, 0
  %v1276 = vsel %vm1235, %v780, 0
  %v1279 = vsel %vm1235, %v786, 0
  %v1282 = vsel %vm1235, %v792, 0
  %v1285 = vsel %vm1235, %v798, 0
  %v1288 = vsel %vm1235, %v804, 0
  %v1291 = vsel %vm1235, %v810, 0
  %v1294 = vsel %vm1235, %v816, 0
  %v1297 = vsel %vm1235, %v822, 0
  %v1300 = vsel %vm1235, %v828, 0
  %v1303 = vsel %vm1235, %v834, 0
  %v1306 = vsel %vm1235, %v840, 0
  %v1309 = vsel %vm1235, %v846, 0
  %vm1311 = vcmask 1045504
  %v1313 = vsel %vm1311, %v1191, 0
  %1315 = vmatprep.subr.bf16.mxu0 0
  %1316 = vmatpush1.bf16.msra.mxu0 %v1155
  %1317 = vmatprep.subr.bf16.mxu0 0
  %1318 = vmatpush1.bf16.msra.mxu0 %v1154
  %1319 = vmatprep.subr.bf16.mxu0 0
  %1320 = vmatpush1.bf16.msra.mxu0 %v1153
  %1321 = vmatprep.subr.bf16.mxu0 0
  %1322 = vmatpush1.bf16.msra.mxu0 %v1152
  %1323 = vmatprep.subr.bf16.mxu0 0
  %1324 = vmatpush1.bf16.msra.mxu0 %v1151
  %1325 = vmatprep.subr.bf16.mxu0 0
  %1326 = vmatpush1.bf16.msra.mxu0 %v1150
  %1327 = vmatprep.subr.bf16.mxu0 0
  %1328 = vmatpush1.bf16.msra.mxu0 %v1149
  %1329 = vmatprep.subr.bf16.mxu0 0
  %1330 = vmatpush1.bf16.msra.mxu0 %v1148
  %1331 = vmatprep.subr.bf16.mxu0 0
  %1332 = vmatpush2.bf16.msra.mxu0 %v1163
  %1333 = vmatprep.subr.bf16.mxu0 0
  %1334 = vmatpush2.bf16.msra.mxu0 %v1162
  %1335 = vmatprep.subr.bf16.mxu0 0
  %1336 = vmatpush2.bf16.msra.mxu0 %v1161
  %1337 = vmatprep.subr.bf16.mxu0 0
  %1338 = vmatpush2.bf16.msra.mxu0 %v1160
  %1339 = vmatprep.subr.bf16.mxu0 0
  %1340 = vmatpush2.bf16.msra.mxu0 %v1159
  %1341 = vmatprep.subr.bf16.mxu0 0
  %1342 = vmatpush2.bf16.msra.mxu0 %v1158
  %1343 = vmatprep.subr.bf16.mxu0 0
  %1344 = vmatpush2.bf16.msra.mxu0 %v1157
  %1345 = vmatprep.subr.bf16.mxu0 0
  %1346 = vmatpush2.bf16.msra.mxu0 %v1156
  %1347 = vmatprep.mubr.bf16.mxu0 %v698
  %1348 = vmatmul.mubr.bf16.gmra.mxu0 %v697
  %v1349 = vpop.f32.mrf.mxu0
  %v1350 = vadd.f32 0.0, %v1349
  %v1351 = vpop.f32.mrf.mxu0
  %v1352 = vpop.f32.mrf.mxu0
  %v1353 = vadd.f32 0.0, %v1352
  %v1354 = vpop.f32.mrf.mxu0
  %1355 = vmatprep.mubr.bf16.mxu0 %v704
  %1356 = vmatmul.mubr.bf16.gmra.mxu0 %v703
  %v1357 = vpop.f32.mrf.mxu0
  %v1358 = vadd.f32 0.0, %v1357
  %v1359 = vpop.f32.mrf.mxu0
  %v1360 = vpop.f32.mrf.mxu0
  %v1361 = vadd.f32 0.0, %v1360
  %v1362 = vpop.f32.mrf.mxu0
  %1363 = vmatprep.mubr.bf16.mxu0 %v710
  %1364 = vmatmul.mubr.bf16.gmra.mxu0 %v709
  %v1365 = vpop.f32.mrf.mxu0
  %v1366 = vadd.f32 0.0, %v1365
  %v1367 = vpop.f32.mrf.mxu0
  %v1368 = vpop.f32.mrf.mxu0
  %v1369 = vadd.f32 0.0, %v1368
  %v1370 = vpop.f32.mrf.mxu0
  %1371 = vmatprep.mubr.bf16.mxu0 %v716
  %1372 = vmatmul.mubr.bf16.gmra.mxu0 %v715
  %v1373 = vpop.f32.mrf.mxu0
  %v1374 = vadd.f32 0.0, %v1373
  %v1375 = vpop.f32.mrf.mxu0
  %v1376 = vpop.f32.mrf.mxu0
  %v1377 = vadd.f32 0.0, %v1376
  %v1378 = vpop.f32.mrf.mxu0
  %1379 = vmatprep.mubr.bf16.mxu0 %v722
  %1380 = vmatmul.mubr.bf16.gmra.mxu0 %v721
  %v1381 = vpop.f32.mrf.mxu0
  %v1382 = vadd.f32 0.0, %v1381
  %v1383 = vpop.f32.mrf.mxu0
  %v1384 = vpop.f32.mrf.mxu0
  %v1385 = vadd.f32 0.0, %v1384
  %v1386 = vpop.f32.mrf.mxu0
  %1387 = vmatprep.mubr.bf16.mxu0 %v728
  %1388 = vmatmul.mubr.bf16.gmra.mxu0 %v727
  %v1389 = vpop.f32.mrf.mxu0
  %v1390 = vadd.f32 0.0, %v1389
  %v1391 = vpop.f32.mrf.mxu0
  %v1392 = vpop.f32.mrf.mxu0
  %v1393 = vadd.f32 0.0, %v1392
  %v1394 = vpop.f32.mrf.mxu0
  %1395 = vmatprep.mubr.bf16.mxu0 %v734
  %1396 = vmatmul.mubr.bf16.gmra.mxu0 %v733
  %v1397 = vpop.f32.mrf.mxu0
  %v1398 = vadd.f32 0.0, %v1397
  %v1399 = vpop.f32.mrf.mxu0
  %v1400 = vpop.f32.mrf.mxu0
  %v1401 = vadd.f32 0.0, %v1400
  %v1402 = vpop.f32.mrf.mxu0
  %1403 = vmatprep.mubr.bf16.mxu0 %v740
  %1404 = vmatmul.mubr.bf16.gmra.mxu0 %v739
  %v1405 = vpop.f32.mrf.mxu0
  %v1406 = vadd.f32 0.0, %v1405
  %v1407 = vpop.f32.mrf.mxu0
  %v1408 = vpop.f32.mrf.mxu0
  %v1409 = vadd.f32 0.0, %v1408
  %v1410 = vpop.f32.mrf.mxu0
  %1411 = vmatprep.mubr.bf16.mxu0 %v746
  %1412 = vmatmul.mubr.bf16.gmra.mxu0 %v745
  %v1413 = vpop.f32.mrf.mxu0
  %v1414 = vadd.f32 0.0, %v1413
  %v1415 = vpop.f32.mrf.mxu0
  %v1416 = vpop.f32.mrf.mxu0
  %v1417 = vadd.f32 0.0, %v1416
  %v1418 = vpop.f32.mrf.mxu0
  %1419 = vmatprep.mubr.bf16.mxu0 %v752
  %1420 = vmatmul.mubr.bf16.gmra.mxu0 %v751
  %v1421 = vpop.f32.mrf.mxu0
  %v1422 = vadd.f32 0.0, %v1421
  %v1423 = vpop.f32.mrf.mxu0
  %v1424 = vpop.f32.mrf.mxu0
  %v1425 = vadd.f32 0.0, %v1424
  %v1426 = vpop.f32.mrf.mxu0
  %1427 = vmatprep.mubr.bf16.mxu0 %v758
  %1428 = vmatmul.mubr.bf16.gmra.mxu0 %v757
  %v1429 = vpop.f32.mrf.mxu0
  %v1430 = vadd.f32 0.0, %v1429
  %v1431 = vpop.f32.mrf.mxu0
  %v1432 = vpop.f32.mrf.mxu0
  %v1433 = vadd.f32 0.0, %v1432
  %v1434 = vpop.f32.mrf.mxu0
  %1435 = vmatprep.mubr.bf16.mxu0 %v764
  %1436 = vmatmul.mubr.bf16.gmra.mxu0 %v763
  %v1437 = vpop.f32.mrf.mxu0
  %v1438 = vadd.f32 0.0, %v1437
  %v1439 = vpop.f32.mrf.mxu0
  %v1440 = vpop.f32.mrf.mxu0
  %v1441 = vadd.f32 0.0, %v1440
  %v1442 = vpop.f32.mrf.mxu0
  %1443 = vmatprep.mubr.bf16.mxu0 %v770
  %1444 = vmatmul.mubr.bf16.gmra.mxu0 %v769
  %v1445 = vpop.f32.mrf.mxu0
  %v1446 = vadd.f32 0.0, %v1445
  %v1447 = vpop.f32.mrf.mxu0
  %v1448 = vpop.f32.mrf.mxu0
  %v1449 = vadd.f32 0.0, %v1448
  %v1450 = vpop.f32.mrf.mxu0
  %1451 = vmatprep.mubr.bf16.mxu0 %v776
  %1452 = vmatmul.mubr.bf16.gmra.mxu0 %v775
  %v1453 = vpop.f32.mrf.mxu0
  %v1454 = vadd.f32 0.0, %v1453
  %v1455 = vpop.f32.mrf.mxu0
  %v1456 = vpop.f32.mrf.mxu0
  %v1457 = vadd.f32 0.0, %v1456
  %v1458 = vpop.f32.mrf.mxu0
  %1459 = vmatprep.mubr.bf16.mxu0 %v782
  %1460 = vmatmul.mubr.bf16.gmra.mxu0 %v781
  %v1461 = vpop.f32.mrf.mxu0
  %v1462 = vadd.f32 0.0, %v1461
  %v1463 = vpop.f32.mrf.mxu0
  %v1464 = vpop.f32.mrf.mxu0
  %v1465 = vadd.f32 0.0, %v1464
  %v1466 = vpop.f32.mrf.mxu0
  %1467 = vmatprep.mubr.bf16.mxu0 %v788
  %1468 = vmatmul.mubr.bf16.gmra.mxu0 %v787
  %v1469 = vpop.f32.mrf.mxu0
  %v1470 = vadd.f32 0.0, %v1469
  %v1471 = vpop.f32.mrf.mxu0
  %v1472 = vpop.f32.mrf.mxu0
  %v1473 = vadd.f32 0.0, %v1472
  %v1474 = vpop.f32.mrf.mxu0
  %1475 = vmatprep.mubr.bf16.mxu0 %v794
  %1476 = vmatmul.mubr.bf16.gmra.mxu0 %v793
  %v1477 = vpop.f32.mrf.mxu0
  %v1478 = vadd.f32 0.0, %v1477
  %v1479 = vpop.f32.mrf.mxu0
  %v1480 = vpop.f32.mrf.mxu0
  %v1481 = vadd.f32 0.0, %v1480
  %v1482 = vpop.f32.mrf.mxu0
  %1483 = vmatprep.mubr.bf16.mxu0 %v800
  %1484 = vmatmul.mubr.bf16.gmra.mxu0 %v799
  %v1485 = vpop.f32.mrf.mxu0
  %v1486 = vadd.f32 0.0, %v1485
  %v1487 = vpop.f32.mrf.mxu0
  %v1488 = vpop.f32.mrf.mxu0
  %v1489 = vadd.f32 0.0, %v1488
  %v1490 = vpop.f32.mrf.mxu0
  %1491 = vmatprep.mubr.bf16.mxu0 %v806
  %1492 = vmatmul.mubr.bf16.gmra.mxu0 %v805
  %v1493 = vpop.f32.mrf.mxu0
  %v1494 = vadd.f32 0.0, %v1493
  %v1495 = vpop.f32.mrf.mxu0
  %v1496 = vpop.f32.mrf.mxu0
  %v1497 = vadd.f32 0.0, %v1496
  %v1498 = vpop.f32.mrf.mxu0
  %1499 = vmatprep.mubr.bf16.mxu0 %v812
  %1500 = vmatmul.mubr.bf16.gmra.mxu0 %v811
  %v1501 = vpop.f32.mrf.mxu0
  %v1502 = vadd.f32 0.0, %v1501
  %v1503 = vpop.f32.mrf.mxu0
  %v1504 = vpop.f32.mrf.mxu0
  %v1505 = vadd.f32 0.0, %v1504
  %v1506 = vpop.f32.mrf.mxu0
  %1507 = vmatprep.mubr.bf16.mxu0 %v818
  %1508 = vmatmul.mubr.bf16.gmra.mxu0 %v817
  %v1509 = vpop.f32.mrf.mxu0
  %v1510 = vadd.f32 0.0, %v1509
  %v1511 = vpop.f32.mrf.mxu0
  %v1512 = vpop.f32.mrf.mxu0
  %v1513 = vadd.f32 0.0, %v1512
  %v1514 = vpop.f32.mrf.mxu0
  %1515 = vmatprep.mubr.bf16.mxu0 %v824
  %1516 = vmatmul.mubr.bf16.gmra.mxu0 %v823
  %v1517 = vpop.f32.mrf.mxu0
  %v1518 = vadd.f32 0.0, %v1517
  %v1519 = vpop.f32.mrf.mxu0
  %v1520 = vpop.f32.mrf.mxu0
  %v1521 = vadd.f32 0.0, %v1520
  %v1522 = vpop.f32.mrf.mxu0
  %1523 = vmatprep.mubr.bf16.mxu0 %v830
  %1524 = vmatmul.mubr.bf16.gmra.mxu0 %v829
  %v1525 = vpop.f32.mrf.mxu0
  %v1526 = vadd.f32 0.0, %v1525
  %v1527 = vpop.f32.mrf.mxu0
  %v1528 = vpop.f32.mrf.mxu0
  %v1529 = vadd.f32 0.0, %v1528
  %v1530 = vpop.f32.mrf.mxu0
  %1531 = vmatprep.mubr.bf16.mxu0 %v836
  %1532 = vmatmul.mubr.bf16.gmra.mxu0 %v835
  %v1533 = vpop.f32.mrf.mxu0
  %v1534 = vadd.f32 0.0, %v1533
  %v1535 = vpop.f32.mrf.mxu0
  %v1536 = vpop.f32.mrf.mxu0
  %v1537 = vadd.f32 0.0, %v1536
  %v1538 = vpop.f32.mrf.mxu0
  %1539 = vmatprep.mubr.bf16.mxu0 %v842
  %1540 = vmatmul.mubr.bf16.gmra.mxu0 %v841
  %v1541 = vpop.f32.mrf.mxu0
  %v1542 = vadd.f32 0.0, %v1541
  %v1543 = vpop.f32.mrf.mxu0
  %v1544 = vpop.f32.mrf.mxu0
  %v1545 = vpop.f32.mrf.mxu0
  %1546 = vdwg.mxu0
  %1547 = vmatprep.subr.bf16.mxu0 0
  %1548 = vmatpush1.bf16.msra.mxu0 %v1171
  %1549 = vmatprep.subr.bf16.mxu0 0
  %1550 = vmatpush1.bf16.msra.mxu0 %v1170
  %1551 = vmatprep.subr.bf16.mxu0 0
  %1552 = vmatpush1.bf16.msra.mxu0 %v1169
  %1553 = vmatprep.subr.bf16.mxu0 0
  %1554 = vmatpush1.bf16.msra.mxu0 %v1168
  %1555 = vmatprep.subr.bf16.mxu0 0
  %1556 = vmatpush1.bf16.msra.mxu0 %v1167
  %1557 = vmatprep.subr.bf16.mxu0 0
  %1558 = vmatpush1.bf16.msra.mxu0 %v1166
  %1559 = vmatprep.subr.bf16.mxu0 0
  %1560 = vmatpush1.bf16.msra.mxu0 %v1165
  %1561 = vmatprep.subr.bf16.mxu0 0
  %1562 = vmatpush1.bf16.msra.mxu0 %v1164
  %1563 = vmatprep.subr.bf16.mxu0 0
  %1564 = vmatpush2.bf16.msra.mxu0 %v1179
  %1565 = vmatprep.subr.bf16.mxu0 0
  %1566 = vmatpush2.bf16.msra.mxu0 %v1178
  %1567 = vmatprep.subr.bf16.mxu0 0
  %1568 = vmatpush2.bf16.msra.mxu0 %v1177
  %1569 = vmatprep.subr.bf16.mxu0 0
  %1570 = vmatpush2.bf16.msra.mxu0 %v1176
  %1571 = vmatprep.subr.bf16.mxu0 0
  %1572 = vmatpush2.bf16.msra.mxu0 %v1175
  %1573 = vmatprep.subr.bf16.mxu0 0
  %1574 = vmatpush2.bf16.msra.mxu0 %v1174
  %1575 = vmatprep.subr.bf16.mxu0 0
  %1576 = vmatpush2.bf16.msra.mxu0 %v1173
  %1577 = vmatprep.subr.bf16.mxu0 0
  %1578 = vmatpush2.bf16.msra.mxu0 %v1172
  %1579 = vmatprep.mubr.bf16.mxu0 %v700
  %1580 = vmatmul.mubr.bf16.gmra.mxu0 %v699
  %v1581 = vpop.f32.mrf.mxu0
  %v1582 = vadd.f32 %v1350, %v1581
  %v1583 = vpop.f32.mrf.mxu0
  %v1584 = vpop.f32.mrf.mxu0
  %v1585 = vadd.f32 %v1353, %v1584
  %v1586 = vpop.f32.mrf.mxu0
  %1587 = vmatprep.mubr.bf16.mxu0 %v706
  %1588 = vmatmul.mubr.bf16.gmra.mxu0 %v705
  %v1589 = vpop.f32.mrf.mxu0
  %v1590 = vadd.f32 %v1358, %v1589
  %v1591 = vpop.f32.mrf.mxu0
  %v1592 = vpop.f32.mrf.mxu0
  %v1593 = vadd.f32 %v1361, %v1592
  %v1594 = vpop.f32.mrf.mxu0
  %1595 = vmatprep.mubr.bf16.mxu0 %v712
  %1596 = vmatmul.mubr.bf16.gmra.mxu0 %v711
  %v1597 = vpop.f32.mrf.mxu0
  %v1598 = vadd.f32 %v1366, %v1597
  %v1599 = vpop.f32.mrf.mxu0
  %v1600 = vpop.f32.mrf.mxu0
  %v1601 = vadd.f32 %v1369, %v1600
  %v1602 = vpop.f32.mrf.mxu0
  %1603 = vmatprep.mubr.bf16.mxu0 %v718
  %1604 = vmatmul.mubr.bf16.gmra.mxu0 %v717
  %v1605 = vpop.f32.mrf.mxu0
  %v1606 = vadd.f32 %v1374, %v1605
  %v1607 = vpop.f32.mrf.mxu0
  %v1608 = vpop.f32.mrf.mxu0
  %v1609 = vadd.f32 %v1377, %v1608
  %v1610 = vpop.f32.mrf.mxu0
  %1611 = vmatprep.mubr.bf16.mxu0 %v724
  %1612 = vmatmul.mubr.bf16.gmra.mxu0 %v723
  %v1613 = vpop.f32.mrf.mxu0
  %v1614 = vadd.f32 %v1382, %v1613
  %v1615 = vpop.f32.mrf.mxu0
  %v1616 = vpop.f32.mrf.mxu0
  %v1617 = vadd.f32 %v1385, %v1616
  %v1618 = vpop.f32.mrf.mxu0
  %1619 = vmatprep.mubr.bf16.mxu0 %v730
  %1620 = vmatmul.mubr.bf16.gmra.mxu0 %v729
  %v1621 = vpop.f32.mrf.mxu0
  %v1622 = vadd.f32 %v1390, %v1621
  %v1623 = vpop.f32.mrf.mxu0
  %v1624 = vpop.f32.mrf.mxu0
  %v1625 = vadd.f32 %v1393, %v1624
  %v1626 = vpop.f32.mrf.mxu0
  %1627 = vmatprep.mubr.bf16.mxu0 %v736
  %1628 = vmatmul.mubr.bf16.gmra.mxu0 %v735
  %v1629 = vpop.f32.mrf.mxu0
  %v1630 = vadd.f32 %v1398, %v1629
  %v1631 = vpop.f32.mrf.mxu0
  %v1632 = vpop.f32.mrf.mxu0
  %v1633 = vadd.f32 %v1401, %v1632
  %v1634 = vpop.f32.mrf.mxu0
  %1635 = vmatprep.mubr.bf16.mxu0 %v742
  %1636 = vmatmul.mubr.bf16.gmra.mxu0 %v741
  %v1637 = vpop.f32.mrf.mxu0
  %v1638 = vadd.f32 %v1406, %v1637
  %v1639 = vpop.f32.mrf.mxu0
  %v1640 = vpop.f32.mrf.mxu0
  %v1641 = vadd.f32 %v1409, %v1640
  %v1642 = vpop.f32.mrf.mxu0
  %1643 = vmatprep.mubr.bf16.mxu0 %v748
  %1644 = vmatmul.mubr.bf16.gmra.mxu0 %v747
  %v1645 = vpop.f32.mrf.mxu0
  %v1646 = vadd.f32 %v1414, %v1645
  %v1647 = vpop.f32.mrf.mxu0
  %v1648 = vpop.f32.mrf.mxu0
  %v1649 = vadd.f32 %v1417, %v1648
  %v1650 = vpop.f32.mrf.mxu0
  %1651 = vmatprep.mubr.bf16.mxu0 %v754
  %1652 = vmatmul.mubr.bf16.gmra.mxu0 %v753
  %v1653 = vpop.f32.mrf.mxu0
  %v1654 = vadd.f32 %v1422, %v1653
  %v1655 = vpop.f32.mrf.mxu0
  %v1656 = vpop.f32.mrf.mxu0
  %v1657 = vadd.f32 %v1425, %v1656
  %v1658 = vpop.f32.mrf.mxu0
  %1659 = vmatprep.mubr.bf16.mxu0 %v760
  %1660 = vmatmul.mubr.bf16.gmra.mxu0 %v759
  %v1661 = vpop.f32.mrf.mxu0
  %v1662 = vadd.f32 %v1430, %v1661
  %v1663 = vpop.f32.mrf.mxu0
  %v1664 = vpop.f32.mrf.mxu0
  %v1665 = vadd.f32 %v1433, %v1664
  %v1666 = vpop.f32.mrf.mxu0
  %1667 = vmatprep.mubr.bf16.mxu0 %v766
  %1668 = vmatmul.mubr.bf16.gmra.mxu0 %v765
  %v1669 = vpop.f32.mrf.mxu0
  %v1670 = vadd.f32 %v1438, %v1669
  %v1671 = vpop.f32.mrf.mxu0
  %v1672 = vpop.f32.mrf.mxu0
  %v1673 = vadd.f32 %v1441, %v1672
  %v1674 = vpop.f32.mrf.mxu0
  %1675 = vmatprep.mubr.bf16.mxu0 %v772
  %1676 = vmatmul.mubr.bf16.gmra.mxu0 %v771
  %v1677 = vpop.f32.mrf.mxu0
  %v1678 = vadd.f32 %v1446, %v1677
  %v1679 = vpop.f32.mrf.mxu0
  %v1680 = vpop.f32.mrf.mxu0
  %v1681 = vadd.f32 %v1449, %v1680
  %v1682 = vpop.f32.mrf.mxu0
  %1683 = vmatprep.mubr.bf16.mxu0 %v778
  %1684 = vmatmul.mubr.bf16.gmra.mxu0 %v777
  %v1685 = vpop.f32.mrf.mxu0
  %v1686 = vadd.f32 %v1454, %v1685
  %v1687 = vpop.f32.mrf.mxu0
  %v1688 = vpop.f32.mrf.mxu0
  %v1689 = vadd.f32 %v1457, %v1688
  %v1690 = vpop.f32.mrf.mxu0
  %1691 = vmatprep.mubr.bf16.mxu0 %v784
  %1692 = vmatmul.mubr.bf16.gmra.mxu0 %v783
  %v1693 = vpop.f32.mrf.mxu0
  %v1694 = vadd.f32 %v1462, %v1693
  %v1695 = vpop.f32.mrf.mxu0
  %v1696 = vpop.f32.mrf.mxu0
  %v1697 = vadd.f32 %v1465, %v1696
  %v1698 = vpop.f32.mrf.mxu0
  %1699 = vmatprep.mubr.bf16.mxu0 %v790
  %1700 = vmatmul.mubr.bf16.gmra.mxu0 %v789
  %v1701 = vpop.f32.mrf.mxu0
  %v1702 = vadd.f32 %v1470, %v1701
  %v1703 = vpop.f32.mrf.mxu0
  %v1704 = vpop.f32.mrf.mxu0
  %v1705 = vadd.f32 %v1473, %v1704
  %v1706 = vpop.f32.mrf.mxu0
  %1707 = vmatprep.mubr.bf16.mxu0 %v796
  %1708 = vmatmul.mubr.bf16.gmra.mxu0 %v795
  %v1709 = vpop.f32.mrf.mxu0
  %v1710 = vadd.f32 %v1478, %v1709
  %v1711 = vpop.f32.mrf.mxu0
  %v1712 = vpop.f32.mrf.mxu0
  %v1713 = vadd.f32 %v1481, %v1712
  %v1714 = vpop.f32.mrf.mxu0
  %1715 = vmatprep.mubr.bf16.mxu0 %v802
  %1716 = vmatmul.mubr.bf16.gmra.mxu0 %v801
  %v1717 = vpop.f32.mrf.mxu0
  %v1718 = vadd.f32 %v1486, %v1717
  %v1719 = vpop.f32.mrf.mxu0
  %v1720 = vpop.f32.mrf.mxu0
  %v1721 = vadd.f32 %v1489, %v1720
  %v1722 = vpop.f32.mrf.mxu0
  %1723 = vmatprep.mubr.bf16.mxu0 %v808
  %1724 = vmatmul.mubr.bf16.gmra.mxu0 %v807
  %v1725 = vpop.f32.mrf.mxu0
  %v1726 = vadd.f32 %v1494, %v1725
  %v1727 = vpop.f32.mrf.mxu0
  %v1728 = vpop.f32.mrf.mxu0
  %v1729 = vadd.f32 %v1497, %v1728
  %v1730 = vpop.f32.mrf.mxu0
  %1731 = vmatprep.mubr.bf16.mxu0 %v814
  %1732 = vmatmul.mubr.bf16.gmra.mxu0 %v813
  %v1733 = vpop.f32.mrf.mxu0
  %v1734 = vadd.f32 %v1502, %v1733
  %v1735 = vpop.f32.mrf.mxu0
  %v1736 = vpop.f32.mrf.mxu0
  %v1737 = vadd.f32 %v1505, %v1736
  %v1738 = vpop.f32.mrf.mxu0
  %1739 = vmatprep.mubr.bf16.mxu0 %v820
  %1740 = vmatmul.mubr.bf16.gmra.mxu0 %v819
  %v1741 = vpop.f32.mrf.mxu0
  %v1742 = vadd.f32 %v1510, %v1741
  %v1743 = vpop.f32.mrf.mxu0
  %v1744 = vpop.f32.mrf.mxu0
  %v1745 = vadd.f32 %v1513, %v1744
  %v1746 = vpop.f32.mrf.mxu0
  %1747 = vmatprep.mubr.bf16.mxu0 %v826
  %1748 = vmatmul.mubr.bf16.gmra.mxu0 %v825
  %v1749 = vpop.f32.mrf.mxu0
  %v1750 = vadd.f32 %v1518, %v1749
  %v1751 = vpop.f32.mrf.mxu0
  %v1752 = vpop.f32.mrf.mxu0
  %v1753 = vadd.f32 %v1521, %v1752
  %v1754 = vpop.f32.mrf.mxu0
  %1755 = vmatprep.mubr.bf16.mxu0 %v832
  %1756 = vmatmul.mubr.bf16.gmra.mxu0 %v831
  %v1757 = vpop.f32.mrf.mxu0
  %v1758 = vadd.f32 %v1526, %v1757
  %v1759 = vpop.f32.mrf.mxu0
  %v1760 = vpop.f32.mrf.mxu0
  %v1761 = vadd.f32 %v1529, %v1760
  %v1762 = vpop.f32.mrf.mxu0
  %1763 = vmatprep.mubr.bf16.mxu0 %v838
  %1764 = vmatmul.mubr.bf16.gmra.mxu0 %v837
  %v1765 = vpop.f32.mrf.mxu0
  %v1766 = vadd.f32 %v1534, %v1765
  %v1767 = vpop.f32.mrf.mxu0
  %v1768 = vpop.f32.mrf.mxu0
  %v1769 = vadd.f32 %v1537, %v1768
  %v1770 = vpop.f32.mrf.mxu0
  %1771 = vmatprep.mubr.bf16.mxu0 %v844
  %1772 = vmatmul.mubr.bf16.gmra.mxu0 %v843
  %v1773 = vpop.f32.mrf.mxu0
  %v1774 = vadd.f32 %v1542, %v1773
  %v1775 = vpop.f32.mrf.mxu0
  %v1776 = vpop.f32.mrf.mxu0
  %v1777 = vpop.f32.mrf.mxu0
  %1778 = vdwg.mxu0
  %1779 = vmatprep.subr.bf16.mxu0 0
  %1780 = vmatpush1.bf16.msra.mxu0 %v1187
  %1781 = vmatprep.subr.bf16.mxu0 0
  %1782 = vmatpush1.bf16.msra.mxu0 %v1186
  %1783 = vmatprep.subr.bf16.mxu0 0
  %1784 = vmatpush1.bf16.msra.mxu0 %v1185
  %1785 = vmatprep.subr.bf16.mxu0 0
  %1786 = vmatpush1.bf16.msra.mxu0 %v1184
  %1787 = vmatprep.subr.bf16.mxu0 0
  %1788 = vmatpush1.bf16.msra.mxu0 %v1183
  %1789 = vmatprep.subr.bf16.mxu0 0
  %1790 = vmatpush1.bf16.msra.mxu0 %v1182
  %1791 = vmatprep.subr.bf16.mxu0 0
  %1792 = vmatpush1.bf16.msra.mxu0 %v1181
  %1793 = vmatprep.subr.bf16.mxu0 0
  %1794 = vmatpush1.bf16.msra.mxu0 %v1180
  %1795 = vmatprep.subr.bf16.mxu0 0
  %1796 = vmatpush2.bf16.msra.mxu0 0
  %1797 = vmatprep.subr.bf16.mxu0 0
  %1798 = vmatpush2.bf16.msra.mxu0 0
  %1799 = vmatprep.subr.bf16.mxu0 0
  %1800 = vmatpush2.bf16.msra.mxu0 0
  %1801 = vmatprep.subr.bf16.mxu0 0
  %1802 = vmatpush2.bf16.msra.mxu0 0
  %1803 = vmatprep.subr.bf16.mxu0 0
  %1804 = vmatpush2.bf16.msra.mxu0 %v1313
  %1805 = vmatprep.subr.bf16.mxu0 0
  %1806 = vmatpush2.bf16.msra.mxu0 %v1190
  %1807 = vmatprep.subr.bf16.mxu0 0
  %1808 = vmatpush2.bf16.msra.mxu0 %v1189
  %1809 = vmatprep.subr.bf16.mxu0 0
  %1810 = vmatpush2.bf16.msra.mxu0 %v1188
  %1811 = vmatprep.mubr.bf16.mxu0 %v1237
  %1812 = vmatmul.mubr.bf16.gmra.mxu0 %v701
  %v1813 = vpop.f32.mrf.mxu0
  %v1814 = vadd.f32 %v1582, %v1813
  %v1815 = vpop.f32.mrf.mxu0
  %v1816 = vpop.f32.mrf.mxu0
  %v1817 = vadd.f32 %v1585, %v1816
  %v1818 = vpop.f32.mrf.mxu0
  %1819 = vmatprep.mubr.bf16.mxu0 %v1240
  %1820 = vmatmul.mubr.bf16.gmra.mxu0 %v707
  %v1821 = vpop.f32.mrf.mxu0
  %v1822 = vadd.f32 %v1590, %v1821
  %v1823 = vpop.f32.mrf.mxu0
  %v1824 = vpop.f32.mrf.mxu0
  %v1825 = vadd.f32 %v1593, %v1824
  %v1826 = vpop.f32.mrf.mxu0
  %1827 = vmatprep.mubr.bf16.mxu0 %v1243
  %1828 = vmatmul.mubr.bf16.gmra.mxu0 %v713
  %v1829 = vpop.f32.mrf.mxu0
  %v1830 = vadd.f32 %v1598, %v1829
  %v1831 = vpop.f32.mrf.mxu0
  %v1832 = vpop.f32.mrf.mxu0
  %v1833 = vadd.f32 %v1601, %v1832
  %v1834 = vpop.f32.mrf.mxu0
  %1835 = vmatprep.mubr.bf16.mxu0 %v1246
  %1836 = vmatmul.mubr.bf16.gmra.mxu0 %v719
  %v1837 = vpop.f32.mrf.mxu0
  %v1838 = vadd.f32 %v1606, %v1837
  %v1839 = vpop.f32.mrf.mxu0
  %v1840 = vpop.f32.mrf.mxu0
  %v1841 = vadd.f32 %v1609, %v1840
  %v1842 = vpop.f32.mrf.mxu0
  %1843 = vmatprep.mubr.bf16.mxu0 %v1249
  %1844 = vmatmul.mubr.bf16.gmra.mxu0 %v725
  %v1845 = vpop.f32.mrf.mxu0
  %v1846 = vadd.f32 %v1614, %v1845
  %v1847 = vpop.f32.mrf.mxu0
  %v1848 = vpop.f32.mrf.mxu0
  %v1849 = vadd.f32 %v1617, %v1848
  %v1850 = vpop.f32.mrf.mxu0
  %1851 = vmatprep.mubr.bf16.mxu0 %v1252
  %1852 = vmatmul.mubr.bf16.gmra.mxu0 %v731
  %v1853 = vpop.f32.mrf.mxu0
  %v1854 = vadd.f32 %v1622, %v1853
  %v1855 = vpop.f32.mrf.mxu0
  %v1856 = vpop.f32.mrf.mxu0
  %v1857 = vadd.f32 %v1625, %v1856
  %v1858 = vpop.f32.mrf.mxu0
  %1859 = vmatprep.mubr.bf16.mxu0 %v1255
  %1860 = vmatmul.mubr.bf16.gmra.mxu0 %v737
  %v1861 = vpop.f32.mrf.mxu0
  %v1862 = vadd.f32 %v1630, %v1861
  %v1863 = vpop.f32.mrf.mxu0
  %v1864 = vpop.f32.mrf.mxu0
  %v1865 = vadd.f32 %v1633, %v1864
  %v1866 = vpop.f32.mrf.mxu0
  %1867 = vmatprep.mubr.bf16.mxu0 %v1258
  %1868 = vmatmul.mubr.bf16.gmra.mxu0 %v743
  %v1869 = vpop.f32.mrf.mxu0
  %v1870 = vadd.f32 %v1638, %v1869
  %v1871 = vpop.f32.mrf.mxu0
  %v1872 = vpop.f32.mrf.mxu0
  %v1873 = vadd.f32 %v1641, %v1872
  %v1874 = vpop.f32.mrf.mxu0
  %1875 = vmatprep.mubr.bf16.mxu0 %v1261
  %1876 = vmatmul.mubr.bf16.gmra.mxu0 %v749
  %v1877 = vpop.f32.mrf.mxu0
  %v1878 = vadd.f32 %v1646, %v1877
  %v1879 = vpop.f32.mrf.mxu0
  %v1880 = vpop.f32.mrf.mxu0
  %v1881 = vadd.f32 %v1649, %v1880
  %v1882 = vpop.f32.mrf.mxu0
  %1883 = vmatprep.mubr.bf16.mxu0 %v1264
  %1884 = vmatmul.mubr.bf16.gmra.mxu0 %v755
  %v1885 = vpop.f32.mrf.mxu0
  %v1886 = vadd.f32 %v1654, %v1885
  %v1887 = vpop.f32.mrf.mxu0
  %v1888 = vpop.f32.mrf.mxu0
  %v1889 = vadd.f32 %v1657, %v1888
  %v1890 = vpop.f32.mrf.mxu0
  %1891 = vmatprep.mubr.bf16.mxu0 %v1267
  %1892 = vmatmul.mubr.bf16.gmra.mxu0 %v761
  %v1893 = vpop.f32.mrf.mxu0
  %v1894 = vadd.f32 %v1662, %v1893
  %v1895 = vpop.f32.mrf.mxu0
  %v1896 = vpop.f32.mrf.mxu0
  %v1897 = vadd.f32 %v1665, %v1896
  %v1898 = vpop.f32.mrf.mxu0
  %1899 = vmatprep.mubr.bf16.mxu0 %v1270
  %1900 = vmatmul.mubr.bf16.gmra.mxu0 %v767
  %v1901 = vpop.f32.mrf.mxu0
  %v1902 = vadd.f32 %v1670, %v1901
  %v1903 = vpop.f32.mrf.mxu0
  %v1904 = vpop.f32.mrf.mxu0
  %v1905 = vadd.f32 %v1673, %v1904
  %v1906 = vpop.f32.mrf.mxu0
  %1907 = vmatprep.mubr.bf16.mxu0 %v1273
  %1908 = vmatmul.mubr.bf16.gmra.mxu0 %v773
  %v1909 = vpop.f32.mrf.mxu0
  %v1910 = vadd.f32 %v1678, %v1909
  %v1911 = vpop.f32.mrf.mxu0
  %v1912 = vpop.f32.mrf.mxu0
  %v1913 = vadd.f32 %v1681, %v1912
  %v1914 = vpop.f32.mrf.mxu0
  %1915 = vmatprep.mubr.bf16.mxu0 %v1276
  %1916 = vmatmul.mubr.bf16.gmra.mxu0 %v779
  %v1917 = vpop.f32.mrf.mxu0
  %v1918 = vadd.f32 %v1686, %v1917
  %v1919 = vpop.f32.mrf.mxu0
  %v1920 = vpop.f32.mrf.mxu0
  %v1921 = vadd.f32 %v1689, %v1920
  %v1922 = vpop.f32.mrf.mxu0
  %1923 = vmatprep.mubr.bf16.mxu0 %v1279
  %1924 = vmatmul.mubr.bf16.gmra.mxu0 %v785
  %v1925 = vpop.f32.mrf.mxu0
  %v1926 = vadd.f32 %v1694, %v1925
  %v1927 = vpop.f32.mrf.mxu0
  %v1928 = vpop.f32.mrf.mxu0
  %v1929 = vadd.f32 %v1697, %v1928
  %v1930 = vpop.f32.mrf.mxu0
  %1931 = vmatprep.mubr.bf16.mxu0 %v1282
  %1932 = vmatmul.mubr.bf16.gmra.mxu0 %v791
  %v1933 = vpop.f32.mrf.mxu0
  %v1934 = vadd.f32 %v1702, %v1933
  %v1935 = vpop.f32.mrf.mxu0
  %v1936 = vpop.f32.mrf.mxu0
  %v1937 = vadd.f32 %v1705, %v1936
  %v1938 = vpop.f32.mrf.mxu0
  %1939 = vmatprep.mubr.bf16.mxu0 %v1285
  %1940 = vmatmul.mubr.bf16.gmra.mxu0 %v797
  %v1941 = vpop.f32.mrf.mxu0
  %v1942 = vadd.f32 %v1710, %v1941
  %v1943 = vpop.f32.mrf.mxu0
  %v1944 = vpop.f32.mrf.mxu0
  %v1945 = vadd.f32 %v1713, %v1944
  %v1946 = vpop.f32.mrf.mxu0
  %1947 = vmatprep.mubr.bf16.mxu0 %v1288
  %1948 = vmatmul.mubr.bf16.gmra.mxu0 %v803
  %v1949 = vpop.f32.mrf.mxu0
  %v1950 = vadd.f32 %v1718, %v1949
  %v1951 = vpop.f32.mrf.mxu0
  %v1952 = vpop.f32.mrf.mxu0
  %v1953 = vadd.f32 %v1721, %v1952
  %v1954 = vpop.f32.mrf.mxu0
  %1955 = vmatprep.mubr.bf16.mxu0 %v1291
  %1956 = vmatmul.mubr.bf16.gmra.mxu0 %v809
  %v1957 = vpop.f32.mrf.mxu0
  %v1958 = vadd.f32 %v1726, %v1957
  %v1959 = vpop.f32.mrf.mxu0
  %v1960 = vpop.f32.mrf.mxu0
  %v1961 = vadd.f32 %v1729, %v1960
  %v1962 = vpop.f32.mrf.mxu0
  %1963 = vmatprep.mubr.bf16.mxu0 %v1294
  %1964 = vmatmul.mubr.bf16.gmra.mxu0 %v815
  %v1965 = vpop.f32.mrf.mxu0
  %v1966 = vadd.f32 %v1734, %v1965
  %v1967 = vpop.f32.mrf.mxu0
  %v1968 = vpop.f32.mrf.mxu0
  %v1969 = vadd.f32 %v1737, %v1968
  %v1970 = vpop.f32.mrf.mxu0
  %1971 = vmatprep.mubr.bf16.mxu0 %v1297
  %1972 = vmatmul.mubr.bf16.gmra.mxu0 %v821
  %v1973 = vpop.f32.mrf.mxu0
  %v1974 = vadd.f32 %v1742, %v1973
  %v1975 = vpop.f32.mrf.mxu0
  %v1976 = vpop.f32.mrf.mxu0
  %v1977 = vadd.f32 %v1745, %v1976
  %v1978 = vpop.f32.mrf.mxu0
  %1979 = vmatprep.mubr.bf16.mxu0 %v1300
  %1980 = vmatmul.mubr.bf16.gmra.mxu0 %v827
  %v1981 = vpop.f32.mrf.mxu0
  %v1982 = vadd.f32 %v1750, %v1981
  %v1983 = vpop.f32.mrf.mxu0
  %v1984 = vpop.f32.mrf.mxu0
  %v1985 = vadd.f32 %v1753, %v1984
  %v1986 = vpop.f32.mrf.mxu0
  %1987 = vmatprep.mubr.bf16.mxu0 %v1303
  %1988 = vmatmul.mubr.bf16.gmra.mxu0 %v833
  %v1989 = vpop.f32.mrf.mxu0
  %v1990 = vadd.f32 %v1758, %v1989
  %v1991 = vpop.f32.mrf.mxu0
  %v1992 = vpop.f32.mrf.mxu0
  %v1993 = vadd.f32 %v1761, %v1992
  %v1994 = vpop.f32.mrf.mxu0
  %1995 = vmatprep.mubr.bf16.mxu0 %v1306
  %1996 = vmatmul.mubr.bf16.gmra.mxu0 %v839
  %v1997 = vpop.f32.mrf.mxu0
  %v1998 = vadd.f32 %v1766, %v1997
  %v1999 = vpop.f32.mrf.mxu0
  %v2000 = vpop.f32.mrf.mxu0
  %v2001 = vadd.f32 %v1769, %v2000
  %v2002 = vpop.f32.mrf.mxu0
  %2003 = vmatprep.mubr.bf16.mxu0 %v1309
  %2004 = vmatmul.mubr.bf16.gmra.mxu0 %v845
  %v2005 = vpop.f32.mrf.mxu0
  %v2006 = vadd.f32 %v1774, %v2005
  %v2007 = vpop.f32.mrf.mxu0
  %v2008 = vpop.f32.mrf.mxu0
  %v2009 = vpop.f32.mrf.mxu0
  %2010 = vdwg.mxu0
  %v2011 = vld [vmem:[%s2] sm:$0x1]
  %vm2012 = vcmask 228352
  %v2013 = vsel %vm2012, %v1814, 0.0
  %v2014 = vsel %vm2012, %v1817, 0.0
  %v2015 = vadd.f32 %v2013, %v2014
  %v2016 = vsel %vm2012, %v1822, 0.0
  %v2017 = vadd.f32 %v2015, %v2016
  %v2018 = vsel %vm2012, %v1825, 0.0
  %v2019 = vadd.f32 %v2017, %v2018
  %v2020 = vsel %vm2012, %v1830, 0.0
  %v2021 = vadd.f32 %v2019, %v2020
  %v2022 = vsel %vm2012, %v1833, 0.0
  %v2023 = vadd.f32 %v2021, %v2022
  %v2024 = vsel %vm2012, %v1838, 0.0
  %v2025 = vadd.f32 %v2023, %v2024
  %v2026 = vsel %vm2012, %v1841, 0.0
  %v2027 = vadd.f32 %v2025, %v2026
  %v2028 = vsel %vm2012, %v1846, 0.0
  %v2029 = vadd.f32 %v2027, %v2028
  %v2030 = vsel %vm2012, %v1849, 0.0
  %v2031 = vadd.f32 %v2029, %v2030
  %v2032 = vsel %vm2012, %v1854, 0.0
  %v2033 = vadd.f32 %v2031, %v2032
  %v2034 = vsel %vm2012, %v1857, 0.0
  %v2035 = vadd.f32 %v2033, %v2034
  %v2036 = vsel %vm2012, %v1862, 0.0
  %v2037 = vadd.f32 %v2035, %v2036
  %v2038 = vsel %vm2012, %v1865, 0.0
  %v2039 = vadd.f32 %v2037, %v2038
  %v2040 = vsel %vm2012, %v1870, 0.0
  %v2041 = vadd.f32 %v2039, %v2040
  %v2042 = vsel %vm2012, %v1873, 0.0
  %v2043 = vadd.f32 %v2041, %v2042
  %v2044 = vsel %vm2012, %v1878, 0.0
  %v2045 = vadd.f32 %v2043, %v2044
  %v2046 = vsel %vm2012, %v1881, 0.0
  %v2047 = vadd.f32 %v2045, %v2046
  %v2048 = vsel %vm2012, %v1886, 0.0
  %v2049 = vadd.f32 %v2047, %v2048
  %v2050 = vsel %vm2012, %v1889, 0.0
  %v2051 = vadd.f32 %v2049, %v2050
  %v2052 = vsel %vm2012, %v1894, 0.0
  %v2053 = vadd.f32 %v2051, %v2052
  %v2054 = vsel %vm2012, %v1897, 0.0
  %v2055 = vadd.f32 %v2053, %v2054
  %v2056 = vsel %vm2012, %v1902, 0.0
  %v2057 = vadd.f32 %v2055, %v2056
  %v2058 = vsel %vm2012, %v1905, 0.0
  %v2059 = vadd.f32 %v2057, %v2058
  %v2060 = vsel %vm2012, %v1910, 0.0
  %v2061 = vadd.f32 %v2059, %v2060
  %v2062 = vsel %vm2012, %v1913, 0.0
  %v2063 = vadd.f32 %v2061, %v2062
  %v2064 = vsel %vm2012, %v1918, 0.0
  %v2065 = vadd.f32 %v2063, %v2064
  %v2066 = vsel %vm2012, %v1921, 0.0
  %v2067 = vadd.f32 %v2065, %v2066
  %v2068 = vsel %vm2012, %v1926, 0.0
  %v2069 = vadd.f32 %v2067, %v2068
  %v2070 = vsel %vm2012, %v1929, 0.0
  %v2071 = vadd.f32 %v2069, %v2070
  %v2072 = vsel %vm2012, %v1934, 0.0
  %v2073 = vadd.f32 %v2071, %v2072
  %v2074 = vsel %vm2012, %v1937, 0.0
  %v2075 = vadd.f32 %v2073, %v2074
  %v2076 = vsel %vm2012, %v1942, 0.0
  %v2077 = vadd.f32 %v2075, %v2076
  %v2078 = vsel %vm2012, %v1945, 0.0
  %v2079 = vadd.f32 %v2077, %v2078
  %v2080 = vsel %vm2012, %v1950, 0.0
  %v2081 = vadd.f32 %v2079, %v2080
  %v2082 = vsel %vm2012, %v1953, 0.0
  %v2083 = vadd.f32 %v2081, %v2082
  %v2084 = vsel %vm2012, %v1958, 0.0
  %v2085 = vadd.f32 %v2083, %v2084
  %v2086 = vsel %vm2012, %v1961, 0.0
  %v2087 = vadd.f32 %v2085, %v2086
  %v2088 = vsel %vm2012, %v1966, 0.0
  %v2089 = vadd.f32 %v2087, %v2088
  %v2090 = vsel %vm2012, %v1969, 0.0
  %v2091 = vadd.f32 %v2089, %v2090
  %v2092 = vsel %vm2012, %v1974, 0.0
  %v2093 = vadd.f32 %v2091, %v2092
  %v2094 = vsel %vm2012, %v1977, 0.0
  %v2095 = vadd.f32 %v2093, %v2094
  %v2096 = vsel %vm2012, %v1982, 0.0
  %v2097 = vadd.f32 %v2095, %v2096
  %v2098 = vsel %vm2012, %v1985, 0.0
  %v2099 = vadd.f32 %v2097, %v2098
  %v2100 = vsel %vm2012, %v1990, 0.0
  %v2101 = vadd.f32 %v2099, %v2100
  %v2102 = vsel %vm2012, %v1993, 0.0
  %v2103 = vadd.f32 %v2101, %v2102
  %v2104 = vsel %vm2012, %v1998, 0.0
  %v2105 = vadd.f32 %v2103, %v2104
  %v2106 = vsel %vm2012, %v2001, 0.0
  %v2107 = vadd.f32 %v2105, %v2106
  %v2108 = vsel %vm2012, %v2006, 0.0
  %v2109 = vadd.f32 %v2107, %v2108
  %v2110 = vrot.slane %v2109, 4
  %v2111 = vadd.f32 %v2109, %v2110
  %v2112 = vrot.slane %v2111, 2
  %v2113 = vadd.f32 %v2111, %v2112
  %v2114 = vrot.slane %v2113, 1
  %v2115 = vadd.f32 %v2113, %v2114
  %v2116 = vadd.f32 %v2011, %v2115
  %vm2117 = vcmask 221184
  %2118 = vst.msk [vmem:[%s2] sm:$0x1] %vm2117, %v2116
  %v2119 = vld [vmem:[%s3] sm:$0x1]
  %v2120 = vmul.f32 %v1814, %v1814
  %v2121 = vmul.f32 %v1817, %v1817
  %v2122 = vmul.f32 %v1822, %v1822
  %v2123 = vmul.f32 %v1825, %v1825
  %v2124 = vmul.f32 %v1830, %v1830
  %v2125 = vmul.f32 %v1833, %v1833
  %v2126 = vmul.f32 %v1838, %v1838
  %v2127 = vmul.f32 %v1841, %v1841
  %v2128 = vmul.f32 %v1846, %v1846
  %v2129 = vmul.f32 %v1849, %v1849
  %v2130 = vmul.f32 %v1854, %v1854
  %v2131 = vmul.f32 %v1857, %v1857
  %v2132 = vmul.f32 %v1862, %v1862
  %v2133 = vmul.f32 %v1865, %v1865
  %v2134 = vmul.f32 %v1870, %v1870
  %v2135 = vmul.f32 %v1873, %v1873
  %v2136 = vmul.f32 %v1878, %v1878
  %v2137 = vmul.f32 %v1881, %v1881
  %v2138 = vmul.f32 %v1886, %v1886
  %v2139 = vmul.f32 %v1889, %v1889
  %v2140 = vmul.f32 %v1894, %v1894
  %v2141 = vmul.f32 %v1897, %v1897
  %v2142 = vmul.f32 %v1902, %v1902
  %v2143 = vmul.f32 %v1905, %v1905
  %v2144 = vmul.f32 %v1910, %v1910
  %v2145 = vmul.f32 %v1913, %v1913
  %v2146 = vmul.f32 %v1918, %v1918
  %v2147 = vmul.f32 %v1921, %v1921
  %v2148 = vmul.f32 %v1926, %v1926
  %v2149 = vmul.f32 %v1929, %v1929
  %v2150 = vmul.f32 %v1934, %v1934
  %v2151 = vmul.f32 %v1937, %v1937
  %v2152 = vmul.f32 %v1942, %v1942
  %v2153 = vmul.f32 %v1945, %v1945
  %v2154 = vmul.f32 %v1950, %v1950
  %v2155 = vmul.f32 %v1953, %v1953
  %v2156 = vmul.f32 %v1958, %v1958
  %v2157 = vmul.f32 %v1961, %v1961
  %v2158 = vmul.f32 %v1966, %v1966
  %v2159 = vmul.f32 %v1969, %v1969
  %v2160 = vmul.f32 %v1974, %v1974
  %v2161 = vmul.f32 %v1977, %v1977
  %v2162 = vmul.f32 %v1982, %v1982
  %v2163 = vmul.f32 %v1985, %v1985
  %v2164 = vmul.f32 %v1990, %v1990
  %v2165 = vmul.f32 %v1993, %v1993
  %v2166 = vmul.f32 %v1998, %v1998
  %v2167 = vmul.f32 %v2001, %v2001
  %v2168 = vmul.f32 %v2006, %v2006
  %v2169 = vsel %vm2012, %v2120, 0.0
  %v2170 = vsel %vm2012, %v2121, 0.0
  %v2171 = vadd.f32 %v2169, %v2170
  %v2172 = vsel %vm2012, %v2122, 0.0
  %v2173 = vadd.f32 %v2171, %v2172
  %v2174 = vsel %vm2012, %v2123, 0.0
  %v2175 = vadd.f32 %v2173, %v2174
  %v2176 = vsel %vm2012, %v2124, 0.0
  %v2177 = vadd.f32 %v2175, %v2176
  %v2178 = vsel %vm2012, %v2125, 0.0
  %v2179 = vadd.f32 %v2177, %v2178
  %v2180 = vsel %vm2012, %v2126, 0.0
  %v2181 = vadd.f32 %v2179, %v2180
  %v2182 = vsel %vm2012, %v2127, 0.0
  %v2183 = vadd.f32 %v2181, %v2182
  %v2184 = vsel %vm2012, %v2128, 0.0
  %v2185 = vadd.f32 %v2183, %v2184
  %v2186 = vsel %vm2012, %v2129, 0.0
  %v2187 = vadd.f32 %v2185, %v2186
  %v2188 = vsel %vm2012, %v2130, 0.0
  %v2189 = vadd.f32 %v2187, %v2188
  %v2190 = vsel %vm2012, %v2131, 0.0
  %v2191 = vadd.f32 %v2189, %v2190
  %v2192 = vsel %vm2012, %v2132, 0.0
  %v2193 = vadd.f32 %v2191, %v2192
  %v2194 = vsel %vm2012, %v2133, 0.0
  %v2195 = vadd.f32 %v2193, %v2194
  %v2196 = vsel %vm2012, %v2134, 0.0
  %v2197 = vadd.f32 %v2195, %v2196
  %v2198 = vsel %vm2012, %v2135, 0.0
  %v2199 = vadd.f32 %v2197, %v2198
  %v2200 = vsel %vm2012, %v2136, 0.0
  %v2201 = vadd.f32 %v2199, %v2200
  %v2202 = vsel %vm2012, %v2137, 0.0
  %v2203 = vadd.f32 %v2201, %v2202
  %v2204 = vsel %vm2012, %v2138, 0.0
  %v2205 = vadd.f32 %v2203, %v2204
  %v2206 = vsel %vm2012, %v2139, 0.0
  %v2207 = vadd.f32 %v2205, %v2206
  %v2208 = vsel %vm2012, %v2140, 0.0
  %v2209 = vadd.f32 %v2207, %v2208
  %v2210 = vsel %vm2012, %v2141, 0.0
  %v2211 = vadd.f32 %v2209, %v2210
  %v2212 = vsel %vm2012, %v2142, 0.0
  %v2213 = vadd.f32 %v2211, %v2212
  %v2214 = vsel %vm2012, %v2143, 0.0
  %v2215 = vadd.f32 %v2213, %v2214
  %v2216 = vsel %vm2012, %v2144, 0.0
  %v2217 = vadd.f32 %v2215, %v2216
  %v2218 = vsel %vm2012, %v2145, 0.0
  %v2219 = vadd.f32 %v2217, %v2218
  %v2220 = vsel %vm2012, %v2146, 0.0
  %v2221 = vadd.f32 %v2219, %v2220
  %v2222 = vsel %vm2012, %v2147, 0.0
  %v2223 = vadd.f32 %v2221, %v2222
  %v2224 = vsel %vm2012, %v2148, 0.0
  %v2225 = vadd.f32 %v2223, %v2224
  %v2226 = vsel %vm2012, %v2149, 0.0
  %v2227 = vadd.f32 %v2225, %v2226
  %v2228 = vsel %vm2012, %v2150, 0.0
  %v2229 = vadd.f32 %v2227, %v2228
  %v2230 = vsel %vm2012, %v2151, 0.0
  %v2231 = vadd.f32 %v2229, %v2230
  %v2232 = vsel %vm2012, %v2152, 0.0
  %v2233 = vadd.f32 %v2231, %v2232
  %v2234 = vsel %vm2012, %v2153, 0.0
  %v2235 = vadd.f32 %v2233, %v2234
  %v2236 = vsel %vm2012, %v2154, 0.0
  %v2237 = vadd.f32 %v2235, %v2236
  %v2238 = vsel %vm2012, %v2155, 0.0
  %v2239 = vadd.f32 %v2237, %v2238
  %v2240 = vsel %vm2012, %v2156, 0.0
  %v2241 = vadd.f32 %v2239, %v2240
  %v2242 = vsel %vm2012, %v2157, 0.0
  %v2243 = vadd.f32 %v2241, %v2242
  %v2244 = vsel %vm2012, %v2158, 0.0
  %v2245 = vadd.f32 %v2243, %v2244
  %v2246 = vsel %vm2012, %v2159, 0.0
  %v2247 = vadd.f32 %v2245, %v2246
  %v2248 = vsel %vm2012, %v2160, 0.0
  %v2249 = vadd.f32 %v2247, %v2248
  %v2250 = vsel %vm2012, %v2161, 0.0
  %v2251 = vadd.f32 %v2249, %v2250
  %v2252 = vsel %vm2012, %v2162, 0.0
  %v2253 = vadd.f32 %v2251, %v2252
  %v2254 = vsel %vm2012, %v2163, 0.0
  %v2255 = vadd.f32 %v2253, %v2254
  %v2256 = vsel %vm2012, %v2164, 0.0
  %v2257 = vadd.f32 %v2255, %v2256
  %v2258 = vsel %vm2012, %v2165, 0.0
  %v2259 = vadd.f32 %v2257, %v2258
  %v2260 = vsel %vm2012, %v2166, 0.0
  %v2261 = vadd.f32 %v2259, %v2260
  %v2262 = vsel %vm2012, %v2167, 0.0
  %v2263 = vadd.f32 %v2261, %v2262
  %v2264 = vsel %vm2012, %v2168, 0.0
  %v2265 = vadd.f32 %v2263, %v2264
  %v2266 = vrot.slane %v2265, 4
  %v2267 = vadd.f32 %v2265, %v2266
  %v2268 = vrot.slane %v2267, 2
  %v2269 = vadd.f32 %v2267, %v2268
  %v2270 = vrot.slane %v2269, 1
  %v2271 = vadd.f32 %v2269, %v2270
  %v2272 = vadd.f32 %v2119, %v2271
  %2273 = vst.msk [vmem:[%s3] sm:$0x1] %vm2117, %v2272
  // Predicated region
  $region14: #{net_forward.7} parent=0 // pred_check
    _
  $region15: #{net_forward.7} parent=0 // pred_check_branch
    %2275 = sbr.rel (0) target = $region17
  $region16: #{net_forward.7} parent=0 // pred_region
    _
  $region17: #{net_forward.7} parent=0 // pred_fallthru
    _
  // Predicated region
  $region18: #{net_forward.7} parent=0 // pred_check
    _
  $region19: #{net_forward.7} parent=0 // pred_check_branch
    %2277 = sbr.rel (0) target = $region21
  $region20: #{net_forward.7} parent=0 // pred_region
    _
  $region21: #{net_forward.7} parent=0 // pred_fallthru
    _
  // Predicated region
  $region22: #{net_forward.7} parent=0 // pred_check
    _
  $region23: #{net_forward.7} parent=0 // pred_check_branch
    %2279 = sbr.rel (0) target = $region25
  $region24: #{net_forward.7} parent=0 // pred_region
    _
  $region25: #{net_forward.7} parent=0 // pred_fallthru
    _
  // Predicated region
  $region26: #{net_forward.7} parent=0 // pred_check
    _
  $region27: #{net_forward.7} parent=0 // pred_check_branch
    %2281 = sbr.rel (0) target = $region29
  $region28: #{net_forward.7} parent=0 // pred_region
    _
  $region29: #{net_forward.7} parent=0 // pred_fallthru
    _

// kernel: net_forward.8
$region0: #{net_forward.8}
  #allocation0 [shape = 'u32[]', space=smem, size = 0x4, offset = 0x4, fixed_abs, tag = 'smem constant byte address 0x4 - core index']
  #allocation1 [shape = 'u32[144,128]{1,0:T(1,128)}', space=vmem, size = 0x12000, scoped, tag = 'internal scratch']
  %s0 = inlined_call_operand.vmem [shape: bf16[392,700], index: 0, kind: input, shape index: {}]
  %s1 = inlined_call_operand.vmem [shape: bf16[700,28], index: 1, kind: input, shape index: {}]
  %s2 = inlined_call_operand.vmem [shape: f32[1,28], index: 2, kind: input, shape index: {}]
  %s3 = inlined_call_operand.vmem [shape: f32[1,28], index: 3, kind: input, shape index: {}]
  %s4 = inlined_call_operand.vmem [shape: f32[392,28], index: 4, kind: output, shape index: {}]
  %s5 = sld [smem:[#allocation0]]
  $region26: #{net_forward.8} parent=0
    _
  %s7 = ssub.s32 1, %s5
  %s8 = scalar_select 0, %s7, %s5
  // Predicated region
  $region2: #{net_forward.8} parent=0 // pred_check
    _
  $region3: #{net_forward.8} parent=0 // pred_check_branch
    %10 = sbr.rel (0) target = $region5
  $region4: #{net_forward.8} parent=0 // pred_region
    _
  $region5: #{net_forward.8} parent=0 // pred_fallthru
    _
  // Predicated region
  $region6: #{net_forward.8} parent=0 // pred_check
    _
  $region7: #{net_forward.8} parent=0 // pred_check_branch
    %12 = sbr.rel (0) target = $region9
  $region8: #{net_forward.8} parent=0 // pred_region
    _
  $region9: #{net_forward.8} parent=0 // pred_fallthru
    _
  // Predicated region
  $region10: #{net_forward.8} parent=0 // pred_check
    _
  $region11: #{net_forward.8} parent=0 // pred_check_branch
    %14 = sbr.rel (0) target = $region13
  $region12: #{net_forward.8} parent=0 // pred_region
    _
  $region13: #{net_forward.8} parent=0 // pred_fallthru
    _
  // Predicated region
  $region14: #{net_forward.8} parent=0 // pred_check
    _
  $region15: #{net_forward.8} parent=0 // pred_check_branch
    %16 = sbr.rel (0) target = $region17
  $region16: #{net_forward.8} parent=0 // pred_region
    _
  $region17: #{net_forward.8} parent=0 // pred_fallthru
    _
  %v18 = vld [vmem:[%s0] sm:$0xff]
  %v19 = vld [vmem:[%s0 + $0x8] sm:$0xff]
  %v20 = vld [vmem:[%s0 + $0x10] sm:$0xff]
  %v21 = vld [vmem:[%s0 + $0x18] sm:$0xff]
  %v22 = vld [vmem:[%s0 + $0x20] sm:$0xff]
  %v23 = vld [vmem:[%s0 + $0x28] sm:$0xff]
  %v24 = vld [vmem:[%s0 + $0x30] sm:$0xff]
  %v25 = vld [vmem:[%s0 + $0x38] sm:$0xff]
  %v26 = vld [vmem:[%s0 + $0x40] sm:$0xff]
  %v27 = vld [vmem:[%s0 + $0x48] sm:$0xff]
  %v28 = vld [vmem:[%s0 + $0x50] sm:$0xff]
  %v29 = vld [vmem:[%s0 + $0x58] sm:$0xff]
  %v30 = vld [vmem:[%s0 + $0x60] sm:$0xff]
  %v31 = vld [vmem:[%s0 + $0x68] sm:$0xff]
  %v32 = vld [vmem:[%s0 + $0x70] sm:$0xff]
  %v33 = vld [vmem:[%s0 + $0x78] sm:$0xff]
  %v34 = vld [vmem:[%s0 + $0x80] sm:$0xff]
  %v35 = vld [vmem:[%s0 + $0x88] sm:$0xff]
  %v36 = vld [vmem:[%s0 + $0x90] sm:$0xff]
  %v37 = vld [vmem:[%s0 + $0x98] sm:$0xff]
  %v38 = vld [vmem:[%s0 + $0xa0] sm:$0xff]
  %v39 = vld [vmem:[%s0 + $0xa8] sm:$0xff]
  %v40 = vld [vmem:[%s0 + $0xb0] sm:$0xff]
  %v41 = vld [vmem:[%s0 + $0xb8] sm:$0xff]
  %v42 = vld [vmem:[%s0 + $0xc0] sm:$0xff]
  %v43 = vld [vmem:[%s0 + $0xc8] sm:$0xff]
  %v44 = vld [vmem:[%s0 + $0xd0] sm:$0xff]
  %v45 = vld [vmem:[%s0 + $0xd8] sm:$0xff]
  %v46 = vld [vmem:[%s0 + $0xe0] sm:$0xff]
  %v47 = vld [vmem:[%s0 + $0xe8] sm:$0xff]
  %v48 = vld [vmem:[%s0 + $0xf0] sm:$0xff]
  %v49 = vld [vmem:[%s0 + $0xf8] sm:$0xff]
  %v50 = vld [vmem:[%s0 + $0x100] sm:$0xff]
  %v51 = vld [vmem:[%s0 + $0x108] sm:$0xff]
  %v52 = vld [vmem:[%s0 + $0x110] sm:$0xff]
  %v53 = vld [vmem:[%s0 + $0x118] sm:$0xff]
  %v54 = vld [vmem:[%s0 + $0x120] sm:$0xff]
  %v55 = vld [vmem:[%s0 + $0x128] sm:$0xff]
  %v56 = vld [vmem:[%s0 + $0x130] sm:$0xff]
  %v57 = vld [vmem:[%s0 + $0x138] sm:$0xff]
  %v58 = vld [vmem:[%s0 + $0x140] sm:$0xff]
  %v59 = vld [vmem:[%s0 + $0x148] sm:$0xff]
  %v60 = vld [vmem:[%s0 + $0x150] sm:$0xff]
  %v61 = vld [vmem:[%s0 + $0x158] sm:$0xff]
  %v62 = vld [vmem:[%s0 + $0x160] sm:$0xff]
  %v63 = vld [vmem:[%s0 + $0x168] sm:$0xff]
  %v64 = vld [vmem:[%s0 + $0x170] sm:$0xff]
  %v65 = vld [vmem:[%s0 + $0x178] sm:$0xff]
  %v66 = vld [vmem:[%s0 + $0x180] sm:$0xff]
  %v67 = vld [vmem:[%s0 + $0x188] sm:$0xff]
  %v68 = vld [vmem:[%s0 + $0x190] sm:$0xff]
  %v69 = vld [vmem:[%s0 + $0x198] sm:$0xff]
  %v70 = vld [vmem:[%s0 + $0x1a0] sm:$0xff]
  %v71 = vld [vmem:[%s0 + $0x1a8] sm:$0xff]
  %v72 = vld [vmem:[%s0 + $0x1b0] sm:$0xff]
  %v73 = vld [vmem:[%s0 + $0x1b8] sm:$0xff]
  %v74 = vld [vmem:[%s0 + $0x1c0] sm:$0xff]
  %v75 = vld [vmem:[%s0 + $0x1c8] sm:$0xff]
  %v76 = vld [vmem:[%s0 + $0x1d0] sm:$0xff]
  %v77 = vld [vmem:[%s0 + $0x1d8] sm:$0xff]
  %v78 = vld [vmem:[%s0 + $0x1e0] sm:$0xff]
  %v79 = vld [vmem:[%s0 + $0x1e8] sm:$0xff]
  %v80 = vld [vmem:[%s0 + $0x1f0] sm:$0xff]
  %v81 = vld [vmem:[%s0 + $0x1f8] sm:$0xff]
  %v82 = vld [vmem:[%s0 + $0x200] sm:$0xff]
  %v83 = vld [vmem:[%s0 + $0x208] sm:$0xff]
  %v84 = vld [vmem:[%s0 + $0x210] sm:$0xff]
  %v85 = vld [vmem:[%s0 + $0x218] sm:$0xff]
  %v86 = vld [vmem:[%s0 + $0x220] sm:$0xff]
  %v87 = vld [vmem:[%s0 + $0x228] sm:$0xff]
  %v88 = vld [vmem:[%s0 + $0x230] sm:$0xff]
  %v89 = vld [vmem:[%s0 + $0x238] sm:$0xff]
  %v90 = vld [vmem:[%s0 + $0x240] sm:$0xff]
  %v91 = vld [vmem:[%s0 + $0x248] sm:$0xff]
  %v92 = vld [vmem:[%s0 + $0x250] sm:$0xff]
  %v93 = vld [vmem:[%s0 + $0x258] sm:$0xff]
  %v94 = vld [vmem:[%s0 + $0x260] sm:$0xff]
  %v95 = vld [vmem:[%s0 + $0x268] sm:$0xff]
  %v96 = vld [vmem:[%s0 + $0x270] sm:$0xff]
  %v97 = vld [vmem:[%s0 + $0x278] sm:$0xff]
  %v98 = vld [vmem:[%s0 + $0x280] sm:$0xff]
  %v99 = vld [vmem:[%s0 + $0x288] sm:$0xff]
  %v100 = vld [vmem:[%s0 + $0x290] sm:$0xff]
  %v101 = vld [vmem:[%s0 + $0x298] sm:$0xff]
  %v102 = vld [vmem:[%s0 + $0x2a0] sm:$0xff]
  %v103 = vld [vmem:[%s0 + $0x2a8] sm:$0xff]
  %v104 = vld [vmem:[%s0 + $0x2b0] sm:$0xff]
  %v105 = vld [vmem:[%s0 + $0x2b8] sm:$0xff]
  %v106 = vld [vmem:[%s0 + $0x2c0] sm:$0xff]
  %v107 = vld [vmem:[%s0 + $0x2c8] sm:$0xff]
  %v108 = vld [vmem:[%s0 + $0x2d0] sm:$0xff]
  %v109 = vld [vmem:[%s0 + $0x2d8] sm:$0xff]
  %v110 = vld [vmem:[%s0 + $0x2e0] sm:$0xff]
  %v111 = vld [vmem:[%s0 + $0x2e8] sm:$0xff]
  %v112 = vld [vmem:[%s0 + $0x2f0] sm:$0xff]
  %v113 = vld [vmem:[%s0 + $0x2f8] sm:$0xff]
  %v114 = vld [vmem:[%s0 + $0x300] sm:$0xff]
  %v115 = vld [vmem:[%s0 + $0x308] sm:$0xff]
  %v116 = vld [vmem:[%s0 + $0x310] sm:$0xff]
  %v117 = vld [vmem:[%s0 + $0x318] sm:$0xff]
  %v118 = vld [vmem:[%s0 + $0x320] sm:$0xff]
  %v119 = vld [vmem:[%s0 + $0x328] sm:$0xff]
  %v120 = vld [vmem:[%s0 + $0x330] sm:$0xff]
  %v121 = vld [vmem:[%s0 + $0x338] sm:$0xff]
  %v122 = vld [vmem:[%s0 + $0x340] sm:$0xff]
  %v123 = vld [vmem:[%s0 + $0x348] sm:$0xff]
  %v124 = vld [vmem:[%s0 + $0x350] sm:$0xff]
  %v125 = vld [vmem:[%s0 + $0x358] sm:$0xff]
  %v126 = vld [vmem:[%s0 + $0x360] sm:$0xff]
  %v127 = vld [vmem:[%s0 + $0x368] sm:$0xff]
  %v128 = vld [vmem:[%s0 + $0x370] sm:$0xff]
  %v129 = vld [vmem:[%s0 + $0x378] sm:$0xff]
  %v130 = vld [vmem:[%s0 + $0x380] sm:$0xff]
  %v131 = vld [vmem:[%s0 + $0x388] sm:$0xff]
  %v132 = vld [vmem:[%s0 + $0x390] sm:$0xff]
  %v133 = vld [vmem:[%s0 + $0x398] sm:$0xff]
  %v134 = vld [vmem:[%s0 + $0x3a0] sm:$0xff]
  %v135 = vld [vmem:[%s0 + $0x3a8] sm:$0xff]
  %v136 = vld [vmem:[%s0 + $0x3b0] sm:$0xff]
  %v137 = vld [vmem:[%s0 + $0x3b8] sm:$0xff]
  %v138 = vld [vmem:[%s0 + $0x3c0] sm:$0xff]
  %v139 = vld [vmem:[%s0 + $0x3c8] sm:$0xff]
  %v140 = vld [vmem:[%s0 + $0x3d0] sm:$0xff]
  %v141 = vld [vmem:[%s0 + $0x3d8] sm:$0xff]
  %v142 = vld [vmem:[%s0 + $0x3e0] sm:$0xff]
  %v143 = vld [vmem:[%s0 + $0x3e8] sm:$0xff]
  %v144 = vld [vmem:[%s0 + $0x3f0] sm:$0xff]
  %v145 = vld [vmem:[%s0 + $0x3f8] sm:$0xff]
  %v146 = vld [vmem:[%s0 + $0x400] sm:$0xff]
  %v147 = vld [vmem:[%s0 + $0x408] sm:$0xff]
  %v148 = vld [vmem:[%s0 + $0x410] sm:$0xff]
  %v149 = vld [vmem:[%s0 + $0x418] sm:$0xff]
  %v150 = vld [vmem:[%s0 + $0x420] sm:$0xff]
  %v151 = vld [vmem:[%s0 + $0x428] sm:$0xff]
  %v152 = vld [vmem:[%s0 + $0x430] sm:$0xff]
  %v153 = vld [vmem:[%s0 + $0x438] sm:$0xff]
  %v154 = vld [vmem:[%s0 + $0x440] sm:$0xff]
  %v155 = vld [vmem:[%s0 + $0x448] sm:$0xff]
  %v156 = vld [vmem:[%s0 + $0x450] sm:$0xff]
  %v157 = vld [vmem:[%s0 + $0x458] sm:$0xff]
  %v158 = vld [vmem:[%s0 + $0x460] sm:$0xff]
  %v159 = vld [vmem:[%s0 + $0x468] sm:$0xff]
  %v160 = vld [vmem:[%s0 + $0x470] sm:$0xff]
  %v161 = vld [vmem:[%s0 + $0x478] sm:$0xff]
  %v162 = vld [vmem:[%s0 + $0x480] sm:$0xff]
  %v163 = vld [vmem:[%s0 + $0x488] sm:$0xff]
  %v164 = vld [vmem:[%s0 + $0x490] sm:$0xff]
  %v165 = vld [vmem:[%s1] sm:$0xf]
  %v166 = vld [vmem:[%s1 + $0x4] sm:$0xf]
  %v167 = vld [vmem:[%s1 + $0x8] sm:$0xf]
  %v168 = vld [vmem:[%s1 + $0xc] sm:$0xf]
  %v169 = vld [vmem:[%s1 + $0x10] sm:$0xf]
  %v170 = vld [vmem:[%s1 + $0x14] sm:$0xf]
  %v171 = vld [vmem:[%s1 + $0x18] sm:$0xf]
  %v172 = vld [vmem:[%s1 + $0x1c] sm:$0xf]
  %v173 = vld [vmem:[%s1 + $0x20] sm:$0xf]
  %v174 = vld [vmem:[%s1 + $0x24] sm:$0xf]
  %v175 = vld [vmem:[%s1 + $0x28] sm:$0xf]
  %v176 = vld [vmem:[%s1 + $0x2c] sm:$0xf]
  %v177 = vld [vmem:[%s1 + $0x30] sm:$0xf]
  %v178 = vld [vmem:[%s1 + $0x34] sm:$0xf]
  %v179 = vld [vmem:[%s1 + $0x38] sm:$0xf]
  %v180 = vld [vmem:[%s1 + $0x3c] sm:$0xf]
  %v181 = vld [vmem:[%s1 + $0x40] sm:$0xf]
  %v182 = vld [vmem:[%s1 + $0x44] sm:$0xf]
  %v183 = vld [vmem:[%s1 + $0x48] sm:$0xf]
  %v184 = vld [vmem:[%s1 + $0x4c] sm:$0xf]
  %v185 = vld [vmem:[%s1 + $0x50] sm:$0xf]
  %v186 = vld [vmem:[%s1 + $0x54] sm:$0xf]
  %v187 = vld [vmem:[%s1 + $0x58] sm:$0xf]
  %v188 = vld [vmem:[%s1 + $0x5c] sm:$0xf]
  %v189 = vld [vmem:[%s1 + $0x60] sm:$0xf]
  %v190 = vld [vmem:[%s1 + $0x64] sm:$0xf]
  %v191 = vld [vmem:[%s1 + $0x68] sm:$0xf]
  %v192 = vld [vmem:[%s1 + $0x6c] sm:$0xf]
  %v193 = vld [vmem:[%s1 + $0x70] sm:$0xf]
  %v194 = vld [vmem:[%s1 + $0x74] sm:$0xf]
  %v195 = vld [vmem:[%s1 + $0x78] sm:$0xf]
  %v196 = vld [vmem:[%s1 + $0x7c] sm:$0xf]
  %v197 = vld [vmem:[%s1 + $0x80] sm:$0xf]
  %v198 = vld [vmem:[%s1 + $0x84] sm:$0xf]
  %v199 = vld [vmem:[%s1 + $0x88] sm:$0xf]
  %v200 = vld [vmem:[%s1 + $0x8c] sm:$0xf]
  %v201 = vld [vmem:[%s1 + $0x90] sm:$0xf]
  %v202 = vld [vmem:[%s1 + $0x94] sm:$0xf]
  %v203 = vld [vmem:[%s1 + $0x98] sm:$0xf]
  %v204 = vld [vmem:[%s1 + $0x9c] sm:$0xf]
  %v205 = vld [vmem:[%s1 + $0xa0] sm:$0xf]
  %v206 = vld [vmem:[%s1 + $0xa4] sm:$0xf]
  %v207 = vld [vmem:[%s1 + $0xa8] sm:$0xf]
  %v208 = vld [vmem:[%s1 + $0xac] sm:$0xf]
  %v209 = vld [vmem:[%s1 + $0xb0] sm:$0xf]
  %v210 = vld [vmem:[%s1 + $0xb4] sm:$0xf]
  %v211 = vld [vmem:[%s1 + $0xb8] sm:$0xf]
  %v212 = vld [vmem:[%s1 + $0xbc] sm:$0xf]
  %v213 = vld [vmem:[%s1 + $0xc0] sm:$0xf]
  %v214 = vld [vmem:[%s1 + $0xc4] sm:$0xf]
  %v215 = vld [vmem:[%s1 + $0xc8] sm:$0xf]
  %v216 = vld [vmem:[%s1 + $0xcc] sm:$0xf]
  %v217 = vld [vmem:[%s1 + $0xd0] sm:$0xf]
  %v218 = vld [vmem:[%s1 + $0xd4] sm:$0xf]
  %v219 = vld [vmem:[%s1 + $0xd8] sm:$0xf]
  %v220 = vld [vmem:[%s1 + $0xdc] sm:$0xf]
  %v221 = vld [vmem:[%s1 + $0xe0] sm:$0xf]
  %v222 = vld [vmem:[%s1 + $0xe4] sm:$0xf]
  %v223 = vld [vmem:[%s1 + $0xe8] sm:$0xf]
  %v224 = vld [vmem:[%s1 + $0xec] sm:$0xf]
  %v225 = vld [vmem:[%s1 + $0xf0] sm:$0xf]
  %v226 = vld [vmem:[%s1 + $0xf4] sm:$0xf]
  %v227 = vld [vmem:[%s1 + $0xf8] sm:$0xf]
  %v228 = vld [vmem:[%s1 + $0xfc] sm:$0xf]
  %v229 = vld [vmem:[%s1 + $0x100] sm:$0xf]
  %v230 = vld [vmem:[%s1 + $0x104] sm:$0xf]
  %v231 = vld [vmem:[%s1 + $0x108] sm:$0xf]
  %v232 = vld [vmem:[%s1 + $0x10c] sm:$0xf]
  %v233 = vld [vmem:[%s1 + $0x110] sm:$0xf]
  %v234 = vld [vmem:[%s1 + $0x114] sm:$0xf]
  %v235 = vld [vmem:[%s1 + $0x118] sm:$0xf]
  %v236 = vld [vmem:[%s1 + $0x11c] sm:$0xf]
  %v237 = vld [vmem:[%s1 + $0x120] sm:$0xf]
  %v238 = vld [vmem:[%s1 + $0x124] sm:$0xf]
  %v239 = vld [vmem:[%s1 + $0x128] sm:$0xf]
  %v240 = vld [vmem:[%s1 + $0x12c] sm:$0xf]
  %v241 = vld [vmem:[%s1 + $0x130] sm:$0xf]
  %v242 = vld [vmem:[%s1 + $0x134] sm:$0xf]
  %v243 = vld [vmem:[%s1 + $0x138] sm:$0xf]
  %v244 = vld [vmem:[%s1 + $0x13c] sm:$0xf]
  %v245 = vld [vmem:[%s1 + $0x140] sm:$0xf]
  %v246 = vld [vmem:[%s1 + $0x144] sm:$0xf]
  %v247 = vld [vmem:[%s1 + $0x148] sm:$0xf]
  %v248 = vld [vmem:[%s1 + $0x14c] sm:$0xf]
  %v249 = vld [vmem:[%s1 + $0x150] sm:$0xf]
  %v250 = vld [vmem:[%s1 + $0x154] sm:$0xf]
  %v251 = vld [vmem:[%s1 + $0x158] sm:$0xf]
  %v252 = vld [vmem:[%s1 + $0x15c] sm:$0x3]
  %v400 = vunpack.c.l.b16 %v18
  %v401 = vunpack.c.h.b16 %v18
  %v402 = vunpack.c.l.b16 %v19
  %v403 = vunpack.c.h.b16 %v19
  %v404 = vunpack.c.l.b16 %v20
  %v405 = vunpack.c.h.b16 %v20
  %v406 = vunpack.c.l.b16 %v21
  %v407 = vunpack.c.h.b16 %v21
  %v408 = vunpack.c.l.b16 %v22
  %v409 = vunpack.c.h.b16 %v22
  %v410 = vunpack.c.l.b16 %v23
  %v411 = vunpack.c.h.b16 %v23
  %v412 = vunpack.c.l.b16 %v24
  %v413 = vunpack.c.h.b16 %v24
  %v414 = vunpack.c.l.b16 %v25
  %v415 = vunpack.c.h.b16 %v25
  %v416 = vunpack.c.l.b16 %v26
  %v417 = vunpack.c.h.b16 %v26
  %v418 = vunpack.c.l.b16 %v27
  %v419 = vunpack.c.h.b16 %v27
  %v420 = vunpack.c.l.b16 %v28
  %v421 = vunpack.c.h.b16 %v28
  %v422 = vunpack.c.l.b16 %v29
  %v423 = vunpack.c.h.b16 %v29
  %v424 = vunpack.c.l.b16 %v30
  %v425 = vunpack.c.h.b16 %v30
  %v426 = vunpack.c.l.b16 %v31
  %v427 = vunpack.c.h.b16 %v31
  %v428 = vunpack.c.l.b16 %v32
  %v429 = vunpack.c.h.b16 %v32
  %v430 = vunpack.c.l.b16 %v33
  %v431 = vunpack.c.h.b16 %v33
  %v432 = vunpack.c.l.b16 %v34
  %v433 = vunpack.c.h.b16 %v34
  %v434 = vunpack.c.l.b16 %v35
  %v435 = vunpack.c.h.b16 %v35
  %v436 = vunpack.c.l.b16 %v36
  %v437 = vunpack.c.h.b16 %v36
  %v438 = vunpack.c.l.b16 %v37
  %v439 = vunpack.c.h.b16 %v37
  %v440 = vunpack.c.l.b16 %v38
  %v441 = vunpack.c.h.b16 %v38
  %v442 = vunpack.c.l.b16 %v39
  %v443 = vunpack.c.h.b16 %v39
  %v444 = vunpack.c.l.b16 %v40
  %v445 = vunpack.c.h.b16 %v40
  %v446 = vunpack.c.l.b16 %v41
  %v447 = vunpack.c.h.b16 %v41
  %v448 = vunpack.c.l.b16 %v42
  %v449 = vunpack.c.h.b16 %v42
  %v450 = vunpack.c.l.b16 %v43
  %v451 = vunpack.c.h.b16 %v43
  %v452 = vunpack.c.l.b16 %v44
  %v453 = vunpack.c.h.b16 %v44
  %v454 = vunpack.c.l.b16 %v45
  %v455 = vunpack.c.h.b16 %v45
  %v456 = vunpack.c.l.b16 %v46
  %v457 = vunpack.c.h.b16 %v46
  %v458 = vunpack.c.l.b16 %v47
  %v459 = vunpack.c.h.b16 %v47
  %v460 = vunpack.c.l.b16 %v48
  %v461 = vunpack.c.h.b16 %v48
  %v462 = vunpack.c.l.b16 %v49
  %v463 = vunpack.c.h.b16 %v49
  %v464 = vunpack.c.l.b16 %v50
  %v465 = vunpack.c.h.b16 %v50
  %v466 = vunpack.c.l.b16 %v51
  %v467 = vunpack.c.h.b16 %v51
  %v468 = vunpack.c.l.b16 %v52
  %v469 = vunpack.c.h.b16 %v52
  %v470 = vunpack.c.l.b16 %v53
  %v471 = vunpack.c.h.b16 %v53
  %v472 = vunpack.c.l.b16 %v54
  %v473 = vunpack.c.h.b16 %v54
  %v474 = vunpack.c.l.b16 %v55
  %v475 = vunpack.c.h.b16 %v55
  %v476 = vunpack.c.l.b16 %v56
  %v477 = vunpack.c.h.b16 %v56
  %v478 = vunpack.c.l.b16 %v57
  %v479 = vunpack.c.h.b16 %v57
  %v480 = vunpack.c.l.b16 %v58
  %v481 = vunpack.c.h.b16 %v58
  %v482 = vunpack.c.l.b16 %v59
  %v483 = vunpack.c.h.b16 %v59
  %v484 = vunpack.c.l.b16 %v60
  %v485 = vunpack.c.h.b16 %v60
  %v486 = vunpack.c.l.b16 %v61
  %v487 = vunpack.c.h.b16 %v61
  %v488 = vunpack.c.l.b16 %v62
  %v489 = vunpack.c.h.b16 %v62
  %v490 = vunpack.c.l.b16 %v63
  %v491 = vunpack.c.h.b16 %v63
  %v492 = vunpack.c.l.b16 %v64
  %v493 = vunpack.c.h.b16 %v64
  %v494 = vunpack.c.l.b16 %v65
  %v495 = vunpack.c.h.b16 %v65
  %v496 = vunpack.c.l.b16 %v66
  %v497 = vunpack.c.h.b16 %v66
  %v498 = vunpack.c.l.b16 %v67
  %v499 = vunpack.c.h.b16 %v67
  %v500 = vunpack.c.l.b16 %v68
  %v501 = vunpack.c.h.b16 %v68
  %v502 = vunpack.c.l.b16 %v69
  %v503 = vunpack.c.h.b16 %v69
  %v504 = vunpack.c.l.b16 %v70
  %v505 = vunpack.c.h.b16 %v70
  %v506 = vunpack.c.l.b16 %v71
  %v507 = vunpack.c.h.b16 %v71
  %v508 = vunpack.c.l.b16 %v72
  %v509 = vunpack.c.h.b16 %v72
  %v510 = vunpack.c.l.b16 %v73
  %v511 = vunpack.c.h.b16 %v73
  %v512 = vunpack.c.l.b16 %v74
  %v513 = vunpack.c.h.b16 %v74
  %v514 = vunpack.c.l.b16 %v75
  %v515 = vunpack.c.h.b16 %v75
  %v516 = vunpack.c.l.b16 %v76
  %v517 = vunpack.c.h.b16 %v76
  %v518 = vunpack.c.l.b16 %v77
  %v519 = vunpack.c.h.b16 %v77
  %v520 = vunpack.c.l.b16 %v78
  %v521 = vunpack.c.h.b16 %v78
  %v522 = vunpack.c.l.b16 %v79
  %v523 = vunpack.c.h.b16 %v79
  %v524 = vunpack.c.l.b16 %v80
  %v525 = vunpack.c.h.b16 %v80
  %v526 = vunpack.c.l.b16 %v81
  %v527 = vunpack.c.h.b16 %v81
  %v528 = vunpack.c.l.b16 %v82
  %v529 = vunpack.c.h.b16 %v82
  %v530 = vunpack.c.l.b16 %v83
  %v531 = vunpack.c.h.b16 %v83
  %v532 = vunpack.c.l.b16 %v84
  %v533 = vunpack.c.h.b16 %v84
  %v534 = vunpack.c.l.b16 %v85
  %v535 = vunpack.c.h.b16 %v85
  %v536 = vunpack.c.l.b16 %v86
  %v537 = vunpack.c.h.b16 %v86
  %v538 = vunpack.c.l.b16 %v87
  %v539 = vunpack.c.h.b16 %v87
  %v540 = vunpack.c.l.b16 %v88
  %v541 = vunpack.c.h.b16 %v88
  %v542 = vunpack.c.l.b16 %v89
  %v543 = vunpack.c.h.b16 %v89
  %v544 = vunpack.c.l.b16 %v90
  %v545 = vunpack.c.h.b16 %v90
  %v546 = vunpack.c.l.b16 %v91
  %v547 = vunpack.c.h.b16 %v91
  %v548 = vunpack.c.l.b16 %v92
  %v549 = vunpack.c.h.b16 %v92
  %v550 = vunpack.c.l.b16 %v93
  %v551 = vunpack.c.h.b16 %v93
  %v552 = vunpack.c.l.b16 %v94
  %v553 = vunpack.c.h.b16 %v94
  %v554 = vunpack.c.l.b16 %v95
  %v555 = vunpack.c.h.b16 %v95
  %v556 = vunpack.c.l.b16 %v96
  %v557 = vunpack.c.h.b16 %v96
  %v558 = vunpack.c.l.b16 %v97
  %v559 = vunpack.c.h.b16 %v97
  %v560 = vunpack.c.l.b16 %v98
  %v561 = vunpack.c.h.b16 %v98
  %v562 = vunpack.c.l.b16 %v99
  %v563 = vunpack.c.h.b16 %v99
  %v564 = vunpack.c.l.b16 %v100
  %v565 = vunpack.c.h.b16 %v100
  %v566 = vunpack.c.l.b16 %v101
  %v567 = vunpack.c.h.b16 %v101
  %v568 = vunpack.c.l.b16 %v102
  %v569 = vunpack.c.h.b16 %v102
  %v570 = vunpack.c.l.b16 %v103
  %v571 = vunpack.c.h.b16 %v103
  %v572 = vunpack.c.l.b16 %v104
  %v573 = vunpack.c.h.b16 %v104
  %v574 = vunpack.c.l.b16 %v105
  %v575 = vunpack.c.h.b16 %v105
  %v576 = vunpack.c.l.b16 %v106
  %v577 = vunpack.c.h.b16 %v106
  %v578 = vunpack.c.l.b16 %v107
  %v579 = vunpack.c.h.b16 %v107
  %v580 = vunpack.c.l.b16 %v108
  %v581 = vunpack.c.h.b16 %v108
  %v582 = vunpack.c.l.b16 %v109
  %v583 = vunpack.c.h.b16 %v109
  %v584 = vunpack.c.l.b16 %v110
  %v585 = vunpack.c.h.b16 %v110
  %v586 = vunpack.c.l.b16 %v111
  %v587 = vunpack.c.h.b16 %v111
  %v588 = vunpack.c.l.b16 %v112
  %v589 = vunpack.c.h.b16 %v112
  %v590 = vunpack.c.l.b16 %v113
  %v591 = vunpack.c.h.b16 %v113
  %v592 = vunpack.c.l.b16 %v114
  %v593 = vunpack.c.h.b16 %v114
  %v594 = vunpack.c.l.b16 %v115
  %v595 = vunpack.c.h.b16 %v115
  %v596 = vunpack.c.l.b16 %v116
  %v597 = vunpack.c.h.b16 %v116
  %v598 = vunpack.c.l.b16 %v117
  %v599 = vunpack.c.h.b16 %v117
  %v600 = vunpack.c.l.b16 %v118
  %v601 = vunpack.c.h.b16 %v118
  %v602 = vunpack.c.l.b16 %v119
  %v603 = vunpack.c.h.b16 %v119
  %v604 = vunpack.c.l.b16 %v120
  %v605 = vunpack.c.h.b16 %v120
  %v606 = vunpack.c.l.b16 %v121
  %v607 = vunpack.c.h.b16 %v121
  %v608 = vunpack.c.l.b16 %v122
  %v609 = vunpack.c.h.b16 %v122
  %v610 = vunpack.c.l.b16 %v123
  %v611 = vunpack.c.h.b16 %v123
  %v612 = vunpack.c.l.b16 %v124
  %v613 = vunpack.c.h.b16 %v124
  %v614 = vunpack.c.l.b16 %v125
  %v615 = vunpack.c.h.b16 %v125
  %v616 = vunpack.c.l.b16 %v126
  %v617 = vunpack.c.h.b16 %v126
  %v618 = vunpack.c.l.b16 %v127
  %v619 = vunpack.c.h.b16 %v127
  %v620 = vunpack.c.l.b16 %v128
  %v621 = vunpack.c.h.b16 %v128
  %v622 = vunpack.c.l.b16 %v129
  %v623 = vunpack.c.h.b16 %v129
  %v624 = vunpack.c.l.b16 %v130
  %v625 = vunpack.c.h.b16 %v130
  %v626 = vunpack.c.l.b16 %v131
  %v627 = vunpack.c.h.b16 %v131
  %v628 = vunpack.c.l.b16 %v132
  %v629 = vunpack.c.h.b16 %v132
  %v630 = vunpack.c.l.b16 %v133
  %v631 = vunpack.c.h.b16 %v133
  %v632 = vunpack.c.l.b16 %v134
  %v633 = vunpack.c.h.b16 %v134
  %v634 = vunpack.c.l.b16 %v135
  %v635 = vunpack.c.h.b16 %v135
  %v636 = vunpack.c.l.b16 %v136
  %v637 = vunpack.c.h.b16 %v136
  %v638 = vunpack.c.l.b16 %v137
  %v639 = vunpack.c.h.b16 %v137
  %v640 = vunpack.c.l.b16 %v138
  %v641 = vunpack.c.h.b16 %v138
  %v642 = vunpack.c.l.b16 %v139
  %v643 = vunpack.c.h.b16 %v139
  %v644 = vunpack.c.l.b16 %v140
  %v645 = vunpack.c.h.b16 %v140
  %v646 = vunpack.c.l.b16 %v141
  %v647 = vunpack.c.h.b16 %v141
  %v648 = vunpack.c.l.b16 %v142
  %v649 = vunpack.c.h.b16 %v142
  %v650 = vunpack.c.l.b16 %v143
  %v651 = vunpack.c.h.b16 %v143
  %v652 = vunpack.c.l.b16 %v144
  %v653 = vunpack.c.h.b16 %v144
  %v654 = vunpack.c.l.b16 %v145
  %v655 = vunpack.c.h.b16 %v145
  %v656 = vunpack.c.l.b16 %v146
  %v657 = vunpack.c.h.b16 %v146
  %v658 = vunpack.c.l.b16 %v147
  %v659 = vunpack.c.h.b16 %v147
  %v660 = vunpack.c.l.b16 %v148
  %v661 = vunpack.c.h.b16 %v148
  %v662 = vunpack.c.l.b16 %v149
  %v663 = vunpack.c.h.b16 %v149
  %v664 = vunpack.c.l.b16 %v150
  %v665 = vunpack.c.h.b16 %v150
  %v666 = vunpack.c.l.b16 %v151
  %v667 = vunpack.c.h.b16 %v151
  %v668 = vunpack.c.l.b16 %v152
  %v669 = vunpack.c.h.b16 %v152
  %v670 = vunpack.c.l.b16 %v153
  %v671 = vunpack.c.h.b16 %v153
  %v672 = vunpack.c.l.b16 %v154
  %v673 = vunpack.c.h.b16 %v154
  %v674 = vunpack.c.l.b16 %v155
  %v675 = vunpack.c.h.b16 %v155
  %v676 = vunpack.c.l.b16 %v156
  %v677 = vunpack.c.h.b16 %v156
  %v678 = vunpack.c.l.b16 %v157
  %v679 = vunpack.c.h.b16 %v157
  %v680 = vunpack.c.l.b16 %v158
  %v681 = vunpack.c.h.b16 %v158
  %v682 = vunpack.c.l.b16 %v159
  %v683 = vunpack.c.h.b16 %v159
  %v684 = vunpack.c.l.b16 %v160
  %v685 = vunpack.c.h.b16 %v160
  %v686 = vunpack.c.l.b16 %v161
  %v687 = vunpack.c.h.b16 %v161
  %v688 = vunpack.c.l.b16 %v162
  %v689 = vunpack.c.h.b16 %v162
  %v690 = vunpack.c.l.b16 %v163
  %v691 = vunpack.c.h.b16 %v163
  %v692 = vunpack.c.l.b16 %v164
  %v693 = vunpack.c.h.b16 %v164
  %v694 = vpack.c.b16 %v406, %v400
  %v695 = vpack.c.b16 %v407, %v401
  %v696 = vpack.c.b16 %v408, %v402
  %v697 = vpack.c.b16 %v409, %v403
  %v698 = vpack.c.b16 %v410, %v404
  %v699 = vpack.c.b16 %v411, %v405
  %v700 = vpack.c.b16 %v418, %v412
  %v701 = vpack.c.b16 %v419, %v413
  %v702 = vpack.c.b16 %v420, %v414
  %v703 = vpack.c.b16 %v421, %v415
  %v704 = vpack.c.b16 %v422, %v416
  %v705 = vpack.c.b16 %v423, %v417
  %v706 = vpack.c.b16 %v430, %v424
  %v707 = vpack.c.b16 %v431, %v425
  %v708 = vpack.c.b16 %v432, %v426
  %v709 = vpack.c.b16 %v433, %v427
  %v710 = vpack.c.b16 %v434, %v428
  %v711 = vpack.c.b16 %v435, %v429
  %v712 = vpack.c.b16 %v442, %v436
  %v713 = vpack.c.b16 %v443, %v437
  %v714 = vpack.c.b16 %v444, %v438
  %v715 = vpack.c.b16 %v445, %v439
  %v716 = vpack.c.b16 %v446, %v440
  %v717 = vpack.c.b16 %v447, %v441
  %v718 = vpack.c.b16 %v454, %v448
  %v719 = vpack.c.b16 %v455, %v449
  %v720 = vpack.c.b16 %v456, %v450
  %v721 = vpack.c.b16 %v457, %v451
  %v722 = vpack.c.b16 %v458, %v452
  %v723 = vpack.c.b16 %v459, %v453
  %v724 = vpack.c.b16 %v466, %v460
  %v725 = vpack.c.b16 %v467, %v461
  %v726 = vpack.c.b16 %v468, %v462
  %v727 = vpack.c.b16 %v469, %v463
  %v728 = vpack.c.b16 %v470, %v464
  %v729 = vpack.c.b16 %v471, %v465
  %v730 = vpack.c.b16 %v478, %v472
  %v731 = vpack.c.b16 %v479, %v473
  %v732 = vpack.c.b16 %v480, %v474
  %v733 = vpack.c.b16 %v481, %v475
  %v734 = vpack.c.b16 %v482, %v476
  %v735 = vpack.c.b16 %v483, %v477
  %v736 = vpack.c.b16 %v490, %v484
  %v737 = vpack.c.b16 %v491, %v485
  %v738 = vpack.c.b16 %v492, %v486
  %v739 = vpack.c.b16 %v493, %v487
  %v740 = vpack.c.b16 %v494, %v488
  %v741 = vpack.c.b16 %v495, %v489
  %v742 = vpack.c.b16 %v502, %v496
  %v743 = vpack.c.b16 %v503, %v497
  %v744 = vpack.c.b16 %v504, %v498
  %v745 = vpack.c.b16 %v505, %v499
  %v746 = vpack.c.b16 %v506, %v500
  %v747 = vpack.c.b16 %v507, %v501
  %v748 = vpack.c.b16 %v514, %v508
  %v749 = vpack.c.b16 %v515, %v509
  %v750 = vpack.c.b16 %v516, %v510
  %v751 = vpack.c.b16 %v517, %v511
  %v752 = vpack.c.b16 %v518, %v512
  %v753 = vpack.c.b16 %v519, %v513
  %v754 = vpack.c.b16 %v526, %v520
  %v755 = vpack.c.b16 %v527, %v521
  %v756 = vpack.c.b16 %v528, %v522
  %v757 = vpack.c.b16 %v529, %v523
  %v758 = vpack.c.b16 %v530, %v524
  %v759 = vpack.c.b16 %v531, %v525
  %v760 = vpack.c.b16 %v538, %v532
  %v761 = vpack.c.b16 %v539, %v533
  %v762 = vpack.c.b16 %v540, %v534
  %v763 = vpack.c.b16 %v541, %v535
  %v764 = vpack.c.b16 %v542, %v536
  %v765 = vpack.c.b16 %v543, %v537
  %v766 = vpack.c.b16 %v550, %v544
  %v767 = vpack.c.b16 %v551, %v545
  %v768 = vpack.c.b16 %v552, %v546
  %v769 = vpack.c.b16 %v553, %v547
  %v770 = vpack.c.b16 %v554, %v548
  %v771 = vpack.c.b16 %v555, %v549
  %v772 = vpack.c.b16 %v562, %v556
  %v773 = vpack.c.b16 %v563, %v557
  %v774 = vpack.c.b16 %v564, %v558
  %v775 = vpack.c.b16 %v565, %v559
  %v776 = vpack.c.b16 %v566, %v560
  %v777 = vpack.c.b16 %v567, %v561
  %v778 = vpack.c.b16 %v574, %v568
  %v779 = vpack.c.b16 %v575, %v569
  %v780 = vpack.c.b16 %v576, %v570
  %v781 = vpack.c.b16 %v577, %v571
  %v782 = vpack.c.b16 %v578, %v572
  %v783 = vpack.c.b16 %v579, %v573
  %v784 = vpack.c.b16 %v586, %v580
  %v785 = vpack.c.b16 %v587, %v581
  %v786 = vpack.c.b16 %v588, %v582
  %v787 = vpack.c.b16 %v589, %v583
  %v788 = vpack.c.b16 %v590, %v584
  %v789 = vpack.c.b16 %v591, %v585
  %v790 = vpack.c.b16 %v598, %v592
  %v791 = vpack.c.b16 %v599, %v593
  %v792 = vpack.c.b16 %v600, %v594
  %v793 = vpack.c.b16 %v601, %v595
  %v794 = vpack.c.b16 %v602, %v596
  %v795 = vpack.c.b16 %v603, %v597
  %v796 = vpack.c.b16 %v610, %v604
  %v797 = vpack.c.b16 %v611, %v605
  %v798 = vpack.c.b16 %v612, %v606
  %v799 = vpack.c.b16 %v613, %v607
  %v800 = vpack.c.b16 %v614, %v608
  %v801 = vpack.c.b16 %v615, %v609
  %v802 = vpack.c.b16 %v622, %v616
  %v803 = vpack.c.b16 %v623, %v617
  %v804 = vpack.c.b16 %v624, %v618
  %v805 = vpack.c.b16 %v625, %v619
  %v806 = vpack.c.b16 %v626, %v620
  %v807 = vpack.c.b16 %v627, %v621
  %v808 = vpack.c.b16 %v634, %v628
  %v809 = vpack.c.b16 %v635, %v629
  %v810 = vpack.c.b16 %v636, %v630
  %v811 = vpack.c.b16 %v637, %v631
  %v812 = vpack.c.b16 %v638, %v632
  %v813 = vpack.c.b16 %v639, %v633
  %v814 = vpack.c.b16 %v646, %v640
  %v815 = vpack.c.b16 %v647, %v641
  %v816 = vpack.c.b16 %v648, %v642
  %v817 = vpack.c.b16 %v649, %v643
  %v818 = vpack.c.b16 %v650, %v644
  %v819 = vpack.c.b16 %v651, %v645
  %v820 = vpack.c.b16 %v658, %v652
  %v821 = vpack.c.b16 %v659, %v653
  %v822 = vpack.c.b16 %v660, %v654
  %v823 = vpack.c.b16 %v661, %v655
  %v824 = vpack.c.b16 %v662, %v656
  %v825 = vpack.c.b16 %v663, %v657
  %v826 = vpack.c.b16 %v670, %v664
  %v827 = vpack.c.b16 %v671, %v665
  %v828 = vpack.c.b16 %v672, %v666
  %v829 = vpack.c.b16 %v673, %v667
  %v830 = vpack.c.b16 %v674, %v668
  %v831 = vpack.c.b16 %v675, %v669
  %v832 = vpack.c.b16 %v682, %v676
  %v833 = vpack.c.b16 %v683, %v677
  %v834 = vpack.c.b16 %v684, %v678
  %v835 = vpack.c.b16 %v685, %v679
  %v836 = vpack.c.b16 %v686, %v680
  %v837 = vpack.c.b16 %v687, %v681
  %v838 = vpack.c.b16 %v688, %v688
  %v839 = vpack.c.b16 %v689, %v689
  %v840 = vpack.c.b16 %v690, %v690
  %v841 = vpack.c.b16 %v691, %v691
  %v842 = vpack.c.b16 %v692, %v692
  %v843 = vpack.c.b16 %v693, %v693
  %v1057 = vunpack.c.l.b16 %v165
  %v1058 = vunpack.c.l.b16 %v166
  %v1059 = vunpack.c.l.b16 %v167
  %v1060 = vunpack.c.l.b16 %v168
  %v1061 = vunpack.c.l.b16 %v169
  %v1062 = vunpack.c.l.b16 %v170
  %v1063 = vunpack.c.l.b16 %v171
  %v1064 = vunpack.c.l.b16 %v172
  %v1065 = vunpack.c.l.b16 %v173
  %v1066 = vunpack.c.l.b16 %v174
  %v1067 = vunpack.c.l.b16 %v175
  %v1068 = vunpack.c.l.b16 %v176
  %v1069 = vunpack.c.l.b16 %v177
  %v1070 = vunpack.c.l.b16 %v178
  %v1071 = vunpack.c.l.b16 %v179
  %v1072 = vunpack.c.l.b16 %v180
  %v1073 = vunpack.c.l.b16 %v181
  %v1074 = vunpack.c.l.b16 %v182
  %v1075 = vunpack.c.l.b16 %v183
  %v1076 = vunpack.c.l.b16 %v184
  %v1077 = vunpack.c.l.b16 %v185
  %v1078 = vunpack.c.l.b16 %v186
  %v1079 = vunpack.c.l.b16 %v187
  %v1080 = vunpack.c.l.b16 %v188
  %v1081 = vunpack.c.l.b16 %v189
  %v1082 = vunpack.c.l.b16 %v190
  %v1083 = vunpack.c.l.b16 %v191
  %v1084 = vunpack.c.l.b16 %v192
  %v1085 = vunpack.c.l.b16 %v193
  %v1086 = vunpack.c.l.b16 %v194
  %v1087 = vunpack.c.l.b16 %v195
  %v1088 = vunpack.c.l.b16 %v196
  %v1089 = vunpack.c.l.b16 %v197
  %v1090 = vunpack.c.l.b16 %v198
  %v1091 = vunpack.c.l.b16 %v199
  %v1092 = vunpack.c.l.b16 %v200
  %v1093 = vunpack.c.l.b16 %v201
  %v1094 = vunpack.c.l.b16 %v202
  %v1095 = vunpack.c.l.b16 %v203
  %v1096 = vunpack.c.l.b16 %v204
  %v1097 = vunpack.c.l.b16 %v205
  %v1098 = vunpack.c.l.b16 %v206
  %v1099 = vunpack.c.l.b16 %v207
  %v1100 = vunpack.c.l.b16 %v208
  %v1101 = vunpack.c.l.b16 %v209
  %v1102 = vunpack.c.l.b16 %v210
  %v1103 = vunpack.c.l.b16 %v211
  %v1104 = vunpack.c.l.b16 %v212
  %v1105 = vunpack.c.l.b16 %v213
  %v1106 = vunpack.c.l.b16 %v214
  %v1107 = vunpack.c.l.b16 %v215
  %v1108 = vunpack.c.l.b16 %v216
  %v1109 = vunpack.c.l.b16 %v217
  %v1110 = vunpack.c.l.b16 %v218
  %v1111 = vunpack.c.l.b16 %v219
  %v1112 = vunpack.c.l.b16 %v220
  %v1113 = vunpack.c.l.b16 %v221
  %v1114 = vunpack.c.l.b16 %v222
  %v1115 = vunpack.c.l.b16 %v223
  %v1116 = vunpack.c.l.b16 %v224
  %v1117 = vunpack.c.l.b16 %v225
  %v1118 = vunpack.c.l.b16 %v226
  %v1119 = vunpack.c.l.b16 %v227
  %v1120 = vunpack.c.l.b16 %v228
  %v1121 = vunpack.c.l.b16 %v229
  %v1122 = vunpack.c.l.b16 %v230
  %v1123 = vunpack.c.l.b16 %v231
  %v1124 = vunpack.c.l.b16 %v232
  %v1125 = vunpack.c.l.b16 %v233
  %v1126 = vunpack.c.l.b16 %v234
  %v1127 = vunpack.c.l.b16 %v235
  %v1128 = vunpack.c.l.b16 %v236
  %v1129 = vunpack.c.l.b16 %v237
  %v1130 = vunpack.c.l.b16 %v238
  %v1131 = vunpack.c.l.b16 %v239
  %v1132 = vunpack.c.l.b16 %v240
  %v1133 = vunpack.c.l.b16 %v241
  %v1134 = vunpack.c.l.b16 %v242
  %v1135 = vunpack.c.l.b16 %v243
  %v1136 = vunpack.c.l.b16 %v244
  %v1137 = vunpack.c.l.b16 %v245
  %v1138 = vunpack.c.l.b16 %v246
  %v1139 = vunpack.c.l.b16 %v247
  %v1140 = vunpack.c.l.b16 %v248
  %v1141 = vunpack.c.l.b16 %v249
  %v1142 = vunpack.c.l.b16 %v250
  %v1143 = vunpack.c.l.b16 %v251
  %v1144 = vunpack.c.l.b16 %v252
  %v1145 = vpack.c.b16 %v1058, %v1057
  %v1146 = vpack.c.b16 %v1060, %v1059
  %v1147 = vpack.c.b16 %v1062, %v1061
  %v1148 = vpack.c.b16 %v1064, %v1063
  %v1149 = vpack.c.b16 %v1066, %v1065
  %v1150 = vpack.c.b16 %v1068, %v1067
  %v1151 = vpack.c.b16 %v1070, %v1069
  %v1152 = vpack.c.b16 %v1072, %v1071
  %v1153 = vpack.c.b16 %v1074, %v1073
  %v1154 = vpack.c.b16 %v1076, %v1075
  %v1155 = vpack.c.b16 %v1078, %v1077
  %v1156 = vpack.c.b16 %v1080, %v1079
  %v1157 = vpack.c.b16 %v1082, %v1081
  %v1158 = vpack.c.b16 %v1084, %v1083
  %v1159 = vpack.c.b16 %v1086, %v1085
  %v1160 = vpack.c.b16 %v1088, %v1087
  %v1161 = vpack.c.b16 %v1090, %v1089
  %v1162 = vpack.c.b16 %v1092, %v1091
  %v1163 = vpack.c.b16 %v1094, %v1093
  %v1164 = vpack.c.b16 %v1096, %v1095
  %v1165 = vpack.c.b16 %v1098, %v1097
  %v1166 = vpack.c.b16 %v1100, %v1099
  %v1167 = vpack.c.b16 %v1102, %v1101
  %v1168 = vpack.c.b16 %v1104, %v1103
  %v1169 = vpack.c.b16 %v1106, %v1105
  %v1170 = vpack.c.b16 %v1108, %v1107
  %v1171 = vpack.c.b16 %v1110, %v1109
  %v1172 = vpack.c.b16 %v1112, %v1111
  %v1173 = vpack.c.b16 %v1114, %v1113
  %v1174 = vpack.c.b16 %v1116, %v1115
  %v1175 = vpack.c.b16 %v1118, %v1117
  %v1176 = vpack.c.b16 %v1120, %v1119
  %v1177 = vpack.c.b16 %v1122, %v1121
  %v1178 = vpack.c.b16 %v1124, %v1123
  %v1179 = vpack.c.b16 %v1126, %v1125
  %v1180 = vpack.c.b16 %v1128, %v1127
  %v1181 = vpack.c.b16 %v1130, %v1129
  %v1182 = vpack.c.b16 %v1132, %v1131
  %v1183 = vpack.c.b16 %v1134, %v1133
  %v1184 = vpack.c.b16 %v1136, %v1135
  %v1185 = vpack.c.b16 %v1138, %v1137
  %v1186 = vpack.c.b16 %v1140, %v1139
  %v1187 = vpack.c.b16 %v1142, %v1141
  %v1188 = vpack.c.b16 %v1144, %v1143
  %vm1232 = vcmask 490496
  %v1234 = vsel %vm1232, %v699, 0
  %v1237 = vsel %vm1232, %v705, 0
  %v1240 = vsel %vm1232, %v711, 0
  %v1243 = vsel %vm1232, %v717, 0
  %v1246 = vsel %vm1232, %v723, 0
  %v1249 = vsel %vm1232, %v729, 0
  %v1252 = vsel %vm1232, %v735, 0
  %v1255 = vsel %vm1232, %v741, 0
  %v1258 = vsel %vm1232, %v747, 0
  %v1261 = vsel %vm1232, %v753, 0
  %v1264 = vsel %vm1232, %v759, 0
  %v1267 = vsel %vm1232, %v765, 0
  %v1270 = vsel %vm1232, %v771, 0
  %v1273 = vsel %vm1232, %v777, 0
  %v1276 = vsel %vm1232, %v783, 0
  %v1279 = vsel %vm1232, %v789, 0
  %v1282 = vsel %vm1232, %v795, 0
  %v1285 = vsel %vm1232, %v801, 0
  %v1288 = vsel %vm1232, %v807, 0
  %v1291 = vsel %vm1232, %v813, 0
  %v1294 = vsel %vm1232, %v819, 0
  %v1297 = vsel %vm1232, %v825, 0
  %v1300 = vsel %vm1232, %v831, 0
  %v1303 = vsel %vm1232, %v837, 0
  %v1306 = vsel %vm1232, %v843, 0
  %vm1308 = vcmask 1045504
  %v1310 = vsel %vm1308, %v1188, 0
  %1312 = vmatprep.subr.bf16.mxu0 0
  %1313 = vmatpush1.bf16.msra.mxu0 %v1152
  %1314 = vmatprep.subr.bf16.mxu0 0
  %1315 = vmatpush1.bf16.msra.mxu0 %v1151
  %1316 = vmatprep.subr.bf16.mxu0 0
  %1317 = vmatpush1.bf16.msra.mxu0 %v1150
  %1318 = vmatprep.subr.bf16.mxu0 0
  %1319 = vmatpush1.bf16.msra.mxu0 %v1149
  %1320 = vmatprep.subr.bf16.mxu0 0
  %1321 = vmatpush1.bf16.msra.mxu0 %v1148
  %1322 = vmatprep.subr.bf16.mxu0 0
  %1323 = vmatpush1.bf16.msra.mxu0 %v1147
  %1324 = vmatprep.subr.bf16.mxu0 0
  %1325 = vmatpush1.bf16.msra.mxu0 %v1146
  %1326 = vmatprep.subr.bf16.mxu0 0
  %1327 = vmatpush1.bf16.msra.mxu0 %v1145
  %1328 = vmatprep.subr.bf16.mxu0 0
  %1329 = vmatpush2.bf16.msra.mxu0 %v1160
  %1330 = vmatprep.subr.bf16.mxu0 0
  %1331 = vmatpush2.bf16.msra.mxu0 %v1159
  %1332 = vmatprep.subr.bf16.mxu0 0
  %1333 = vmatpush2.bf16.msra.mxu0 %v1158
  %1334 = vmatprep.subr.bf16.mxu0 0
  %1335 = vmatpush2.bf16.msra.mxu0 %v1157
  %1336 = vmatprep.subr.bf16.mxu0 0
  %1337 = vmatpush2.bf16.msra.mxu0 %v1156
  %1338 = vmatprep.subr.bf16.mxu0 0
  %1339 = vmatpush2.bf16.msra.mxu0 %v1155
  %1340 = vmatprep.subr.bf16.mxu0 0
  %1341 = vmatpush2.bf16.msra.mxu0 %v1154
  %1342 = vmatprep.subr.bf16.mxu0 0
  %1343 = vmatpush2.bf16.msra.mxu0 %v1153
  %1344 = vmatprep.mubr.bf16.mxu0 %v695
  %1345 = vmatmul.mubr.bf16.gmra.mxu0 %v694
  %v1346 = vpop.f32.mrf.mxu0
  %v1347 = vadd.f32 0.0, %v1346
  %v1348 = vpop.f32.mrf.mxu0
  %v1349 = vpop.f32.mrf.mxu0
  %v1350 = vadd.f32 0.0, %v1349
  %v1351 = vpop.f32.mrf.mxu0
  %1352 = vmatprep.mubr.bf16.mxu0 %v701
  %1353 = vmatmul.mubr.bf16.gmra.mxu0 %v700
  %v1354 = vpop.f32.mrf.mxu0
  %v1355 = vadd.f32 0.0, %v1354
  %v1356 = vpop.f32.mrf.mxu0
  %v1357 = vpop.f32.mrf.mxu0
  %v1358 = vadd.f32 0.0, %v1357
  %v1359 = vpop.f32.mrf.mxu0
  %1360 = vmatprep.mubr.bf16.mxu0 %v707
  %1361 = vmatmul.mubr.bf16.gmra.mxu0 %v706
  %v1362 = vpop.f32.mrf.mxu0
  %v1363 = vadd.f32 0.0, %v1362
  %v1364 = vpop.f32.mrf.mxu0
  %v1365 = vpop.f32.mrf.mxu0
  %v1366 = vadd.f32 0.0, %v1365
  %v1367 = vpop.f32.mrf.mxu0
  %1368 = vmatprep.mubr.bf16.mxu0 %v713
  %1369 = vmatmul.mubr.bf16.gmra.mxu0 %v712
  %v1370 = vpop.f32.mrf.mxu0
  %v1371 = vadd.f32 0.0, %v1370
  %v1372 = vpop.f32.mrf.mxu0
  %v1373 = vpop.f32.mrf.mxu0
  %v1374 = vadd.f32 0.0, %v1373
  %v1375 = vpop.f32.mrf.mxu0
  %1376 = vmatprep.mubr.bf16.mxu0 %v719
  %1377 = vmatmul.mubr.bf16.gmra.mxu0 %v718
  %v1378 = vpop.f32.mrf.mxu0
  %v1379 = vadd.f32 0.0, %v1378
  %v1380 = vpop.f32.mrf.mxu0
  %v1381 = vpop.f32.mrf.mxu0
  %v1382 = vadd.f32 0.0, %v1381
  %v1383 = vpop.f32.mrf.mxu0
  %1384 = vmatprep.mubr.bf16.mxu0 %v725
  %1385 = vmatmul.mubr.bf16.gmra.mxu0 %v724
  %v1386 = vpop.f32.mrf.mxu0
  %v1387 = vadd.f32 0.0, %v1386
  %v1388 = vpop.f32.mrf.mxu0
  %v1389 = vpop.f32.mrf.mxu0
  %v1390 = vadd.f32 0.0, %v1389
  %v1391 = vpop.f32.mrf.mxu0
  %1392 = vmatprep.mubr.bf16.mxu0 %v731
  %1393 = vmatmul.mubr.bf16.gmra.mxu0 %v730
  %v1394 = vpop.f32.mrf.mxu0
  %v1395 = vadd.f32 0.0, %v1394
  %v1396 = vpop.f32.mrf.mxu0
  %v1397 = vpop.f32.mrf.mxu0
  %v1398 = vadd.f32 0.0, %v1397
  %v1399 = vpop.f32.mrf.mxu0
  %1400 = vmatprep.mubr.bf16.mxu0 %v737
  %1401 = vmatmul.mubr.bf16.gmra.mxu0 %v736
  %v1402 = vpop.f32.mrf.mxu0
  %v1403 = vadd.f32 0.0, %v1402
  %v1404 = vpop.f32.mrf.mxu0
  %v1405 = vpop.f32.mrf.mxu0
  %v1406 = vadd.f32 0.0, %v1405
  %v1407 = vpop.f32.mrf.mxu0
  %1408 = vmatprep.mubr.bf16.mxu0 %v743
  %1409 = vmatmul.mubr.bf16.gmra.mxu0 %v742
  %v1410 = vpop.f32.mrf.mxu0
  %v1411 = vadd.f32 0.0, %v1410
  %v1412 = vpop.f32.mrf.mxu0
  %v1413 = vpop.f32.mrf.mxu0
  %v1414 = vadd.f32 0.0, %v1413
  %v1415 = vpop.f32.mrf.mxu0
  %1416 = vmatprep.mubr.bf16.mxu0 %v749
  %1417 = vmatmul.mubr.bf16.gmra.mxu0 %v748
  %v1418 = vpop.f32.mrf.mxu0
  %v1419 = vadd.f32 0.0, %v1418
  %v1420 = vpop.f32.mrf.mxu0
  %v1421 = vpop.f32.mrf.mxu0
  %v1422 = vadd.f32 0.0, %v1421
  %v1423 = vpop.f32.mrf.mxu0
  %1424 = vmatprep.mubr.bf16.mxu0 %v755
  %1425 = vmatmul.mubr.bf16.gmra.mxu0 %v754
  %v1426 = vpop.f32.mrf.mxu0
  %v1427 = vadd.f32 0.0, %v1426
  %v1428 = vpop.f32.mrf.mxu0
  %v1429 = vpop.f32.mrf.mxu0
  %v1430 = vadd.f32 0.0, %v1429
  %v1431 = vpop.f32.mrf.mxu0
  %1432 = vmatprep.mubr.bf16.mxu0 %v761
  %1433 = vmatmul.mubr.bf16.gmra.mxu0 %v760
  %v1434 = vpop.f32.mrf.mxu0
  %v1435 = vadd.f32 0.0, %v1434
  %v1436 = vpop.f32.mrf.mxu0
  %v1437 = vpop.f32.mrf.mxu0
  %v1438 = vadd.f32 0.0, %v1437
  %v1439 = vpop.f32.mrf.mxu0
  %1440 = vmatprep.mubr.bf16.mxu0 %v767
  %1441 = vmatmul.mubr.bf16.gmra.mxu0 %v766
  %v1442 = vpop.f32.mrf.mxu0
  %v1443 = vadd.f32 0.0, %v1442
  %v1444 = vpop.f32.mrf.mxu0
  %v1445 = vpop.f32.mrf.mxu0
  %v1446 = vadd.f32 0.0, %v1445
  %v1447 = vpop.f32.mrf.mxu0
  %1448 = vmatprep.mubr.bf16.mxu0 %v773
  %1449 = vmatmul.mubr.bf16.gmra.mxu0 %v772
  %v1450 = vpop.f32.mrf.mxu0
  %v1451 = vadd.f32 0.0, %v1450
  %v1452 = vpop.f32.mrf.mxu0
  %v1453 = vpop.f32.mrf.mxu0
  %v1454 = vadd.f32 0.0, %v1453
  %v1455 = vpop.f32.mrf.mxu0
  %1456 = vmatprep.mubr.bf16.mxu0 %v779
  %1457 = vmatmul.mubr.bf16.gmra.mxu0 %v778
  %v1458 = vpop.f32.mrf.mxu0
  %v1459 = vadd.f32 0.0, %v1458
  %v1460 = vpop.f32.mrf.mxu0
  %v1461 = vpop.f32.mrf.mxu0
  %v1462 = vadd.f32 0.0, %v1461
  %v1463 = vpop.f32.mrf.mxu0
  %1464 = vmatprep.mubr.bf16.mxu0 %v785
  %1465 = vmatmul.mubr.bf16.gmra.mxu0 %v784
  %v1466 = vpop.f32.mrf.mxu0
  %v1467 = vadd.f32 0.0, %v1466
  %v1468 = vpop.f32.mrf.mxu0
  %v1469 = vpop.f32.mrf.mxu0
  %v1470 = vadd.f32 0.0, %v1469
  %v1471 = vpop.f32.mrf.mxu0
  %1472 = vmatprep.mubr.bf16.mxu0 %v791
  %1473 = vmatmul.mubr.bf16.gmra.mxu0 %v790
  %v1474 = vpop.f32.mrf.mxu0
  %v1475 = vadd.f32 0.0, %v1474
  %v1476 = vpop.f32.mrf.mxu0
  %v1477 = vpop.f32.mrf.mxu0
  %v1478 = vadd.f32 0.0, %v1477
  %v1479 = vpop.f32.mrf.mxu0
  %1480 = vmatprep.mubr.bf16.mxu0 %v797
  %1481 = vmatmul.mubr.bf16.gmra.mxu0 %v796
  %v1482 = vpop.f32.mrf.mxu0
  %v1483 = vadd.f32 0.0, %v1482
  %v1484 = vpop.f32.mrf.mxu0
  %v1485 = vpop.f32.mrf.mxu0
  %v1486 = vadd.f32 0.0, %v1485
  %v1487 = vpop.f32.mrf.mxu0
  %1488 = vmatprep.mubr.bf16.mxu0 %v803
  %1489 = vmatmul.mubr.bf16.gmra.mxu0 %v802
  %v1490 = vpop.f32.mrf.mxu0
  %v1491 = vadd.f32 0.0, %v1490
  %v1492 = vpop.f32.mrf.mxu0
  %v1493 = vpop.f32.mrf.mxu0
  %v1494 = vadd.f32 0.0, %v1493
  %v1495 = vpop.f32.mrf.mxu0
  %1496 = vmatprep.mubr.bf16.mxu0 %v809
  %1497 = vmatmul.mubr.bf16.gmra.mxu0 %v808
  %v1498 = vpop.f32.mrf.mxu0
  %v1499 = vadd.f32 0.0, %v1498
  %v1500 = vpop.f32.mrf.mxu0
  %v1501 = vpop.f32.mrf.mxu0
  %v1502 = vadd.f32 0.0, %v1501
  %v1503 = vpop.f32.mrf.mxu0
  %1504 = vmatprep.mubr.bf16.mxu0 %v815
  %1505 = vmatmul.mubr.bf16.gmra.mxu0 %v814
  %v1506 = vpop.f32.mrf.mxu0
  %v1507 = vadd.f32 0.0, %v1506
  %v1508 = vpop.f32.mrf.mxu0
  %v1509 = vpop.f32.mrf.mxu0
  %v1510 = vadd.f32 0.0, %v1509
  %v1511 = vpop.f32.mrf.mxu0
  %1512 = vmatprep.mubr.bf16.mxu0 %v821
  %1513 = vmatmul.mubr.bf16.gmra.mxu0 %v820
  %v1514 = vpop.f32.mrf.mxu0
  %v1515 = vadd.f32 0.0, %v1514
  %v1516 = vpop.f32.mrf.mxu0
  %v1517 = vpop.f32.mrf.mxu0
  %v1518 = vadd.f32 0.0, %v1517
  %v1519 = vpop.f32.mrf.mxu0
  %1520 = vmatprep.mubr.bf16.mxu0 %v827
  %1521 = vmatmul.mubr.bf16.gmra.mxu0 %v826
  %v1522 = vpop.f32.mrf.mxu0
  %v1523 = vadd.f32 0.0, %v1522
  %v1524 = vpop.f32.mrf.mxu0
  %v1525 = vpop.f32.mrf.mxu0
  %v1526 = vadd.f32 0.0, %v1525
  %v1527 = vpop.f32.mrf.mxu0
  %1528 = vmatprep.mubr.bf16.mxu0 %v833
  %1529 = vmatmul.mubr.bf16.gmra.mxu0 %v832
  %v1530 = vpop.f32.mrf.mxu0
  %v1531 = vadd.f32 0.0, %v1530
  %v1532 = vpop.f32.mrf.mxu0
  %v1533 = vpop.f32.mrf.mxu0
  %v1534 = vadd.f32 0.0, %v1533
  %v1535 = vpop.f32.mrf.mxu0
  %1536 = vmatprep.mubr.bf16.mxu0 %v839
  %1537 = vmatmul.mubr.bf16.gmra.mxu0 %v838
  %v1538 = vpop.f32.mrf.mxu0
  %v1539 = vadd.f32 0.0, %v1538
  %v1540 = vpop.f32.mrf.mxu0
  %v1541 = vpop.f32.mrf.mxu0
  %v1542 = vpop.f32.mrf.mxu0
  %1543 = vdwg.mxu0
  %1544 = vmatprep.subr.bf16.mxu0 0
  %1545 = vmatpush1.bf16.msra.mxu0 %v1168
  %1546 = vmatprep.subr.bf16.mxu0 0
  %1547 = vmatpush1.bf16.msra.mxu0 %v1167
  %1548 = vmatprep.subr.bf16.mxu0 0
  %1549 = vmatpush1.bf16.msra.mxu0 %v1166
  %1550 = vmatprep.subr.bf16.mxu0 0
  %1551 = vmatpush1.bf16.msra.mxu0 %v1165
  %1552 = vmatprep.subr.bf16.mxu0 0
  %1553 = vmatpush1.bf16.msra.mxu0 %v1164
  %1554 = vmatprep.subr.bf16.mxu0 0
  %1555 = vmatpush1.bf16.msra.mxu0 %v1163
  %1556 = vmatprep.subr.bf16.mxu0 0
  %1557 = vmatpush1.bf16.msra.mxu0 %v1162
  %1558 = vmatprep.subr.bf16.mxu0 0
  %1559 = vmatpush1.bf16.msra.mxu0 %v1161
  %1560 = vmatprep.subr.bf16.mxu0 0
  %1561 = vmatpush2.bf16.msra.mxu0 %v1176
  %1562 = vmatprep.subr.bf16.mxu0 0
  %1563 = vmatpush2.bf16.msra.mxu0 %v1175
  %1564 = vmatprep.subr.bf16.mxu0 0
  %1565 = vmatpush2.bf16.msra.mxu0 %v1174
  %1566 = vmatprep.subr.bf16.mxu0 0
  %1567 = vmatpush2.bf16.msra.mxu0 %v1173
  %1568 = vmatprep.subr.bf16.mxu0 0
  %1569 = vmatpush2.bf16.msra.mxu0 %v1172
  %1570 = vmatprep.subr.bf16.mxu0 0
  %1571 = vmatpush2.bf16.msra.mxu0 %v1171
  %1572 = vmatprep.subr.bf16.mxu0 0
  %1573 = vmatpush2.bf16.msra.mxu0 %v1170
  %1574 = vmatprep.subr.bf16.mxu0 0
  %1575 = vmatpush2.bf16.msra.mxu0 %v1169
  %1576 = vmatprep.mubr.bf16.mxu0 %v697
  %1577 = vmatmul.mubr.bf16.gmra.mxu0 %v696
  %v1578 = vpop.f32.mrf.mxu0
  %v1579 = vadd.f32 %v1347, %v1578
  %v1580 = vpop.f32.mrf.mxu0
  %v1581 = vpop.f32.mrf.mxu0
  %v1582 = vadd.f32 %v1350, %v1581
  %v1583 = vpop.f32.mrf.mxu0
  %1584 = vmatprep.mubr.bf16.mxu0 %v703
  %1585 = vmatmul.mubr.bf16.gmra.mxu0 %v702
  %v1586 = vpop.f32.mrf.mxu0
  %v1587 = vadd.f32 %v1355, %v1586
  %v1588 = vpop.f32.mrf.mxu0
  %v1589 = vpop.f32.mrf.mxu0
  %v1590 = vadd.f32 %v1358, %v1589
  %v1591 = vpop.f32.mrf.mxu0
  %1592 = vmatprep.mubr.bf16.mxu0 %v709
  %1593 = vmatmul.mubr.bf16.gmra.mxu0 %v708
  %v1594 = vpop.f32.mrf.mxu0
  %v1595 = vadd.f32 %v1363, %v1594
  %v1596 = vpop.f32.mrf.mxu0
  %v1597 = vpop.f32.mrf.mxu0
  %v1598 = vadd.f32 %v1366, %v1597
  %v1599 = vpop.f32.mrf.mxu0
  %1600 = vmatprep.mubr.bf16.mxu0 %v715
  %1601 = vmatmul.mubr.bf16.gmra.mxu0 %v714
  %v1602 = vpop.f32.mrf.mxu0
  %v1603 = vadd.f32 %v1371, %v1602
  %v1604 = vpop.f32.mrf.mxu0
  %v1605 = vpop.f32.mrf.mxu0
  %v1606 = vadd.f32 %v1374, %v1605
  %v1607 = vpop.f32.mrf.mxu0
  %1608 = vmatprep.mubr.bf16.mxu0 %v721
  %1609 = vmatmul.mubr.bf16.gmra.mxu0 %v720
  %v1610 = vpop.f32.mrf.mxu0
  %v1611 = vadd.f32 %v1379, %v1610
  %v1612 = vpop.f32.mrf.mxu0
  %v1613 = vpop.f32.mrf.mxu0
  %v1614 = vadd.f32 %v1382, %v1613
  %v1615 = vpop.f32.mrf.mxu0
  %1616 = vmatprep.mubr.bf16.mxu0 %v727
  %1617 = vmatmul.mubr.bf16.gmra.mxu0 %v726
  %v1618 = vpop.f32.mrf.mxu0
  %v1619 = vadd.f32 %v1387, %v1618
  %v1620 = vpop.f32.mrf.mxu0
  %v1621 = vpop.f32.mrf.mxu0
  %v1622 = vadd.f32 %v1390, %v1621
  %v1623 = vpop.f32.mrf.mxu0
  %1624 = vmatprep.mubr.bf16.mxu0 %v733
  %1625 = vmatmul.mubr.bf16.gmra.mxu0 %v732
  %v1626 = vpop.f32.mrf.mxu0
  %v1627 = vadd.f32 %v1395, %v1626
  %v1628 = vpop.f32.mrf.mxu0
  %v1629 = vpop.f32.mrf.mxu0
  %v1630 = vadd.f32 %v1398, %v1629
  %v1631 = vpop.f32.mrf.mxu0
  %1632 = vmatprep.mubr.bf16.mxu0 %v739
  %1633 = vmatmul.mubr.bf16.gmra.mxu0 %v738
  %v1634 = vpop.f32.mrf.mxu0
  %v1635 = vadd.f32 %v1403, %v1634
  %v1636 = vpop.f32.mrf.mxu0
  %v1637 = vpop.f32.mrf.mxu0
  %v1638 = vadd.f32 %v1406, %v1637
  %v1639 = vpop.f32.mrf.mxu0
  %1640 = vmatprep.mubr.bf16.mxu0 %v745
  %1641 = vmatmul.mubr.bf16.gmra.mxu0 %v744
  %v1642 = vpop.f32.mrf.mxu0
  %v1643 = vadd.f32 %v1411, %v1642
  %v1644 = vpop.f32.mrf.mxu0
  %v1645 = vpop.f32.mrf.mxu0
  %v1646 = vadd.f32 %v1414, %v1645
  %v1647 = vpop.f32.mrf.mxu0
  %1648 = vmatprep.mubr.bf16.mxu0 %v751
  %1649 = vmatmul.mubr.bf16.gmra.mxu0 %v750
  %v1650 = vpop.f32.mrf.mxu0
  %v1651 = vadd.f32 %v1419, %v1650
  %v1652 = vpop.f32.mrf.mxu0
  %v1653 = vpop.f32.mrf.mxu0
  %v1654 = vadd.f32 %v1422, %v1653
  %v1655 = vpop.f32.mrf.mxu0
  %1656 = vmatprep.mubr.bf16.mxu0 %v757
  %1657 = vmatmul.mubr.bf16.gmra.mxu0 %v756
  %v1658 = vpop.f32.mrf.mxu0
  %v1659 = vadd.f32 %v1427, %v1658
  %v1660 = vpop.f32.mrf.mxu0
  %v1661 = vpop.f32.mrf.mxu0
  %v1662 = vadd.f32 %v1430, %v1661
  %v1663 = vpop.f32.mrf.mxu0
  %1664 = vmatprep.mubr.bf16.mxu0 %v763
  %1665 = vmatmul.mubr.bf16.gmra.mxu0 %v762
  %v1666 = vpop.f32.mrf.mxu0
  %v1667 = vadd.f32 %v1435, %v1666
  %v1668 = vpop.f32.mrf.mxu0
  %v1669 = vpop.f32.mrf.mxu0
  %v1670 = vadd.f32 %v1438, %v1669
  %v1671 = vpop.f32.mrf.mxu0
  %1672 = vmatprep.mubr.bf16.mxu0 %v769
  %1673 = vmatmul.mubr.bf16.gmra.mxu0 %v768
  %v1674 = vpop.f32.mrf.mxu0
  %v1675 = vadd.f32 %v1443, %v1674
  %v1676 = vpop.f32.mrf.mxu0
  %v1677 = vpop.f32.mrf.mxu0
  %v1678 = vadd.f32 %v1446, %v1677
  %v1679 = vpop.f32.mrf.mxu0
  %1680 = vmatprep.mubr.bf16.mxu0 %v775
  %1681 = vmatmul.mubr.bf16.gmra.mxu0 %v774
  %v1682 = vpop.f32.mrf.mxu0
  %v1683 = vadd.f32 %v1451, %v1682
  %v1684 = vpop.f32.mrf.mxu0
  %v1685 = vpop.f32.mrf.mxu0
  %v1686 = vadd.f32 %v1454, %v1685
  %v1687 = vpop.f32.mrf.mxu0
  %1688 = vmatprep.mubr.bf16.mxu0 %v781
  %1689 = vmatmul.mubr.bf16.gmra.mxu0 %v780
  %v1690 = vpop.f32.mrf.mxu0
  %v1691 = vadd.f32 %v1459, %v1690
  %v1692 = vpop.f32.mrf.mxu0
  %v1693 = vpop.f32.mrf.mxu0
  %v1694 = vadd.f32 %v1462, %v1693
  %v1695 = vpop.f32.mrf.mxu0
  %1696 = vmatprep.mubr.bf16.mxu0 %v787
  %1697 = vmatmul.mubr.bf16.gmra.mxu0 %v786
  %v1698 = vpop.f32.mrf.mxu0
  %v1699 = vadd.f32 %v1467, %v1698
  %v1700 = vpop.f32.mrf.mxu0
  %v1701 = vpop.f32.mrf.mxu0
  %v1702 = vadd.f32 %v1470, %v1701
  %v1703 = vpop.f32.mrf.mxu0
  %1704 = vmatprep.mubr.bf16.mxu0 %v793
  %1705 = vmatmul.mubr.bf16.gmra.mxu0 %v792
  %v1706 = vpop.f32.mrf.mxu0
  %v1707 = vadd.f32 %v1475, %v1706
  %v1708 = vpop.f32.mrf.mxu0
  %v1709 = vpop.f32.mrf.mxu0
  %v1710 = vadd.f32 %v1478, %v1709
  %v1711 = vpop.f32.mrf.mxu0
  %1712 = vmatprep.mubr.bf16.mxu0 %v799
  %1713 = vmatmul.mubr.bf16.gmra.mxu0 %v798
  %v1714 = vpop.f32.mrf.mxu0
  %v1715 = vadd.f32 %v1483, %v1714
  %v1716 = vpop.f32.mrf.mxu0
  %v1717 = vpop.f32.mrf.mxu0
  %v1718 = vadd.f32 %v1486, %v1717
  %v1719 = vpop.f32.mrf.mxu0
  %1720 = vmatprep.mubr.bf16.mxu0 %v805
  %1721 = vmatmul.mubr.bf16.gmra.mxu0 %v804
  %v1722 = vpop.f32.mrf.mxu0
  %v1723 = vadd.f32 %v1491, %v1722
  %v1724 = vpop.f32.mrf.mxu0
  %v1725 = vpop.f32.mrf.mxu0
  %v1726 = vadd.f32 %v1494, %v1725
  %v1727 = vpop.f32.mrf.mxu0
  %1728 = vmatprep.mubr.bf16.mxu0 %v811
  %1729 = vmatmul.mubr.bf16.gmra.mxu0 %v810
  %v1730 = vpop.f32.mrf.mxu0
  %v1731 = vadd.f32 %v1499, %v1730
  %v1732 = vpop.f32.mrf.mxu0
  %v1733 = vpop.f32.mrf.mxu0
  %v1734 = vadd.f32 %v1502, %v1733
  %v1735 = vpop.f32.mrf.mxu0
  %1736 = vmatprep.mubr.bf16.mxu0 %v817
  %1737 = vmatmul.mubr.bf16.gmra.mxu0 %v816
  %v1738 = vpop.f32.mrf.mxu0
  %v1739 = vadd.f32 %v1507, %v1738
  %v1740 = vpop.f32.mrf.mxu0
  %v1741 = vpop.f32.mrf.mxu0
  %v1742 = vadd.f32 %v1510, %v1741
  %v1743 = vpop.f32.mrf.mxu0
  %1744 = vmatprep.mubr.bf16.mxu0 %v823
  %1745 = vmatmul.mubr.bf16.gmra.mxu0 %v822
  %v1746 = vpop.f32.mrf.mxu0
  %v1747 = vadd.f32 %v1515, %v1746
  %v1748 = vpop.f32.mrf.mxu0
  %v1749 = vpop.f32.mrf.mxu0
  %v1750 = vadd.f32 %v1518, %v1749
  %v1751 = vpop.f32.mrf.mxu0
  %1752 = vmatprep.mubr.bf16.mxu0 %v829
  %1753 = vmatmul.mubr.bf16.gmra.mxu0 %v828
  %v1754 = vpop.f32.mrf.mxu0
  %v1755 = vadd.f32 %v1523, %v1754
  %v1756 = vpop.f32.mrf.mxu0
  %v1757 = vpop.f32.mrf.mxu0
  %v1758 = vadd.f32 %v1526, %v1757
  %v1759 = vpop.f32.mrf.mxu0
  %1760 = vmatprep.mubr.bf16.mxu0 %v835
  %1761 = vmatmul.mubr.bf16.gmra.mxu0 %v834
  %v1762 = vpop.f32.mrf.mxu0
  %v1763 = vadd.f32 %v1531, %v1762
  %v1764 = vpop.f32.mrf.mxu0
  %v1765 = vpop.f32.mrf.mxu0
  %v1766 = vadd.f32 %v1534, %v1765
  %v1767 = vpop.f32.mrf.mxu0
  %1768 = vmatprep.mubr.bf16.mxu0 %v841
  %1769 = vmatmul.mubr.bf16.gmra.mxu0 %v840
  %v1770 = vpop.f32.mrf.mxu0
  %v1771 = vadd.f32 %v1539, %v1770
  %v1772 = vpop.f32.mrf.mxu0
  %v1773 = vpop.f32.mrf.mxu0
  %v1774 = vpop.f32.mrf.mxu0
  %1775 = vdwg.mxu0
  %1776 = vmatprep.subr.bf16.mxu0 0
  %1777 = vmatpush1.bf16.msra.mxu0 %v1184
  %1778 = vmatprep.subr.bf16.mxu0 0
  %1779 = vmatpush1.bf16.msra.mxu0 %v1183
  %1780 = vmatprep.subr.bf16.mxu0 0
  %1781 = vmatpush1.bf16.msra.mxu0 %v1182
  %1782 = vmatprep.subr.bf16.mxu0 0
  %1783 = vmatpush1.bf16.msra.mxu0 %v1181
  %1784 = vmatprep.subr.bf16.mxu0 0
  %1785 = vmatpush1.bf16.msra.mxu0 %v1180
  %1786 = vmatprep.subr.bf16.mxu0 0
  %1787 = vmatpush1.bf16.msra.mxu0 %v1179
  %1788 = vmatprep.subr.bf16.mxu0 0
  %1789 = vmatpush1.bf16.msra.mxu0 %v1178
  %1790 = vmatprep.subr.bf16.mxu0 0
  %1791 = vmatpush1.bf16.msra.mxu0 %v1177
  %1792 = vmatprep.subr.bf16.mxu0 0
  %1793 = vmatpush2.bf16.msra.mxu0 0
  %1794 = vmatprep.subr.bf16.mxu0 0
  %1795 = vmatpush2.bf16.msra.mxu0 0
  %1796 = vmatprep.subr.bf16.mxu0 0
  %1797 = vmatpush2.bf16.msra.mxu0 0
  %1798 = vmatprep.subr.bf16.mxu0 0
  %1799 = vmatpush2.bf16.msra.mxu0 0
  %1800 = vmatprep.subr.bf16.mxu0 0
  %1801 = vmatpush2.bf16.msra.mxu0 %v1310
  %1802 = vmatprep.subr.bf16.mxu0 0
  %1803 = vmatpush2.bf16.msra.mxu0 %v1187
  %1804 = vmatprep.subr.bf16.mxu0 0
  %1805 = vmatpush2.bf16.msra.mxu0 %v1186
  %1806 = vmatprep.subr.bf16.mxu0 0
  %1807 = vmatpush2.bf16.msra.mxu0 %v1185
  %1808 = vmatprep.mubr.bf16.mxu0 %v1234
  %1809 = vmatmul.mubr.bf16.gmra.mxu0 %v698
  %v1810 = vpop.f32.mrf.mxu0
  %v1811 = vadd.f32 %v1579, %v1810
  %v1812 = vpop.f32.mrf.mxu0
  %v1813 = vpop.f32.mrf.mxu0
  %v1814 = vadd.f32 %v1582, %v1813
  %v1815 = vpop.f32.mrf.mxu0
  %1816 = vmatprep.mubr.bf16.mxu0 %v1237
  %1817 = vmatmul.mubr.bf16.gmra.mxu0 %v704
  %v1818 = vpop.f32.mrf.mxu0
  %v1819 = vadd.f32 %v1587, %v1818
  %v1820 = vpop.f32.mrf.mxu0
  %v1821 = vpop.f32.mrf.mxu0
  %v1822 = vadd.f32 %v1590, %v1821
  %v1823 = vpop.f32.mrf.mxu0
  %1824 = vmatprep.mubr.bf16.mxu0 %v1240
  %1825 = vmatmul.mubr.bf16.gmra.mxu0 %v710
  %v1826 = vpop.f32.mrf.mxu0
  %v1827 = vadd.f32 %v1595, %v1826
  %v1828 = vpop.f32.mrf.mxu0
  %v1829 = vpop.f32.mrf.mxu0
  %v1830 = vadd.f32 %v1598, %v1829
  %v1831 = vpop.f32.mrf.mxu0
  %1832 = vmatprep.mubr.bf16.mxu0 %v1243
  %1833 = vmatmul.mubr.bf16.gmra.mxu0 %v716
  %v1834 = vpop.f32.mrf.mxu0
  %v1835 = vadd.f32 %v1603, %v1834
  %v1836 = vpop.f32.mrf.mxu0
  %v1837 = vpop.f32.mrf.mxu0
  %v1838 = vadd.f32 %v1606, %v1837
  %v1839 = vpop.f32.mrf.mxu0
  %1840 = vmatprep.mubr.bf16.mxu0 %v1246
  %1841 = vmatmul.mubr.bf16.gmra.mxu0 %v722
  %v1842 = vpop.f32.mrf.mxu0
  %v1843 = vadd.f32 %v1611, %v1842
  %v1844 = vpop.f32.mrf.mxu0
  %v1845 = vpop.f32.mrf.mxu0
  %v1846 = vadd.f32 %v1614, %v1845
  %v1847 = vpop.f32.mrf.mxu0
  %1848 = vmatprep.mubr.bf16.mxu0 %v1249
  %1849 = vmatmul.mubr.bf16.gmra.mxu0 %v728
  %v1850 = vpop.f32.mrf.mxu0
  %v1851 = vadd.f32 %v1619, %v1850
  %v1852 = vpop.f32.mrf.mxu0
  %v1853 = vpop.f32.mrf.mxu0
  %v1854 = vadd.f32 %v1622, %v1853
  %v1855 = vpop.f32.mrf.mxu0
  %1856 = vmatprep.mubr.bf16.mxu0 %v1252
  %1857 = vmatmul.mubr.bf16.gmra.mxu0 %v734
  %v1858 = vpop.f32.mrf.mxu0
  %v1859 = vadd.f32 %v1627, %v1858
  %v1860 = vpop.f32.mrf.mxu0
  %v1861 = vpop.f32.mrf.mxu0
  %v1862 = vadd.f32 %v1630, %v1861
  %v1863 = vpop.f32.mrf.mxu0
  %1864 = vmatprep.mubr.bf16.mxu0 %v1255
  %1865 = vmatmul.mubr.bf16.gmra.mxu0 %v740
  %v1866 = vpop.f32.mrf.mxu0
  %v1867 = vadd.f32 %v1635, %v1866
  %v1868 = vpop.f32.mrf.mxu0
  %v1869 = vpop.f32.mrf.mxu0
  %v1870 = vadd.f32 %v1638, %v1869
  %v1871 = vpop.f32.mrf.mxu0
  %1872 = vmatprep.mubr.bf16.mxu0 %v1258
  %1873 = vmatmul.mubr.bf16.gmra.mxu0 %v746
  %v1874 = vpop.f32.mrf.mxu0
  %v1875 = vadd.f32 %v1643, %v1874
  %v1876 = vpop.f32.mrf.mxu0
  %v1877 = vpop.f32.mrf.mxu0
  %v1878 = vadd.f32 %v1646, %v1877
  %v1879 = vpop.f32.mrf.mxu0
  %1880 = vmatprep.mubr.bf16.mxu0 %v1261
  %1881 = vmatmul.mubr.bf16.gmra.mxu0 %v752
  %v1882 = vpop.f32.mrf.mxu0
  %v1883 = vadd.f32 %v1651, %v1882
  %v1884 = vpop.f32.mrf.mxu0
  %v1885 = vpop.f32.mrf.mxu0
  %v1886 = vadd.f32 %v1654, %v1885
  %v1887 = vpop.f32.mrf.mxu0
  %1888 = vmatprep.mubr.bf16.mxu0 %v1264
  %1889 = vmatmul.mubr.bf16.gmra.mxu0 %v758
  %v1890 = vpop.f32.mrf.mxu0
  %v1891 = vadd.f32 %v1659, %v1890
  %v1892 = vpop.f32.mrf.mxu0
  %v1893 = vpop.f32.mrf.mxu0
  %v1894 = vadd.f32 %v1662, %v1893
  %v1895 = vpop.f32.mrf.mxu0
  %1896 = vmatprep.mubr.bf16.mxu0 %v1267
  %1897 = vmatmul.mubr.bf16.gmra.mxu0 %v764
  %v1898 = vpop.f32.mrf.mxu0
  %v1899 = vadd.f32 %v1667, %v1898
  %v1900 = vpop.f32.mrf.mxu0
  %v1901 = vpop.f32.mrf.mxu0
  %v1902 = vadd.f32 %v1670, %v1901
  %v1903 = vpop.f32.mrf.mxu0
  %1904 = vmatprep.mubr.bf16.mxu0 %v1270
  %1905 = vmatmul.mubr.bf16.gmra.mxu0 %v770
  %v1906 = vpop.f32.mrf.mxu0
  %v1907 = vadd.f32 %v1675, %v1906
  %v1908 = vpop.f32.mrf.mxu0
  %v1909 = vpop.f32.mrf.mxu0
  %v1910 = vadd.f32 %v1678, %v1909
  %v1911 = vpop.f32.mrf.mxu0
  %1912 = vmatprep.mubr.bf16.mxu0 %v1273
  %1913 = vmatmul.mubr.bf16.gmra.mxu0 %v776
  %v1914 = vpop.f32.mrf.mxu0
  %v1915 = vadd.f32 %v1683, %v1914
  %v1916 = vpop.f32.mrf.mxu0
  %v1917 = vpop.f32.mrf.mxu0
  %v1918 = vadd.f32 %v1686, %v1917
  %v1919 = vpop.f32.mrf.mxu0
  %1920 = vmatprep.mubr.bf16.mxu0 %v1276
  %1921 = vmatmul.mubr.bf16.gmra.mxu0 %v782
  %v1922 = vpop.f32.mrf.mxu0
  %v1923 = vadd.f32 %v1691, %v1922
  %v1924 = vpop.f32.mrf.mxu0
  %v1925 = vpop.f32.mrf.mxu0
  %v1926 = vadd.f32 %v1694, %v1925
  %v1927 = vpop.f32.mrf.mxu0
  %1928 = vmatprep.mubr.bf16.mxu0 %v1279
  %1929 = vmatmul.mubr.bf16.gmra.mxu0 %v788
  %v1930 = vpop.f32.mrf.mxu0
  %v1931 = vadd.f32 %v1699, %v1930
  %v1932 = vpop.f32.mrf.mxu0
  %v1933 = vpop.f32.mrf.mxu0
  %v1934 = vadd.f32 %v1702, %v1933
  %v1935 = vpop.f32.mrf.mxu0
  %1936 = vmatprep.mubr.bf16.mxu0 %v1282
  %1937 = vmatmul.mubr.bf16.gmra.mxu0 %v794
  %v1938 = vpop.f32.mrf.mxu0
  %v1939 = vadd.f32 %v1707, %v1938
  %v1940 = vpop.f32.mrf.mxu0
  %v1941 = vpop.f32.mrf.mxu0
  %v1942 = vadd.f32 %v1710, %v1941
  %v1943 = vpop.f32.mrf.mxu0
  %1944 = vmatprep.mubr.bf16.mxu0 %v1285
  %1945 = vmatmul.mubr.bf16.gmra.mxu0 %v800
  %v1946 = vpop.f32.mrf.mxu0
  %v1947 = vadd.f32 %v1715, %v1946
  %v1948 = vpop.f32.mrf.mxu0
  %v1949 = vpop.f32.mrf.mxu0
  %v1950 = vadd.f32 %v1718, %v1949
  %v1951 = vpop.f32.mrf.mxu0
  %1952 = vmatprep.mubr.bf16.mxu0 %v1288
  %1953 = vmatmul.mubr.bf16.gmra.mxu0 %v806
  %v1954 = vpop.f32.mrf.mxu0
  %v1955 = vadd.f32 %v1723, %v1954
  %v1956 = vpop.f32.mrf.mxu0
  %v1957 = vpop.f32.mrf.mxu0
  %v1958 = vadd.f32 %v1726, %v1957
  %v1959 = vpop.f32.mrf.mxu0
  %1960 = vmatprep.mubr.bf16.mxu0 %v1291
  %1961 = vmatmul.mubr.bf16.gmra.mxu0 %v812
  %v1962 = vpop.f32.mrf.mxu0
  %v1963 = vadd.f32 %v1731, %v1962
  %v1964 = vpop.f32.mrf.mxu0
  %v1965 = vpop.f32.mrf.mxu0
  %v1966 = vadd.f32 %v1734, %v1965
  %v1967 = vpop.f32.mrf.mxu0
  %1968 = vmatprep.mubr.bf16.mxu0 %v1294
  %1969 = vmatmul.mubr.bf16.gmra.mxu0 %v818
  %v1970 = vpop.f32.mrf.mxu0
  %v1971 = vadd.f32 %v1739, %v1970
  %v1972 = vpop.f32.mrf.mxu0
  %v1973 = vpop.f32.mrf.mxu0
  %v1974 = vadd.f32 %v1742, %v1973
  %v1975 = vpop.f32.mrf.mxu0
  %1976 = vmatprep.mubr.bf16.mxu0 %v1297
  %1977 = vmatmul.mubr.bf16.gmra.mxu0 %v824
  %v1978 = vpop.f32.mrf.mxu0
  %v1979 = vadd.f32 %v1747, %v1978
  %v1980 = vpop.f32.mrf.mxu0
  %v1981 = vpop.f32.mrf.mxu0
  %v1982 = vadd.f32 %v1750, %v1981
  %v1983 = vpop.f32.mrf.mxu0
  %1984 = vmatprep.mubr.bf16.mxu0 %v1300
  %1985 = vmatmul.mubr.bf16.gmra.mxu0 %v830
  %v1986 = vpop.f32.mrf.mxu0
  %v1987 = vadd.f32 %v1755, %v1986
  %v1988 = vpop.f32.mrf.mxu0
  %v1989 = vpop.f32.mrf.mxu0
  %v1990 = vadd.f32 %v1758, %v1989
  %v1991 = vpop.f32.mrf.mxu0
  %1992 = vmatprep.mubr.bf16.mxu0 %v1303
  %1993 = vmatmul.mubr.bf16.gmra.mxu0 %v836
  %v1994 = vpop.f32.mrf.mxu0
  %v1995 = vadd.f32 %v1763, %v1994
  %v1996 = vpop.f32.mrf.mxu0
  %v1997 = vpop.f32.mrf.mxu0
  %v1998 = vadd.f32 %v1766, %v1997
  %v1999 = vpop.f32.mrf.mxu0
  %2000 = vmatprep.mubr.bf16.mxu0 %v1306
  %2001 = vmatmul.mubr.bf16.gmra.mxu0 %v842
  %v2002 = vpop.f32.mrf.mxu0
  %v2003 = vadd.f32 %v1771, %v2002
  %v2004 = vpop.f32.mrf.mxu0
  %v2005 = vpop.f32.mrf.mxu0
  %v2006 = vpop.f32.mrf.mxu0
  %2007 = vdwg.mxu0
  %v2008 = vld [vmem:[%s2] sm:$0x1]
  %v2010 = vlaneseq
  %v2011 = vshrl.u32 %v2010, 7
  %v2012 = vsub.s32 0, %v2011
  %v2013 = vrot.slane %v2008, %v2012
  %v2015 = vmul.f32 %v1811, %v2013
  %v2016 = vmul.f32 %v1814, %v2013
  %v2017 = vmul.f32 %v1819, %v2013
  %v2018 = vmul.f32 %v1822, %v2013
  %v2019 = vmul.f32 %v1827, %v2013
  %v2020 = vmul.f32 %v1830, %v2013
  %v2021 = vmul.f32 %v1835, %v2013
  %v2022 = vmul.f32 %v1838, %v2013
  %v2023 = vmul.f32 %v1843, %v2013
  %v2024 = vmul.f32 %v1846, %v2013
  %v2025 = vmul.f32 %v1851, %v2013
  %v2026 = vmul.f32 %v1854, %v2013
  %v2027 = vmul.f32 %v1859, %v2013
  %v2028 = vmul.f32 %v1862, %v2013
  %v2029 = vmul.f32 %v1867, %v2013
  %v2030 = vmul.f32 %v1870, %v2013
  %v2031 = vmul.f32 %v1875, %v2013
  %v2032 = vmul.f32 %v1878, %v2013
  %v2033 = vmul.f32 %v1883, %v2013
  %v2034 = vmul.f32 %v1886, %v2013
  %v2035 = vmul.f32 %v1891, %v2013
  %v2036 = vmul.f32 %v1894, %v2013
  %v2037 = vmul.f32 %v1899, %v2013
  %v2038 = vmul.f32 %v1902, %v2013
  %v2039 = vmul.f32 %v1907, %v2013
  %v2040 = vmul.f32 %v1910, %v2013
  %v2041 = vmul.f32 %v1915, %v2013
  %v2042 = vmul.f32 %v1918, %v2013
  %v2043 = vmul.f32 %v1923, %v2013
  %v2044 = vmul.f32 %v1926, %v2013
  %v2045 = vmul.f32 %v1931, %v2013
  %v2046 = vmul.f32 %v1934, %v2013
  %v2047 = vmul.f32 %v1939, %v2013
  %v2048 = vmul.f32 %v1942, %v2013
  %v2049 = vmul.f32 %v1947, %v2013
  %v2050 = vmul.f32 %v1950, %v2013
  %v2051 = vmul.f32 %v1955, %v2013
  %v2052 = vmul.f32 %v1958, %v2013
  %v2053 = vmul.f32 %v1963, %v2013
  %v2054 = vmul.f32 %v1966, %v2013
  %v2055 = vmul.f32 %v1971, %v2013
  %v2056 = vmul.f32 %v1974, %v2013
  %v2057 = vmul.f32 %v1979, %v2013
  %v2058 = vmul.f32 %v1982, %v2013
  %v2059 = vmul.f32 %v1987, %v2013
  %v2060 = vmul.f32 %v1990, %v2013
  %v2061 = vmul.f32 %v1995, %v2013
  %v2062 = vmul.f32 %v1998, %v2013
  %v2063 = vmul.f32 %v2003, %v2013
  %v2064 = vld [vmem:[%s3] sm:$0x1]
  %v2066 = vlaneseq
  %v2067 = vshrl.u32 %v2066, 7
  %v2068 = vsub.s32 0, %v2067
  %v2069 = vrot.slane %v2064, %v2068
  %v2071 = vadd.f32 %v2015, %v2069
  %v2072 = vadd.f32 %v2016, %v2069
  %v2073 = vadd.f32 %v2017, %v2069
  %v2074 = vadd.f32 %v2018, %v2069
  %v2075 = vadd.f32 %v2019, %v2069
  %v2076 = vadd.f32 %v2020, %v2069
  %v2077 = vadd.f32 %v2021, %v2069
  %v2078 = vadd.f32 %v2022, %v2069
  %v2079 = vadd.f32 %v2023, %v2069
  %v2080 = vadd.f32 %v2024, %v2069
  %v2081 = vadd.f32 %v2025, %v2069
  %v2082 = vadd.f32 %v2026, %v2069
  %v2083 = vadd.f32 %v2027, %v2069
  %v2084 = vadd.f32 %v2028, %v2069
  %v2085 = vadd.f32 %v2029, %v2069
  %v2086 = vadd.f32 %v2030, %v2069
  %v2087 = vadd.f32 %v2031, %v2069
  %v2088 = vadd.f32 %v2032, %v2069
  %v2089 = vadd.f32 %v2033, %v2069
  %v2090 = vadd.f32 %v2034, %v2069
  %v2091 = vadd.f32 %v2035, %v2069
  %v2092 = vadd.f32 %v2036, %v2069
  %v2093 = vadd.f32 %v2037, %v2069
  %v2094 = vadd.f32 %v2038, %v2069
  %v2095 = vadd.f32 %v2039, %v2069
  %v2096 = vadd.f32 %v2040, %v2069
  %v2097 = vadd.f32 %v2041, %v2069
  %v2098 = vadd.f32 %v2042, %v2069
  %v2099 = vadd.f32 %v2043, %v2069
  %v2100 = vadd.f32 %v2044, %v2069
  %v2101 = vadd.f32 %v2045, %v2069
  %v2102 = vadd.f32 %v2046, %v2069
  %v2103 = vadd.f32 %v2047, %v2069
  %v2104 = vadd.f32 %v2048, %v2069
  %v2105 = vadd.f32 %v2049, %v2069
  %v2106 = vadd.f32 %v2050, %v2069
  %v2107 = vadd.f32 %v2051, %v2069
  %v2108 = vadd.f32 %v2052, %v2069
  %v2109 = vadd.f32 %v2053, %v2069
  %v2110 = vadd.f32 %v2054, %v2069
  %v2111 = vadd.f32 %v2055, %v2069
  %v2112 = vadd.f32 %v2056, %v2069
  %v2113 = vadd.f32 %v2057, %v2069
  %v2114 = vadd.f32 %v2058, %v2069
  %v2115 = vadd.f32 %v2059, %v2069
  %v2116 = vadd.f32 %v2060, %v2069
  %v2117 = vadd.f32 %v2061, %v2069
  %v2118 = vadd.f32 %v2062, %v2069
  %v2119 = vadd.f32 %v2063, %v2069
  %v2120 = vmax.f32 %v2071, 0.0
  %v2121 = vmax.f32 %v2072, 0.0
  %v2122 = vmax.f32 %v2073, 0.0
  %v2123 = vmax.f32 %v2074, 0.0
  %v2124 = vmax.f32 %v2075, 0.0
  %v2125 = vmax.f32 %v2076, 0.0
  %v2126 = vmax.f32 %v2077, 0.0
  %v2127 = vmax.f32 %v2078, 0.0
  %v2128 = vmax.f32 %v2079, 0.0
  %v2129 = vmax.f32 %v2080, 0.0
  %v2130 = vmax.f32 %v2081, 0.0
  %v2131 = vmax.f32 %v2082, 0.0
  %v2132 = vmax.f32 %v2083, 0.0
  %v2133 = vmax.f32 %v2084, 0.0
  %v2134 = vmax.f32 %v2085, 0.0
  %v2135 = vmax.f32 %v2086, 0.0
  %v2136 = vmax.f32 %v2087, 0.0
  %v2137 = vmax.f32 %v2088, 0.0
  %v2138 = vmax.f32 %v2089, 0.0
  %v2139 = vmax.f32 %v2090, 0.0
  %v2140 = vmax.f32 %v2091, 0.0
  %v2141 = vmax.f32 %v2092, 0.0
  %v2142 = vmax.f32 %v2093, 0.0
  %v2143 = vmax.f32 %v2094, 0.0
  %v2144 = vmax.f32 %v2095, 0.0
  %v2145 = vmax.f32 %v2096, 0.0
  %v2146 = vmax.f32 %v2097, 0.0
  %v2147 = vmax.f32 %v2098, 0.0
  %v2148 = vmax.f32 %v2099, 0.0
  %v2149 = vmax.f32 %v2100, 0.0
  %v2150 = vmax.f32 %v2101, 0.0
  %v2151 = vmax.f32 %v2102, 0.0
  %v2152 = vmax.f32 %v2103, 0.0
  %v2153 = vmax.f32 %v2104, 0.0
  %v2154 = vmax.f32 %v2105, 0.0
  %v2155 = vmax.f32 %v2106, 0.0
  %v2156 = vmax.f32 %v2107, 0.0
  %v2157 = vmax.f32 %v2108, 0.0
  %v2158 = vmax.f32 %v2109, 0.0
  %v2159 = vmax.f32 %v2110, 0.0
  %v2160 = vmax.f32 %v2111, 0.0
  %v2161 = vmax.f32 %v2112, 0.0
  %v2162 = vmax.f32 %v2113, 0.0
  %v2163 = vmax.f32 %v2114, 0.0
  %v2164 = vmax.f32 %v2115, 0.0
  %v2165 = vmax.f32 %v2116, 0.0
  %v2166 = vmax.f32 %v2117, 0.0
  %v2167 = vmax.f32 %v2118, 0.0
  %v2168 = vmax.f32 %v2119, 0.0
  %vm2169 = vcmask 228352
  %2170 = vst.msk [vmem:[%s4] sm:$0xff] %vm2169, %v2120
  %2171 = vst.msk [vmem:[%s4 + $0x8] sm:$0xff] %vm2169, %v2121
  %2172 = vst.msk [vmem:[%s4 + $0x10] sm:$0xff] %vm2169, %v2122
  %2173 = vst.msk [vmem:[%s4 + $0x18] sm:$0xff] %vm2169, %v2123
  %2174 = vst.msk [vmem:[%s4 + $0x20] sm:$0xff] %vm2169, %v2124
  %2175 = vst.msk [vmem:[%s4 + $0x28] sm:$0xff] %vm2169, %v2125
  %2176 = vst.msk [vmem:[%s4 + $0x30] sm:$0xff] %vm2169, %v2126
  %2177 = vst.msk [vmem:[%s4 + $0x38] sm:$0xff] %vm2169, %v2127
  %2178 = vst.msk [vmem:[%s4 + $0x40] sm:$0xff] %vm2169, %v2128
  %2179 = vst.msk [vmem:[%s4 + $0x48] sm:$0xff] %vm2169, %v2129
  %2180 = vst.msk [vmem:[%s4 + $0x50] sm:$0xff] %vm2169, %v2130
  %2181 = vst.msk [vmem:[%s4 + $0x58] sm:$0xff] %vm2169, %v2131
  %2182 = vst.msk [vmem:[%s4 + $0x60] sm:$0xff] %vm2169, %v2132
  %2183 = vst.msk [vmem:[%s4 + $0x68] sm:$0xff] %vm2169, %v2133
  %2184 = vst.msk [vmem:[%s4 + $0x70] sm:$0xff] %vm2169, %v2134
  %2185 = vst.msk [vmem:[%s4 + $0x78] sm:$0xff] %vm2169, %v2135
  %2186 = vst.msk [vmem:[%s4 + $0x80] sm:$0xff] %vm2169, %v2136
  %2187 = vst.msk [vmem:[%s4 + $0x88] sm:$0xff] %vm2169, %v2137
  %2188 = vst.msk [vmem:[%s4 + $0x90] sm:$0xff] %vm2169, %v2138
  %2189 = vst.msk [vmem:[%s4 + $0x98] sm:$0xff] %vm2169, %v2139
  %2190 = vst.msk [vmem:[%s4 + $0xa0] sm:$0xff] %vm2169, %v2140
  %2191 = vst.msk [vmem:[%s4 + $0xa8] sm:$0xff] %vm2169, %v2141
  %2192 = vst.msk [vmem:[%s4 + $0xb0] sm:$0xff] %vm2169, %v2142
  %2193 = vst.msk [vmem:[%s4 + $0xb8] sm:$0xff] %vm2169, %v2143
  %2194 = vst.msk [vmem:[%s4 + $0xc0] sm:$0xff] %vm2169, %v2144
  %2195 = vst.msk [vmem:[%s4 + $0xc8] sm:$0xff] %vm2169, %v2145
  %2196 = vst.msk [vmem:[%s4 + $0xd0] sm:$0xff] %vm2169, %v2146
  %2197 = vst.msk [vmem:[%s4 + $0xd8] sm:$0xff] %vm2169, %v2147
  %2198 = vst.msk [vmem:[%s4 + $0xe0] sm:$0xff] %vm2169, %v2148
  %2199 = vst.msk [vmem:[%s4 + $0xe8] sm:$0xff] %vm2169, %v2149
  %2200 = vst.msk [vmem:[%s4 + $0xf0] sm:$0xff] %vm2169, %v2150
  %2201 = vst.msk [vmem:[%s4 + $0xf8] sm:$0xff] %vm2169, %v2151
  %2202 = vst.msk [vmem:[%s4 + $0x100] sm:$0xff] %vm2169, %v2152
  %2203 = vst.msk [vmem:[%s4 + $0x108] sm:$0xff] %vm2169, %v2153
  %2204 = vst.msk [vmem:[%s4 + $0x110] sm:$0xff] %vm2169, %v2154
  %2205 = vst.msk [vmem:[%s4 + $0x118] sm:$0xff] %vm2169, %v2155
  %2206 = vst.msk [vmem:[%s4 + $0x120] sm:$0xff] %vm2169, %v2156
  %2207 = vst.msk [vmem:[%s4 + $0x128] sm:$0xff] %vm2169, %v2157
  %2208 = vst.msk [vmem:[%s4 + $0x130] sm:$0xff] %vm2169, %v2158
  %2209 = vst.msk [vmem:[%s4 + $0x138] sm:$0xff] %vm2169, %v2159
  %2210 = vst.msk [vmem:[%s4 + $0x140] sm:$0xff] %vm2169, %v2160
  %2211 = vst.msk [vmem:[%s4 + $0x148] sm:$0xff] %vm2169, %v2161
  %2212 = vst.msk [vmem:[%s4 + $0x150] sm:$0xff] %vm2169, %v2162
  %2213 = vst.msk [vmem:[%s4 + $0x158] sm:$0xff] %vm2169, %v2163
  %2214 = vst.msk [vmem:[%s4 + $0x160] sm:$0xff] %vm2169, %v2164
  %2215 = vst.msk [vmem:[%s4 + $0x168] sm:$0xff] %vm2169, %v2165
  %2216 = vst.msk [vmem:[%s4 + $0x170] sm:$0xff] %vm2169, %v2166
  %2217 = vst.msk [vmem:[%s4 + $0x178] sm:$0xff] %vm2169, %v2167
  %2218 = vst.msk [vmem:[%s4 + $0x180] sm:$0xff] %vm2169, %v2168
  // Predicated region
  $region18: #{net_forward.8} parent=0 // pred_check
    _
  $region19: #{net_forward.8} parent=0 // pred_check_branch
    %2220 = sbr.rel (0) target = $region21
  $region20: #{net_forward.8} parent=0 // pred_region
    _
  $region21: #{net_forward.8} parent=0 // pred_fallthru
    _
  // Predicated region
  $region22: #{net_forward.8} parent=0 // pred_check
    _
  $region23: #{net_forward.8} parent=0 // pred_check_branch
    %2222 = sbr.rel (0) target = $region25
  $region24: #{net_forward.8} parent=0 // pred_region
    _
  $region25: #{net_forward.8} parent=0 // pred_fallthru
    _

// kernel: net_forward.9
$region0: #{net_forward.9}
  #allocation0 [shape = 'u32[]', space=smem, size = 0x4, offset = 0x4, fixed_abs, tag = 'smem constant byte address 0x4 - core index']
  #allocation1 [shape = 'u32[144,128]{1,0:T(1,128)}', space=vmem, size = 0x12000, scoped, tag = 'internal scratch']
  %s0 = inlined_call_operand.vmem [shape: bf16[8,1372], index: 0, kind: input, shape index: {}]
  %s1 = inlined_call_operand.vmem [shape: bf16[1372,64], index: 1, kind: input, shape index: {}]
  %s2 = inlined_call_operand.vmem [shape: f32[1,64], index: 2, kind: input, shape index: {}]
  %s3 = inlined_call_operand.vmem [shape: f32[8,64], index: 3, kind: output, shape index: {}]
  %s4 = sld [smem:[#allocation0]]
  $region22: #{net_forward.9} parent=0
    _
  %s6 = ssub.s32 1, %s4
  %s7 = scalar_select 0, %s6, %s4
  // Predicated region
  $region2: #{net_forward.9} parent=0 // pred_check
    _
  $region3: #{net_forward.9} parent=0 // pred_check_branch
    %9 = sbr.rel (0) target = $region5
  $region4: #{net_forward.9} parent=0 // pred_region
    _
  $region5: #{net_forward.9} parent=0 // pred_fallthru
    _
  // Predicated region
  $region6: #{net_forward.9} parent=0 // pred_check
    _
  $region7: #{net_forward.9} parent=0 // pred_check_branch
    %11 = sbr.rel (0) target = $region9
  $region8: #{net_forward.9} parent=0 // pred_region
    _
  $region9: #{net_forward.9} parent=0 // pred_fallthru
    _
  // Predicated region
  $region10: #{net_forward.9} parent=0 // pred_check
    _
  $region11: #{net_forward.9} parent=0 // pred_check_branch
    %13 = sbr.rel (0) target = $region13
  $region12: #{net_forward.9} parent=0 // pred_region
    _
  $region13: #{net_forward.9} parent=0 // pred_fallthru
    _
  %v15 = vld [vmem:[%s0] sm:$0xff]
  %v16 = vld [vmem:[%s0 + $0x8] sm:$0xff]
  %v17 = vld [vmem:[%s0 + $0x10] sm:$0xff]
  %v18 = vld [vmem:[%s0 + $0x18] sm:$0xff]
  %v19 = vld [vmem:[%s0 + $0x20] sm:$0xff]
  %v20 = vld [vmem:[%s0 + $0x28] sm:$0xf]
  %v21 = vld [vmem:[%s1] sm:$0xf]
  %v22 = vld [vmem:[%s1 + $0x4] sm:$0xf]
  %v23 = vld [vmem:[%s1 + $0x8] sm:$0xf]
  %v24 = vld [vmem:[%s1 + $0xc] sm:$0xf]
  %v25 = vld [vmem:[%s1 + $0x10] sm:$0xf]
  %v26 = vld [vmem:[%s1 + $0x14] sm:$0xf]
  %v27 = vld [vmem:[%s1 + $0x18] sm:$0xf]
  %v28 = vld [vmem:[%s1 + $0x1c] sm:$0xf]
  %v29 = vld [vmem:[%s1 + $0x20] sm:$0xf]
  %v30 = vld [vmem:[%s1 + $0x24] sm:$0xf]
  %v31 = vld [vmem:[%s1 + $0x28] sm:$0xf]
  %v32 = vld [vmem:[%s1 + $0x2c] sm:$0xf]
  %v33 = vld [vmem:[%s1 + $0x30] sm:$0xf]
  %v34 = vld [vmem:[%s1 + $0x34] sm:$0xf]
  %v35 = vld [vmem:[%s1 + $0x38] sm:$0xf]
  %v36 = vld [vmem:[%s1 + $0x3c] sm:$0xf]
  %v37 = vld [vmem:[%s1 + $0x40] sm:$0xf]
  %v38 = vld [vmem:[%s1 + $0x44] sm:$0xf]
  %v39 = vld [vmem:[%s1 + $0x48] sm:$0xf]
  %v40 = vld [vmem:[%s1 + $0x4c] sm:$0xf]
  %v41 = vld [vmem:[%s1 + $0x50] sm:$0xf]
  %v42 = vld [vmem:[%s1 + $0x54] sm:$0xf]
  %v43 = vld [vmem:[%s1 + $0x58] sm:$0xf]
  %v44 = vld [vmem:[%s1 + $0x5c] sm:$0xf]
  %v45 = vld [vmem:[%s1 + $0x60] sm:$0xf]
  %v46 = vld [vmem:[%s1 + $0x64] sm:$0xf]
  %v47 = vld [vmem:[%s1 + $0x68] sm:$0xf]
  %v48 = vld [vmem:[%s1 + $0x6c] sm:$0xf]
  %v49 = vld [vmem:[%s1 + $0x70] sm:$0xf]
  %v50 = vld [vmem:[%s1 + $0x74] sm:$0xf]
  %v51 = vld [vmem:[%s1 + $0x78] sm:$0xf]
  %v52 = vld [vmem:[%s1 + $0x7c] sm:$0xf]
  %v53 = vld [vmem:[%s1 + $0x80] sm:$0xf]
  %v54 = vld [vmem:[%s1 + $0x84] sm:$0xf]
  %v55 = vld [vmem:[%s1 + $0x88] sm:$0xf]
  %v56 = vld [vmem:[%s1 + $0x8c] sm:$0xf]
  %v57 = vld [vmem:[%s1 + $0x90] sm:$0xf]
  %v58 = vld [vmem:[%s1 + $0x94] sm:$0xf]
  %v59 = vld [vmem:[%s1 + $0x98] sm:$0xf]
  %v60 = vld [vmem:[%s1 + $0x9c] sm:$0xf]
  %v61 = vld [vmem:[%s1 + $0xa0] sm:$0xf]
  %v62 = vld [vmem:[%s1 + $0xa4] sm:$0xf]
  %v63 = vld [vmem:[%s1 + $0xa8] sm:$0xf]
  %v64 = vld [vmem:[%s1 + $0xac] sm:$0xf]
  %v65 = vld [vmem:[%s1 + $0xb0] sm:$0xf]
  %v66 = vld [vmem:[%s1 + $0xb4] sm:$0xf]
  %v67 = vld [vmem:[%s1 + $0xb8] sm:$0xf]
  %v68 = vld [vmem:[%s1 + $0xbc] sm:$0xf]
  %v69 = vld [vmem:[%s1 + $0xc0] sm:$0xf]
  %v70 = vld [vmem:[%s1 + $0xc4] sm:$0xf]
  %v71 = vld [vmem:[%s1 + $0xc8] sm:$0xf]
  %v72 = vld [vmem:[%s1 + $0xcc] sm:$0xf]
  %v73 = vld [vmem:[%s1 + $0xd0] sm:$0xf]
  %v74 = vld [vmem:[%s1 + $0xd4] sm:$0xf]
  %v75 = vld [vmem:[%s1 + $0xd8] sm:$0xf]
  %v76 = vld [vmem:[%s1 + $0xdc] sm:$0xf]
  %v77 = vld [vmem:[%s1 + $0xe0] sm:$0xf]
  %v78 = vld [vmem:[%s1 + $0xe4] sm:$0xf]
  %v79 = vld [vmem:[%s1 + $0xe8] sm:$0xf]
  %v80 = vld [vmem:[%s1 + $0xec] sm:$0xf]
  %v81 = vld [vmem:[%s1 + $0xf0] sm:$0xf]
  %v82 = vld [vmem:[%s1 + $0xf4] sm:$0xf]
  %v83 = vld [vmem:[%s1 + $0xf8] sm:$0xf]
  %v84 = vld [vmem:[%s1 + $0xfc] sm:$0xf]
  %v85 = vld [vmem:[%s1 + $0x100] sm:$0xf]
  %v86 = vld [vmem:[%s1 + $0x104] sm:$0xf]
  %v87 = vld [vmem:[%s1 + $0x108] sm:$0xf]
  %v88 = vld [vmem:[%s1 + $0x10c] sm:$0xf]
  %v89 = vld [vmem:[%s1 + $0x110] sm:$0xf]
  %v90 = vld [vmem:[%s1 + $0x114] sm:$0xf]
  %v91 = vld [vmem:[%s1 + $0x118] sm:$0xf]
  %v92 = vld [vmem:[%s1 + $0x11c] sm:$0xf]
  %v93 = vld [vmem:[%s1 + $0x120] sm:$0xf]
  %v94 = vld [vmem:[%s1 + $0x124] sm:$0xf]
  %v95 = vld [vmem:[%s1 + $0x128] sm:$0xf]
  %v96 = vld [vmem:[%s1 + $0x12c] sm:$0xf]
  %v97 = vld [vmem:[%s1 + $0x130] sm:$0xf]
  %v98 = vld [vmem:[%s1 + $0x134] sm:$0xf]
  %v99 = vld [vmem:[%s1 + $0x138] sm:$0xf]
  %v100 = vld [vmem:[%s1 + $0x13c] sm:$0xf]
  %v101 = vld [vmem:[%s1 + $0x140] sm:$0xf]
  %v102 = vld [vmem:[%s1 + $0x144] sm:$0xf]
  %v103 = vld [vmem:[%s1 + $0x148] sm:$0xf]
  %v104 = vld [vmem:[%s1 + $0x14c] sm:$0xf]
  %v105 = vld [vmem:[%s1 + $0x150] sm:$0xf]
  %v106 = vld [vmem:[%s1 + $0x154] sm:$0xf]
  %v107 = vld [vmem:[%s1 + $0x158] sm:$0xf]
  %v108 = vld [vmem:[%s1 + $0x15c] sm:$0xf]
  %v109 = vld [vmem:[%s1 + $0x160] sm:$0xf]
  %v110 = vld [vmem:[%s1 + $0x164] sm:$0xf]
  %v111 = vld [vmem:[%s1 + $0x168] sm:$0xf]
  %v112 = vld [vmem:[%s1 + $0x16c] sm:$0xf]
  %v113 = vld [vmem:[%s1 + $0x170] sm:$0xf]
  %v114 = vld [vmem:[%s1 + $0x174] sm:$0xf]
  %v115 = vld [vmem:[%s1 + $0x178] sm:$0xf]
  %v116 = vld [vmem:[%s1 + $0x17c] sm:$0xf]
  %v117 = vld [vmem:[%s1 + $0x180] sm:$0xf]
  %v118 = vld [vmem:[%s1 + $0x184] sm:$0xf]
  %v119 = vld [vmem:[%s1 + $0x188] sm:$0xf]
  %v120 = vld [vmem:[%s1 + $0x18c] sm:$0xf]
  %v121 = vld [vmem:[%s1 + $0x190] sm:$0xf]
  %v122 = vld [vmem:[%s1 + $0x194] sm:$0xf]
  %v123 = vld [vmem:[%s1 + $0x198] sm:$0xf]
  %v124 = vld [vmem:[%s1 + $0x19c] sm:$0xf]
  %v125 = vld [vmem:[%s1 + $0x1a0] sm:$0xf]
  %v126 = vld [vmem:[%s1 + $0x1a4] sm:$0xf]
  %v127 = vld [vmem:[%s1 + $0x1a8] sm:$0xf]
  %v128 = vld [vmem:[%s1 + $0x1ac] sm:$0xf]
  %v129 = vld [vmem:[%s1 + $0x1b0] sm:$0xf]
  %v130 = vld [vmem:[%s1 + $0x1b4] sm:$0xf]
  %v131 = vld [vmem:[%s1 + $0x1b8] sm:$0xf]
  %v132 = vld [vmem:[%s1 + $0x1bc] sm:$0xf]
  %v133 = vld [vmem:[%s1 + $0x1c0] sm:$0xf]
  %v134 = vld [vmem:[%s1 + $0x1c4] sm:$0xf]
  %v135 = vld [vmem:[%s1 + $0x1c8] sm:$0xf]
  %v136 = vld [vmem:[%s1 + $0x1cc] sm:$0xf]
  %v137 = vld [vmem:[%s1 + $0x1d0] sm:$0xf]
  %v138 = vld [vmem:[%s1 + $0x1d4] sm:$0xf]
  %v139 = vld [vmem:[%s1 + $0x1d8] sm:$0xf]
  %v140 = vld [vmem:[%s1 + $0x1dc] sm:$0xf]
  %v141 = vld [vmem:[%s1 + $0x1e0] sm:$0xf]
  %v142 = vld [vmem:[%s1 + $0x1e4] sm:$0xf]
  %v143 = vld [vmem:[%s1 + $0x1e8] sm:$0xf]
  %v144 = vld [vmem:[%s1 + $0x1ec] sm:$0xf]
  %v145 = vld [vmem:[%s1 + $0x1f0] sm:$0xf]
  %v146 = vld [vmem:[%s1 + $0x1f4] sm:$0xf]
  %v147 = vld [vmem:[%s1 + $0x1f8] sm:$0xf]
  %v148 = vld [vmem:[%s1 + $0x1fc] sm:$0xf]
  %v149 = vld [vmem:[%s1 + $0x200] sm:$0xf]
  %v150 = vld [vmem:[%s1 + $0x204] sm:$0xf]
  %v151 = vld [vmem:[%s1 + $0x208] sm:$0xf]
  %v152 = vld [vmem:[%s1 + $0x20c] sm:$0xf]
  %v153 = vld [vmem:[%s1 + $0x210] sm:$0xf]
  %v154 = vld [vmem:[%s1 + $0x214] sm:$0xf]
  %v155 = vld [vmem:[%s1 + $0x218] sm:$0xf]
  %v156 = vld [vmem:[%s1 + $0x21c] sm:$0xf]
  %v157 = vld [vmem:[%s1 + $0x220] sm:$0xf]
  %v158 = vld [vmem:[%s1 + $0x224] sm:$0xf]
  %v159 = vld [vmem:[%s1 + $0x228] sm:$0xf]
  %v160 = vld [vmem:[%s1 + $0x22c] sm:$0xf]
  %v161 = vld [vmem:[%s1 + $0x230] sm:$0xf]
  %v162 = vld [vmem:[%s1 + $0x234] sm:$0xf]
  %v163 = vld [vmem:[%s1 + $0x238] sm:$0xf]
  %v164 = vld [vmem:[%s1 + $0x23c] sm:$0xf]
  %v165 = vld [vmem:[%s1 + $0x240] sm:$0xf]
  %v166 = vld [vmem:[%s1 + $0x244] sm:$0xf]
  %v167 = vld [vmem:[%s1 + $0x248] sm:$0xf]
  %v168 = vld [vmem:[%s1 + $0x24c] sm:$0xf]
  %v169 = vld [vmem:[%s1 + $0x250] sm:$0xf]
  %v170 = vld [vmem:[%s1 + $0x254] sm:$0xf]
  %v171 = vld [vmem:[%s1 + $0x258] sm:$0xf]
  %v172 = vld [vmem:[%s1 + $0x25c] sm:$0xf]
  %v173 = vld [vmem:[%s1 + $0x260] sm:$0xf]
  %v174 = vld [vmem:[%s1 + $0x264] sm:$0xf]
  %v175 = vld [vmem:[%s1 + $0x268] sm:$0xf]
  %v176 = vld [vmem:[%s1 + $0x26c] sm:$0xf]
  %v177 = vld [vmem:[%s1 + $0x270] sm:$0xf]
  %v178 = vld [vmem:[%s1 + $0x274] sm:$0xf]
  %v179 = vld [vmem:[%s1 + $0x278] sm:$0xf]
  %v180 = vld [vmem:[%s1 + $0x27c] sm:$0xf]
  %v181 = vld [vmem:[%s1 + $0x280] sm:$0xf]
  %v182 = vld [vmem:[%s1 + $0x284] sm:$0xf]
  %v183 = vld [vmem:[%s1 + $0x288] sm:$0xf]
  %v184 = vld [vmem:[%s1 + $0x28c] sm:$0xf]
  %v185 = vld [vmem:[%s1 + $0x290] sm:$0xf]
  %v186 = vld [vmem:[%s1 + $0x294] sm:$0xf]
  %v187 = vld [vmem:[%s1 + $0x298] sm:$0xf]
  %v188 = vld [vmem:[%s1 + $0x29c] sm:$0xf]
  %v189 = vld [vmem:[%s1 + $0x2a0] sm:$0xf]
  %v190 = vld [vmem:[%s1 + $0x2a4] sm:$0xf]
  %v191 = vld [vmem:[%s1 + $0x2a8] sm:$0xf]
  %v192 = vld [vmem:[%s1 + $0x2ac] sm:$0x3]
  %v193 = vld [vmem:[%s2] sm:$0x1]
  %v195 = vlaneseq
  %v196 = vshrl.u32 %v195, 7
  %v197 = vsub.s32 0, %v196
  %v198 = vrot.slane %v193, %v197
  %v206 = vunpack.c.l.b16 %v15
  %v207 = vunpack.c.h.b16 %v15
  %v208 = vunpack.c.l.b16 %v16
  %v209 = vunpack.c.h.b16 %v16
  %v210 = vunpack.c.l.b16 %v17
  %v211 = vunpack.c.h.b16 %v17
  %v212 = vunpack.c.l.b16 %v18
  %v213 = vunpack.c.h.b16 %v18
  %v214 = vunpack.c.l.b16 %v19
  %v215 = vunpack.c.h.b16 %v19
  %v216 = vunpack.c.l.b16 %v20
  %v217 = vpack.c.b16 %v206, %v206
  %v218 = vpack.c.b16 %v207, %v207
  %v219 = vpack.c.b16 %v208, %v208
  %v220 = vpack.c.b16 %v209, %v209
  %v221 = vpack.c.b16 %v210, %v210
  %v222 = vpack.c.b16 %v211, %v211
  %v223 = vpack.c.b16 %v212, %v212
  %v224 = vpack.c.b16 %v213, %v213
  %v225 = vpack.c.b16 %v214, %v214
  %v226 = vpack.c.b16 %v215, %v215
  %v227 = vpack.c.b16 %v216, %v216
  %v410 = vunpack.c.l.b16 %v21
  %v411 = vunpack.c.l.b16 %v22
  %v412 = vunpack.c.l.b16 %v23
  %v413 = vunpack.c.l.b16 %v24
  %v414 = vunpack.c.l.b16 %v25
  %v415 = vunpack.c.l.b16 %v26
  %v416 = vunpack.c.l.b16 %v27
  %v417 = vunpack.c.l.b16 %v28
  %v418 = vunpack.c.l.b16 %v29
  %v419 = vunpack.c.l.b16 %v30
  %v420 = vunpack.c.l.b16 %v31
  %v421 = vunpack.c.l.b16 %v32
  %v422 = vunpack.c.l.b16 %v33
  %v423 = vunpack.c.l.b16 %v34
  %v424 = vunpack.c.l.b16 %v35
  %v425 = vunpack.c.l.b16 %v36
  %v426 = vunpack.c.l.b16 %v37
  %v427 = vunpack.c.l.b16 %v38
  %v428 = vunpack.c.l.b16 %v39
  %v429 = vunpack.c.l.b16 %v40
  %v430 = vunpack.c.l.b16 %v41
  %v431 = vunpack.c.l.b16 %v42
  %v432 = vunpack.c.l.b16 %v43
  %v433 = vunpack.c.l.b16 %v44
  %v434 = vunpack.c.l.b16 %v45
  %v435 = vunpack.c.l.b16 %v46
  %v436 = vunpack.c.l.b16 %v47
  %v437 = vunpack.c.l.b16 %v48
  %v438 = vunpack.c.l.b16 %v49
  %v439 = vunpack.c.l.b16 %v50
  %v440 = vunpack.c.l.b16 %v51
  %v441 = vunpack.c.l.b16 %v52
  %v442 = vunpack.c.l.b16 %v53
  %v443 = vunpack.c.l.b16 %v54
  %v444 = vunpack.c.l.b16 %v55
  %v445 = vunpack.c.l.b16 %v56
  %v446 = vunpack.c.l.b16 %v57
  %v447 = vunpack.c.l.b16 %v58
  %v448 = vunpack.c.l.b16 %v59
  %v449 = vunpack.c.l.b16 %v60
  %v450 = vunpack.c.l.b16 %v61
  %v451 = vunpack.c.l.b16 %v62
  %v452 = vunpack.c.l.b16 %v63
  %v453 = vunpack.c.l.b16 %v64
  %v454 = vunpack.c.l.b16 %v65
  %v455 = vunpack.c.l.b16 %v66
  %v456 = vunpack.c.l.b16 %v67
  %v457 = vunpack.c.l.b16 %v68
  %v458 = vunpack.c.l.b16 %v69
  %v459 = vunpack.c.l.b16 %v70
  %v460 = vunpack.c.l.b16 %v71
  %v461 = vunpack.c.l.b16 %v72
  %v462 = vunpack.c.l.b16 %v73
  %v463 = vunpack.c.l.b16 %v74
  %v464 = vunpack.c.l.b16 %v75
  %v465 = vunpack.c.l.b16 %v76
  %v466 = vunpack.c.l.b16 %v77
  %v467 = vunpack.c.l.b16 %v78
  %v468 = vunpack.c.l.b16 %v79
  %v469 = vunpack.c.l.b16 %v80
  %v470 = vunpack.c.l.b16 %v81
  %v471 = vunpack.c.l.b16 %v82
  %v472 = vunpack.c.l.b16 %v83
  %v473 = vunpack.c.l.b16 %v84
  %v474 = vunpack.c.l.b16 %v85
  %v475 = vunpack.c.l.b16 %v86
  %v476 = vunpack.c.l.b16 %v87
  %v477 = vunpack.c.l.b16 %v88
  %v478 = vunpack.c.l.b16 %v89
  %v479 = vunpack.c.l.b16 %v90
  %v480 = vunpack.c.l.b16 %v91
  %v481 = vunpack.c.l.b16 %v92
  %v482 = vunpack.c.l.b16 %v93
  %v483 = vunpack.c.l.b16 %v94
  %v484 = vunpack.c.l.b16 %v95
  %v485 = vunpack.c.l.b16 %v96
  %v486 = vunpack.c.l.b16 %v97
  %v487 = vunpack.c.l.b16 %v98
  %v488 = vunpack.c.l.b16 %v99
  %v489 = vunpack.c.l.b16 %v100
  %v490 = vunpack.c.l.b16 %v101
  %v491 = vunpack.c.l.b16 %v102
  %v492 = vunpack.c.l.b16 %v103
  %v493 = vunpack.c.l.b16 %v104
  %v494 = vunpack.c.l.b16 %v105
  %v495 = vunpack.c.l.b16 %v106
  %v496 = vunpack.c.l.b16 %v107
  %v497 = vunpack.c.l.b16 %v108
  %v498 = vunpack.c.l.b16 %v109
  %v499 = vunpack.c.l.b16 %v110
  %v500 = vunpack.c.l.b16 %v111
  %v501 = vunpack.c.l.b16 %v112
  %v502 = vunpack.c.l.b16 %v113
  %v503 = vunpack.c.l.b16 %v114
  %v504 = vunpack.c.l.b16 %v115
  %v505 = vunpack.c.l.b16 %v116
  %v506 = vunpack.c.l.b16 %v117
  %v507 = vunpack.c.l.b16 %v118
  %v508 = vunpack.c.l.b16 %v119
  %v509 = vunpack.c.l.b16 %v120
  %v510 = vunpack.c.l.b16 %v121
  %v511 = vunpack.c.l.b16 %v122
  %v512 = vunpack.c.l.b16 %v123
  %v513 = vunpack.c.l.b16 %v124
  %v514 = vunpack.c.l.b16 %v125
  %v515 = vunpack.c.l.b16 %v126
  %v516 = vunpack.c.l.b16 %v127
  %v517 = vunpack.c.l.b16 %v128
  %v518 = vunpack.c.l.b16 %v129
  %v519 = vunpack.c.l.b16 %v130
  %v520 = vunpack.c.l.b16 %v131
  %v521 = vunpack.c.l.b16 %v132
  %v522 = vunpack.c.l.b16 %v133
  %v523 = vunpack.c.l.b16 %v134
  %v524 = vunpack.c.l.b16 %v135
  %v525 = vunpack.c.l.b16 %v136
  %v526 = vunpack.c.l.b16 %v137
  %v527 = vunpack.c.l.b16 %v138
  %v528 = vunpack.c.l.b16 %v139
  %v529 = vunpack.c.l.b16 %v140
  %v530 = vunpack.c.l.b16 %v141
  %v531 = vunpack.c.l.b16 %v142
  %v532 = vunpack.c.l.b16 %v143
  %v533 = vunpack.c.l.b16 %v144
  %v534 = vunpack.c.l.b16 %v145
  %v535 = vunpack.c.l.b16 %v146
  %v536 = vunpack.c.l.b16 %v147
  %v537 = vunpack.c.l.b16 %v148
  %v538 = vunpack.c.l.b16 %v149
  %v539 = vunpack.c.l.b16 %v150
  %v540 = vunpack.c.l.b16 %v151
  %v541 = vunpack.c.l.b16 %v152
  %v542 = vunpack.c.l.b16 %v153
  %v543 = vunpack.c.l.b16 %v154
  %v544 = vunpack.c.l.b16 %v155
  %v545 = vunpack.c.l.b16 %v156
  %v546 = vunpack.c.l.b16 %v157
  %v547 = vunpack.c.l.b16 %v158
  %v548 = vunpack.c.l.b16 %v159
  %v549 = vunpack.c.l.b16 %v160
  %v550 = vunpack.c.l.b16 %v161
  %v551 = vunpack.c.l.b16 %v162
  %v552 = vunpack.c.l.b16 %v163
  %v553 = vunpack.c.l.b16 %v164
  %v554 = vunpack.c.l.b16 %v165
  %v555 = vunpack.c.l.b16 %v166
  %v556 = vunpack.c.l.b16 %v167
  %v557 = vunpack.c.l.b16 %v168
  %v558 = vunpack.c.l.b16 %v169
  %v559 = vunpack.c.l.b16 %v170
  %v560 = vunpack.c.l.b16 %v171
  %v561 = vunpack.c.l.b16 %v172
  %v562 = vunpack.c.l.b16 %v173
  %v563 = vunpack.c.l.b16 %v174
  %v564 = vunpack.c.l.b16 %v175
  %v565 = vunpack.c.l.b16 %v176
  %v566 = vunpack.c.l.b16 %v177
  %v567 = vunpack.c.l.b16 %v178
  %v568 = vunpack.c.l.b16 %v179
  %v569 = vunpack.c.l.b16 %v180
  %v570 = vunpack.c.l.b16 %v181
  %v571 = vunpack.c.l.b16 %v182
  %v572 = vunpack.c.l.b16 %v183
  %v573 = vunpack.c.l.b16 %v184
  %v574 = vunpack.c.l.b16 %v185
  %v575 = vunpack.c.l.b16 %v186
  %v576 = vunpack.c.l.b16 %v187
  %v577 = vunpack.c.l.b16 %v188
  %v578 = vunpack.c.l.b16 %v189
  %v579 = vunpack.c.l.b16 %v190
  %v580 = vunpack.c.l.b16 %v191
  %v581 = vunpack.c.l.b16 %v192
  %v582 = vpack.c.b16 %v411, %v410
  %v583 = vpack.c.b16 %v413, %v412
  %v584 = vpack.c.b16 %v415, %v414
  %v585 = vpack.c.b16 %v417, %v416
  %v586 = vpack.c.b16 %v419, %v418
  %v587 = vpack.c.b16 %v421, %v420
  %v588 = vpack.c.b16 %v423, %v422
  %v589 = vpack.c.b16 %v425, %v424
  %v590 = vpack.c.b16 %v427, %v426
  %v591 = vpack.c.b16 %v429, %v428
  %v592 = vpack.c.b16 %v431, %v430
  %v593 = vpack.c.b16 %v433, %v432
  %v594 = vpack.c.b16 %v435, %v434
  %v595 = vpack.c.b16 %v437, %v436
  %v596 = vpack.c.b16 %v439, %v438
  %v597 = vpack.c.b16 %v441, %v440
  %v598 = vpack.c.b16 %v443, %v442
  %v599 = vpack.c.b16 %v445, %v444
  %v600 = vpack.c.b16 %v447, %v446
  %v601 = vpack.c.b16 %v449, %v448
  %v602 = vpack.c.b16 %v451, %v450
  %v603 = vpack.c.b16 %v453, %v452
  %v604 = vpack.c.b16 %v455, %v454
  %v605 = vpack.c.b16 %v457, %v456
  %v606 = vpack.c.b16 %v459, %v458
  %v607 = vpack.c.b16 %v461, %v460
  %v608 = vpack.c.b16 %v463, %v462
  %v609 = vpack.c.b16 %v465, %v464
  %v610 = vpack.c.b16 %v467, %v466
  %v611 = vpack.c.b16 %v469, %v468
  %v612 = vpack.c.b16 %v471, %v470
  %v613 = vpack.c.b16 %v473, %v472
  %v614 = vpack.c.b16 %v475, %v474
  %v615 = vpack.c.b16 %v477, %v476
  %v616 = vpack.c.b16 %v479, %v478
  %v617 = vpack.c.b16 %v481, %v480
  %v618 = vpack.c.b16 %v483, %v482
  %v619 = vpack.c.b16 %v485, %v484
  %v620 = vpack.c.b16 %v487, %v486
  %v621 = vpack.c.b16 %v489, %v488
  %v622 = vpack.c.b16 %v491, %v490
  %v623 = vpack.c.b16 %v493, %v492
  %v624 = vpack.c.b16 %v495, %v494
  %v625 = vpack.c.b16 %v497, %v496
  %v626 = vpack.c.b16 %v499, %v498
  %v627 = vpack.c.b16 %v501, %v500
  %v628 = vpack.c.b16 %v503, %v502
  %v629 = vpack.c.b16 %v505, %v504
  %v630 = vpack.c.b16 %v507, %v506
  %v631 = vpack.c.b16 %v509, %v508
  %v632 = vpack.c.b16 %v511, %v510
  %v633 = vpack.c.b16 %v513, %v512
  %v634 = vpack.c.b16 %v515, %v514
  %v635 = vpack.c.b16 %v517, %v516
  %v636 = vpack.c.b16 %v519, %v518
  %v637 = vpack.c.b16 %v521, %v520
  %v638 = vpack.c.b16 %v523, %v522
  %v639 = vpack.c.b16 %v525, %v524
  %v640 = vpack.c.b16 %v527, %v526
  %v641 = vpack.c.b16 %v529, %v528
  %v642 = vpack.c.b16 %v531, %v530
  %v643 = vpack.c.b16 %v533, %v532
  %v644 = vpack.c.b16 %v535, %v534
  %v645 = vpack.c.b16 %v537, %v536
  %v646 = vpack.c.b16 %v539, %v538
  %v647 = vpack.c.b16 %v541, %v540
  %v648 = vpack.c.b16 %v543, %v542
  %v649 = vpack.c.b16 %v545, %v544
  %v650 = vpack.c.b16 %v547, %v546
  %v651 = vpack.c.b16 %v549, %v548
  %v652 = vpack.c.b16 %v551, %v550
  %v653 = vpack.c.b16 %v553, %v552
  %v654 = vpack.c.b16 %v555, %v554
  %v655 = vpack.c.b16 %v557, %v556
  %v656 = vpack.c.b16 %v559, %v558
  %v657 = vpack.c.b16 %v561, %v560
  %v658 = vpack.c.b16 %v563, %v562
  %v659 = vpack.c.b16 %v565, %v564
  %v660 = vpack.c.b16 %v567, %v566
  %v661 = vpack.c.b16 %v569, %v568
  %v662 = vpack.c.b16 %v571, %v570
  %v663 = vpack.c.b16 %v573, %v572
  %v664 = vpack.c.b16 %v575, %v574
  %v665 = vpack.c.b16 %v577, %v576
  %v666 = vpack.c.b16 %v579, %v578
  %v667 = vpack.c.b16 %v581, %v580
  %vm753 = vcmask 752640
  %v755 = vsel %vm753, %v227, 0
  %vm757 = vcmask 1045504
  %v759 = vsel %vm757, %v667, 0
  %761 = vmatprep.subr.bf16.mxu0 0
  %762 = vmatpush1.bf16.msra.mxu0 %v589
  %763 = vmatprep.subr.bf16.mxu0 0
  %764 = vmatpush1.bf16.msra.mxu0 %v588
  %765 = vmatprep.subr.bf16.mxu0 0
  %766 = vmatpush1.bf16.msra.mxu0 %v587
  %767 = vmatprep.subr.bf16.mxu0 0
  %768 = vmatpush1.bf16.msra.mxu0 %v586
  %769 = vmatprep.subr.bf16.mxu0 0
  %770 = vmatpush1.bf16.msra.mxu0 %v585
  %771 = vmatprep.subr.bf16.mxu0 0
  %772 = vmatpush1.bf16.msra.mxu0 %v584
  %773 = vmatprep.subr.bf16.mxu0 0
  %774 = vmatpush1.bf16.msra.mxu0 %v583
  %775 = vmatprep.subr.bf16.mxu0 0
  %776 = vmatpush1.bf16.msra.mxu0 %v582
  %777 = vmatprep.subr.bf16.mxu0 0
  %778 = vmatpush2.bf16.msra.mxu0 %v597
  %779 = vmatprep.subr.bf16.mxu0 0
  %780 = vmatpush2.bf16.msra.mxu0 %v596
  %781 = vmatprep.subr.bf16.mxu0 0
  %782 = vmatpush2.bf16.msra.mxu0 %v595
  %783 = vmatprep.subr.bf16.mxu0 0
  %784 = vmatpush2.bf16.msra.mxu0 %v594
  %785 = vmatprep.subr.bf16.mxu0 0
  %786 = vmatpush2.bf16.msra.mxu0 %v593
  %787 = vmatprep.subr.bf16.mxu0 0
  %788 = vmatpush2.bf16.msra.mxu0 %v592
  %789 = vmatprep.subr.bf16.mxu0 0
  %790 = vmatpush2.bf16.msra.mxu0 %v591
  %791 = vmatprep.subr.bf16.mxu0 0
  %792 = vmatpush2.bf16.msra.mxu0 %v590
  %793 = vmatprep.mubr.bf16.mxu0 %v218
  %794 = vmatmul.mubr.bf16.gmra.mxu0 %v217
  %v795 = vpop.f32.mrf.mxu0
  %v796 = vadd.f32 %v198, %v795
  %v797 = vpop.f32.mrf.mxu0
  %v798 = vpop.f32.mrf.mxu0
  %v799 = vpop.f32.mrf.mxu0
  %800 = vdwg.mxu0
  %801 = vmatprep.subr.bf16.mxu0 0
  %802 = vmatpush1.bf16.msra.mxu0 %v605
  %803 = vmatprep.subr.bf16.mxu0 0
  %804 = vmatpush1.bf16.msra.mxu0 %v604
  %805 = vmatprep.subr.bf16.mxu0 0
  %806 = vmatpush1.bf16.msra.mxu0 %v603
  %807 = vmatprep.subr.bf16.mxu0 0
  %808 = vmatpush1.bf16.msra.mxu0 %v602
  %809 = vmatprep.subr.bf16.mxu0 0
  %810 = vmatpush1.bf16.msra.mxu0 %v601
  %811 = vmatprep.subr.bf16.mxu0 0
  %812 = vmatpush1.bf16.msra.mxu0 %v600
  %813 = vmatprep.subr.bf16.mxu0 0
  %814 = vmatpush1.bf16.msra.mxu0 %v599
  %815 = vmatprep.subr.bf16.mxu0 0
  %816 = vmatpush1.bf16.msra.mxu0 %v598
  %817 = vmatprep.subr.bf16.mxu0 0
  %818 = vmatpush2.bf16.msra.mxu0 %v613
  %819 = vmatprep.subr.bf16.mxu0 0
  %820 = vmatpush2.bf16.msra.mxu0 %v612
  %821 = vmatprep.subr.bf16.mxu0 0
  %822 = vmatpush2.bf16.msra.mxu0 %v611
  %823 = vmatprep.subr.bf16.mxu0 0
  %824 = vmatpush2.bf16.msra.mxu0 %v610
  %825 = vmatprep.subr.bf16.mxu0 0
  %826 = vmatpush2.bf16.msra.mxu0 %v609
  %827 = vmatprep.subr.bf16.mxu0 0
  %828 = vmatpush2.bf16.msra.mxu0 %v608
  %829 = vmatprep.subr.bf16.mxu0 0
  %830 = vmatpush2.bf16.msra.mxu0 %v607
  %831 = vmatprep.subr.bf16.mxu0 0
  %832 = vmatpush2.bf16.msra.mxu0 %v606
  %833 = vmatprep.mubr.bf16.mxu0 %v220
  %834 = vmatmul.mubr.bf16.gmra.mxu0 %v219
  %v835 = vpop.f32.mrf.mxu0
  %v836 = vadd.f32 %v796, %v835
  %v837 = vpop.f32.mrf.mxu0
  %v838 = vpop.f32.mrf.mxu0
  %v839 = vpop.f32.mrf.mxu0
  %840 = vdwg.mxu0
  %841 = vmatprep.subr.bf16.mxu0 0
  %842 = vmatpush1.bf16.msra.mxu0 %v621
  %843 = vmatprep.subr.bf16.mxu0 0
  %844 = vmatpush1.bf16.msra.mxu0 %v620
  %845 = vmatprep.subr.bf16.mxu0 0
  %846 = vmatpush1.bf16.msra.mxu0 %v619
  %847 = vmatprep.subr.bf16.mxu0 0
  %848 = vmatpush1.bf16.msra.mxu0 %v618
  %849 = vmatprep.subr.bf16.mxu0 0
  %850 = vmatpush1.bf16.msra.mxu0 %v617
  %851 = vmatprep.subr.bf16.mxu0 0
  %852 = vmatpush1.bf16.msra.mxu0 %v616
  %853 = vmatprep.subr.bf16.mxu0 0
  %854 = vmatpush1.bf16.msra.mxu0 %v615
  %855 = vmatprep.subr.bf16.mxu0 0
  %856 = vmatpush1.bf16.msra.mxu0 %v614
  %857 = vmatprep.subr.bf16.mxu0 0
  %858 = vmatpush2.bf16.msra.mxu0 %v629
  %859 = vmatprep.subr.bf16.mxu0 0
  %860 = vmatpush2.bf16.msra.mxu0 %v628
  %861 = vmatprep.subr.bf16.mxu0 0
  %862 = vmatpush2.bf16.msra.mxu0 %v627
  %863 = vmatprep.subr.bf16.mxu0 0
  %864 = vmatpush2.bf16.msra.mxu0 %v626
  %865 = vmatprep.subr.bf16.mxu0 0
  %866 = vmatpush2.bf16.msra.mxu0 %v625
  %867 = vmatprep.subr.bf16.mxu0 0
  %868 = vmatpush2.bf16.msra.mxu0 %v624
  %869 = vmatprep.subr.bf16.mxu0 0
  %870 = vmatpush2.bf16.msra.mxu0 %v623
  %871 = vmatprep.subr.bf16.mxu0 0
  %872 = vmatpush2.bf16.msra.mxu0 %v622
  %873 = vmatprep.mubr.bf16.mxu0 %v222
  %874 = vmatmul.mubr.bf16.gmra.mxu0 %v221
  %v875 = vpop.f32.mrf.mxu0
  %v876 = vadd.f32 %v836, %v875
  %v877 = vpop.f32.mrf.mxu0
  %v878 = vpop.f32.mrf.mxu0
  %v879 = vpop.f32.mrf.mxu0
  %880 = vdwg.mxu0
  %881 = vmatprep.subr.bf16.mxu0 0
  %882 = vmatpush1.bf16.msra.mxu0 %v637
  %883 = vmatprep.subr.bf16.mxu0 0
  %884 = vmatpush1.bf16.msra.mxu0 %v636
  %885 = vmatprep.subr.bf16.mxu0 0
  %886 = vmatpush1.bf16.msra.mxu0 %v635
  %887 = vmatprep.subr.bf16.mxu0 0
  %888 = vmatpush1.bf16.msra.mxu0 %v634
  %889 = vmatprep.subr.bf16.mxu0 0
  %890 = vmatpush1.bf16.msra.mxu0 %v633
  %891 = vmatprep.subr.bf16.mxu0 0
  %892 = vmatpush1.bf16.msra.mxu0 %v632
  %893 = vmatprep.subr.bf16.mxu0 0
  %894 = vmatpush1.bf16.msra.mxu0 %v631
  %895 = vmatprep.subr.bf16.mxu0 0
  %896 = vmatpush1.bf16.msra.mxu0 %v630
  %897 = vmatprep.subr.bf16.mxu0 0
  %898 = vmatpush2.bf16.msra.mxu0 %v645
  %899 = vmatprep.subr.bf16.mxu0 0
  %900 = vmatpush2.bf16.msra.mxu0 %v644
  %901 = vmatprep.subr.bf16.mxu0 0
  %902 = vmatpush2.bf16.msra.mxu0 %v643
  %903 = vmatprep.subr.bf16.mxu0 0
  %904 = vmatpush2.bf16.msra.mxu0 %v642
  %905 = vmatprep.subr.bf16.mxu0 0
  %906 = vmatpush2.bf16.msra.mxu0 %v641
  %907 = vmatprep.subr.bf16.mxu0 0
  %908 = vmatpush2.bf16.msra.mxu0 %v640
  %909 = vmatprep.subr.bf16.mxu0 0
  %910 = vmatpush2.bf16.msra.mxu0 %v639
  %911 = vmatprep.subr.bf16.mxu0 0
  %912 = vmatpush2.bf16.msra.mxu0 %v638
  %913 = vmatprep.mubr.bf16.mxu0 %v224
  %914 = vmatmul.mubr.bf16.gmra.mxu0 %v223
  %v915 = vpop.f32.mrf.mxu0
  %v916 = vadd.f32 %v876, %v915
  %v917 = vpop.f32.mrf.mxu0
  %v918 = vpop.f32.mrf.mxu0
  %v919 = vpop.f32.mrf.mxu0
  %920 = vdwg.mxu0
  %921 = vmatprep.subr.bf16.mxu0 0
  %922 = vmatpush1.bf16.msra.mxu0 %v653
  %923 = vmatprep.subr.bf16.mxu0 0
  %924 = vmatpush1.bf16.msra.mxu0 %v652
  %925 = vmatprep.subr.bf16.mxu0 0
  %926 = vmatpush1.bf16.msra.mxu0 %v651
  %927 = vmatprep.subr.bf16.mxu0 0
  %928 = vmatpush1.bf16.msra.mxu0 %v650
  %929 = vmatprep.subr.bf16.mxu0 0
  %930 = vmatpush1.bf16.msra.mxu0 %v649
  %931 = vmatprep.subr.bf16.mxu0 0
  %932 = vmatpush1.bf16.msra.mxu0 %v648
  %933 = vmatprep.subr.bf16.mxu0 0
  %934 = vmatpush1.bf16.msra.mxu0 %v647
  %935 = vmatprep.subr.bf16.mxu0 0
  %936 = vmatpush1.bf16.msra.mxu0 %v646
  %937 = vmatprep.subr.bf16.mxu0 0
  %938 = vmatpush2.bf16.msra.mxu0 %v661
  %939 = vmatprep.subr.bf16.mxu0 0
  %940 = vmatpush2.bf16.msra.mxu0 %v660
  %941 = vmatprep.subr.bf16.mxu0 0
  %942 = vmatpush2.bf16.msra.mxu0 %v659
  %943 = vmatprep.subr.bf16.mxu0 0
  %944 = vmatpush2.bf16.msra.mxu0 %v658
  %945 = vmatprep.subr.bf16.mxu0 0
  %946 = vmatpush2.bf16.msra.mxu0 %v657
  %947 = vmatprep.subr.bf16.mxu0 0
  %948 = vmatpush2.bf16.msra.mxu0 %v656
  %949 = vmatprep.subr.bf16.mxu0 0
  %950 = vmatpush2.bf16.msra.mxu0 %v655
  %951 = vmatprep.subr.bf16.mxu0 0
  %952 = vmatpush2.bf16.msra.mxu0 %v654
  %953 = vmatprep.mubr.bf16.mxu0 %v226
  %954 = vmatmul.mubr.bf16.gmra.mxu0 %v225
  %v955 = vpop.f32.mrf.mxu0
  %v956 = vadd.f32 %v916, %v955
  %v957 = vpop.f32.mrf.mxu0
  %v958 = vpop.f32.mrf.mxu0
  %v959 = vpop.f32.mrf.mxu0
  %960 = vdwg.mxu0
  %961 = vmatprep.subr.bf16.mxu0 0
  %962 = vmatpush1.bf16.msra.mxu0 0
  %963 = vmatprep.subr.bf16.mxu0 0
  %964 = vmatpush1.bf16.msra.mxu0 0
  %965 = vmatprep.subr.bf16.mxu0 0
  %966 = vmatpush1.bf16.msra.mxu0 %v759
  %967 = vmatprep.subr.bf16.mxu0 0
  %968 = vmatpush1.bf16.msra.mxu0 %v666
  %969 = vmatprep.subr.bf16.mxu0 0
  %970 = vmatpush1.bf16.msra.mxu0 %v665
  %971 = vmatprep.subr.bf16.mxu0 0
  %972 = vmatpush1.bf16.msra.mxu0 %v664
  %973 = vmatprep.subr.bf16.mxu0 0
  %974 = vmatpush1.bf16.msra.mxu0 %v663
  %975 = vmatprep.subr.bf16.mxu0 0
  %976 = vmatpush1.bf16.msra.mxu0 %v662
  %977 = vmatprep.subr.bf16.mxu0 0
  %978 = vmatpush2.bf16.msra.mxu0 0
  %979 = vmatprep.subr.bf16.mxu0 0
  %980 = vmatpush2.bf16.msra.mxu0 0
  %981 = vmatprep.subr.bf16.mxu0 0
  %982 = vmatpush2.bf16.msra.mxu0 0
  %983 = vmatprep.subr.bf16.mxu0 0
  %984 = vmatpush2.bf16.msra.mxu0 0
  %985 = vmatprep.subr.bf16.mxu0 0
  %986 = vmatpush2.bf16.msra.mxu0 0
  %987 = vmatprep.subr.bf16.mxu0 0
  %988 = vmatpush2.bf16.msra.mxu0 0
  %989 = vmatprep.subr.bf16.mxu0 0
  %990 = vmatpush2.bf16.msra.mxu0 0
  %991 = vmatprep.subr.bf16.mxu0 0
  %992 = vmatpush2.bf16.msra.mxu0 0
  %993 = vmatprep.mubr.bf16.mxu0 0
  %994 = vmatmul.mubr.bf16.gmra.mxu0 %v755
  %v995 = vpop.f32.mrf.mxu0
  %v996 = vadd.f32 %v956, %v995
  %v997 = vpop.f32.mrf.mxu0
  %v998 = vpop.f32.mrf.mxu0
  %v999 = vpop.f32.mrf.mxu0
  %1000 = vdwg.mxu0
  %vm1001 = vcmask 523264
  %v1002 = vsel %vm1001, %v996, -inf
  %1003 = vmax.xlane.f32.xlu0 %v1002
  %v1004 = vpop.xlane.xlu0 %1003
  %v1005 = vsub.f32 %v996, %v1004
  %v1006 = vmul.f32 %v1005, 1.442695
  %v1007 = vpow.pop %v1006
  %v1008 = vsel %vm1001, %v1007, 0.0
  %1009 = vadd.xlane.f32.xlu0 %v1008
  %v1010 = vpop.xlane.xlu0 %1009
  %v1011 = vlog2.pop %v1010
  %v1012 = vmul.f32 %v1011, 0.6931472
  %v1013 = vadd.f32 %v1004, %v1012
  %v1014 = vsub.f32 %v996, %v1013
  %1015 = vst.msk [vmem:[%s3] sm:$0xff] %vm1001, %v1014
  // Predicated region
  $region14: #{net_forward.9} parent=0 // pred_check
    _
  $region15: #{net_forward.9} parent=0 // pred_check_branch
    %1017 = sbr.rel (0) target = $region17
  $region16: #{net_forward.9} parent=0 // pred_region
    _
  $region17: #{net_forward.9} parent=0 // pred_fallthru
    _
  // Predicated region
  $region18: #{net_forward.9} parent=0 // pred_check
    _
  $region19: #{net_forward.9} parent=0 // pred_check_branch
    %1019 = sbr.rel (0) target = $region21
  $region20: #{net_forward.9} parent=0 // pred_region
    _
  $region21: #{net_forward.9} parent=0 // pred_fallthru
    _

</llo_original>
